<compile_context>
chip_gen: v5e
topology: v5e:2x2
jax: 0.10.0
libtpu: 0.0.40
codegen_flags: <defaults>
</compile_context>

<pallas_src>
import functools
import math

import numpy as np
import jax
import jax.numpy as jnp
from jax.experimental import pallas as pl
from jax.experimental.pallas import tpu as pltpu


def _round_up(v, m):
    return ((v + m - 1) // m) * m


# ----------------------------- Pallas kernels --------------------------------
def _matmul_bias_act_kernel(x_ref, w_ref, b_ref, o_ref, *, relu):
    """One row tile of  o = act(x @ w + b).  x:(TM,K)  w:(K,Np)  b:(1,Np)."""
    acc = jnp.dot(x_ref[...], w_ref[...], preferred_element_type=jnp.float32)
    acc = acc + b_ref[...]
    if relu:
        acc = jnp.maximum(acc, 0.0)
    o_ref[...] = acc.astype(o_ref.dtype)


def matmul_bias_act(x, w, b, *, relu):
    """Row-tiled fused (x @ w + b) with optional ReLU on the MXU.

    x: (M, K) f32,  w: (K, Nc) f32,  b: (Nc,) f32  ->  (M, Nc) f32.
    Cout is zero-padded to a multiple of 128 (lane-dense stores); rows are
    tiled with TM <= 512 and the grid axis is parallel (no accumulator).
    """
    M, K = x.shape
    Nc = w.shape[1]
    Np = _round_up(max(Nc, 128), 128)
    if Np != Nc:
        w = jnp.pad(w, ((0, 0), (0, Np - Nc)))
        b = jnp.pad(b, ((0, Np - Nc),))
    b2 = b.reshape(1, Np)

    TM = min(512, _round_up(M, 8))
    Mp = _round_up(M, TM)
    if Mp != M:
        x = jnp.pad(x, ((0, Mp - M), (0, 0)))

    out = pl.pallas_call(
        functools.partial(_matmul_bias_act_kernel, relu=relu),
        out_shape=jax.ShapeDtypeStruct((Mp, Np), jnp.float32),
        grid_spec=pltpu.PrefetchScalarGridSpec(
            num_scalar_prefetch=0,
            grid=(Mp // TM,),
            in_specs=[
                pl.BlockSpec((TM, K), lambda i: (i, 0)),
                pl.BlockSpec((K, Np), lambda i: (0, 0)),
                pl.BlockSpec((1, Np), lambda i: (0, 0)),
            ],
            out_specs=pl.BlockSpec((TM, Np), lambda i: (i, 0)),
        ),
        compiler_params=pltpu.CompilerParams(
            dimension_semantics=("parallel",)),
    )(x, w, b2)
    return out[:M, :Nc]


def _maxpool_kernel(v0_ref, v1_ref, v2_ref, v3_ref, base_ref,
                    out_ref, idx_ref, *, w_in):
    """2x2 max pool: max + first-occurrence argmax (PyTorch tie-break)."""
    best = v0_ref[...]
    delta = jnp.zeros(best.shape, jnp.int32)
    for v_ref, d in ((v1_ref, 1), (v2_ref, w_in), (v3_ref, w_in + 1)):
        v = v_ref[...]
        upd = v > best
        best = jnp.where(upd, v, best)
        delta = jnp.where(upd, jnp.int32(d), delta)
    out_ref[...] = best
    idx_ref[...] = base_ref[...] + delta


def maxpool2x2_with_indices(x_nhwc):
    """MaxPool2d(kernel=2, stride=2, return_indices=True), NHWC layout.

    Returns (pooled (N,Ho,Wo,C) f32, idx (N,Ho,Wo,C) int32) where idx is the
    flat index into the H*W spatial plane (PyTorch convention).
    """
    N, H, W, C = x_nhwc.shape
    Ho, Wo = H // 2, W // 2
    M = N * Ho * Wo
    v0 = x_nhwc[:, 0::2, 0::2, :].reshape(M, C)
    v1 = x_nhwc[:, 0::2, 1::2, :].reshape(M, C)
    v2 = x_nhwc[:, 1::2, 0::2, :].reshape(M, C)
    v3 = x_nhwc[:, 1::2, 1::2, :].reshape(M, C)
    base = (2 * jnp.arange(Ho, dtype=jnp.int32)[:, None] * W
            + 2 * jnp.arange(Wo, dtype=jnp.int32)[None, :])
    base = jnp.broadcast_to(base[None], (N, Ho, Wo)).reshape(M, 1)

    TM = min(512, _round_up(M, 8))
    Mp = _round_up(M, TM)
    if Mp != M:
        pad = ((0, Mp - M), (0, 0))
        v0, v1, v2, v3 = (jnp.pad(v, pad) for v in (v0, v1, v2, v3))
        base = jnp.pad(base, pad)

    row_spec = pl.BlockSpec((TM, C), lambda i: (i, 0))
    pooled, idx = pl.pallas_call(
        functools.partial(_maxpool_kernel, w_in=W),
        out_shape=(jax.ShapeDtypeStruct((Mp, C), jnp.float32),
                   jax.ShapeDtypeStruct((Mp, C), jnp.int32)),
        grid_spec=pltpu.PrefetchScalarGridSpec(
            num_scalar_prefetch=0,
            grid=(Mp // TM,),
            in_specs=[row_spec, row_spec, row_spec, row_spec,
                      pl.BlockSpec((TM, 1), lambda i: (i, 0))],
            out_specs=(row_spec, row_spec),
        ),
        compiler_params=pltpu.CompilerParams(
            dimension_semantics=("parallel",)),
    )(v0, v1, v2, v3, base)
    pooled = pooled[:M].reshape(N, Ho, Wo, C)
    idx = idx[:M].reshape(N, Ho, Wo, C)
    return pooled, idx


# ------------------------- conv wrappers (JAX glue) ---------------------------
def conv1x1(x_nhwc, w_mat, b, *, relu):
    N, H, W, C = x_nhwc.shape
    out = matmul_bias_act(x_nhwc.reshape(N * H * W, C), w_mat, b, relu=relu)
    return out.reshape(N, H, W, w_mat.shape[1])


def conv3x3_reflect(x_nhwc, w_mat, b, *, relu=True):
    """ReflectionPad2d(1) + Conv2d(3x3, stride 1) + optional ReLU (im2col)."""
    N, H, W, C = x_nhwc.shape
    xp = jnp.pad(x_nhwc, ((0, 0), (1, 1), (1, 1), (0, 0)), mode="reflect")
    patches = jnp.concatenate(
        [xp[:, di:di + H, dj:dj + W, :] for di in range(3) for dj in range(3)],
        axis=-1).reshape(N * H * W, 9 * C)
    out = matmul_bias_act(patches, w_mat, b, relu=relu)
    return out.reshape(N, H, W, w_mat.shape[1])


# -------------------------------- parameters ----------------------------------
def _conv_params(key, cin, cout, ksize):
    """PyTorch Conv2d default init; weight stored as (k*k*cin, cout) matmul layout."""
    kw, kb = jax.random.split(key)
    fan_in = cin * ksize * ksize
    bound = 1.0 / math.sqrt(fan_in)
    w = jax.random.uniform(kw, (ksize * ksize * cin, cout),
                           minval=-bound, maxval=bound, dtype=jnp.float32)
    b = jax.random.uniform(kb, (cout,), minval=-bound, maxval=bound,
                           dtype=jnp.float32)
    return w, b


def init_params(key, level):
    cfg = [("conv0", 3, 3, 1), ("conv1_1", 3, 64, 3)]
    if level >= 2:
        cfg += [("conv1_2", 64, 64, 3), ("conv2_1", 64, 128, 3)]
    if level >= 3:
        cfg += [("conv2_2", 128, 128, 3), ("conv3_1", 128, 256, 3)]
    if level >= 4:
        cfg += [("conv3_2", 256, 256, 3), ("conv3_3", 256, 256, 3),
                ("conv3_4", 256, 256, 3), ("conv4_1", 256, 512, 3)]
    keys = jax.random.split(key, len(cfg))
    return {name: _conv_params(k, cin, cout, ks)
            for k, (name, cin, cout, ks) in zip(keys, cfg)}


# --------------------------------- forward ------------------------------------
def _to_nchw(x):
    return jnp.transpose(x, (0, 3, 1, 2))


def _nchw_size(x_nhwc):
    n, h, w, c = x_nhwc.shape
    return (n, c, h, w)


def vgg_encoder_forward(x_nchw, params, level):
    """Mirrors VGGEncoder.forward; x_nchw: (N, 3, H, W)."""
    x = jnp.transpose(x_nchw, (0, 2, 3, 1))            # NHWC, C on lanes
    out = conv1x1(x, *params["conv0"], relu=False)
    out = conv3x3_reflect(out, *params["conv1_1"], relu=True)
    if level < 2:
        return _to_nchw(out)

    pool1 = conv3x3_reflect(out, *params["conv1_2"], relu=True)
    pool1_size = _nchw_size(pool1)
    out, pool1_idx = maxpool2x2_with_indices(pool1)
    out = conv3x3_reflect(out, *params["conv2_1"], relu=True)
    if level < 3:
        return _to_nchw(out), _to_nchw(pool1_idx), pool1_size

    pool2 = conv3x3_reflect(out, *params["conv2_2"], relu=True)
    pool2_size = _nchw_size(pool2)
    out, pool2_idx = maxpool2x2_with_indices(pool2)
    out = conv3x3_reflect(out, *params["conv3_1"], relu=True)
    if level < 4:
        return (_to_nchw(out), _to_nchw(pool1_idx), pool1_size,
                _to_nchw(pool2_idx), pool2_size)

    out = conv3x3_reflect(out, *params["conv3_2"], relu=True)
    out = conv3x3_reflect(out, *params["conv3_3"], relu=True)
    pool3 = conv3x3_reflect(out, *params["conv3_4"], relu=True)
    pool3_size = _nchw_size(pool3)
    out, pool3_idx = maxpool2x2_with_indices(pool3)
    out = conv3x3_reflect(out, *params["conv4_1"], relu=True)
    return (_to_nchw(out), _to_nchw(pool1_idx), pool1_size,
            _to_nchw(pool2_idx), pool2_size,
            _to_nchw(pool3_idx), pool3_size)


# ----------------------- pure-JAX references (checks) -------------------------
def _ref_forward_final(x_nchw, params, level):
    """Final feature map only, computed with plain jnp ops (no Pallas)."""
    hp = jax.lax.Precision.HIGHEST

    def mm(xx, w, b, relu):
        o = jnp.dot(xx, w, precision=hp) + b[None, :]
        return jnp.maximum(o, 0.0) if relu else o

    def conv3(xx, w, b):
        N, H, W, C = xx.shape
        xp = jnp.pad(xx, ((0, 0), (1, 1), (1, 1), (0, 0)), mode="reflect")
        p = jnp.concatenate(
            [xp[:, di:di + H, dj:dj + W, :] for di in range(3) for dj in range(3)],
            axis=-1).reshape(N * H * W, 9 * C)
        return mm(p, w, b, True).reshape(N, H, W, w.shape[1])

    def pool(xx):
        N, H, W, C = xx.shape
        return jnp.max(xx.reshape(N, H // 2, 2, W // 2, 2, C), axis=(2, 4))

    x = jnp.transpose(x_nchw, (0, 2, 3, 1))
    N, H, W, _ = x.shape
    out = mm(x.reshape(N * H * W, 3), *params["conv0"], False).reshape(N, H, W, 3)
    out = conv3(out, *params["conv1_1"])
    if level < 2:
        return _to_nchw(out)
    out = pool(conv3(out, *params["conv1_2"]))
    out = conv3(out, *params["conv2_1"])
    if level < 3:
        return _to_nchw(out)
    out = pool(conv3(out, *params["conv2_2"]))
    out = conv3(out, *params["conv3_1"])
    if level < 4:
        return _to_nchw(out)
    out = conv3(out, *params["conv3_2"])
    out = conv3(out, *params["conv3_3"])
    out = pool(conv3(out, *params["conv3_4"]))
    out = conv3(out, *params["conv4_1"])
    return _to_nchw(out)


def _ref_maxpool_with_indices(x):
    N, H, W, C = x.shape
    Ho, Wo = H // 2, W // 2
    cand = [x[:, 0::2, 0::2, :], x[:, 0::2, 1::2, :],
            x[:, 1::2, 0::2, :], x[:, 1::2, 1::2, :]]
    deltas = [0, 1, W, W + 1]
    best = cand[0]
    delta = jnp.zeros(best.shape, jnp.int32)
    for k in range(1, 4):
        upd = cand[k] > best
        best = jnp.where(upd, cand[k], best)
        delta = jnp.where(upd, jnp.int32(deltas[k]), delta)
    base = (2 * jnp.arange(Ho, dtype=jnp.int32)[:, None] * W
            + 2 * jnp.arange(Wo, dtype=jnp.int32)[None, :])
    return best, base[None, :, :, None] + delta


# ------------------------------------ main -------------------------------------
if __name__ == "__main__":
    LEVEL = 4
    key = jax.random.PRNGKey(0)
    kp, kx = jax.random.split(key)
    params = init_params(kp, LEVEL)
    x = jax.random.normal(kx, (2, 3, 16, 16), dtype=jnp.float32)

    fwd = jax.jit(lambda xx: vgg_encoder_forward(xx, params, LEVEL))
    outs = jax.block_until_ready(fwd(x))
    out, p1_idx, p1_size, p2_idx, p2_size, p3_idx, p3_size = outs

    # shape checks (match PyTorch VGGEncoder(level=4) on a (2,3,16,16) input)
    assert out.shape == (2, 512, 2, 2)
    assert p1_idx.shape == (2, 64, 8, 8)
    assert tuple(int(v) for v in p1_size) == (2, 64, 16, 16)
    assert p2_idx.shape == (2, 128, 4, 4)
    assert tuple(int(v) for v in p2_size) == (2, 128, 8, 8)
    assert p3_idx.shape == (2, 256, 2, 2)
    assert tuple(int(v) for v in p3_size) == (2, 256, 4, 4)
    assert bool(jnp.all(jnp.isfinite(out)))
    assert bool(jnp.all((p1_idx >= 0) & (p1_idx < 16 * 16)))
    assert bool(jnp.all((p2_idx >= 0) & (p2_idx < 8 * 8)))
    assert bool(jnp.all((p3_idx >= 0) & (p3_idx < 4 * 4)))

    # numeric check of the full conv/pool chain against a plain-JAX reference
    ref_out = jax.block_until_ready(_ref_forward_final(x, params, LEVEL))
    np.testing.assert_allclose(np.asarray(out), np.asarray(ref_out),
                               rtol=2e-3, atol=2e-3)

    # unit check of the max-pool kernel (values + indices, exact)
    xt = jax.random.normal(jax.random.PRNGKey(1), (2, 8, 8, 64), jnp.float32)
    pv, pidx = maxpool2x2_with_indices(xt)
    rv, ridx = _ref_maxpool_with_indices(xt)
    assert bool(jnp.all(pv == rv))
    assert bool(jnp.all(pidx == ridx))

    print("KERNEL_OK")
</pallas_src>

<mosaic_0001>
module attributes {stable_mosaic.version = 11 : i64} {
  func.func @_matmul_bias_act_kernel(%arg0: i32, %arg1: memref<512x3xf32, #tpu.memory_space<vmem>>, %arg2: memref<3x128xf32, #tpu.memory_space<vmem>>, %arg3: memref<1x128xf32, #tpu.memory_space<vmem>>, %arg4: memref<512x128xf32, #tpu.memory_space<vmem>>) attributes {dimension_semantics = [#tpu.dimension_semantics<parallel>], iteration_bounds = array<i64: 1>, scalar_prefetch = 0 : i64, scratch_operands = 0 : i64, tpu.core_type = #tpu.core_type<tc>, window_params = [{transform_indices = @transform_0, window_bounds = array<i64: 512, 3>}, {pipeline_mode = #tpu.pipeline_mode<synchronous>, transform_indices = @transform_1, window_bounds = array<i64: 3, 128>}, {pipeline_mode = #tpu.pipeline_mode<synchronous>, transform_indices = @transform_2, window_bounds = array<i64: 1, 128>}, {transform_indices = @transform_3, window_bounds = array<i64: 512, 128>}]} {
    %c0 = arith.constant 0 : index
    %c0_0 = arith.constant 0 : index
    %0 = vector.load %arg1[%c0, %c0_0] : memref<512x3xf32, #tpu.memory_space<vmem>>, vector<512x3xf32>
    %c0_1 = arith.constant 0 : index
    %c0_2 = arith.constant 0 : index
    %1 = vector.load %arg2[%c0_1, %c0_2] : memref<3x128xf32, #tpu.memory_space<vmem>>, vector<3x128xf32>
    %cst = arith.constant dense<0.000000e+00> : vector<512x128xf32>
    %2 = tpu.matmul %0, %1, %cst {dimension_numbers = #tpu.dot_dimension_numbers<[1], [0], [0], [1], [0, 0, 1, 1], [], []>} : vector<512x3xf32>, vector<3x128xf32>, vector<512x128xf32> -> vector<512x128xf32>
    %c0_3 = arith.constant 0 : index
    %c0_4 = arith.constant 0 : index
    %3 = vector.load %arg3[%c0_3, %c0_4] : memref<1x128xf32, #tpu.memory_space<vmem>>, vector<1x128xf32>
    %4 = vector.broadcast %3 : vector<1x128xf32> to vector<512x128xf32>
    %5 = arith.addf %2, %4 : vector<512x128xf32>
    %c0_5 = arith.constant 0 : index
    %c0_6 = arith.constant 0 : index
    %6 = vector.load %arg4[%c0_5, %c0_6] : memref<512x128xf32, #tpu.memory_space<vmem>>, vector<512x128xf32>
    tpu.vector_store %arg4[%c0_5, %c0_6], %5 {strides = array<i32>} : memref<512x128xf32, #tpu.memory_space<vmem>>, vector<512x128xf32>,
    return
  }
  func.func @transform_0(%arg0: i32) -> (i32, i32) {
    %c0_i32 = arith.constant 0 : i32
    %c0_i32_0 = arith.constant 0 : i32
    return %arg0, %c0_i32 : i32, i32
  }
  func.func @transform_1(%arg0: i32) -> (i32, i32) {
    %c0_i32 = arith.constant 0 : i32
    %c0_i32_0 = arith.constant 0 : i32
    %c0_i32_1 = arith.constant 0 : i32
    return %c0_i32, %c0_i32_0 : i32, i32
  }
  func.func @transform_2(%arg0: i32) -> (i32, i32) {
    %c0_i32 = arith.constant 0 : i32
    %c0_i32_0 = arith.constant 0 : i32
    %c0_i32_1 = arith.constant 0 : i32
    return %c0_i32, %c0_i32_0 : i32, i32
  }
  func.func @transform_3(%arg0: i32) -> (i32, i32) {
    %c0_i32 = arith.constant 0 : i32
    %c0_i32_0 = arith.constant 0 : i32
    return %arg0, %c0_i32 : i32, i32
  }
}

module attributes {stable_mosaic.version = 11 : i64} {
  func.func @_matmul_bias_act_kernel(%arg0: i32, %arg1: memref<512x27xf32, #tpu.memory_space<vmem>>, %arg2: memref<27x128xf32, #tpu.memory_space<vmem>>, %arg3: memref<1x128xf32, #tpu.memory_space<vmem>>, %arg4: memref<512x128xf32, #tpu.memory_space<vmem>>) attributes {dimension_semantics = [#tpu.dimension_semantics<parallel>], iteration_bounds = array<i64: 1>, scalar_prefetch = 0 : i64, scratch_operands = 0 : i64, tpu.core_type = #tpu.core_type<tc>, window_params = [{transform_indices = @transform_0, window_bounds = array<i64: 512, 27>}, {pipeline_mode = #tpu.pipeline_mode<synchronous>, transform_indices = @transform_1, window_bounds = array<i64: 27, 128>}, {pipeline_mode = #tpu.pipeline_mode<synchronous>, transform_indices = @transform_2, window_bounds = array<i64: 1, 128>}, {transform_indices = @transform_3, window_bounds = array<i64: 512, 128>}]} {
    %c0 = arith.constant 0 : index
    %c0_0 = arith.constant 0 : index
    %0 = vector.load %arg1[%c0, %c0_0] : memref<512x27xf32, #tpu.memory_space<vmem>>, vector<512x27xf32>
    %c0_1 = arith.constant 0 : index
    %c0_2 = arith.constant 0 : index
    %1 = vector.load %arg2[%c0_1, %c0_2] : memref<27x128xf32, #tpu.memory_space<vmem>>, vector<27x128xf32>
    %cst = arith.constant dense<0.000000e+00> : vector<512x128xf32>
    %2 = tpu.matmul %0, %1, %cst {dimension_numbers = #tpu.dot_dimension_numbers<[1], [0], [0], [1], [0, 0, 1, 1], [], []>} : vector<512x27xf32>, vector<27x128xf32>, vector<512x128xf32> -> vector<512x128xf32>
    %c0_3 = arith.constant 0 : index
    %c0_4 = arith.constant 0 : index
    %3 = vector.load %arg3[%c0_3, %c0_4] : memref<1x128xf32, #tpu.memory_space<vmem>>, vector<1x128xf32>
    %4 = vector.broadcast %3 : vector<1x128xf32> to vector<512x128xf32>
    %5 = arith.addf %2, %4 : vector<512x128xf32>
    %cst_5 = arith.constant 0.000000e+00 : f32
    %6 = vector.broadcast %cst_5 : f32 to vector<512x128xf32>
    %7 = arith.maximumf %5, %6 : vector<512x128xf32>
    %c0_6 = arith.constant 0 : index
    %c0_7 = arith.constant 0 : index
    %8 = vector.load %arg4[%c0_6, %c0_7] : memref<512x128xf32, #tpu.memory_space<vmem>>, vector<512x128xf32>
    tpu.vector_store %arg4[%c0_6, %c0_7], %7 {strides = array<i32>} : memref<512x128xf32, #tpu.memory_space<vmem>>, vector<512x128xf32>,
    return
  }
  func.func @transform_0(%arg0: i32) -> (i32, i32) {
    %c0_i32 = arith.constant 0 : i32
    %c0_i32_0 = arith.constant 0 : i32
    return %arg0, %c0_i32 : i32, i32
  }
  func.func @transform_1(%arg0: i32) -> (i32, i32) {
    %c0_i32 = arith.constant 0 : i32
    %c0_i32_0 = arith.constant 0 : i32
    %c0_i32_1 = arith.constant 0 : i32
    return %c0_i32, %c0_i32_0 : i32, i32
  }
  func.func @transform_2(%arg0: i32) -> (i32, i32) {
    %c0_i32 = arith.constant 0 : i32
    %c0_i32_0 = arith.constant 0 : i32
    %c0_i32_1 = arith.constant 0 : i32
    return %c0_i32, %c0_i32_0 : i32, i32
  }
  func.func @transform_3(%arg0: i32) -> (i32, i32) {
    %c0_i32 = arith.constant 0 : i32
    %c0_i32_0 = arith.constant 0 : i32
    return %arg0, %c0_i32 : i32, i32
  }
}

module attributes {stable_mosaic.version = 11 : i64} {
  func.func @_matmul_bias_act_kernel(%arg0: i32, %arg1: memref<512x576xf32, #tpu.memory_space<vmem>>, %arg2: memref<576x128xf32, #tpu.memory_space<vmem>>, %arg3: memref<1x128xf32, #tpu.memory_space<vmem>>, %arg4: memref<512x128xf32, #tpu.memory_space<vmem>>) attributes {dimension_semantics = [#tpu.dimension_semantics<parallel>], iteration_bounds = array<i64: 1>, scalar_prefetch = 0 : i64, scratch_operands = 0 : i64, tpu.core_type = #tpu.core_type<tc>, window_params = [{transform_indices = @transform_0, window_bounds = array<i64: 512, 576>}, {pipeline_mode = #tpu.pipeline_mode<synchronous>, transform_indices = @transform_1, window_bounds = array<i64: 576, 128>}, {pipeline_mode = #tpu.pipeline_mode<synchronous>, transform_indices = @transform_2, window_bounds = array<i64: 1, 128>}, {transform_indices = @transform_3, window_bounds = array<i64: 512, 128>}]} {
    %c0 = arith.constant 0 : index
    %c0_0 = arith.constant 0 : index
    %0 = vector.load %arg1[%c0, %c0_0] : memref<512x576xf32, #tpu.memory_space<vmem>>, vector<512x576xf32>
    %c0_1 = arith.constant 0 : index
    %c0_2 = arith.constant 0 : index
    %1 = vector.load %arg2[%c0_1, %c0_2] : memref<576x128xf32, #tpu.memory_space<vmem>>, vector<576x128xf32>
    %cst = arith.constant dense<0.000000e+00> : vector<512x128xf32>
    %2 = tpu.matmul %0, %1, %cst {dimension_numbers = #tpu.dot_dimension_numbers<[1], [0], [0], [1], [0, 0, 1, 1], [], []>} : vector<512x576xf32>, vector<576x128xf32>, vector<512x128xf32> -> vector<512x128xf32>
    %c0_3 = arith.constant 0 : index
    %c0_4 = arith.constant 0 : index
    %3 = vector.load %arg3[%c0_3, %c0_4] : memref<1x128xf32, #tpu.memory_space<vmem>>, vector<1x128xf32>
    %4 = vector.broadcast %3 : vector<1x128xf32> to vector<512x128xf32>
    %5 = arith.addf %2, %4 : vector<512x128xf32>
    %cst_5 = arith.constant 0.000000e+00 : f32
    %6 = vector.broadcast %cst_5 : f32 to vector<512x128xf32>
    %7 = arith.maximumf %5, %6 : vector<512x128xf32>
    %c0_6 = arith.constant 0 : index
    %c0_7 = arith.constant 0 : index
    %8 = vector.load %arg4[%c0_6, %c0_7] : memref<512x128xf32, #tpu.memory_space<vmem>>, vector<512x128xf32>
    tpu.vector_store %arg4[%c0_6, %c0_7], %7 {strides = array<i32>} : memref<512x128xf32, #tpu.memory_space<vmem>>, vector<512x128xf32>,
    return
  }
  func.func @transform_0(%arg0: i32) -> (i32, i32) {
    %c0_i32 = arith.constant 0 : i32
    %c0_i32_0 = arith.constant 0 : i32
    return %arg0, %c0_i32 : i32, i32
  }
  func.func @transform_1(%arg0: i32) -> (i32, i32) {
    %c0_i32 = arith.constant 0 : i32
    %c0_i32_0 = arith.constant 0 : i32
    %c0_i32_1 = arith.constant 0 : i32
    return %c0_i32, %c0_i32_0 : i32, i32
  }
  func.func @transform_2(%arg0: i32) -> (i32, i32) {
    %c0_i32 = arith.constant 0 : i32
    %c0_i32_0 = arith.constant 0 : i32
    %c0_i32_1 = arith.constant 0 : i32
    return %c0_i32, %c0_i32_0 : i32, i32
  }
  func.func @transform_3(%arg0: i32) -> (i32, i32) {
    %c0_i32 = arith.constant 0 : i32
    %c0_i32_0 = arith.constant 0 : i32
    return %arg0, %c0_i32 : i32, i32
  }
}

module attributes {stable_mosaic.version = 11 : i64} {
  func.func @_maxpool_kernel(%arg0: i32, %arg1: memref<128x64xf32, #tpu.memory_space<vmem>>, %arg2: memref<128x64xf32, #tpu.memory_space<vmem>>, %arg3: memref<128x64xf32, #tpu.memory_space<vmem>>, %arg4: memref<128x64xf32, #tpu.memory_space<vmem>>, %arg5: memref<128x1xi32, #tpu.memory_space<vmem>>, %arg6: memref<128x64xf32, #tpu.memory_space<vmem>>, %arg7: memref<128x64xi32, #tpu.memory_space<vmem>>) attributes {dimension_semantics = [#tpu.dimension_semantics<parallel>], iteration_bounds = array<i64: 1>, scalar_prefetch = 0 : i64, scratch_operands = 0 : i64, tpu.core_type = #tpu.core_type<tc>, window_params = [{transform_indices = @transform_0, window_bounds = array<i64: 128, 64>}, {transform_indices = @transform_1, window_bounds = array<i64: 128, 64>}, {transform_indices = @transform_2, window_bounds = array<i64: 128, 64>}, {transform_indices = @transform_3, window_bounds = array<i64: 128, 64>}, {transform_indices = @transform_4, window_bounds = array<i64: 128, 1>}, {transform_indices = @transform_5, window_bounds = array<i64: 128, 64>}, {transform_indices = @transform_6, window_bounds = array<i64: 128, 64>}]} {
    %c0 = arith.constant 0 : index
    %c0_0 = arith.constant 0 : index
    %0 = vector.load %arg1[%c0, %c0_0] : memref<128x64xf32, #tpu.memory_space<vmem>>, vector<128x64xf32>
    %c0_i32 = arith.constant 0 : i32
    %1 = vector.broadcast %c0_i32 : i32 to vector<128x64xi32>
    %c0_1 = arith.constant 0 : index
    %c0_2 = arith.constant 0 : index
    %2 = vector.load %arg2[%c0_1, %c0_2] : memref<128x64xf32, #tpu.memory_space<vmem>>, vector<128x64xf32>
    %3 = arith.cmpf ogt, %2, %0 : vector<128x64xf32>
    %4 = arith.select %3, %2, %0 : vector<128x64xi1>, vector<128x64xf32>
    %c1_i32 = arith.constant 1 : i32
    %5 = vector.broadcast %c1_i32 : i32 to vector<128x64xi32>
    %6 = arith.select %3, %5, %1 : vector<128x64xi1>, vector<128x64xi32>
    %c0_3 = arith.constant 0 : index
    %c0_4 = arith.constant 0 : index
    %7 = vector.load %arg3[%c0_3, %c0_4] : memref<128x64xf32, #tpu.memory_space<vmem>>, vector<128x64xf32>
    %8 = arith.cmpf ogt, %7, %4 : vector<128x64xf32>
    %9 = arith.select %8, %7, %4 : vector<128x64xi1>, vector<128x64xf32>
    %c16_i32 = arith.constant 16 : i32
    %10 = vector.broadcast %c16_i32 : i32 to vector<128x64xi32>
    %11 = arith.select %8, %10, %6 : vector<128x64xi1>, vector<128x64xi32>
    %c0_5 = arith.constant 0 : index
    %c0_6 = arith.constant 0 : index
    %12 = vector.load %arg4[%c0_5, %c0_6] : memref<128x64xf32, #tpu.memory_space<vmem>>, vector<128x64xf32>
    %13 = arith.cmpf ogt, %12, %9 : vector<128x64xf32>
    %14 = arith.select %13, %12, %9 : vector<128x64xi1>, vector<128x64xf32>
    %c17_i32 = arith.constant 17 : i32
    %15 = vector.broadcast %c17_i32 : i32 to vector<128x64xi32>
    %16 = arith.select %13, %15, %11 : vector<128x64xi1>, vector<128x64xi32>
    %c0_7 = arith.constant 0 : index
    %c0_8 = arith.constant 0 : index
    %17 = vector.load %arg6[%c0_7, %c0_8] : memref<128x64xf32, #tpu.memory_space<vmem>>, vector<128x64xf32>
    tpu.vector_store %arg6[%c0_7, %c0_8], %14 {strides = array<i32>} : memref<128x64xf32, #tpu.memory_space<vmem>>, vector<128x64xf32>,
    %c0_9 = arith.constant 0 : index
    %c0_10 = arith.constant 0 : index
    %18 = vector.load %arg5[%c0_9, %c0_10] : memref<128x1xi32, #tpu.memory_space<vmem>>, vector<128x1xi32>
    %19 = vector.broadcast %18 : vector<128x1xi32> to vector<128x64xi32>
    %20 = arith.addi %19, %16 : vector<128x64xi32>
    %c0_11 = arith.constant 0 : index
    %c0_12 = arith.constant 0 : index
    %21 = vector.load %arg7[%c0_11, %c0_12] : memref<128x64xi32, #tpu.memory_space<vmem>>, vector<128x64xi32>
    tpu.vector_store %arg7[%c0_11, %c0_12], %20 {strides = array<i32>} : memref<128x64xi32, #tpu.memory_space<vmem>>, vector<128x64xi32>,
    return
  }
  func.func @transform_0(%arg0: i32) -> (i32, i32) {
    %c0_i32 = arith.constant 0 : i32
    %c0_i32_0 = arith.constant 0 : i32
    return %arg0, %c0_i32 : i32, i32
  }
  func.func @transform_1(%arg0: i32) -> (i32, i32) {
    %c0_i32 = arith.constant 0 : i32
    %c0_i32_0 = arith.constant 0 : i32
    return %arg0, %c0_i32 : i32, i32
  }
  func.func @transform_2(%arg0: i32) -> (i32, i32) {
    %c0_i32 = arith.constant 0 : i32
    %c0_i32_0 = arith.constant 0 : i32
    return %arg0, %c0_i32 : i32, i32
  }
  func.func @transform_3(%arg0: i32) -> (i32, i32) {
    %c0_i32 = arith.constant 0 : i32
    %c0_i32_0 = arith.constant 0 : i32
    return %arg0, %c0_i32 : i32, i32
  }
  func.func @transform_4(%arg0: i32) -> (i32, i32) {
    %c0_i32 = arith.constant 0 : i32
    %c0_i32_0 = arith.constant 0 : i32
    return %arg0, %c0_i32 : i32, i32
  }
  func.func @transform_5(%arg0: i32) -> (i32, i32) {
    %c0_i32 = arith.constant 0 : i32
    %c0_i32_0 = arith.constant 0 : i32
    return %arg0, %c0_i32 : i32, i32
  }
  func.func @transform_6(%arg0: i32) -> (i32, i32) {
    %c0_i32 = arith.constant 0 : i32
    %c0_i32_0 = arith.constant 0 : i32
    return %arg0, %c0_i32 : i32, i32
  }
}

module attributes {stable_mosaic.version = 11 : i64} {
  func.func @_matmul_bias_act_kernel(%arg0: i32, %arg1: memref<128x576xf32, #tpu.memory_space<vmem>>, %arg2: memref<576x128xf32, #tpu.memory_space<vmem>>, %arg3: memref<1x128xf32, #tpu.memory_space<vmem>>, %arg4: memref<128x128xf32, #tpu.memory_space<vmem>>) attributes {dimension_semantics = [#tpu.dimension_semantics<parallel>], iteration_bounds = array<i64: 1>, scalar_prefetch = 0 : i64, scratch_operands = 0 : i64, tpu.core_type = #tpu.core_type<tc>, window_params = [{transform_indices = @transform_0, window_bounds = array<i64: 128, 576>}, {pipeline_mode = #tpu.pipeline_mode<synchronous>, transform_indices = @transform_1, window_bounds = array<i64: 576, 128>}, {pipeline_mode = #tpu.pipeline_mode<synchronous>, transform_indices = @transform_2, window_bounds = array<i64: 1, 128>}, {transform_indices = @transform_3, window_bounds = array<i64: 128, 128>}]} {
    %c0 = arith.constant 0 : index
    %c0_0 = arith.constant 0 : index
    %0 = vector.load %arg1[%c0, %c0_0] : memref<128x576xf32, #tpu.memory_space<vmem>>, vector<128x576xf32>
    %c0_1 = arith.constant 0 : index
    %c0_2 = arith.constant 0 : index
    %1 = vector.load %arg2[%c0_1, %c0_2] : memref<576x128xf32, #tpu.memory_space<vmem>>, vector<576x128xf32>
    %cst = arith.constant dense<0.000000e+00> : vector<128x128xf32>
    %2 = tpu.matmul %0, %1, %cst {dimension_numbers = #tpu.dot_dimension_numbers<[1], [0], [0], [1], [0, 0, 1, 1], [], []>} : vector<128x576xf32>, vector<576x128xf32>, vector<128x128xf32> -> vector<128x128xf32>
    %c0_3 = arith.constant 0 : index
    %c0_4 = arith.constant 0 : index
    %3 = vector.load %arg3[%c0_3, %c0_4] : memref<1x128xf32, #tpu.memory_space<vmem>>, vector<1x128xf32>
    %4 = vector.broadcast %3 : vector<1x128xf32> to vector<128x128xf32>
    %5 = arith.addf %2, %4 : vector<128x128xf32>
    %cst_5 = arith.constant 0.000000e+00 : f32
    %6 = vector.broadcast %cst_5 : f32 to vector<128x128xf32>
    %7 = arith.maximumf %5, %6 : vector<128x128xf32>
    %c0_6 = arith.constant 0 : index
    %c0_7 = arith.constant 0 : index
    %8 = vector.load %arg4[%c0_6, %c0_7] : memref<128x128xf32, #tpu.memory_space<vmem>>, vector<128x128xf32>
    tpu.vector_store %arg4[%c0_6, %c0_7], %7 {strides = array<i32>} : memref<128x128xf32, #tpu.memory_space<vmem>>, vector<128x128xf32>,
    return
  }
  func.func @transform_0(%arg0: i32) -> (i32, i32) {
    %c0_i32 = arith.constant 0 : i32
    %c0_i32_0 = arith.constant 0 : i32
    return %arg0, %c0_i32 : i32, i32
  }
  func.func @transform_1(%arg0: i32) -> (i32, i32) {
    %c0_i32 = arith.constant 0 : i32
    %c0_i32_0 = arith.constant 0 : i32
    %c0_i32_1 = arith.constant 0 : i32
    return %c0_i32, %c0_i32_0 : i32, i32
  }
  func.func @transform_2(%arg0: i32) -> (i32, i32) {
    %c0_i32 = arith.constant 0 : i32
    %c0_i32_0 = arith.constant 0 : i32
    %c0_i32_1 = arith.constant 0 : i32
    return %c0_i32, %c0_i32_0 : i32, i32
  }
  func.func @transform_3(%arg0: i32) -> (i32, i32) {
    %c0_i32 = arith.constant 0 : i32
    %c0_i32_0 = arith.constant 0 : i32
    return %arg0, %c0_i32 : i32, i32
  }
}

module attributes {stable_mosaic.version = 11 : i64} {
  func.func @_matmul_bias_act_kernel(%arg0: i32, %arg1: memref<128x1152xf32, #tpu.memory_space<vmem>>, %arg2: memref<1152x128xf32, #tpu.memory_space<vmem>>, %arg3: memref<1x128xf32, #tpu.memory_space<vmem>>, %arg4: memref<128x128xf32, #tpu.memory_space<vmem>>) attributes {dimension_semantics = [#tpu.dimension_semantics<parallel>], iteration_bounds = array<i64: 1>, scalar_prefetch = 0 : i64, scratch_operands = 0 : i64, tpu.core_type = #tpu.core_type<tc>, window_params = [{transform_indices = @transform_0, window_bounds = array<i64: 128, 1152>}, {pipeline_mode = #tpu.pipeline_mode<synchronous>, transform_indices = @transform_1, window_bounds = array<i64: 1152, 128>}, {pipeline_mode = #tpu.pipeline_mode<synchronous>, transform_indices = @transform_2, window_bounds = array<i64: 1, 128>}, {transform_indices = @transform_3, window_bounds = array<i64: 128, 128>}]} {
    %c0 = arith.constant 0 : index
    %c0_0 = arith.constant 0 : index
    %0 = vector.load %arg1[%c0, %c0_0] : memref<128x1152xf32, #tpu.memory_space<vmem>>, vector<128x1152xf32>
    %c0_1 = arith.constant 0 : index
    %c0_2 = arith.constant 0 : index
    %1 = vector.load %arg2[%c0_1, %c0_2] : memref<1152x128xf32, #tpu.memory_space<vmem>>, vector<1152x128xf32>
    %cst = arith.constant dense<0.000000e+00> : vector<128x128xf32>
    %2 = tpu.matmul %0, %1, %cst {dimension_numbers = #tpu.dot_dimension_numbers<[1], [0], [0], [1], [0, 0, 1, 1], [], []>} : vector<128x1152xf32>, vector<1152x128xf32>, vector<128x128xf32> -> vector<128x128xf32>
    %c0_3 = arith.constant 0 : index
    %c0_4 = arith.constant 0 : index
    %3 = vector.load %arg3[%c0_3, %c0_4] : memref<1x128xf32, #tpu.memory_space<vmem>>, vector<1x128xf32>
    %4 = vector.broadcast %3 : vector<1x128xf32> to vector<128x128xf32>
    %5 = arith.addf %2, %4 : vector<128x128xf32>
    %cst_5 = arith.constant 0.000000e+00 : f32
    %6 = vector.broadcast %cst_5 : f32 to vector<128x128xf32>
    %7 = arith.maximumf %5, %6 : vector<128x128xf32>
    %c0_6 = arith.constant 0 : index
    %c0_7 = arith.constant 0 : index
    %8 = vector.load %arg4[%c0_6, %c0_7] : memref<128x128xf32, #tpu.memory_space<vmem>>, vector<128x128xf32>
    tpu.vector_store %arg4[%c0_6, %c0_7], %7 {strides = array<i32>} : memref<128x128xf32, #tpu.memory_space<vmem>>, vector<128x128xf32>,
    return
  }
  func.func @transform_0(%arg0: i32) -> (i32, i32) {
    %c0_i32 = arith.constant 0 : i32
    %c0_i32_0 = arith.constant 0 : i32
    return %arg0, %c0_i32 : i32, i32
  }
  func.func @transform_1(%arg0: i32) -> (i32, i32) {
    %c0_i32 = arith.constant 0 : i32
    %c0_i32_0 = arith.constant 0 : i32
    %c0_i32_1 = arith.constant 0 : i32
    return %c0_i32, %c0_i32_0 : i32, i32
  }
  func.func @transform_2(%arg0: i32) -> (i32, i32) {
    %c0_i32 = arith.constant 0 : i32
    %c0_i32_0 = arith.constant 0 : i32
    %c0_i32_1 = arith.constant 0 : i32
    return %c0_i32, %c0_i32_0 : i32, i32
  }
  func.func @transform_3(%arg0: i32) -> (i32, i32) {
    %c0_i32 = arith.constant 0 : i32
    %c0_i32_0 = arith.constant 0 : i32
    return %arg0, %c0_i32 : i32, i32
  }
}

module attributes {stable_mosaic.version = 11 : i64} {
  func.func @_maxpool_kernel(%arg0: i32, %arg1: memref<32x128xf32, #tpu.memory_space<vmem>>, %arg2: memref<32x128xf32, #tpu.memory_space<vmem>>, %arg3: memref<32x128xf32, #tpu.memory_space<vmem>>, %arg4: memref<32x128xf32, #tpu.memory_space<vmem>>, %arg5: memref<32x1xi32, #tpu.memory_space<vmem>>, %arg6: memref<32x128xf32, #tpu.memory_space<vmem>>, %arg7: memref<32x128xi32, #tpu.memory_space<vmem>>) attributes {dimension_semantics = [#tpu.dimension_semantics<parallel>], iteration_bounds = array<i64: 1>, scalar_prefetch = 0 : i64, scratch_operands = 0 : i64, tpu.core_type = #tpu.core_type<tc>, window_params = [{transform_indices = @transform_0, window_bounds = array<i64: 32, 128>}, {transform_indices = @transform_1, window_bounds = array<i64: 32, 128>}, {transform_indices = @transform_2, window_bounds = array<i64: 32, 128>}, {transform_indices = @transform_3, window_bounds = array<i64: 32, 128>}, {transform_indices = @transform_4, window_bounds = array<i64: 32, 1>}, {transform_indices = @transform_5, window_bounds = array<i64: 32, 128>}, {transform_indices = @transform_6, window_bounds = array<i64: 32, 128>}]} {
    %c0 = arith.constant 0 : index
    %c0_0 = arith.constant 0 : index
    %0 = vector.load %arg1[%c0, %c0_0] : memref<32x128xf32, #tpu.memory_space<vmem>>, vector<32x128xf32>
    %c0_i32 = arith.constant 0 : i32
    %1 = vector.broadcast %c0_i32 : i32 to vector<32x128xi32>
    %c0_1 = arith.constant 0 : index
    %c0_2 = arith.constant 0 : index
    %2 = vector.load %arg2[%c0_1, %c0_2] : memref<32x128xf32, #tpu.memory_space<vmem>>, vector<32x128xf32>
    %3 = arith.cmpf ogt, %2, %0 : vector<32x128xf32>
    %4 = arith.select %3, %2, %0 : vector<32x128xi1>, vector<32x128xf32>
    %c1_i32 = arith.constant 1 : i32
    %5 = vector.broadcast %c1_i32 : i32 to vector<32x128xi32>
    %6 = arith.select %3, %5, %1 : vector<32x128xi1>, vector<32x128xi32>
    %c0_3 = arith.constant 0 : index
    %c0_4 = arith.constant 0 : index
    %7 = vector.load %arg3[%c0_3, %c0_4] : memref<32x128xf32, #tpu.memory_space<vmem>>, vector<32x128xf32>
    %8 = arith.cmpf ogt, %7, %4 : vector<32x128xf32>
    %9 = arith.select %8, %7, %4 : vector<32x128xi1>, vector<32x128xf32>
    %c8_i32 = arith.constant 8 : i32
    %10 = vector.broadcast %c8_i32 : i32 to vector<32x128xi32>
    %11 = arith.select %8, %10, %6 : vector<32x128xi1>, vector<32x128xi32>
    %c0_5 = arith.constant 0 : index
    %c0_6 = arith.constant 0 : index
    %12 = vector.load %arg4[%c0_5, %c0_6] : memref<32x128xf32, #tpu.memory_space<vmem>>, vector<32x128xf32>
    %13 = arith.cmpf ogt, %12, %9 : vector<32x128xf32>
    %14 = arith.select %13, %12, %9 : vector<32x128xi1>, vector<32x128xf32>
    %c9_i32 = arith.constant 9 : i32
    %15 = vector.broadcast %c9_i32 : i32 to vector<32x128xi32>
    %16 = arith.select %13, %15, %11 : vector<32x128xi1>, vector<32x128xi32>
    %c0_7 = arith.constant 0 : index
    %c0_8 = arith.constant 0 : index
    %17 = vector.load %arg6[%c0_7, %c0_8] : memref<32x128xf32, #tpu.memory_space<vmem>>, vector<32x128xf32>
    tpu.vector_store %arg6[%c0_7, %c0_8], %14 {strides = array<i32>} : memref<32x128xf32, #tpu.memory_space<vmem>>, vector<32x128xf32>,
    %c0_9 = arith.constant 0 : index
    %c0_10 = arith.constant 0 : index
    %18 = vector.load %arg5[%c0_9, %c0_10] : memref<32x1xi32, #tpu.memory_space<vmem>>, vector<32x1xi32>
    %19 = vector.broadcast %18 : vector<32x1xi32> to vector<32x128xi32>
    %20 = arith.addi %19, %16 : vector<32x128xi32>
    %c0_11 = arith.constant 0 : index
    %c0_12 = arith.constant 0 : index
    %21 = vector.load %arg7[%c0_11, %c0_12] : memref<32x128xi32, #tpu.memory_space<vmem>>, vector<32x128xi32>
    tpu.vector_store %arg7[%c0_11, %c0_12], %20 {strides = array<i32>} : memref<32x128xi32, #tpu.memory_space<vmem>>, vector<32x128xi32>,
    return
  }
  func.func @transform_0(%arg0: i32) -> (i32, i32) {
    %c0_i32 = arith.constant 0 : i32
    %c0_i32_0 = arith.constant 0 : i32
    return %arg0, %c0_i32 : i32, i32
  }
  func.func @transform_1(%arg0: i32) -> (i32, i32) {
    %c0_i32 = arith.constant 0 : i32
    %c0_i32_0 = arith.constant 0 : i32
    return %arg0, %c0_i32 : i32, i32
  }
  func.func @transform_2(%arg0: i32) -> (i32, i32) {
    %c0_i32 = arith.constant 0 : i32
    %c0_i32_0 = arith.constant 0 : i32
    return %arg0, %c0_i32 : i32, i32
  }
  func.func @transform_3(%arg0: i32) -> (i32, i32) {
    %c0_i32 = arith.constant 0 : i32
    %c0_i32_0 = arith.constant 0 : i32
    return %arg0, %c0_i32 : i32, i32
  }
  func.func @transform_4(%arg0: i32) -> (i32, i32) {
    %c0_i32 = arith.constant 0 : i32
    %c0_i32_0 = arith.constant 0 : i32
    return %arg0, %c0_i32 : i32, i32
  }
  func.func @transform_5(%arg0: i32) -> (i32, i32) {
    %c0_i32 = arith.constant 0 : i32
    %c0_i32_0 = arith.constant 0 : i32
    return %arg0, %c0_i32 : i32, i32
  }
  func.func @transform_6(%arg0: i32) -> (i32, i32) {
    %c0_i32 = arith.constant 0 : i32
    %c0_i32_0 = arith.constant 0 : i32
    return %arg0, %c0_i32 : i32, i32
  }
}

module attributes {stable_mosaic.version = 11 : i64} {
  func.func @_matmul_bias_act_kernel(%arg0: i32, %arg1: memref<32x1152xf32, #tpu.memory_space<vmem>>, %arg2: memref<1152x256xf32, #tpu.memory_space<vmem>>, %arg3: memref<1x256xf32, #tpu.memory_space<vmem>>, %arg4: memref<32x256xf32, #tpu.memory_space<vmem>>) attributes {dimension_semantics = [#tpu.dimension_semantics<parallel>], iteration_bounds = array<i64: 1>, scalar_prefetch = 0 : i64, scratch_operands = 0 : i64, tpu.core_type = #tpu.core_type<tc>, window_params = [{transform_indices = @transform_0, window_bounds = array<i64: 32, 1152>}, {pipeline_mode = #tpu.pipeline_mode<synchronous>, transform_indices = @transform_1, window_bounds = array<i64: 1152, 256>}, {pipeline_mode = #tpu.pipeline_mode<synchronous>, transform_indices = @transform_2, window_bounds = array<i64: 1, 256>}, {transform_indices = @transform_3, window_bounds = array<i64: 32, 256>}]} {
    %c0 = arith.constant 0 : index
    %c0_0 = arith.constant 0 : index
    %0 = vector.load %arg1[%c0, %c0_0] : memref<32x1152xf32, #tpu.memory_space<vmem>>, vector<32x1152xf32>
    %c0_1 = arith.constant 0 : index
    %c0_2 = arith.constant 0 : index
    %1 = vector.load %arg2[%c0_1, %c0_2] : memref<1152x256xf32, #tpu.memory_space<vmem>>, vector<1152x256xf32>
    %cst = arith.constant dense<0.000000e+00> : vector<32x256xf32>
    %2 = tpu.matmul %0, %1, %cst {dimension_numbers = #tpu.dot_dimension_numbers<[1], [0], [0], [1], [0, 0, 1, 1], [], []>} : vector<32x1152xf32>, vector<1152x256xf32>, vector<32x256xf32> -> vector<32x256xf32>
    %c0_3 = arith.constant 0 : index
    %c0_4 = arith.constant 0 : index
    %3 = vector.load %arg3[%c0_3, %c0_4] : memref<1x256xf32, #tpu.memory_space<vmem>>, vector<1x256xf32>
    %4 = vector.broadcast %3 : vector<1x256xf32> to vector<32x256xf32>
    %5 = arith.addf %2, %4 : vector<32x256xf32>
    %cst_5 = arith.constant 0.000000e+00 : f32
    %6 = vector.broadcast %cst_5 : f32 to vector<32x256xf32>
    %7 = arith.maximumf %5, %6 : vector<32x256xf32>
    %c0_6 = arith.constant 0 : index
    %c0_7 = arith.constant 0 : index
    %8 = vector.load %arg4[%c0_6, %c0_7] : memref<32x256xf32, #tpu.memory_space<vmem>>, vector<32x256xf32>
    tpu.vector_store %arg4[%c0_6, %c0_7], %7 {strides = array<i32>} : memref<32x256xf32, #tpu.memory_space<vmem>>, vector<32x256xf32>,
    return
  }
  func.func @transform_0(%arg0: i32) -> (i32, i32) {
    %c0_i32 = arith.constant 0 : i32
    %c0_i32_0 = arith.constant 0 : i32
    return %arg0, %c0_i32 : i32, i32
  }
  func.func @transform_1(%arg0: i32) -> (i32, i32) {
    %c0_i32 = arith.constant 0 : i32
    %c0_i32_0 = arith.constant 0 : i32
    %c0_i32_1 = arith.constant 0 : i32
    return %c0_i32, %c0_i32_0 : i32, i32
  }
  func.func @transform_2(%arg0: i32) -> (i32, i32) {
    %c0_i32 = arith.constant 0 : i32
    %c0_i32_0 = arith.constant 0 : i32
    %c0_i32_1 = arith.constant 0 : i32
    return %c0_i32, %c0_i32_0 : i32, i32
  }
  func.func @transform_3(%arg0: i32) -> (i32, i32) {
    %c0_i32 = arith.constant 0 : i32
    %c0_i32_0 = arith.constant 0 : i32
    return %arg0, %c0_i32 : i32, i32
  }
}

module attributes {stable_mosaic.version = 11 : i64} {
  func.func @_matmul_bias_act_kernel(%arg0: i32, %arg1: memref<32x2304xf32, #tpu.memory_space<vmem>>, %arg2: memref<2304x256xf32, #tpu.memory_space<vmem>>, %arg3: memref<1x256xf32, #tpu.memory_space<vmem>>, %arg4: memref<32x256xf32, #tpu.memory_space<vmem>>) attributes {dimension_semantics = [#tpu.dimension_semantics<parallel>], iteration_bounds = array<i64: 1>, scalar_prefetch = 0 : i64, scratch_operands = 0 : i64, tpu.core_type = #tpu.core_type<tc>, window_params = [{transform_indices = @transform_0, window_bounds = array<i64: 32, 2304>}, {pipeline_mode = #tpu.pipeline_mode<synchronous>, transform_indices = @transform_1, window_bounds = array<i64: 2304, 256>}, {pipeline_mode = #tpu.pipeline_mode<synchronous>, transform_indices = @transform_2, window_bounds = array<i64: 1, 256>}, {transform_indices = @transform_3, window_bounds = array<i64: 32, 256>}]} {
    %c0 = arith.constant 0 : index
    %c0_0 = arith.constant 0 : index
    %0 = vector.load %arg1[%c0, %c0_0] : memref<32x2304xf32, #tpu.memory_space<vmem>>, vector<32x2304xf32>
    %c0_1 = arith.constant 0 : index
    %c0_2 = arith.constant 0 : index
    %1 = vector.load %arg2[%c0_1, %c0_2] : memref<2304x256xf32, #tpu.memory_space<vmem>>, vector<2304x256xf32>
    %cst = arith.constant dense<0.000000e+00> : vector<32x256xf32>
    %2 = tpu.matmul %0, %1, %cst {dimension_numbers = #tpu.dot_dimension_numbers<[1], [0], [0], [1], [0, 0, 1, 1], [], []>} : vector<32x2304xf32>, vector<2304x256xf32>, vector<32x256xf32> -> vector<32x256xf32>
    %c0_3 = arith.constant 0 : index
    %c0_4 = arith.constant 0 : index
    %3 = vector.load %arg3[%c0_3, %c0_4] : memref<1x256xf32, #tpu.memory_space<vmem>>, vector<1x256xf32>
    %4 = vector.broadcast %3 : vector<1x256xf32> to vector<32x256xf32>
    %5 = arith.addf %2, %4 : vector<32x256xf32>
    %cst_5 = arith.constant 0.000000e+00 : f32
    %6 = vector.broadcast %cst_5 : f32 to vector<32x256xf32>
    %7 = arith.maximumf %5, %6 : vector<32x256xf32>
    %c0_6 = arith.constant 0 : index
    %c0_7 = arith.constant 0 : index
    %8 = vector.load %arg4[%c0_6, %c0_7] : memref<32x256xf32, #tpu.memory_space<vmem>>, vector<32x256xf32>
    tpu.vector_store %arg4[%c0_6, %c0_7], %7 {strides = array<i32>} : memref<32x256xf32, #tpu.memory_space<vmem>>, vector<32x256xf32>,
    return
  }
  func.func @transform_0(%arg0: i32) -> (i32, i32) {
    %c0_i32 = arith.constant 0 : i32
    %c0_i32_0 = arith.constant 0 : i32
    return %arg0, %c0_i32 : i32, i32
  }
  func.func @transform_1(%arg0: i32) -> (i32, i32) {
    %c0_i32 = arith.constant 0 : i32
    %c0_i32_0 = arith.constant 0 : i32
    %c0_i32_1 = arith.constant 0 : i32
    return %c0_i32, %c0_i32_0 : i32, i32
  }
  func.func @transform_2(%arg0: i32) -> (i32, i32) {
    %c0_i32 = arith.constant 0 : i32
    %c0_i32_0 = arith.constant 0 : i32
    %c0_i32_1 = arith.constant 0 : i32
    return %c0_i32, %c0_i32_0 : i32, i32
  }
  func.func @transform_3(%arg0: i32) -> (i32, i32) {
    %c0_i32 = arith.constant 0 : i32
    %c0_i32_0 = arith.constant 0 : i32
    return %arg0, %c0_i32 : i32, i32
  }
}

module attributes {stable_mosaic.version = 11 : i64} {
  func.func @_maxpool_kernel(%arg0: i32, %arg1: memref<8x256xf32, #tpu.memory_space<vmem>>, %arg2: memref<8x256xf32, #tpu.memory_space<vmem>>, %arg3: memref<8x256xf32, #tpu.memory_space<vmem>>, %arg4: memref<8x256xf32, #tpu.memory_space<vmem>>, %arg5: memref<8x1xi32, #tpu.memory_space<vmem>>, %arg6: memref<8x256xf32, #tpu.memory_space<vmem>>, %arg7: memref<8x256xi32, #tpu.memory_space<vmem>>) attributes {dimension_semantics = [#tpu.dimension_semantics<parallel>], iteration_bounds = array<i64: 1>, scalar_prefetch = 0 : i64, scratch_operands = 0 : i64, tpu.core_type = #tpu.core_type<tc>, window_params = [{transform_indices = @transform_0, window_bounds = array<i64: 8, 256>}, {transform_indices = @transform_1, window_bounds = array<i64: 8, 256>}, {transform_indices = @transform_2, window_bounds = array<i64: 8, 256>}, {transform_indices = @transform_3, window_bounds = array<i64: 8, 256>}, {transform_indices = @transform_4, window_bounds = array<i64: 8, 1>}, {transform_indices = @transform_5, window_bounds = array<i64: 8, 256>}, {transform_indices = @transform_6, window_bounds = array<i64: 8, 256>}]} {
    %c0 = arith.constant 0 : index
    %c0_0 = arith.constant 0 : index
    %0 = vector.load %arg1[%c0, %c0_0] : memref<8x256xf32, #tpu.memory_space<vmem>>, vector<8x256xf32>
    %c0_i32 = arith.constant 0 : i32
    %1 = vector.broadcast %c0_i32 : i32 to vector<8x256xi32>
    %c0_1 = arith.constant 0 : index
    %c0_2 = arith.constant 0 : index
    %2 = vector.load %arg2[%c0_1, %c0_2] : memref<8x256xf32, #tpu.memory_space<vmem>>, vector<8x256xf32>
    %3 = arith.cmpf ogt, %2, %0 : vector<8x256xf32>
    %4 = arith.select %3, %2, %0 : vector<8x256xi1>, vector<8x256xf32>
    %c1_i32 = arith.constant 1 : i32
    %5 = vector.broadcast %c1_i32 : i32 to vector<8x256xi32>
    %6 = arith.select %3, %5, %1 : vector<8x256xi1>, vector<8x256xi32>
    %c0_3 = arith.constant 0 : index
    %c0_4 = arith.constant 0 : index
    %7 = vector.load %arg3[%c0_3, %c0_4] : memref<8x256xf32, #tpu.memory_space<vmem>>, vector<8x256xf32>
    %8 = arith.cmpf ogt, %7, %4 : vector<8x256xf32>
    %9 = arith.select %8, %7, %4 : vector<8x256xi1>, vector<8x256xf32>
    %c4_i32 = arith.constant 4 : i32
    %10 = vector.broadcast %c4_i32 : i32 to vector<8x256xi32>
    %11 = arith.select %8, %10, %6 : vector<8x256xi1>, vector<8x256xi32>
    %c0_5 = arith.constant 0 : index
    %c0_6 = arith.constant 0 : index
    %12 = vector.load %arg4[%c0_5, %c0_6] : memref<8x256xf32, #tpu.memory_space<vmem>>, vector<8x256xf32>
    %13 = arith.cmpf ogt, %12, %9 : vector<8x256xf32>
    %14 = arith.select %13, %12, %9 : vector<8x256xi1>, vector<8x256xf32>
    %c5_i32 = arith.constant 5 : i32
    %15 = vector.broadcast %c5_i32 : i32 to vector<8x256xi32>
    %16 = arith.select %13, %15, %11 : vector<8x256xi1>, vector<8x256xi32>
    %c0_7 = arith.constant 0 : index
    %c0_8 = arith.constant 0 : index
    %17 = vector.load %arg6[%c0_7, %c0_8] : memref<8x256xf32, #tpu.memory_space<vmem>>, vector<8x256xf32>
    tpu.vector_store %arg6[%c0_7, %c0_8], %14 {strides = array<i32>} : memref<8x256xf32, #tpu.memory_space<vmem>>, vector<8x256xf32>,
    %c0_9 = arith.constant 0 : index
    %c0_10 = arith.constant 0 : index
    %18 = vector.load %arg5[%c0_9, %c0_10] : memref<8x1xi32, #tpu.memory_space<vmem>>, vector<8x1xi32>
    %19 = vector.broadcast %18 : vector<8x1xi32> to vector<8x256xi32>
    %20 = arith.addi %19, %16 : vector<8x256xi32>
    %c0_11 = arith.constant 0 : index
    %c0_12 = arith.constant 0 : index
    %21 = vector.load %arg7[%c0_11, %c0_12] : memref<8x256xi32, #tpu.memory_space<vmem>>, vector<8x256xi32>
    tpu.vector_store %arg7[%c0_11, %c0_12], %20 {strides = array<i32>} : memref<8x256xi32, #tpu.memory_space<vmem>>, vector<8x256xi32>,
    return
  }
  func.func @transform_0(%arg0: i32) -> (i32, i32) {
    %c0_i32 = arith.constant 0 : i32
    %c0_i32_0 = arith.constant 0 : i32
    return %arg0, %c0_i32 : i32, i32
  }
  func.func @transform_1(%arg0: i32) -> (i32, i32) {
    %c0_i32 = arith.constant 0 : i32
    %c0_i32_0 = arith.constant 0 : i32
    return %arg0, %c0_i32 : i32, i32
  }
  func.func @transform_2(%arg0: i32) -> (i32, i32) {
    %c0_i32 = arith.constant 0 : i32
    %c0_i32_0 = arith.constant 0 : i32
    return %arg0, %c0_i32 : i32, i32
  }
  func.func @transform_3(%arg0: i32) -> (i32, i32) {
    %c0_i32 = arith.constant 0 : i32
    %c0_i32_0 = arith.constant 0 : i32
    return %arg0, %c0_i32 : i32, i32
  }
  func.func @transform_4(%arg0: i32) -> (i32, i32) {
    %c0_i32 = arith.constant 0 : i32
    %c0_i32_0 = arith.constant 0 : i32
    return %arg0, %c0_i32 : i32, i32
  }
  func.func @transform_5(%arg0: i32) -> (i32, i32) {
    %c0_i32 = arith.constant 0 : i32
    %c0_i32_0 = arith.constant 0 : i32
    return %arg0, %c0_i32 : i32, i32
  }
  func.func @transform_6(%arg0: i32) -> (i32, i32) {
    %c0_i32 = arith.constant 0 : i32
    %c0_i32_0 = arith.constant 0 : i32
    return %arg0, %c0_i32 : i32, i32
  }
}

module attributes {stable_mosaic.version = 11 : i64} {
  func.func @_matmul_bias_act_kernel(%arg0: i32, %arg1: memref<8x2304xf32, #tpu.memory_space<vmem>>, %arg2: memref<2304x512xf32, #tpu.memory_space<vmem>>, %arg3: memref<1x512xf32, #tpu.memory_space<vmem>>, %arg4: memref<8x512xf32, #tpu.memory_space<vmem>>) attributes {dimension_semantics = [#tpu.dimension_semantics<parallel>], iteration_bounds = array<i64: 1>, scalar_prefetch = 0 : i64, scratch_operands = 0 : i64, tpu.core_type = #tpu.core_type<tc>, window_params = [{transform_indices = @transform_0, window_bounds = array<i64: 8, 2304>}, {pipeline_mode = #tpu.pipeline_mode<synchronous>, transform_indices = @transform_1, window_bounds = array<i64: 2304, 512>}, {pipeline_mode = #tpu.pipeline_mode<synchronous>, transform_indices = @transform_2, window_bounds = array<i64: 1, 512>}, {transform_indices = @transform_3, window_bounds = array<i64: 8, 512>}]} {
    %c0 = arith.constant 0 : index
    %c0_0 = arith.constant 0 : index
    %0 = vector.load %arg1[%c0, %c0_0] : memref<8x2304xf32, #tpu.memory_space<vmem>>, vector<8x2304xf32>
    %c0_1 = arith.constant 0 : index
    %c0_2 = arith.constant 0 : index
    %1 = vector.load %arg2[%c0_1, %c0_2] : memref<2304x512xf32, #tpu.memory_space<vmem>>, vector<2304x512xf32>
    %cst = arith.constant dense<0.000000e+00> : vector<8x512xf32>
    %2 = tpu.matmul %0, %1, %cst {dimension_numbers = #tpu.dot_dimension_numbers<[1], [0], [0], [1], [0, 0, 1, 1], [], []>} : vector<8x2304xf32>, vector<2304x512xf32>, vector<8x512xf32> -> vector<8x512xf32>
    %c0_3 = arith.constant 0 : index
    %c0_4 = arith.constant 0 : index
    %3 = vector.load %arg3[%c0_3, %c0_4] : memref<1x512xf32, #tpu.memory_space<vmem>>, vector<1x512xf32>
    %4 = vector.broadcast %3 : vector<1x512xf32> to vector<8x512xf32>
    %5 = arith.addf %2, %4 : vector<8x512xf32>
    %cst_5 = arith.constant 0.000000e+00 : f32
    %6 = vector.broadcast %cst_5 : f32 to vector<8x512xf32>
    %7 = arith.maximumf %5, %6 : vector<8x512xf32>
    %c0_6 = arith.constant 0 : index
    %c0_7 = arith.constant 0 : index
    %8 = vector.load %arg4[%c0_6, %c0_7] : memref<8x512xf32, #tpu.memory_space<vmem>>, vector<8x512xf32>
    tpu.vector_store %arg4[%c0_6, %c0_7], %7 {strides = array<i32>} : memref<8x512xf32, #tpu.memory_space<vmem>>, vector<8x512xf32>,
    return
  }
  func.func @transform_0(%arg0: i32) -> (i32, i32) {
    %c0_i32 = arith.constant 0 : i32
    %c0_i32_0 = arith.constant 0 : i32
    return %arg0, %c0_i32 : i32, i32
  }
  func.func @transform_1(%arg0: i32) -> (i32, i32) {
    %c0_i32 = arith.constant 0 : i32
    %c0_i32_0 = arith.constant 0 : i32
    %c0_i32_1 = arith.constant 0 : i32
    return %c0_i32, %c0_i32_0 : i32, i32
  }
  func.func @transform_2(%arg0: i32) -> (i32, i32) {
    %c0_i32 = arith.constant 0 : i32
    %c0_i32_0 = arith.constant 0 : i32
    %c0_i32_1 = arith.constant 0 : i32
    return %c0_i32, %c0_i32_0 : i32, i32
  }
  func.func @transform_3(%arg0: i32) -> (i32, i32) {
    %c0_i32 = arith.constant 0 : i32
    %c0_i32_0 = arith.constant 0 : i32
    return %arg0, %c0_i32 : i32, i32
  }
}

</mosaic_0001>

<llo_original>
// kernel: _lambda_.13
$region0: #{_lambda_.13}
  #allocation0 [shape = 'u32[]', space=smem, size = 0x4, offset = 0x4, fixed_abs, tag = 'smem constant byte address 0x4 - core index']
  #allocation1 [shape = 'u32[72,128]{1,0:T(1,128)}', space=vmem, size = 0x9000, scoped, tag = 'internal scratch']
  %s0 = inlined_call_operand.vmem [shape: f32[512,3], index: 0, kind: input, shape index: {}]
  %s1 = inlined_call_operand.hbm [shape: f32[3,128], index: 1, kind: input, shape index: {}]
  %s2 = inlined_call_operand.hbm [shape: f32[1,128], index: 2, kind: input, shape index: {}]
  %s3 = inlined_call_operand.vmem [shape: f32[512,128], index: 3, kind: output, shape index: {}]
  %s4 = sld [smem:[#allocation0]]
  $region30: #{_lambda_.13} parent=0
    _
  %s6 = ssub.s32 1, %s4
  %s7 = scalar_select 0, %s6, %s4
  $region1: #{_lambda_.13} parent=0
    #allocation2 [shape = 'u8[2048]{0}', space=vmem, size = 0x800, scoped, tag = 'input window, operand 1, single buffered']
    #allocation3 [shape = 's32[1]{0}', space=sflag, size = 0x4, scoped, tag = 'scoped memory for _lambda_.13']
    #allocation4 [shape = 'u8[512]{0}', space=vmem, size = 0x400, scoped, tag = 'input window, operand 2, single buffered']
    #allocation5 [shape = 's32[1]{0}', space=sflag, size = 0x4, scoped, tag = 'scoped memory for _lambda_.13']
    %8 = vsyncpa [#allocation3], 0
    %9 = vsyncpa [#allocation5], 0
    // Predicated region
    $region2: #{_lambda_.13} parent=1 // pred_check
      _
    $region3: #{_lambda_.13} parent=1 // pred_check_branch
      %11 = sbr.rel (0) target = $region5
    $region4: #{_lambda_.13} parent=1 // pred_region
      _
    $region5: #{_lambda_.13} parent=1 // pred_fallthru
      _
    // Predicated region
    $region6: #{_lambda_.13} parent=1 // pred_check
      _
    $region7: #{_lambda_.13} parent=1 // pred_check_branch
      %13 = sbr.rel (0) target = $region9
    $region8: #{_lambda_.13} parent=1 // pred_region
      %15 = vsyncadd [#allocation3], 0
      %s17 = sshll.u32 %s1, 4
      %s18 = int_to_ptr.hbm [resolvable:$true] %s17
      %s19 = sshll.u32 [#allocation2], 4
      %s20 = int_to_ptr.vmem [resolvable:$true] %s19
      %22 = dma.hbm_to_vmem [thread:$0]  %s18, 64, %s20, [#allocation3]
    $region9: #{_lambda_.13} parent=1 // pred_fallthru
      _
    // Predicated region
    $region10: #{_lambda_.13} parent=1 // pred_check
      _
    $region11: #{_lambda_.13} parent=1 // pred_check_branch
      %24 = sbr.rel (0) target = $region13
    $region12: #{_lambda_.13} parent=1 // pred_region
      %26 = vsyncadd [#allocation5], 0
      %s28 = sshll.u32 %s2, 4
      %s29 = int_to_ptr.hbm [resolvable:$true] %s28
      %s30 = sshll.u32 [#allocation4], 4
      %s31 = int_to_ptr.vmem [resolvable:$true] %s30
      %33 = dma.hbm_to_vmem [thread:$0]  %s29, 16, %s31, [#allocation5]
    $region13: #{_lambda_.13} parent=1 // pred_fallthru
      _
    // Predicated region
    $region14: #{_lambda_.13} parent=1 // pred_check
      _
    $region15: #{_lambda_.13} parent=1 // pred_check_branch
      %35 = sbr.rel (0) target = $region17
    $region16: #{_lambda_.13} parent=1 // pred_region
      %37 = dma.done [#allocation3], 64
    $region17: #{_lambda_.13} parent=1 // pred_fallthru
      _
    // Predicated region
    $region18: #{_lambda_.13} parent=1 // pred_check
      _
    $region19: #{_lambda_.13} parent=1 // pred_check_branch
      %39 = sbr.rel (0) target = $region21
    $region20: #{_lambda_.13} parent=1 // pred_region
      %41 = dma.done [#allocation5], 16
    $region21: #{_lambda_.13} parent=1 // pred_fallthru
      _
    %v42 = vld [vmem:[%s0] sm:$0xff]
    %v43 = vld [vmem:[%s0 + $0x8] sm:$0xff]
    %v44 = vld [vmem:[%s0 + $0x10] sm:$0xff]
    %v45 = vld [vmem:[%s0 + $0x18] sm:$0xff]
    %v46 = vld [vmem:[%s0 + $0x20] sm:$0xff]
    %v47 = vld [vmem:[%s0 + $0x28] sm:$0xff]
    %v48 = vld [vmem:[%s0 + $0x30] sm:$0xff]
    %v49 = vld [vmem:[%s0 + $0x38] sm:$0xff]
    %v50 = vld [vmem:[%s0 + $0x40] sm:$0xff]
    %v51 = vld [vmem:[%s0 + $0x48] sm:$0xff]
    %v52 = vld [vmem:[%s0 + $0x50] sm:$0xff]
    %v53 = vld [vmem:[%s0 + $0x58] sm:$0xff]
    %v54 = vld [vmem:[%s0 + $0x60] sm:$0xff]
    %v55 = vld [vmem:[%s0 + $0x68] sm:$0xff]
    %v56 = vld [vmem:[%s0 + $0x70] sm:$0xff]
    %v57 = vld [vmem:[%s0 + $0x78] sm:$0xff]
    %v58 = vld [vmem:[%s0 + $0x80] sm:$0xff]
    %v59 = vld [vmem:[%s0 + $0x88] sm:$0xff]
    %v60 = vld [vmem:[%s0 + $0x90] sm:$0xff]
    %v61 = vld [vmem:[%s0 + $0x98] sm:$0xff]
    %v62 = vld [vmem:[%s0 + $0xa0] sm:$0xff]
    %v63 = vld [vmem:[%s0 + $0xa8] sm:$0xff]
    %v64 = vld [vmem:[%s0 + $0xb0] sm:$0xff]
    %v65 = vld [vmem:[%s0 + $0xb8] sm:$0xff]
    %v66 = vld [vmem:[%s0 + $0xc0] sm:$0xff]
    %v67 = vld [vmem:[%s0 + $0xc8] sm:$0xff]
    %v68 = vld [vmem:[%s0 + $0xd0] sm:$0xff]
    %v69 = vld [vmem:[%s0 + $0xd8] sm:$0xff]
    %v70 = vld [vmem:[%s0 + $0xe0] sm:$0xff]
    %v71 = vld [vmem:[%s0 + $0xe8] sm:$0xff]
    %v72 = vld [vmem:[%s0 + $0xf0] sm:$0xff]
    %v73 = vld [vmem:[%s0 + $0xf8] sm:$0xff]
    %v74 = vld [vmem:[%s0 + $0x100] sm:$0xff]
    %v75 = vld [vmem:[%s0 + $0x108] sm:$0xff]
    %v76 = vld [vmem:[%s0 + $0x110] sm:$0xff]
    %v77 = vld [vmem:[%s0 + $0x118] sm:$0xff]
    %v78 = vld [vmem:[%s0 + $0x120] sm:$0xff]
    %v79 = vld [vmem:[%s0 + $0x128] sm:$0xff]
    %v80 = vld [vmem:[%s0 + $0x130] sm:$0xff]
    %v81 = vld [vmem:[%s0 + $0x138] sm:$0xff]
    %v82 = vld [vmem:[%s0 + $0x140] sm:$0xff]
    %v83 = vld [vmem:[%s0 + $0x148] sm:$0xff]
    %v84 = vld [vmem:[%s0 + $0x150] sm:$0xff]
    %v85 = vld [vmem:[%s0 + $0x158] sm:$0xff]
    %v86 = vld [vmem:[%s0 + $0x160] sm:$0xff]
    %v87 = vld [vmem:[%s0 + $0x168] sm:$0xff]
    %v88 = vld [vmem:[%s0 + $0x170] sm:$0xff]
    %v89 = vld [vmem:[%s0 + $0x178] sm:$0xff]
    %v90 = vld [vmem:[%s0 + $0x180] sm:$0xff]
    %v91 = vld [vmem:[%s0 + $0x188] sm:$0xff]
    %v92 = vld [vmem:[%s0 + $0x190] sm:$0xff]
    %v93 = vld [vmem:[%s0 + $0x198] sm:$0xff]
    %v94 = vld [vmem:[%s0 + $0x1a0] sm:$0xff]
    %v95 = vld [vmem:[%s0 + $0x1a8] sm:$0xff]
    %v96 = vld [vmem:[%s0 + $0x1b0] sm:$0xff]
    %v97 = vld [vmem:[%s0 + $0x1b8] sm:$0xff]
    %v98 = vld [vmem:[%s0 + $0x1c0] sm:$0xff]
    %v99 = vld [vmem:[%s0 + $0x1c8] sm:$0xff]
    %v100 = vld [vmem:[%s0 + $0x1d0] sm:$0xff]
    %v101 = vld [vmem:[%s0 + $0x1d8] sm:$0xff]
    %v102 = vld [vmem:[%s0 + $0x1e0] sm:$0xff]
    %v103 = vld [vmem:[%s0 + $0x1e8] sm:$0xff]
    %v104 = vld [vmem:[%s0 + $0x1f0] sm:$0xff]
    %v105 = vld [vmem:[%s0 + $0x1f8] sm:$0xff]
    %v106 = vld [vmem:[#allocation2] sm:$0x7]
    %v107 = vld [vmem:[#allocation4] sm:$0x1]
    %v109 = vperm.slane %v107, 0
    %vm111 = vcmask 23552
    %v113 = vsel %vm111, %v42, 0
    %v116 = vsel %vm111, %v43, 0
    %v119 = vsel %vm111, %v44, 0
    %v122 = vsel %vm111, %v45, 0
    %v125 = vsel %vm111, %v46, 0
    %v128 = vsel %vm111, %v47, 0
    %v131 = vsel %vm111, %v48, 0
    %v134 = vsel %vm111, %v49, 0
    %v137 = vsel %vm111, %v50, 0
    %v140 = vsel %vm111, %v51, 0
    %v143 = vsel %vm111, %v52, 0
    %v146 = vsel %vm111, %v53, 0
    %v149 = vsel %vm111, %v54, 0
    %v152 = vsel %vm111, %v55, 0
    %v155 = vsel %vm111, %v56, 0
    %v158 = vsel %vm111, %v57, 0
    %v161 = vsel %vm111, %v58, 0
    %v164 = vsel %vm111, %v59, 0
    %v167 = vsel %vm111, %v60, 0
    %v170 = vsel %vm111, %v61, 0
    %v173 = vsel %vm111, %v62, 0
    %v176 = vsel %vm111, %v63, 0
    %v179 = vsel %vm111, %v64, 0
    %v182 = vsel %vm111, %v65, 0
    %v185 = vsel %vm111, %v66, 0
    %v188 = vsel %vm111, %v67, 0
    %v191 = vsel %vm111, %v68, 0
    %v194 = vsel %vm111, %v69, 0
    %v197 = vsel %vm111, %v70, 0
    %v200 = vsel %vm111, %v71, 0
    %v203 = vsel %vm111, %v72, 0
    %v206 = vsel %vm111, %v73, 0
    %v209 = vsel %vm111, %v74, 0
    %v212 = vsel %vm111, %v75, 0
    %v215 = vsel %vm111, %v76, 0
    %v218 = vsel %vm111, %v77, 0
    %v221 = vsel %vm111, %v78, 0
    %v224 = vsel %vm111, %v79, 0
    %v227 = vsel %vm111, %v80, 0
    %v230 = vsel %vm111, %v81, 0
    %v233 = vsel %vm111, %v82, 0
    %v236 = vsel %vm111, %v83, 0
    %v239 = vsel %vm111, %v84, 0
    %v242 = vsel %vm111, %v85, 0
    %v245 = vsel %vm111, %v86, 0
    %v248 = vsel %vm111, %v87, 0
    %v251 = vsel %vm111, %v88, 0
    %v254 = vsel %vm111, %v89, 0
    %v257 = vsel %vm111, %v90, 0
    %v260 = vsel %vm111, %v91, 0
    %v263 = vsel %vm111, %v92, 0
    %v266 = vsel %vm111, %v93, 0
    %v269 = vsel %vm111, %v94, 0
    %v272 = vsel %vm111, %v95, 0
    %v275 = vsel %vm111, %v96, 0
    %v278 = vsel %vm111, %v97, 0
    %v281 = vsel %vm111, %v98, 0
    %v284 = vsel %vm111, %v99, 0
    %v287 = vsel %vm111, %v100, 0
    %v290 = vsel %vm111, %v101, 0
    %v293 = vsel %vm111, %v102, 0
    %v296 = vsel %vm111, %v103, 0
    %v299 = vsel %vm111, %v104, 0
    %v302 = vsel %vm111, %v105, 0
    %vm304 = vcmask 1042432
    %v306 = vsel %vm304, %v106, 0
    %308 = vmatpush.msra.mxu0 0.0
    %309 = vmatpush.msra.mxu0 0.0
    %310 = vmatpush.msra.mxu0 0.0
    %311 = vmatpush.msra.mxu0 0.0
    %312 = vmatpush.msra.mxu0 0.0
    %313 = vmatpush.msra.mxu0 0.0
    %314 = vmatpush.msra.mxu0 0.0
    %315 = vmatpush.msra.mxu0 0.0
    %316 = vmatpush.msra.mxu0 0.0
    %317 = vmatpush.msra.mxu0 0.0
    %318 = vmatpush.msra.mxu0 0.0
    %319 = vmatpush.msra.mxu0 0.0
    %320 = vmatpush.msra.mxu0 0.0
    %321 = vmatpush.msra.mxu0 0.0
    %322 = vmatpush.msra.mxu0 0.0
    %323 = vmatpush.msra.mxu0 %v306
    %324 = vmatmul.f32.gmra.mxu0 %v113
    %v325 = vpop.f32.mrf.mxu0
    %v326 = vadd.f32 %v109, %v325
    %327 = vmatmul.f32.gmra.mxu0 %v116
    %v328 = vpop.f32.mrf.mxu0
    %v329 = vadd.f32 %v109, %v328
    %330 = vmatmul.f32.gmra.mxu0 %v119
    %v331 = vpop.f32.mrf.mxu0
    %v332 = vadd.f32 %v109, %v331
    %333 = vmatmul.f32.gmra.mxu0 %v122
    %v334 = vpop.f32.mrf.mxu0
    %v335 = vadd.f32 %v109, %v334
    %336 = vmatmul.f32.gmra.mxu0 %v125
    %v337 = vpop.f32.mrf.mxu0
    %v338 = vadd.f32 %v109, %v337
    %339 = vmatmul.f32.gmra.mxu0 %v128
    %v340 = vpop.f32.mrf.mxu0
    %v341 = vadd.f32 %v109, %v340
    %342 = vmatmul.f32.gmra.mxu0 %v131
    %v343 = vpop.f32.mrf.mxu0
    %v344 = vadd.f32 %v109, %v343
    %345 = vmatmul.f32.gmra.mxu0 %v134
    %v346 = vpop.f32.mrf.mxu0
    %v347 = vadd.f32 %v109, %v346
    %348 = vmatmul.f32.gmra.mxu0 %v137
    %v349 = vpop.f32.mrf.mxu0
    %v350 = vadd.f32 %v109, %v349
    %351 = vmatmul.f32.gmra.mxu0 %v140
    %v352 = vpop.f32.mrf.mxu0
    %v353 = vadd.f32 %v109, %v352
    %354 = vmatmul.f32.gmra.mxu0 %v143
    %v355 = vpop.f32.mrf.mxu0
    %v356 = vadd.f32 %v109, %v355
    %357 = vmatmul.f32.gmra.mxu0 %v146
    %v358 = vpop.f32.mrf.mxu0
    %v359 = vadd.f32 %v109, %v358
    %360 = vmatmul.f32.gmra.mxu0 %v149
    %v361 = vpop.f32.mrf.mxu0
    %v362 = vadd.f32 %v109, %v361
    %363 = vmatmul.f32.gmra.mxu0 %v152
    %v364 = vpop.f32.mrf.mxu0
    %v365 = vadd.f32 %v109, %v364
    %366 = vmatmul.f32.gmra.mxu0 %v155
    %v367 = vpop.f32.mrf.mxu0
    %v368 = vadd.f32 %v109, %v367
    %369 = vmatmul.f32.gmra.mxu0 %v158
    %v370 = vpop.f32.mrf.mxu0
    %v371 = vadd.f32 %v109, %v370
    %372 = vmatmul.f32.gmra.mxu0 %v161
    %v373 = vpop.f32.mrf.mxu0
    %v374 = vadd.f32 %v109, %v373
    %375 = vmatmul.f32.gmra.mxu0 %v164
    %v376 = vpop.f32.mrf.mxu0
    %v377 = vadd.f32 %v109, %v376
    %378 = vmatmul.f32.gmra.mxu0 %v167
    %v379 = vpop.f32.mrf.mxu0
    %v380 = vadd.f32 %v109, %v379
    %381 = vmatmul.f32.gmra.mxu0 %v170
    %v382 = vpop.f32.mrf.mxu0
    %v383 = vadd.f32 %v109, %v382
    %384 = vmatmul.f32.gmra.mxu0 %v173
    %v385 = vpop.f32.mrf.mxu0
    %v386 = vadd.f32 %v109, %v385
    %387 = vmatmul.f32.gmra.mxu0 %v176
    %v388 = vpop.f32.mrf.mxu0
    %v389 = vadd.f32 %v109, %v388
    %390 = vmatmul.f32.gmra.mxu0 %v179
    %v391 = vpop.f32.mrf.mxu0
    %v392 = vadd.f32 %v109, %v391
    %393 = vmatmul.f32.gmra.mxu0 %v182
    %v394 = vpop.f32.mrf.mxu0
    %v395 = vadd.f32 %v109, %v394
    %396 = vmatmul.f32.gmra.mxu0 %v185
    %v397 = vpop.f32.mrf.mxu0
    %v398 = vadd.f32 %v109, %v397
    %399 = vmatmul.f32.gmra.mxu0 %v188
    %v400 = vpop.f32.mrf.mxu0
    %v401 = vadd.f32 %v109, %v400
    %402 = vmatmul.f32.gmra.mxu0 %v191
    %v403 = vpop.f32.mrf.mxu0
    %v404 = vadd.f32 %v109, %v403
    %405 = vmatmul.f32.gmra.mxu0 %v194
    %v406 = vpop.f32.mrf.mxu0
    %v407 = vadd.f32 %v109, %v406
    %408 = vmatmul.f32.gmra.mxu0 %v197
    %v409 = vpop.f32.mrf.mxu0
    %v410 = vadd.f32 %v109, %v409
    %411 = vmatmul.f32.gmra.mxu0 %v200
    %v412 = vpop.f32.mrf.mxu0
    %v413 = vadd.f32 %v109, %v412
    %414 = vmatmul.f32.gmra.mxu0 %v203
    %v415 = vpop.f32.mrf.mxu0
    %v416 = vadd.f32 %v109, %v415
    %417 = vmatmul.f32.gmra.mxu0 %v206
    %v418 = vpop.f32.mrf.mxu0
    %v419 = vadd.f32 %v109, %v418
    %420 = vmatmul.f32.gmra.mxu0 %v209
    %v421 = vpop.f32.mrf.mxu0
    %v422 = vadd.f32 %v109, %v421
    %423 = vmatmul.f32.gmra.mxu0 %v212
    %v424 = vpop.f32.mrf.mxu0
    %v425 = vadd.f32 %v109, %v424
    %426 = vmatmul.f32.gmra.mxu0 %v215
    %v427 = vpop.f32.mrf.mxu0
    %v428 = vadd.f32 %v109, %v427
    %429 = vmatmul.f32.gmra.mxu0 %v218
    %v430 = vpop.f32.mrf.mxu0
    %v431 = vadd.f32 %v109, %v430
    %432 = vmatmul.f32.gmra.mxu0 %v221
    %v433 = vpop.f32.mrf.mxu0
    %v434 = vadd.f32 %v109, %v433
    %435 = vmatmul.f32.gmra.mxu0 %v224
    %v436 = vpop.f32.mrf.mxu0
    %v437 = vadd.f32 %v109, %v436
    %438 = vmatmul.f32.gmra.mxu0 %v227
    %v439 = vpop.f32.mrf.mxu0
    %v440 = vadd.f32 %v109, %v439
    %441 = vmatmul.f32.gmra.mxu0 %v230
    %v442 = vpop.f32.mrf.mxu0
    %v443 = vadd.f32 %v109, %v442
    %444 = vmatmul.f32.gmra.mxu0 %v233
    %v445 = vpop.f32.mrf.mxu0
    %v446 = vadd.f32 %v109, %v445
    %447 = vmatmul.f32.gmra.mxu0 %v236
    %v448 = vpop.f32.mrf.mxu0
    %v449 = vadd.f32 %v109, %v448
    %450 = vmatmul.f32.gmra.mxu0 %v239
    %v451 = vpop.f32.mrf.mxu0
    %v452 = vadd.f32 %v109, %v451
    %453 = vmatmul.f32.gmra.mxu0 %v242
    %v454 = vpop.f32.mrf.mxu0
    %v455 = vadd.f32 %v109, %v454
    %456 = vmatmul.f32.gmra.mxu0 %v245
    %v457 = vpop.f32.mrf.mxu0
    %v458 = vadd.f32 %v109, %v457
    %459 = vmatmul.f32.gmra.mxu0 %v248
    %v460 = vpop.f32.mrf.mxu0
    %v461 = vadd.f32 %v109, %v460
    %462 = vmatmul.f32.gmra.mxu0 %v251
    %v463 = vpop.f32.mrf.mxu0
    %v464 = vadd.f32 %v109, %v463
    %465 = vmatmul.f32.gmra.mxu0 %v254
    %v466 = vpop.f32.mrf.mxu0
    %v467 = vadd.f32 %v109, %v466
    %468 = vmatmul.f32.gmra.mxu0 %v257
    %v469 = vpop.f32.mrf.mxu0
    %v470 = vadd.f32 %v109, %v469
    %471 = vmatmul.f32.gmra.mxu0 %v260
    %v472 = vpop.f32.mrf.mxu0
    %v473 = vadd.f32 %v109, %v472
    %474 = vmatmul.f32.gmra.mxu0 %v263
    %v475 = vpop.f32.mrf.mxu0
    %v476 = vadd.f32 %v109, %v475
    %477 = vmatmul.f32.gmra.mxu0 %v266
    %v478 = vpop.f32.mrf.mxu0
    %v479 = vadd.f32 %v109, %v478
    %480 = vmatmul.f32.gmra.mxu0 %v269
    %v481 = vpop.f32.mrf.mxu0
    %v482 = vadd.f32 %v109, %v481
    %483 = vmatmul.f32.gmra.mxu0 %v272
    %v484 = vpop.f32.mrf.mxu0
    %v485 = vadd.f32 %v109, %v484
    %486 = vmatmul.f32.gmra.mxu0 %v275
    %v487 = vpop.f32.mrf.mxu0
    %v488 = vadd.f32 %v109, %v487
    %489 = vmatmul.f32.gmra.mxu0 %v278
    %v490 = vpop.f32.mrf.mxu0
    %v491 = vadd.f32 %v109, %v490
    %492 = vmatmul.f32.gmra.mxu0 %v281
    %v493 = vpop.f32.mrf.mxu0
    %v494 = vadd.f32 %v109, %v493
    %495 = vmatmul.f32.gmra.mxu0 %v284
    %v496 = vpop.f32.mrf.mxu0
    %v497 = vadd.f32 %v109, %v496
    %498 = vmatmul.f32.gmra.mxu0 %v287
    %v499 = vpop.f32.mrf.mxu0
    %v500 = vadd.f32 %v109, %v499
    %501 = vmatmul.f32.gmra.mxu0 %v290
    %v502 = vpop.f32.mrf.mxu0
    %v503 = vadd.f32 %v109, %v502
    %504 = vmatmul.f32.gmra.mxu0 %v293
    %v505 = vpop.f32.mrf.mxu0
    %v506 = vadd.f32 %v109, %v505
    %507 = vmatmul.f32.gmra.mxu0 %v296
    %v508 = vpop.f32.mrf.mxu0
    %v509 = vadd.f32 %v109, %v508
    %510 = vmatmul.f32.gmra.mxu0 %v299
    %v511 = vpop.f32.mrf.mxu0
    %v512 = vadd.f32 %v109, %v511
    %513 = vmatmul.f32.gmra.mxu0 %v302
    %v514 = vpop.f32.mrf.mxu0
    %v515 = vadd.f32 %v109, %v514
    %516 = vdwg.mxu0
    %517 = vst [vmem:[%s3] sm:$0xff] %v326
    %518 = vst [vmem:[%s3 + $0x8] sm:$0xff] %v329
    %519 = vst [vmem:[%s3 + $0x10] sm:$0xff] %v332
    %520 = vst [vmem:[%s3 + $0x18] sm:$0xff] %v335
    %521 = vst [vmem:[%s3 + $0x20] sm:$0xff] %v338
    %522 = vst [vmem:[%s3 + $0x28] sm:$0xff] %v341
    %523 = vst [vmem:[%s3 + $0x30] sm:$0xff] %v344
    %524 = vst [vmem:[%s3 + $0x38] sm:$0xff] %v347
    %525 = vst [vmem:[%s3 + $0x40] sm:$0xff] %v350
    %526 = vst [vmem:[%s3 + $0x48] sm:$0xff] %v353
    %527 = vst [vmem:[%s3 + $0x50] sm:$0xff] %v356
    %528 = vst [vmem:[%s3 + $0x58] sm:$0xff] %v359
    %529 = vst [vmem:[%s3 + $0x60] sm:$0xff] %v362
    %530 = vst [vmem:[%s3 + $0x68] sm:$0xff] %v365
    %531 = vst [vmem:[%s3 + $0x70] sm:$0xff] %v368
    %532 = vst [vmem:[%s3 + $0x78] sm:$0xff] %v371
    %533 = vst [vmem:[%s3 + $0x80] sm:$0xff] %v374
    %534 = vst [vmem:[%s3 + $0x88] sm:$0xff] %v377
    %535 = vst [vmem:[%s3 + $0x90] sm:$0xff] %v380
    %536 = vst [vmem:[%s3 + $0x98] sm:$0xff] %v383
    %537 = vst [vmem:[%s3 + $0xa0] sm:$0xff] %v386
    %538 = vst [vmem:[%s3 + $0xa8] sm:$0xff] %v389
    %539 = vst [vmem:[%s3 + $0xb0] sm:$0xff] %v392
    %540 = vst [vmem:[%s3 + $0xb8] sm:$0xff] %v395
    %541 = vst [vmem:[%s3 + $0xc0] sm:$0xff] %v398
    %542 = vst [vmem:[%s3 + $0xc8] sm:$0xff] %v401
    %543 = vst [vmem:[%s3 + $0xd0] sm:$0xff] %v404
    %544 = vst [vmem:[%s3 + $0xd8] sm:$0xff] %v407
    %545 = vst [vmem:[%s3 + $0xe0] sm:$0xff] %v410
    %546 = vst [vmem:[%s3 + $0xe8] sm:$0xff] %v413
    %547 = vst [vmem:[%s3 + $0xf0] sm:$0xff] %v416
    %548 = vst [vmem:[%s3 + $0xf8] sm:$0xff] %v419
    %549 = vst [vmem:[%s3 + $0x100] sm:$0xff] %v422
    %550 = vst [vmem:[%s3 + $0x108] sm:$0xff] %v425
    %551 = vst [vmem:[%s3 + $0x110] sm:$0xff] %v428
    %552 = vst [vmem:[%s3 + $0x118] sm:$0xff] %v431
    %553 = vst [vmem:[%s3 + $0x120] sm:$0xff] %v434
    %554 = vst [vmem:[%s3 + $0x128] sm:$0xff] %v437
    %555 = vst [vmem:[%s3 + $0x130] sm:$0xff] %v440
    %556 = vst [vmem:[%s3 + $0x138] sm:$0xff] %v443
    %557 = vst [vmem:[%s3 + $0x140] sm:$0xff] %v446
    %558 = vst [vmem:[%s3 + $0x148] sm:$0xff] %v449
    %559 = vst [vmem:[%s3 + $0x150] sm:$0xff] %v452
    %560 = vst [vmem:[%s3 + $0x158] sm:$0xff] %v455
    %561 = vst [vmem:[%s3 + $0x160] sm:$0xff] %v458
    %562 = vst [vmem:[%s3 + $0x168] sm:$0xff] %v461
    %563 = vst [vmem:[%s3 + $0x170] sm:$0xff] %v464
    %564 = vst [vmem:[%s3 + $0x178] sm:$0xff] %v467
    %565 = vst [vmem:[%s3 + $0x180] sm:$0xff] %v470
    %566 = vst [vmem:[%s3 + $0x188] sm:$0xff] %v473
    %567 = vst [vmem:[%s3 + $0x190] sm:$0xff] %v476
    %568 = vst [vmem:[%s3 + $0x198] sm:$0xff] %v479
    %569 = vst [vmem:[%s3 + $0x1a0] sm:$0xff] %v482
    %570 = vst [vmem:[%s3 + $0x1a8] sm:$0xff] %v485
    %571 = vst [vmem:[%s3 + $0x1b0] sm:$0xff] %v488
    %572 = vst [vmem:[%s3 + $0x1b8] sm:$0xff] %v491
    %573 = vst [vmem:[%s3 + $0x1c0] sm:$0xff] %v494
    %574 = vst [vmem:[%s3 + $0x1c8] sm:$0xff] %v497
    %575 = vst [vmem:[%s3 + $0x1d0] sm:$0xff] %v500
    %576 = vst [vmem:[%s3 + $0x1d8] sm:$0xff] %v503
    %577 = vst [vmem:[%s3 + $0x1e0] sm:$0xff] %v506
    %578 = vst [vmem:[%s3 + $0x1e8] sm:$0xff] %v509
    %579 = vst [vmem:[%s3 + $0x1f0] sm:$0xff] %v512
    %580 = vst [vmem:[%s3 + $0x1f8] sm:$0xff] %v515
    // Predicated region
    $region22: #{_lambda_.13} parent=1 // pred_check
      _
    $region23: #{_lambda_.13} parent=1 // pred_check_branch
      %582 = sbr.rel (0) target = $region25
    $region24: #{_lambda_.13} parent=1 // pred_region
      _
    $region25: #{_lambda_.13} parent=1 // pred_fallthru
      _
    // Predicated region
    $region26: #{_lambda_.13} parent=1 // pred_check
      _
    $region27: #{_lambda_.13} parent=1 // pred_check_branch
      %584 = sbr.rel (0) target = $region29
    $region28: #{_lambda_.13} parent=1 // pred_region
      _
    $region29: #{_lambda_.13} parent=1 // pred_fallthru
      _
    %585 = vsyncpa [#allocation3], 1
    %586 = vsyncpa [#allocation5], 1

// kernel: _lambda_.14
$region0: #{_lambda_.14}
  #allocation0 [shape = 'u32[]', space=smem, size = 0x4, offset = 0x4, fixed_abs, tag = 'smem constant byte address 0x4 - core index']
  #allocation1 [shape = 'u32[72,128]{1,0:T(1,128)}', space=vmem, size = 0x9000, scoped, tag = 'internal scratch']
  %s0 = inlined_call_operand.vmem [shape: f32[512,27], index: 0, kind: input, shape index: {}]
  %s1 = inlined_call_operand.vmem [shape: f32[27,128], index: 1, kind: input, shape index: {}]
  %s2 = inlined_call_operand.vmem [shape: f32[1,128], index: 2, kind: input, shape index: {}]
  %s3 = inlined_call_operand.vmem [shape: f32[512,128], index: 3, kind: output, shape index: {}]
  %s4 = sld [smem:[#allocation0]]
  $region22: #{_lambda_.14} parent=0
    _
  %s6 = ssub.s32 1, %s4
  %s7 = scalar_select 0, %s6, %s4
  // Predicated region
  $region2: #{_lambda_.14} parent=0 // pred_check
    _
  $region3: #{_lambda_.14} parent=0 // pred_check_branch
    %9 = sbr.rel (0) target = $region5
  $region4: #{_lambda_.14} parent=0 // pred_region
    _
  $region5: #{_lambda_.14} parent=0 // pred_fallthru
    _
  // Predicated region
  $region6: #{_lambda_.14} parent=0 // pred_check
    _
  $region7: #{_lambda_.14} parent=0 // pred_check_branch
    %11 = sbr.rel (0) target = $region9
  $region8: #{_lambda_.14} parent=0 // pred_region
    _
  $region9: #{_lambda_.14} parent=0 // pred_fallthru
    _
  // Predicated region
  $region10: #{_lambda_.14} parent=0 // pred_check
    _
  $region11: #{_lambda_.14} parent=0 // pred_check_branch
    %13 = sbr.rel (0) target = $region13
  $region12: #{_lambda_.14} parent=0 // pred_region
    _
  $region13: #{_lambda_.14} parent=0 // pred_fallthru
    _
  %v14 = vld [vmem:[%s0] sm:$0xff]
  %v15 = vld [vmem:[%s0 + $0x8] sm:$0xff]
  %v16 = vld [vmem:[%s0 + $0x10] sm:$0xff]
  %v17 = vld [vmem:[%s0 + $0x18] sm:$0xff]
  %v18 = vld [vmem:[%s0 + $0x20] sm:$0xff]
  %v19 = vld [vmem:[%s0 + $0x28] sm:$0xff]
  %v20 = vld [vmem:[%s0 + $0x30] sm:$0xff]
  %v21 = vld [vmem:[%s0 + $0x38] sm:$0xff]
  %v22 = vld [vmem:[%s0 + $0x40] sm:$0xff]
  %v23 = vld [vmem:[%s0 + $0x48] sm:$0xff]
  %v24 = vld [vmem:[%s0 + $0x50] sm:$0xff]
  %v25 = vld [vmem:[%s0 + $0x58] sm:$0xff]
  %v26 = vld [vmem:[%s0 + $0x60] sm:$0xff]
  %v27 = vld [vmem:[%s0 + $0x68] sm:$0xff]
  %v28 = vld [vmem:[%s0 + $0x70] sm:$0xff]
  %v29 = vld [vmem:[%s0 + $0x78] sm:$0xff]
  %v30 = vld [vmem:[%s0 + $0x80] sm:$0xff]
  %v31 = vld [vmem:[%s0 + $0x88] sm:$0xff]
  %v32 = vld [vmem:[%s0 + $0x90] sm:$0xff]
  %v33 = vld [vmem:[%s0 + $0x98] sm:$0xff]
  %v34 = vld [vmem:[%s0 + $0xa0] sm:$0xff]
  %v35 = vld [vmem:[%s0 + $0xa8] sm:$0xff]
  %v36 = vld [vmem:[%s0 + $0xb0] sm:$0xff]
  %v37 = vld [vmem:[%s0 + $0xb8] sm:$0xff]
  %v38 = vld [vmem:[%s0 + $0xc0] sm:$0xff]
  %v39 = vld [vmem:[%s0 + $0xc8] sm:$0xff]
  %v40 = vld [vmem:[%s0 + $0xd0] sm:$0xff]
  %v41 = vld [vmem:[%s0 + $0xd8] sm:$0xff]
  %v42 = vld [vmem:[%s0 + $0xe0] sm:$0xff]
  %v43 = vld [vmem:[%s0 + $0xe8] sm:$0xff]
  %v44 = vld [vmem:[%s0 + $0xf0] sm:$0xff]
  %v45 = vld [vmem:[%s0 + $0xf8] sm:$0xff]
  %v46 = vld [vmem:[%s0 + $0x100] sm:$0xff]
  %v47 = vld [vmem:[%s0 + $0x108] sm:$0xff]
  %v48 = vld [vmem:[%s0 + $0x110] sm:$0xff]
  %v49 = vld [vmem:[%s0 + $0x118] sm:$0xff]
  %v50 = vld [vmem:[%s0 + $0x120] sm:$0xff]
  %v51 = vld [vmem:[%s0 + $0x128] sm:$0xff]
  %v52 = vld [vmem:[%s0 + $0x130] sm:$0xff]
  %v53 = vld [vmem:[%s0 + $0x138] sm:$0xff]
  %v54 = vld [vmem:[%s0 + $0x140] sm:$0xff]
  %v55 = vld [vmem:[%s0 + $0x148] sm:$0xff]
  %v56 = vld [vmem:[%s0 + $0x150] sm:$0xff]
  %v57 = vld [vmem:[%s0 + $0x158] sm:$0xff]
  %v58 = vld [vmem:[%s0 + $0x160] sm:$0xff]
  %v59 = vld [vmem:[%s0 + $0x168] sm:$0xff]
  %v60 = vld [vmem:[%s0 + $0x170] sm:$0xff]
  %v61 = vld [vmem:[%s0 + $0x178] sm:$0xff]
  %v62 = vld [vmem:[%s0 + $0x180] sm:$0xff]
  %v63 = vld [vmem:[%s0 + $0x188] sm:$0xff]
  %v64 = vld [vmem:[%s0 + $0x190] sm:$0xff]
  %v65 = vld [vmem:[%s0 + $0x198] sm:$0xff]
  %v66 = vld [vmem:[%s0 + $0x1a0] sm:$0xff]
  %v67 = vld [vmem:[%s0 + $0x1a8] sm:$0xff]
  %v68 = vld [vmem:[%s0 + $0x1b0] sm:$0xff]
  %v69 = vld [vmem:[%s0 + $0x1b8] sm:$0xff]
  %v70 = vld [vmem:[%s0 + $0x1c0] sm:$0xff]
  %v71 = vld [vmem:[%s0 + $0x1c8] sm:$0xff]
  %v72 = vld [vmem:[%s0 + $0x1d0] sm:$0xff]
  %v73 = vld [vmem:[%s0 + $0x1d8] sm:$0xff]
  %v74 = vld [vmem:[%s0 + $0x1e0] sm:$0xff]
  %v75 = vld [vmem:[%s0 + $0x1e8] sm:$0xff]
  %v76 = vld [vmem:[%s0 + $0x1f0] sm:$0xff]
  %v77 = vld [vmem:[%s0 + $0x1f8] sm:$0xff]
  %v78 = vld [vmem:[%s1] sm:$0xff]
  %v79 = vld [vmem:[%s1 + $0x8] sm:$0xff]
  %v80 = vld [vmem:[%s1 + $0x10] sm:$0xff]
  %v81 = vld [vmem:[%s1 + $0x18] sm:$0x7]
  %v82 = vld [vmem:[%s2] sm:$0x1]
  %v84 = vperm.slane %v82, 0
  %vm86 = vcmask 220160
  %v88 = vsel %vm86, %v14, 0
  %v91 = vsel %vm86, %v15, 0
  %v94 = vsel %vm86, %v16, 0
  %v97 = vsel %vm86, %v17, 0
  %v100 = vsel %vm86, %v18, 0
  %v103 = vsel %vm86, %v19, 0
  %v106 = vsel %vm86, %v20, 0
  %v109 = vsel %vm86, %v21, 0
  %v112 = vsel %vm86, %v22, 0
  %v115 = vsel %vm86, %v23, 0
  %v118 = vsel %vm86, %v24, 0
  %v121 = vsel %vm86, %v25, 0
  %v124 = vsel %vm86, %v26, 0
  %v127 = vsel %vm86, %v27, 0
  %v130 = vsel %vm86, %v28, 0
  %v133 = vsel %vm86, %v29, 0
  %v136 = vsel %vm86, %v30, 0
  %v139 = vsel %vm86, %v31, 0
  %v142 = vsel %vm86, %v32, 0
  %v145 = vsel %vm86, %v33, 0
  %v148 = vsel %vm86, %v34, 0
  %v151 = vsel %vm86, %v35, 0
  %v154 = vsel %vm86, %v36, 0
  %v157 = vsel %vm86, %v37, 0
  %v160 = vsel %vm86, %v38, 0
  %v163 = vsel %vm86, %v39, 0
  %v166 = vsel %vm86, %v40, 0
  %v169 = vsel %vm86, %v41, 0
  %v172 = vsel %vm86, %v42, 0
  %v175 = vsel %vm86, %v43, 0
  %v178 = vsel %vm86, %v44, 0
  %v181 = vsel %vm86, %v45, 0
  %v184 = vsel %vm86, %v46, 0
  %v187 = vsel %vm86, %v47, 0
  %v190 = vsel %vm86, %v48, 0
  %v193 = vsel %vm86, %v49, 0
  %v196 = vsel %vm86, %v50, 0
  %v199 = vsel %vm86, %v51, 0
  %v202 = vsel %vm86, %v52, 0
  %v205 = vsel %vm86, %v53, 0
  %v208 = vsel %vm86, %v54, 0
  %v211 = vsel %vm86, %v55, 0
  %v214 = vsel %vm86, %v56, 0
  %v217 = vsel %vm86, %v57, 0
  %v220 = vsel %vm86, %v58, 0
  %v223 = vsel %vm86, %v59, 0
  %v226 = vsel %vm86, %v60, 0
  %v229 = vsel %vm86, %v61, 0
  %v232 = vsel %vm86, %v62, 0
  %v235 = vsel %vm86, %v63, 0
  %v238 = vsel %vm86, %v64, 0
  %v241 = vsel %vm86, %v65, 0
  %v244 = vsel %vm86, %v66, 0
  %v247 = vsel %vm86, %v67, 0
  %v250 = vsel %vm86, %v68, 0
  %v253 = vsel %vm86, %v69, 0
  %v256 = vsel %vm86, %v70, 0
  %v259 = vsel %vm86, %v71, 0
  %v262 = vsel %vm86, %v72, 0
  %v265 = vsel %vm86, %v73, 0
  %v268 = vsel %vm86, %v74, 0
  %v271 = vsel %vm86, %v75, 0
  %v274 = vsel %vm86, %v76, 0
  %v277 = vsel %vm86, %v77, 0
  %vm279 = vcmask 1042432
  %v281 = vsel %vm279, %v81, 0
  %283 = vmatpush.msra.mxu0 0.0
  %284 = vmatpush.msra.mxu0 0.0
  %285 = vmatpush.msra.mxu0 0.0
  %286 = vmatpush.msra.mxu0 0.0
  %287 = vmatpush.msra.mxu0 0.0
  %288 = vmatpush.msra.mxu0 0.0
  %289 = vmatpush.msra.mxu0 0.0
  %290 = vmatpush.msra.mxu0 0.0
  %291 = vmatpush.msra.mxu0 0.0
  %292 = vmatpush.msra.mxu0 0.0
  %293 = vmatpush.msra.mxu0 0.0
  %294 = vmatpush.msra.mxu0 0.0
  %295 = vmatpush.msra.mxu0 %v281
  %296 = vmatpush.msra.mxu0 %v80
  %297 = vmatpush.msra.mxu0 %v79
  %298 = vmatpush.msra.mxu0 %v78
  %299 = vmatmul.f32.gmra.mxu0 %v88
  %v300 = vpop.f32.mrf.mxu0
  %v301 = vadd.f32 %v84, %v300
  %302 = vmatmul.f32.gmra.mxu0 %v91
  %v303 = vpop.f32.mrf.mxu0
  %v304 = vadd.f32 %v84, %v303
  %305 = vmatmul.f32.gmra.mxu0 %v94
  %v306 = vpop.f32.mrf.mxu0
  %v307 = vadd.f32 %v84, %v306
  %308 = vmatmul.f32.gmra.mxu0 %v97
  %v309 = vpop.f32.mrf.mxu0
  %v310 = vadd.f32 %v84, %v309
  %311 = vmatmul.f32.gmra.mxu0 %v100
  %v312 = vpop.f32.mrf.mxu0
  %v313 = vadd.f32 %v84, %v312
  %314 = vmatmul.f32.gmra.mxu0 %v103
  %v315 = vpop.f32.mrf.mxu0
  %v316 = vadd.f32 %v84, %v315
  %317 = vmatmul.f32.gmra.mxu0 %v106
  %v318 = vpop.f32.mrf.mxu0
  %v319 = vadd.f32 %v84, %v318
  %320 = vmatmul.f32.gmra.mxu0 %v109
  %v321 = vpop.f32.mrf.mxu0
  %v322 = vadd.f32 %v84, %v321
  %323 = vmatmul.f32.gmra.mxu0 %v112
  %v324 = vpop.f32.mrf.mxu0
  %v325 = vadd.f32 %v84, %v324
  %326 = vmatmul.f32.gmra.mxu0 %v115
  %v327 = vpop.f32.mrf.mxu0
  %v328 = vadd.f32 %v84, %v327
  %329 = vmatmul.f32.gmra.mxu0 %v118
  %v330 = vpop.f32.mrf.mxu0
  %v331 = vadd.f32 %v84, %v330
  %332 = vmatmul.f32.gmra.mxu0 %v121
  %v333 = vpop.f32.mrf.mxu0
  %v334 = vadd.f32 %v84, %v333
  %335 = vmatmul.f32.gmra.mxu0 %v124
  %v336 = vpop.f32.mrf.mxu0
  %v337 = vadd.f32 %v84, %v336
  %338 = vmatmul.f32.gmra.mxu0 %v127
  %v339 = vpop.f32.mrf.mxu0
  %v340 = vadd.f32 %v84, %v339
  %341 = vmatmul.f32.gmra.mxu0 %v130
  %v342 = vpop.f32.mrf.mxu0
  %v343 = vadd.f32 %v84, %v342
  %344 = vmatmul.f32.gmra.mxu0 %v133
  %v345 = vpop.f32.mrf.mxu0
  %v346 = vadd.f32 %v84, %v345
  %347 = vmatmul.f32.gmra.mxu0 %v136
  %v348 = vpop.f32.mrf.mxu0
  %v349 = vadd.f32 %v84, %v348
  %350 = vmatmul.f32.gmra.mxu0 %v139
  %v351 = vpop.f32.mrf.mxu0
  %v352 = vadd.f32 %v84, %v351
  %353 = vmatmul.f32.gmra.mxu0 %v142
  %v354 = vpop.f32.mrf.mxu0
  %v355 = vadd.f32 %v84, %v354
  %356 = vmatmul.f32.gmra.mxu0 %v145
  %v357 = vpop.f32.mrf.mxu0
  %v358 = vadd.f32 %v84, %v357
  %359 = vmatmul.f32.gmra.mxu0 %v148
  %v360 = vpop.f32.mrf.mxu0
  %v361 = vadd.f32 %v84, %v360
  %362 = vmatmul.f32.gmra.mxu0 %v151
  %v363 = vpop.f32.mrf.mxu0
  %v364 = vadd.f32 %v84, %v363
  %365 = vmatmul.f32.gmra.mxu0 %v154
  %v366 = vpop.f32.mrf.mxu0
  %v367 = vadd.f32 %v84, %v366
  %368 = vmatmul.f32.gmra.mxu0 %v157
  %v369 = vpop.f32.mrf.mxu0
  %v370 = vadd.f32 %v84, %v369
  %371 = vmatmul.f32.gmra.mxu0 %v160
  %v372 = vpop.f32.mrf.mxu0
  %v373 = vadd.f32 %v84, %v372
  %374 = vmatmul.f32.gmra.mxu0 %v163
  %v375 = vpop.f32.mrf.mxu0
  %v376 = vadd.f32 %v84, %v375
  %377 = vmatmul.f32.gmra.mxu0 %v166
  %v378 = vpop.f32.mrf.mxu0
  %v379 = vadd.f32 %v84, %v378
  %380 = vmatmul.f32.gmra.mxu0 %v169
  %v381 = vpop.f32.mrf.mxu0
  %v382 = vadd.f32 %v84, %v381
  %383 = vmatmul.f32.gmra.mxu0 %v172
  %v384 = vpop.f32.mrf.mxu0
  %v385 = vadd.f32 %v84, %v384
  %386 = vmatmul.f32.gmra.mxu0 %v175
  %v387 = vpop.f32.mrf.mxu0
  %v388 = vadd.f32 %v84, %v387
  %389 = vmatmul.f32.gmra.mxu0 %v178
  %v390 = vpop.f32.mrf.mxu0
  %v391 = vadd.f32 %v84, %v390
  %392 = vmatmul.f32.gmra.mxu0 %v181
  %v393 = vpop.f32.mrf.mxu0
  %v394 = vadd.f32 %v84, %v393
  %395 = vmatmul.f32.gmra.mxu0 %v184
  %v396 = vpop.f32.mrf.mxu0
  %v397 = vadd.f32 %v84, %v396
  %398 = vmatmul.f32.gmra.mxu0 %v187
  %v399 = vpop.f32.mrf.mxu0
  %v400 = vadd.f32 %v84, %v399
  %401 = vmatmul.f32.gmra.mxu0 %v190
  %v402 = vpop.f32.mrf.mxu0
  %v403 = vadd.f32 %v84, %v402
  %404 = vmatmul.f32.gmra.mxu0 %v193
  %v405 = vpop.f32.mrf.mxu0
  %v406 = vadd.f32 %v84, %v405
  %407 = vmatmul.f32.gmra.mxu0 %v196
  %v408 = vpop.f32.mrf.mxu0
  %v409 = vadd.f32 %v84, %v408
  %410 = vmatmul.f32.gmra.mxu0 %v199
  %v411 = vpop.f32.mrf.mxu0
  %v412 = vadd.f32 %v84, %v411
  %413 = vmatmul.f32.gmra.mxu0 %v202
  %v414 = vpop.f32.mrf.mxu0
  %v415 = vadd.f32 %v84, %v414
  %416 = vmatmul.f32.gmra.mxu0 %v205
  %v417 = vpop.f32.mrf.mxu0
  %v418 = vadd.f32 %v84, %v417
  %419 = vmatmul.f32.gmra.mxu0 %v208
  %v420 = vpop.f32.mrf.mxu0
  %v421 = vadd.f32 %v84, %v420
  %422 = vmatmul.f32.gmra.mxu0 %v211
  %v423 = vpop.f32.mrf.mxu0
  %v424 = vadd.f32 %v84, %v423
  %425 = vmatmul.f32.gmra.mxu0 %v214
  %v426 = vpop.f32.mrf.mxu0
  %v427 = vadd.f32 %v84, %v426
  %428 = vmatmul.f32.gmra.mxu0 %v217
  %v429 = vpop.f32.mrf.mxu0
  %v430 = vadd.f32 %v84, %v429
  %431 = vmatmul.f32.gmra.mxu0 %v220
  %v432 = vpop.f32.mrf.mxu0
  %v433 = vadd.f32 %v84, %v432
  %434 = vmatmul.f32.gmra.mxu0 %v223
  %v435 = vpop.f32.mrf.mxu0
  %v436 = vadd.f32 %v84, %v435
  %437 = vmatmul.f32.gmra.mxu0 %v226
  %v438 = vpop.f32.mrf.mxu0
  %v439 = vadd.f32 %v84, %v438
  %440 = vmatmul.f32.gmra.mxu0 %v229
  %v441 = vpop.f32.mrf.mxu0
  %v442 = vadd.f32 %v84, %v441
  %443 = vmatmul.f32.gmra.mxu0 %v232
  %v444 = vpop.f32.mrf.mxu0
  %v445 = vadd.f32 %v84, %v444
  %446 = vmatmul.f32.gmra.mxu0 %v235
  %v447 = vpop.f32.mrf.mxu0
  %v448 = vadd.f32 %v84, %v447
  %449 = vmatmul.f32.gmra.mxu0 %v238
  %v450 = vpop.f32.mrf.mxu0
  %v451 = vadd.f32 %v84, %v450
  %452 = vmatmul.f32.gmra.mxu0 %v241
  %v453 = vpop.f32.mrf.mxu0
  %v454 = vadd.f32 %v84, %v453
  %455 = vmatmul.f32.gmra.mxu0 %v244
  %v456 = vpop.f32.mrf.mxu0
  %v457 = vadd.f32 %v84, %v456
  %458 = vmatmul.f32.gmra.mxu0 %v247
  %v459 = vpop.f32.mrf.mxu0
  %v460 = vadd.f32 %v84, %v459
  %461 = vmatmul.f32.gmra.mxu0 %v250
  %v462 = vpop.f32.mrf.mxu0
  %v463 = vadd.f32 %v84, %v462
  %464 = vmatmul.f32.gmra.mxu0 %v253
  %v465 = vpop.f32.mrf.mxu0
  %v466 = vadd.f32 %v84, %v465
  %467 = vmatmul.f32.gmra.mxu0 %v256
  %v468 = vpop.f32.mrf.mxu0
  %v469 = vadd.f32 %v84, %v468
  %470 = vmatmul.f32.gmra.mxu0 %v259
  %v471 = vpop.f32.mrf.mxu0
  %v472 = vadd.f32 %v84, %v471
  %473 = vmatmul.f32.gmra.mxu0 %v262
  %v474 = vpop.f32.mrf.mxu0
  %v475 = vadd.f32 %v84, %v474
  %476 = vmatmul.f32.gmra.mxu0 %v265
  %v477 = vpop.f32.mrf.mxu0
  %v478 = vadd.f32 %v84, %v477
  %479 = vmatmul.f32.gmra.mxu0 %v268
  %v480 = vpop.f32.mrf.mxu0
  %v481 = vadd.f32 %v84, %v480
  %482 = vmatmul.f32.gmra.mxu0 %v271
  %v483 = vpop.f32.mrf.mxu0
  %v484 = vadd.f32 %v84, %v483
  %485 = vmatmul.f32.gmra.mxu0 %v274
  %v486 = vpop.f32.mrf.mxu0
  %v487 = vadd.f32 %v84, %v486
  %488 = vmatmul.f32.gmra.mxu0 %v277
  %v489 = vpop.f32.mrf.mxu0
  %v490 = vadd.f32 %v84, %v489
  %491 = vdwg.mxu0
  %v492 = vmax.f32 %v301, 0.0
  %v493 = vmax.f32 %v304, 0.0
  %v494 = vmax.f32 %v307, 0.0
  %v495 = vmax.f32 %v310, 0.0
  %v496 = vmax.f32 %v313, 0.0
  %v497 = vmax.f32 %v316, 0.0
  %v498 = vmax.f32 %v319, 0.0
  %v499 = vmax.f32 %v322, 0.0
  %v500 = vmax.f32 %v325, 0.0
  %v501 = vmax.f32 %v328, 0.0
  %v502 = vmax.f32 %v331, 0.0
  %v503 = vmax.f32 %v334, 0.0
  %v504 = vmax.f32 %v337, 0.0
  %v505 = vmax.f32 %v340, 0.0
  %v506 = vmax.f32 %v343, 0.0
  %v507 = vmax.f32 %v346, 0.0
  %v508 = vmax.f32 %v349, 0.0
  %v509 = vmax.f32 %v352, 0.0
  %v510 = vmax.f32 %v355, 0.0
  %v511 = vmax.f32 %v358, 0.0
  %v512 = vmax.f32 %v361, 0.0
  %v513 = vmax.f32 %v364, 0.0
  %v514 = vmax.f32 %v367, 0.0
  %v515 = vmax.f32 %v370, 0.0
  %v516 = vmax.f32 %v373, 0.0
  %v517 = vmax.f32 %v376, 0.0
  %v518 = vmax.f32 %v379, 0.0
  %v519 = vmax.f32 %v382, 0.0
  %v520 = vmax.f32 %v385, 0.0
  %v521 = vmax.f32 %v388, 0.0
  %v522 = vmax.f32 %v391, 0.0
  %v523 = vmax.f32 %v394, 0.0
  %v524 = vmax.f32 %v397, 0.0
  %v525 = vmax.f32 %v400, 0.0
  %v526 = vmax.f32 %v403, 0.0
  %v527 = vmax.f32 %v406, 0.0
  %v528 = vmax.f32 %v409, 0.0
  %v529 = vmax.f32 %v412, 0.0
  %v530 = vmax.f32 %v415, 0.0
  %v531 = vmax.f32 %v418, 0.0
  %v532 = vmax.f32 %v421, 0.0
  %v533 = vmax.f32 %v424, 0.0
  %v534 = vmax.f32 %v427, 0.0
  %v535 = vmax.f32 %v430, 0.0
  %v536 = vmax.f32 %v433, 0.0
  %v537 = vmax.f32 %v436, 0.0
  %v538 = vmax.f32 %v439, 0.0
  %v539 = vmax.f32 %v442, 0.0
  %v540 = vmax.f32 %v445, 0.0
  %v541 = vmax.f32 %v448, 0.0
  %v542 = vmax.f32 %v451, 0.0
  %v543 = vmax.f32 %v454, 0.0
  %v544 = vmax.f32 %v457, 0.0
  %v545 = vmax.f32 %v460, 0.0
  %v546 = vmax.f32 %v463, 0.0
  %v547 = vmax.f32 %v466, 0.0
  %v548 = vmax.f32 %v469, 0.0
  %v549 = vmax.f32 %v472, 0.0
  %v550 = vmax.f32 %v475, 0.0
  %v551 = vmax.f32 %v478, 0.0
  %v552 = vmax.f32 %v481, 0.0
  %v553 = vmax.f32 %v484, 0.0
  %v554 = vmax.f32 %v487, 0.0
  %v555 = vmax.f32 %v490, 0.0
  %556 = vst [vmem:[%s3] sm:$0xff] %v492
  %557 = vst [vmem:[%s3 + $0x8] sm:$0xff] %v493
  %558 = vst [vmem:[%s3 + $0x10] sm:$0xff] %v494
  %559 = vst [vmem:[%s3 + $0x18] sm:$0xff] %v495
  %560 = vst [vmem:[%s3 + $0x20] sm:$0xff] %v496
  %561 = vst [vmem:[%s3 + $0x28] sm:$0xff] %v497
  %562 = vst [vmem:[%s3 + $0x30] sm:$0xff] %v498
  %563 = vst [vmem:[%s3 + $0x38] sm:$0xff] %v499
  %564 = vst [vmem:[%s3 + $0x40] sm:$0xff] %v500
  %565 = vst [vmem:[%s3 + $0x48] sm:$0xff] %v501
  %566 = vst [vmem:[%s3 + $0x50] sm:$0xff] %v502
  %567 = vst [vmem:[%s3 + $0x58] sm:$0xff] %v503
  %568 = vst [vmem:[%s3 + $0x60] sm:$0xff] %v504
  %569 = vst [vmem:[%s3 + $0x68] sm:$0xff] %v505
  %570 = vst [vmem:[%s3 + $0x70] sm:$0xff] %v506
  %571 = vst [vmem:[%s3 + $0x78] sm:$0xff] %v507
  %572 = vst [vmem:[%s3 + $0x80] sm:$0xff] %v508
  %573 = vst [vmem:[%s3 + $0x88] sm:$0xff] %v509
  %574 = vst [vmem:[%s3 + $0x90] sm:$0xff] %v510
  %575 = vst [vmem:[%s3 + $0x98] sm:$0xff] %v511
  %576 = vst [vmem:[%s3 + $0xa0] sm:$0xff] %v512
  %577 = vst [vmem:[%s3 + $0xa8] sm:$0xff] %v513
  %578 = vst [vmem:[%s3 + $0xb0] sm:$0xff] %v514
  %579 = vst [vmem:[%s3 + $0xb8] sm:$0xff] %v515
  %580 = vst [vmem:[%s3 + $0xc0] sm:$0xff] %v516
  %581 = vst [vmem:[%s3 + $0xc8] sm:$0xff] %v517
  %582 = vst [vmem:[%s3 + $0xd0] sm:$0xff] %v518
  %583 = vst [vmem:[%s3 + $0xd8] sm:$0xff] %v519
  %584 = vst [vmem:[%s3 + $0xe0] sm:$0xff] %v520
  %585 = vst [vmem:[%s3 + $0xe8] sm:$0xff] %v521
  %586 = vst [vmem:[%s3 + $0xf0] sm:$0xff] %v522
  %587 = vst [vmem:[%s3 + $0xf8] sm:$0xff] %v523
  %588 = vst [vmem:[%s3 + $0x100] sm:$0xff] %v524
  %589 = vst [vmem:[%s3 + $0x108] sm:$0xff] %v525
  %590 = vst [vmem:[%s3 + $0x110] sm:$0xff] %v526
  %591 = vst [vmem:[%s3 + $0x118] sm:$0xff] %v527
  %592 = vst [vmem:[%s3 + $0x120] sm:$0xff] %v528
  %593 = vst [vmem:[%s3 + $0x128] sm:$0xff] %v529
  %594 = vst [vmem:[%s3 + $0x130] sm:$0xff] %v530
  %595 = vst [vmem:[%s3 + $0x138] sm:$0xff] %v531
  %596 = vst [vmem:[%s3 + $0x140] sm:$0xff] %v532
  %597 = vst [vmem:[%s3 + $0x148] sm:$0xff] %v533
  %598 = vst [vmem:[%s3 + $0x150] sm:$0xff] %v534
  %599 = vst [vmem:[%s3 + $0x158] sm:$0xff] %v535
  %600 = vst [vmem:[%s3 + $0x160] sm:$0xff] %v536
  %601 = vst [vmem:[%s3 + $0x168] sm:$0xff] %v537
  %602 = vst [vmem:[%s3 + $0x170] sm:$0xff] %v538
  %603 = vst [vmem:[%s3 + $0x178] sm:$0xff] %v539
  %604 = vst [vmem:[%s3 + $0x180] sm:$0xff] %v540
  %605 = vst [vmem:[%s3 + $0x188] sm:$0xff] %v541
  %606 = vst [vmem:[%s3 + $0x190] sm:$0xff] %v542
  %607 = vst [vmem:[%s3 + $0x198] sm:$0xff] %v543
  %608 = vst [vmem:[%s3 + $0x1a0] sm:$0xff] %v544
  %609 = vst [vmem:[%s3 + $0x1a8] sm:$0xff] %v545
  %610 = vst [vmem:[%s3 + $0x1b0] sm:$0xff] %v546
  %611 = vst [vmem:[%s3 + $0x1b8] sm:$0xff] %v547
  %612 = vst [vmem:[%s3 + $0x1c0] sm:$0xff] %v548
  %613 = vst [vmem:[%s3 + $0x1c8] sm:$0xff] %v549
  %614 = vst [vmem:[%s3 + $0x1d0] sm:$0xff] %v550
  %615 = vst [vmem:[%s3 + $0x1d8] sm:$0xff] %v551
  %616 = vst [vmem:[%s3 + $0x1e0] sm:$0xff] %v552
  %617 = vst [vmem:[%s3 + $0x1e8] sm:$0xff] %v553
  %618 = vst [vmem:[%s3 + $0x1f0] sm:$0xff] %v554
  %619 = vst [vmem:[%s3 + $0x1f8] sm:$0xff] %v555
  // Predicated region
  $region14: #{_lambda_.14} parent=0 // pred_check
    _
  $region15: #{_lambda_.14} parent=0 // pred_check_branch
    %621 = sbr.rel (0) target = $region17
  $region16: #{_lambda_.14} parent=0 // pred_region
    _
  $region17: #{_lambda_.14} parent=0 // pred_fallthru
    _
  // Predicated region
  $region18: #{_lambda_.14} parent=0 // pred_check
    _
  $region19: #{_lambda_.14} parent=0 // pred_check_branch
    %623 = sbr.rel (0) target = $region21
  $region20: #{_lambda_.14} parent=0 // pred_region
    _
  $region21: #{_lambda_.14} parent=0 // pred_fallthru
    _

// kernel: _lambda_.15
$region0: #{_lambda_.15}
  #allocation0 [shape = 'u32[]', space=smem, size = 0x4, offset = 0x4, fixed_abs, tag = 'smem constant byte address 0x4 - core index']
  #allocation1 [shape = 'u32[72,128]{1,0:T(1,128)}', space=vmem, size = 0x9000, scoped, tag = 'internal scratch']
  %s0 = inlined_call_operand.vmem [shape: f32[512,576], index: 0, kind: input, shape index: {}]
  %s1 = inlined_call_operand.vmem [shape: f32[576,128], index: 1, kind: input, shape index: {}]
  %s2 = inlined_call_operand.vmem [shape: f32[1,128], index: 2, kind: input, shape index: {}]
  %s3 = inlined_call_operand.vmem [shape: f32[512,128], index: 3, kind: output, shape index: {}]
  %s4 = sld [smem:[#allocation0]]
  $region22: #{_lambda_.15} parent=0
    _
  %s6 = ssub.s32 1, %s4
  %s7 = scalar_select 0, %s6, %s4
  // Predicated region
  $region2: #{_lambda_.15} parent=0 // pred_check
    _
  $region3: #{_lambda_.15} parent=0 // pred_check_branch
    %9 = sbr.rel (0) target = $region5
  $region4: #{_lambda_.15} parent=0 // pred_region
    _
  $region5: #{_lambda_.15} parent=0 // pred_fallthru
    _
  // Predicated region
  $region6: #{_lambda_.15} parent=0 // pred_check
    _
  $region7: #{_lambda_.15} parent=0 // pred_check_branch
    %11 = sbr.rel (0) target = $region9
  $region8: #{_lambda_.15} parent=0 // pred_region
    _
  $region9: #{_lambda_.15} parent=0 // pred_fallthru
    _
  // Predicated region
  $region10: #{_lambda_.15} parent=0 // pred_check
    _
  $region11: #{_lambda_.15} parent=0 // pred_check_branch
    %13 = sbr.rel (0) target = $region13
  $region12: #{_lambda_.15} parent=0 // pred_region
    _
  $region13: #{_lambda_.15} parent=0 // pred_fallthru
    _
  %v14 = vld [vmem:[%s0] sm:$0xff]
  %v15 = vld [vmem:[%s0 + $0x8] sm:$0xff]
  %v16 = vld [vmem:[%s0 + $0x10] sm:$0xff]
  %v17 = vld [vmem:[%s0 + $0x18] sm:$0xff]
  %v18 = vld [vmem:[%s0 + $0x20] sm:$0xff]
  %v19 = vld [vmem:[%s0 + $0x28] sm:$0xff]
  %v20 = vld [vmem:[%s0 + $0x30] sm:$0xff]
  %v21 = vld [vmem:[%s0 + $0x38] sm:$0xff]
  %v22 = vld [vmem:[%s0 + $0x40] sm:$0xff]
  %v23 = vld [vmem:[%s0 + $0x48] sm:$0xff]
  %v24 = vld [vmem:[%s0 + $0x50] sm:$0xff]
  %v25 = vld [vmem:[%s0 + $0x58] sm:$0xff]
  %v26 = vld [vmem:[%s0 + $0x60] sm:$0xff]
  %v27 = vld [vmem:[%s0 + $0x68] sm:$0xff]
  %v28 = vld [vmem:[%s0 + $0x70] sm:$0xff]
  %v29 = vld [vmem:[%s0 + $0x78] sm:$0xff]
  %v30 = vld [vmem:[%s0 + $0x80] sm:$0xff]
  %v31 = vld [vmem:[%s0 + $0x88] sm:$0xff]
  %v32 = vld [vmem:[%s0 + $0x90] sm:$0xff]
  %v33 = vld [vmem:[%s0 + $0x98] sm:$0xff]
  %v34 = vld [vmem:[%s0 + $0xa0] sm:$0xff]
  %v35 = vld [vmem:[%s0 + $0xa8] sm:$0xff]
  %v36 = vld [vmem:[%s0 + $0xb0] sm:$0xff]
  %v37 = vld [vmem:[%s0 + $0xb8] sm:$0xff]
  %v38 = vld [vmem:[%s0 + $0xc0] sm:$0xff]
  %v39 = vld [vmem:[%s0 + $0xc8] sm:$0xff]
  %v40 = vld [vmem:[%s0 + $0xd0] sm:$0xff]
  %v41 = vld [vmem:[%s0 + $0xd8] sm:$0xff]
  %v42 = vld [vmem:[%s0 + $0xe0] sm:$0xff]
  %v43 = vld [vmem:[%s0 + $0xe8] sm:$0xff]
  %v44 = vld [vmem:[%s0 + $0xf0] sm:$0xff]
  %v45 = vld [vmem:[%s0 + $0xf8] sm:$0xff]
  %v46 = vld [vmem:[%s0 + $0x100] sm:$0xff]
  %v47 = vld [vmem:[%s0 + $0x108] sm:$0xff]
  %v48 = vld [vmem:[%s0 + $0x110] sm:$0xff]
  %v49 = vld [vmem:[%s0 + $0x118] sm:$0xff]
  %v50 = vld [vmem:[%s0 + $0x120] sm:$0xff]
  %v51 = vld [vmem:[%s0 + $0x128] sm:$0xff]
  %v52 = vld [vmem:[%s0 + $0x130] sm:$0xff]
  %v53 = vld [vmem:[%s0 + $0x138] sm:$0xff]
  %v54 = vld [vmem:[%s0 + $0x140] sm:$0xff]
  %v55 = vld [vmem:[%s0 + $0x148] sm:$0xff]
  %v56 = vld [vmem:[%s0 + $0x150] sm:$0xff]
  %v57 = vld [vmem:[%s0 + $0x158] sm:$0xff]
  %v58 = vld [vmem:[%s0 + $0x160] sm:$0xff]
  %v59 = vld [vmem:[%s0 + $0x168] sm:$0xff]
  %v60 = vld [vmem:[%s0 + $0x170] sm:$0xff]
  %v61 = vld [vmem:[%s0 + $0x178] sm:$0xff]
  %v62 = vld [vmem:[%s0 + $0x180] sm:$0xff]
  %v63 = vld [vmem:[%s0 + $0x188] sm:$0xff]
  %v64 = vld [vmem:[%s0 + $0x190] sm:$0xff]
  %v65 = vld [vmem:[%s0 + $0x198] sm:$0xff]
  %v66 = vld [vmem:[%s0 + $0x1a0] sm:$0xff]
  %v67 = vld [vmem:[%s0 + $0x1a8] sm:$0xff]
  %v68 = vld [vmem:[%s0 + $0x1b0] sm:$0xff]
  %v69 = vld [vmem:[%s0 + $0x1b8] sm:$0xff]
  %v70 = vld [vmem:[%s0 + $0x1c0] sm:$0xff]
  %v71 = vld [vmem:[%s0 + $0x1c8] sm:$0xff]
  %v72 = vld [vmem:[%s0 + $0x1d0] sm:$0xff]
  %v73 = vld [vmem:[%s0 + $0x1d8] sm:$0xff]
  %v74 = vld [vmem:[%s0 + $0x1e0] sm:$0xff]
  %v75 = vld [vmem:[%s0 + $0x1e8] sm:$0xff]
  %v76 = vld [vmem:[%s0 + $0x1f0] sm:$0xff]
  %v77 = vld [vmem:[%s0 + $0x1f8] sm:$0xff]
  %v78 = vld [vmem:[%s0 + $0x200] sm:$0xff]
  %v79 = vld [vmem:[%s0 + $0x208] sm:$0xff]
  %v80 = vld [vmem:[%s0 + $0x210] sm:$0xff]
  %v81 = vld [vmem:[%s0 + $0x218] sm:$0xff]
  %v82 = vld [vmem:[%s0 + $0x220] sm:$0xff]
  %v83 = vld [vmem:[%s0 + $0x228] sm:$0xff]
  %v84 = vld [vmem:[%s0 + $0x230] sm:$0xff]
  %v85 = vld [vmem:[%s0 + $0x238] sm:$0xff]
  %v86 = vld [vmem:[%s0 + $0x240] sm:$0xff]
  %v87 = vld [vmem:[%s0 + $0x248] sm:$0xff]
  %v88 = vld [vmem:[%s0 + $0x250] sm:$0xff]
  %v89 = vld [vmem:[%s0 + $0x258] sm:$0xff]
  %v90 = vld [vmem:[%s0 + $0x260] sm:$0xff]
  %v91 = vld [vmem:[%s0 + $0x268] sm:$0xff]
  %v92 = vld [vmem:[%s0 + $0x270] sm:$0xff]
  %v93 = vld [vmem:[%s0 + $0x278] sm:$0xff]
  %v94 = vld [vmem:[%s0 + $0x280] sm:$0xff]
  %v95 = vld [vmem:[%s0 + $0x288] sm:$0xff]
  %v96 = vld [vmem:[%s0 + $0x290] sm:$0xff]
  %v97 = vld [vmem:[%s0 + $0x298] sm:$0xff]
  %v98 = vld [vmem:[%s0 + $0x2a0] sm:$0xff]
  %v99 = vld [vmem:[%s0 + $0x2a8] sm:$0xff]
  %v100 = vld [vmem:[%s0 + $0x2b0] sm:$0xff]
  %v101 = vld [vmem:[%s0 + $0x2b8] sm:$0xff]
  %v102 = vld [vmem:[%s0 + $0x2c0] sm:$0xff]
  %v103 = vld [vmem:[%s0 + $0x2c8] sm:$0xff]
  %v104 = vld [vmem:[%s0 + $0x2d0] sm:$0xff]
  %v105 = vld [vmem:[%s0 + $0x2d8] sm:$0xff]
  %v106 = vld [vmem:[%s0 + $0x2e0] sm:$0xff]
  %v107 = vld [vmem:[%s0 + $0x2e8] sm:$0xff]
  %v108 = vld [vmem:[%s0 + $0x2f0] sm:$0xff]
  %v109 = vld [vmem:[%s0 + $0x2f8] sm:$0xff]
  %v110 = vld [vmem:[%s0 + $0x300] sm:$0xff]
  %v111 = vld [vmem:[%s0 + $0x308] sm:$0xff]
  %v112 = vld [vmem:[%s0 + $0x310] sm:$0xff]
  %v113 = vld [vmem:[%s0 + $0x318] sm:$0xff]
  %v114 = vld [vmem:[%s0 + $0x320] sm:$0xff]
  %v115 = vld [vmem:[%s0 + $0x328] sm:$0xff]
  %v116 = vld [vmem:[%s0 + $0x330] sm:$0xff]
  %v117 = vld [vmem:[%s0 + $0x338] sm:$0xff]
  %v118 = vld [vmem:[%s0 + $0x340] sm:$0xff]
  %v119 = vld [vmem:[%s0 + $0x348] sm:$0xff]
  %v120 = vld [vmem:[%s0 + $0x350] sm:$0xff]
  %v121 = vld [vmem:[%s0 + $0x358] sm:$0xff]
  %v122 = vld [vmem:[%s0 + $0x360] sm:$0xff]
  %v123 = vld [vmem:[%s0 + $0x368] sm:$0xff]
  %v124 = vld [vmem:[%s0 + $0x370] sm:$0xff]
  %v125 = vld [vmem:[%s0 + $0x378] sm:$0xff]
  %v126 = vld [vmem:[%s0 + $0x380] sm:$0xff]
  %v127 = vld [vmem:[%s0 + $0x388] sm:$0xff]
  %v128 = vld [vmem:[%s0 + $0x390] sm:$0xff]
  %v129 = vld [vmem:[%s0 + $0x398] sm:$0xff]
  %v130 = vld [vmem:[%s0 + $0x3a0] sm:$0xff]
  %v131 = vld [vmem:[%s0 + $0x3a8] sm:$0xff]
  %v132 = vld [vmem:[%s0 + $0x3b0] sm:$0xff]
  %v133 = vld [vmem:[%s0 + $0x3b8] sm:$0xff]
  %v134 = vld [vmem:[%s0 + $0x3c0] sm:$0xff]
  %v135 = vld [vmem:[%s0 + $0x3c8] sm:$0xff]
  %v136 = vld [vmem:[%s0 + $0x3d0] sm:$0xff]
  %v137 = vld [vmem:[%s0 + $0x3d8] sm:$0xff]
  %v138 = vld [vmem:[%s0 + $0x3e0] sm:$0xff]
  %v139 = vld [vmem:[%s0 + $0x3e8] sm:$0xff]
  %v140 = vld [vmem:[%s0 + $0x3f0] sm:$0xff]
  %v141 = vld [vmem:[%s0 + $0x3f8] sm:$0xff]
  %v142 = vld [vmem:[%s0 + $0x400] sm:$0xff]
  %v143 = vld [vmem:[%s0 + $0x408] sm:$0xff]
  %v144 = vld [vmem:[%s0 + $0x410] sm:$0xff]
  %v145 = vld [vmem:[%s0 + $0x418] sm:$0xff]
  %v146 = vld [vmem:[%s0 + $0x420] sm:$0xff]
  %v147 = vld [vmem:[%s0 + $0x428] sm:$0xff]
  %v148 = vld [vmem:[%s0 + $0x430] sm:$0xff]
  %v149 = vld [vmem:[%s0 + $0x438] sm:$0xff]
  %v150 = vld [vmem:[%s0 + $0x440] sm:$0xff]
  %v151 = vld [vmem:[%s0 + $0x448] sm:$0xff]
  %v152 = vld [vmem:[%s0 + $0x450] sm:$0xff]
  %v153 = vld [vmem:[%s0 + $0x458] sm:$0xff]
  %v154 = vld [vmem:[%s0 + $0x460] sm:$0xff]
  %v155 = vld [vmem:[%s0 + $0x468] sm:$0xff]
  %v156 = vld [vmem:[%s0 + $0x470] sm:$0xff]
  %v157 = vld [vmem:[%s0 + $0x478] sm:$0xff]
  %v158 = vld [vmem:[%s0 + $0x480] sm:$0xff]
  %v159 = vld [vmem:[%s0 + $0x488] sm:$0xff]
  %v160 = vld [vmem:[%s0 + $0x490] sm:$0xff]
  %v161 = vld [vmem:[%s0 + $0x498] sm:$0xff]
  %v162 = vld [vmem:[%s0 + $0x4a0] sm:$0xff]
  %v163 = vld [vmem:[%s0 + $0x4a8] sm:$0xff]
  %v164 = vld [vmem:[%s0 + $0x4b0] sm:$0xff]
  %v165 = vld [vmem:[%s0 + $0x4b8] sm:$0xff]
  %v166 = vld [vmem:[%s0 + $0x4c0] sm:$0xff]
  %v167 = vld [vmem:[%s0 + $0x4c8] sm:$0xff]
  %v168 = vld [vmem:[%s0 + $0x4d0] sm:$0xff]
  %v169 = vld [vmem:[%s0 + $0x4d8] sm:$0xff]
  %v170 = vld [vmem:[%s0 + $0x4e0] sm:$0xff]
  %v171 = vld [vmem:[%s0 + $0x4e8] sm:$0xff]
  %v172 = vld [vmem:[%s0 + $0x4f0] sm:$0xff]
  %v173 = vld [vmem:[%s0 + $0x4f8] sm:$0xff]
  %v174 = vld [vmem:[%s0 + $0x500] sm:$0xff]
  %v175 = vld [vmem:[%s0 + $0x508] sm:$0xff]
  %v176 = vld [vmem:[%s0 + $0x510] sm:$0xff]
  %v177 = vld [vmem:[%s0 + $0x518] sm:$0xff]
  %v178 = vld [vmem:[%s0 + $0x520] sm:$0xff]
  %v179 = vld [vmem:[%s0 + $0x528] sm:$0xff]
  %v180 = vld [vmem:[%s0 + $0x530] sm:$0xff]
  %v181 = vld [vmem:[%s0 + $0x538] sm:$0xff]
  %v182 = vld [vmem:[%s0 + $0x540] sm:$0xff]
  %v183 = vld [vmem:[%s0 + $0x548] sm:$0xff]
  %v184 = vld [vmem:[%s0 + $0x550] sm:$0xff]
  %v185 = vld [vmem:[%s0 + $0x558] sm:$0xff]
  %v186 = vld [vmem:[%s0 + $0x560] sm:$0xff]
  %v187 = vld [vmem:[%s0 + $0x568] sm:$0xff]
  %v188 = vld [vmem:[%s0 + $0x570] sm:$0xff]
  %v189 = vld [vmem:[%s0 + $0x578] sm:$0xff]
  %v190 = vld [vmem:[%s0 + $0x580] sm:$0xff]
  %v191 = vld [vmem:[%s0 + $0x588] sm:$0xff]
  %v192 = vld [vmem:[%s0 + $0x590] sm:$0xff]
  %v193 = vld [vmem:[%s0 + $0x598] sm:$0xff]
  %v194 = vld [vmem:[%s0 + $0x5a0] sm:$0xff]
  %v195 = vld [vmem:[%s0 + $0x5a8] sm:$0xff]
  %v196 = vld [vmem:[%s0 + $0x5b0] sm:$0xff]
  %v197 = vld [vmem:[%s0 + $0x5b8] sm:$0xff]
  %v198 = vld [vmem:[%s0 + $0x5c0] sm:$0xff]
  %v199 = vld [vmem:[%s0 + $0x5c8] sm:$0xff]
  %v200 = vld [vmem:[%s0 + $0x5d0] sm:$0xff]
  %v201 = vld [vmem:[%s0 + $0x5d8] sm:$0xff]
  %v202 = vld [vmem:[%s0 + $0x5e0] sm:$0xff]
  %v203 = vld [vmem:[%s0 + $0x5e8] sm:$0xff]
  %v204 = vld [vmem:[%s0 + $0x5f0] sm:$0xff]
  %v205 = vld [vmem:[%s0 + $0x5f8] sm:$0xff]
  %v206 = vld [vmem:[%s0 + $0x600] sm:$0xff]
  %v207 = vld [vmem:[%s0 + $0x608] sm:$0xff]
  %v208 = vld [vmem:[%s0 + $0x610] sm:$0xff]
  %v209 = vld [vmem:[%s0 + $0x618] sm:$0xff]
  %v210 = vld [vmem:[%s0 + $0x620] sm:$0xff]
  %v211 = vld [vmem:[%s0 + $0x628] sm:$0xff]
  %v212 = vld [vmem:[%s0 + $0x630] sm:$0xff]
  %v213 = vld [vmem:[%s0 + $0x638] sm:$0xff]
  %v214 = vld [vmem:[%s0 + $0x640] sm:$0xff]
  %v215 = vld [vmem:[%s0 + $0x648] sm:$0xff]
  %v216 = vld [vmem:[%s0 + $0x650] sm:$0xff]
  %v217 = vld [vmem:[%s0 + $0x658] sm:$0xff]
  %v218 = vld [vmem:[%s0 + $0x660] sm:$0xff]
  %v219 = vld [vmem:[%s0 + $0x668] sm:$0xff]
  %v220 = vld [vmem:[%s0 + $0x670] sm:$0xff]
  %v221 = vld [vmem:[%s0 + $0x678] sm:$0xff]
  %v222 = vld [vmem:[%s0 + $0x680] sm:$0xff]
  %v223 = vld [vmem:[%s0 + $0x688] sm:$0xff]
  %v224 = vld [vmem:[%s0 + $0x690] sm:$0xff]
  %v225 = vld [vmem:[%s0 + $0x698] sm:$0xff]
  %v226 = vld [vmem:[%s0 + $0x6a0] sm:$0xff]
  %v227 = vld [vmem:[%s0 + $0x6a8] sm:$0xff]
  %v228 = vld [vmem:[%s0 + $0x6b0] sm:$0xff]
  %v229 = vld [vmem:[%s0 + $0x6b8] sm:$0xff]
  %v230 = vld [vmem:[%s0 + $0x6c0] sm:$0xff]
  %v231 = vld [vmem:[%s0 + $0x6c8] sm:$0xff]
  %v232 = vld [vmem:[%s0 + $0x6d0] sm:$0xff]
  %v233 = vld [vmem:[%s0 + $0x6d8] sm:$0xff]
  %v234 = vld [vmem:[%s0 + $0x6e0] sm:$0xff]
  %v235 = vld [vmem:[%s0 + $0x6e8] sm:$0xff]
  %v236 = vld [vmem:[%s0 + $0x6f0] sm:$0xff]
  %v237 = vld [vmem:[%s0 + $0x6f8] sm:$0xff]
  %v238 = vld [vmem:[%s0 + $0x700] sm:$0xff]
  %v239 = vld [vmem:[%s0 + $0x708] sm:$0xff]
  %v240 = vld [vmem:[%s0 + $0x710] sm:$0xff]
  %v241 = vld [vmem:[%s0 + $0x718] sm:$0xff]
  %v242 = vld [vmem:[%s0 + $0x720] sm:$0xff]
  %v243 = vld [vmem:[%s0 + $0x728] sm:$0xff]
  %v244 = vld [vmem:[%s0 + $0x730] sm:$0xff]
  %v245 = vld [vmem:[%s0 + $0x738] sm:$0xff]
  %v246 = vld [vmem:[%s0 + $0x740] sm:$0xff]
  %v247 = vld [vmem:[%s0 + $0x748] sm:$0xff]
  %v248 = vld [vmem:[%s0 + $0x750] sm:$0xff]
  %v249 = vld [vmem:[%s0 + $0x758] sm:$0xff]
  %v250 = vld [vmem:[%s0 + $0x760] sm:$0xff]
  %v251 = vld [vmem:[%s0 + $0x768] sm:$0xff]
  %v252 = vld [vmem:[%s0 + $0x770] sm:$0xff]
  %v253 = vld [vmem:[%s0 + $0x778] sm:$0xff]
  %v254 = vld [vmem:[%s0 + $0x780] sm:$0xff]
  %v255 = vld [vmem:[%s0 + $0x788] sm:$0xff]
  %v256 = vld [vmem:[%s0 + $0x790] sm:$0xff]
  %v257 = vld [vmem:[%s0 + $0x798] sm:$0xff]
  %v258 = vld [vmem:[%s0 + $0x7a0] sm:$0xff]
  %v259 = vld [vmem:[%s0 + $0x7a8] sm:$0xff]
  %v260 = vld [vmem:[%s0 + $0x7b0] sm:$0xff]
  %v261 = vld [vmem:[%s0 + $0x7b8] sm:$0xff]
  %v262 = vld [vmem:[%s0 + $0x7c0] sm:$0xff]
  %v263 = vld [vmem:[%s0 + $0x7c8] sm:$0xff]
  %v264 = vld [vmem:[%s0 + $0x7d0] sm:$0xff]
  %v265 = vld [vmem:[%s0 + $0x7d8] sm:$0xff]
  %v266 = vld [vmem:[%s0 + $0x7e0] sm:$0xff]
  %v267 = vld [vmem:[%s0 + $0x7e8] sm:$0xff]
  %v268 = vld [vmem:[%s0 + $0x7f0] sm:$0xff]
  %v269 = vld [vmem:[%s0 + $0x7f8] sm:$0xff]
  %v270 = vld [vmem:[%s0 + $0x800] sm:$0xff]
  %v271 = vld [vmem:[%s0 + $0x808] sm:$0xff]
  %v272 = vld [vmem:[%s0 + $0x810] sm:$0xff]
  %v273 = vld [vmem:[%s0 + $0x818] sm:$0xff]
  %v274 = vld [vmem:[%s0 + $0x820] sm:$0xff]
  %v275 = vld [vmem:[%s0 + $0x828] sm:$0xff]
  %v276 = vld [vmem:[%s0 + $0x830] sm:$0xff]
  %v277 = vld [vmem:[%s0 + $0x838] sm:$0xff]
  %v278 = vld [vmem:[%s0 + $0x840] sm:$0xff]
  %v279 = vld [vmem:[%s0 + $0x848] sm:$0xff]
  %v280 = vld [vmem:[%s0 + $0x850] sm:$0xff]
  %v281 = vld [vmem:[%s0 + $0x858] sm:$0xff]
  %v282 = vld [vmem:[%s0 + $0x860] sm:$0xff]
  %v283 = vld [vmem:[%s0 + $0x868] sm:$0xff]
  %v284 = vld [vmem:[%s0 + $0x870] sm:$0xff]
  %v285 = vld [vmem:[%s0 + $0x878] sm:$0xff]
  %v286 = vld [vmem:[%s0 + $0x880] sm:$0xff]
  %v287 = vld [vmem:[%s0 + $0x888] sm:$0xff]
  %v288 = vld [vmem:[%s0 + $0x890] sm:$0xff]
  %v289 = vld [vmem:[%s0 + $0x898] sm:$0xff]
  %v290 = vld [vmem:[%s0 + $0x8a0] sm:$0xff]
  %v291 = vld [vmem:[%s0 + $0x8a8] sm:$0xff]
  %v292 = vld [vmem:[%s0 + $0x8b0] sm:$0xff]
  %v293 = vld [vmem:[%s0 + $0x8b8] sm:$0xff]
  %v294 = vld [vmem:[%s0 + $0x8c0] sm:$0xff]
  %v295 = vld [vmem:[%s0 + $0x8c8] sm:$0xff]
  %v296 = vld [vmem:[%s0 + $0x8d0] sm:$0xff]
  %v297 = vld [vmem:[%s0 + $0x8d8] sm:$0xff]
  %v298 = vld [vmem:[%s0 + $0x8e0] sm:$0xff]
  %v299 = vld [vmem:[%s0 + $0x8e8] sm:$0xff]
  %v300 = vld [vmem:[%s0 + $0x8f0] sm:$0xff]
  %v301 = vld [vmem:[%s0 + $0x8f8] sm:$0xff]
  %v302 = vld [vmem:[%s0 + $0x900] sm:$0xff]
  %v303 = vld [vmem:[%s0 + $0x908] sm:$0xff]
  %v304 = vld [vmem:[%s0 + $0x910] sm:$0xff]
  %v305 = vld [vmem:[%s0 + $0x918] sm:$0xff]
  %v306 = vld [vmem:[%s0 + $0x920] sm:$0xff]
  %v307 = vld [vmem:[%s0 + $0x928] sm:$0xff]
  %v308 = vld [vmem:[%s0 + $0x930] sm:$0xff]
  %v309 = vld [vmem:[%s0 + $0x938] sm:$0xff]
  %v310 = vld [vmem:[%s0 + $0x940] sm:$0xff]
  %v311 = vld [vmem:[%s0 + $0x948] sm:$0xff]
  %v312 = vld [vmem:[%s0 + $0x950] sm:$0xff]
  %v313 = vld [vmem:[%s0 + $0x958] sm:$0xff]
  %v314 = vld [vmem:[%s0 + $0x960] sm:$0xff]
  %v315 = vld [vmem:[%s0 + $0x968] sm:$0xff]
  %v316 = vld [vmem:[%s0 + $0x970] sm:$0xff]
  %v317 = vld [vmem:[%s0 + $0x978] sm:$0xff]
  %v318 = vld [vmem:[%s0 + $0x980] sm:$0xff]
  %v319 = vld [vmem:[%s0 + $0x988] sm:$0xff]
  %v320 = vld [vmem:[%s0 + $0x990] sm:$0xff]
  %v321 = vld [vmem:[%s0 + $0x998] sm:$0xff]
  %v322 = vld [vmem:[%s0 + $0x9a0] sm:$0xff]
  %v323 = vld [vmem:[%s0 + $0x9a8] sm:$0xff]
  %v324 = vld [vmem:[%s0 + $0x9b0] sm:$0xff]
  %v325 = vld [vmem:[%s0 + $0x9b8] sm:$0xff]
  %v326 = vld [vmem:[%s0 + $0x9c0] sm:$0xff]
  %v327 = vld [vmem:[%s0 + $0x9c8] sm:$0xff]
  %v328 = vld [vmem:[%s0 + $0x9d0] sm:$0xff]
  %v329 = vld [vmem:[%s0 + $0x9d8] sm:$0xff]
  %v330 = vld [vmem:[%s0 + $0x9e0] sm:$0xff]
  %v331 = vld [vmem:[%s0 + $0x9e8] sm:$0xff]
  %v332 = vld [vmem:[%s0 + $0x9f0] sm:$0xff]
  %v333 = vld [vmem:[%s0 + $0x9f8] sm:$0xff]
  %v334 = vld [vmem:[%s1] sm:$0xff]
  %v335 = vld [vmem:[%s1 + $0x8] sm:$0xff]
  %v336 = vld [vmem:[%s1 + $0x10] sm:$0xff]
  %v337 = vld [vmem:[%s1 + $0x18] sm:$0xff]
  %v338 = vld [vmem:[%s1 + $0x20] sm:$0xff]
  %v339 = vld [vmem:[%s1 + $0x28] sm:$0xff]
  %v340 = vld [vmem:[%s1 + $0x30] sm:$0xff]
  %v341 = vld [vmem:[%s1 + $0x38] sm:$0xff]
  %v342 = vld [vmem:[%s1 + $0x40] sm:$0xff]
  %v343 = vld [vmem:[%s1 + $0x48] sm:$0xff]
  %v344 = vld [vmem:[%s1 + $0x50] sm:$0xff]
  %v345 = vld [vmem:[%s1 + $0x58] sm:$0xff]
  %v346 = vld [vmem:[%s1 + $0x60] sm:$0xff]
  %v347 = vld [vmem:[%s1 + $0x68] sm:$0xff]
  %v348 = vld [vmem:[%s1 + $0x70] sm:$0xff]
  %v349 = vld [vmem:[%s1 + $0x78] sm:$0xff]
  %v350 = vld [vmem:[%s1 + $0x80] sm:$0xff]
  %v351 = vld [vmem:[%s1 + $0x88] sm:$0xff]
  %v352 = vld [vmem:[%s1 + $0x90] sm:$0xff]
  %v353 = vld [vmem:[%s1 + $0x98] sm:$0xff]
  %v354 = vld [vmem:[%s1 + $0xa0] sm:$0xff]
  %v355 = vld [vmem:[%s1 + $0xa8] sm:$0xff]
  %v356 = vld [vmem:[%s1 + $0xb0] sm:$0xff]
  %v357 = vld [vmem:[%s1 + $0xb8] sm:$0xff]
  %v358 = vld [vmem:[%s1 + $0xc0] sm:$0xff]
  %v359 = vld [vmem:[%s1 + $0xc8] sm:$0xff]
  %v360 = vld [vmem:[%s1 + $0xd0] sm:$0xff]
  %v361 = vld [vmem:[%s1 + $0xd8] sm:$0xff]
  %v362 = vld [vmem:[%s1 + $0xe0] sm:$0xff]
  %v363 = vld [vmem:[%s1 + $0xe8] sm:$0xff]
  %v364 = vld [vmem:[%s1 + $0xf0] sm:$0xff]
  %v365 = vld [vmem:[%s1 + $0xf8] sm:$0xff]
  %v366 = vld [vmem:[%s1 + $0x100] sm:$0xff]
  %v367 = vld [vmem:[%s1 + $0x108] sm:$0xff]
  %v368 = vld [vmem:[%s1 + $0x110] sm:$0xff]
  %v369 = vld [vmem:[%s1 + $0x118] sm:$0xff]
  %v370 = vld [vmem:[%s1 + $0x120] sm:$0xff]
  %v371 = vld [vmem:[%s1 + $0x128] sm:$0xff]
  %v372 = vld [vmem:[%s1 + $0x130] sm:$0xff]
  %v373 = vld [vmem:[%s1 + $0x138] sm:$0xff]
  %v374 = vld [vmem:[%s1 + $0x140] sm:$0xff]
  %v375 = vld [vmem:[%s1 + $0x148] sm:$0xff]
  %v376 = vld [vmem:[%s1 + $0x150] sm:$0xff]
  %v377 = vld [vmem:[%s1 + $0x158] sm:$0xff]
  %v378 = vld [vmem:[%s1 + $0x160] sm:$0xff]
  %v379 = vld [vmem:[%s1 + $0x168] sm:$0xff]
  %v380 = vld [vmem:[%s1 + $0x170] sm:$0xff]
  %v381 = vld [vmem:[%s1 + $0x178] sm:$0xff]
  %v382 = vld [vmem:[%s1 + $0x180] sm:$0xff]
  %v383 = vld [vmem:[%s1 + $0x188] sm:$0xff]
  %v384 = vld [vmem:[%s1 + $0x190] sm:$0xff]
  %v385 = vld [vmem:[%s1 + $0x198] sm:$0xff]
  %v386 = vld [vmem:[%s1 + $0x1a0] sm:$0xff]
  %v387 = vld [vmem:[%s1 + $0x1a8] sm:$0xff]
  %v388 = vld [vmem:[%s1 + $0x1b0] sm:$0xff]
  %v389 = vld [vmem:[%s1 + $0x1b8] sm:$0xff]
  %v390 = vld [vmem:[%s1 + $0x1c0] sm:$0xff]
  %v391 = vld [vmem:[%s1 + $0x1c8] sm:$0xff]
  %v392 = vld [vmem:[%s1 + $0x1d0] sm:$0xff]
  %v393 = vld [vmem:[%s1 + $0x1d8] sm:$0xff]
  %v394 = vld [vmem:[%s1 + $0x1e0] sm:$0xff]
  %v395 = vld [vmem:[%s1 + $0x1e8] sm:$0xff]
  %v396 = vld [vmem:[%s1 + $0x1f0] sm:$0xff]
  %v397 = vld [vmem:[%s1 + $0x1f8] sm:$0xff]
  %v398 = vld [vmem:[%s1 + $0x200] sm:$0xff]
  %v399 = vld [vmem:[%s1 + $0x208] sm:$0xff]
  %v400 = vld [vmem:[%s1 + $0x210] sm:$0xff]
  %v401 = vld [vmem:[%s1 + $0x218] sm:$0xff]
  %v402 = vld [vmem:[%s1 + $0x220] sm:$0xff]
  %v403 = vld [vmem:[%s1 + $0x228] sm:$0xff]
  %v404 = vld [vmem:[%s1 + $0x230] sm:$0xff]
  %v405 = vld [vmem:[%s1 + $0x238] sm:$0xff]
  %v406 = vld [vmem:[%s2] sm:$0x1]
  %v408 = vperm.slane %v406, 0
  %vm410 = vcmask 523264
  %v412 = vsel %vm410, %v18, 0
  %v415 = vsel %vm410, %v23, 0
  %v418 = vsel %vm410, %v28, 0
  %v421 = vsel %vm410, %v33, 0
  %v424 = vsel %vm410, %v38, 0
  %v427 = vsel %vm410, %v43, 0
  %v430 = vsel %vm410, %v48, 0
  %v433 = vsel %vm410, %v53, 0
  %v436 = vsel %vm410, %v58, 0
  %v439 = vsel %vm410, %v63, 0
  %v442 = vsel %vm410, %v68, 0
  %v445 = vsel %vm410, %v73, 0
  %v448 = vsel %vm410, %v78, 0
  %v451 = vsel %vm410, %v83, 0
  %v454 = vsel %vm410, %v88, 0
  %v457 = vsel %vm410, %v93, 0
  %v460 = vsel %vm410, %v98, 0
  %v463 = vsel %vm410, %v103, 0
  %v466 = vsel %vm410, %v108, 0
  %v469 = vsel %vm410, %v113, 0
  %v472 = vsel %vm410, %v118, 0
  %v475 = vsel %vm410, %v123, 0
  %v478 = vsel %vm410, %v128, 0
  %v481 = vsel %vm410, %v133, 0
  %v484 = vsel %vm410, %v138, 0
  %v487 = vsel %vm410, %v143, 0
  %v490 = vsel %vm410, %v148, 0
  %v493 = vsel %vm410, %v153, 0
  %v496 = vsel %vm410, %v158, 0
  %v499 = vsel %vm410, %v163, 0
  %v502 = vsel %vm410, %v168, 0
  %v505 = vsel %vm410, %v173, 0
  %v508 = vsel %vm410, %v178, 0
  %v511 = vsel %vm410, %v183, 0
  %v514 = vsel %vm410, %v188, 0
  %v517 = vsel %vm410, %v193, 0
  %v520 = vsel %vm410, %v198, 0
  %v523 = vsel %vm410, %v203, 0
  %v526 = vsel %vm410, %v208, 0
  %v529 = vsel %vm410, %v213, 0
  %v532 = vsel %vm410, %v218, 0
  %v535 = vsel %vm410, %v223, 0
  %v538 = vsel %vm410, %v228, 0
  %v541 = vsel %vm410, %v233, 0
  %v544 = vsel %vm410, %v238, 0
  %v547 = vsel %vm410, %v243, 0
  %v550 = vsel %vm410, %v248, 0
  %v553 = vsel %vm410, %v253, 0
  %v556 = vsel %vm410, %v258, 0
  %v559 = vsel %vm410, %v263, 0
  %v562 = vsel %vm410, %v268, 0
  %v565 = vsel %vm410, %v273, 0
  %v568 = vsel %vm410, %v278, 0
  %v571 = vsel %vm410, %v283, 0
  %v574 = vsel %vm410, %v288, 0
  %v577 = vsel %vm410, %v293, 0
  %v580 = vsel %vm410, %v298, 0
  %v583 = vsel %vm410, %v303, 0
  %v586 = vsel %vm410, %v308, 0
  %v589 = vsel %vm410, %v313, 0
  %v592 = vsel %vm410, %v318, 0
  %v595 = vsel %vm410, %v323, 0
  %v598 = vsel %vm410, %v328, 0
  %v601 = vsel %vm410, %v333, 0
  %603 = vmatpush.msra.mxu0 %v349
  %604 = vmatpush.msra.mxu0 %v348
  %605 = vmatpush.msra.mxu0 %v347
  %606 = vmatpush.msra.mxu0 %v346
  %607 = vmatpush.msra.mxu0 %v345
  %608 = vmatpush.msra.mxu0 %v344
  %609 = vmatpush.msra.mxu0 %v343
  %610 = vmatpush.msra.mxu0 %v342
  %611 = vmatpush.msra.mxu0 %v341
  %612 = vmatpush.msra.mxu0 %v340
  %613 = vmatpush.msra.mxu0 %v339
  %614 = vmatpush.msra.mxu0 %v338
  %615 = vmatpush.msra.mxu0 %v337
  %616 = vmatpush.msra.mxu0 %v336
  %617 = vmatpush.msra.mxu0 %v335
  %618 = vmatpush.msra.mxu0 %v334
  %619 = vmatmul.f32.gmra.mxu0 %v14
  %v620 = vpop.f32.mrf.mxu0
  %v621 = vadd.f32 %v408, %v620
  %622 = vmatmul.f32.gmra.mxu0 %v19
  %v623 = vpop.f32.mrf.mxu0
  %v624 = vadd.f32 %v408, %v623
  %625 = vmatmul.f32.gmra.mxu0 %v24
  %v626 = vpop.f32.mrf.mxu0
  %v627 = vadd.f32 %v408, %v626
  %628 = vmatmul.f32.gmra.mxu0 %v29
  %v629 = vpop.f32.mrf.mxu0
  %v630 = vadd.f32 %v408, %v629
  %631 = vmatmul.f32.gmra.mxu0 %v34
  %v632 = vpop.f32.mrf.mxu0
  %v633 = vadd.f32 %v408, %v632
  %634 = vmatmul.f32.gmra.mxu0 %v39
  %v635 = vpop.f32.mrf.mxu0
  %v636 = vadd.f32 %v408, %v635
  %637 = vmatmul.f32.gmra.mxu0 %v44
  %v638 = vpop.f32.mrf.mxu0
  %v639 = vadd.f32 %v408, %v638
  %640 = vmatmul.f32.gmra.mxu0 %v49
  %v641 = vpop.f32.mrf.mxu0
  %v642 = vadd.f32 %v408, %v641
  %643 = vmatmul.f32.gmra.mxu0 %v54
  %v644 = vpop.f32.mrf.mxu0
  %v645 = vadd.f32 %v408, %v644
  %646 = vmatmul.f32.gmra.mxu0 %v59
  %v647 = vpop.f32.mrf.mxu0
  %v648 = vadd.f32 %v408, %v647
  %649 = vmatmul.f32.gmra.mxu0 %v64
  %v650 = vpop.f32.mrf.mxu0
  %v651 = vadd.f32 %v408, %v650
  %652 = vmatmul.f32.gmra.mxu0 %v69
  %v653 = vpop.f32.mrf.mxu0
  %v654 = vadd.f32 %v408, %v653
  %655 = vmatmul.f32.gmra.mxu0 %v74
  %v656 = vpop.f32.mrf.mxu0
  %v657 = vadd.f32 %v408, %v656
  %658 = vmatmul.f32.gmra.mxu0 %v79
  %v659 = vpop.f32.mrf.mxu0
  %v660 = vadd.f32 %v408, %v659
  %661 = vmatmul.f32.gmra.mxu0 %v84
  %v662 = vpop.f32.mrf.mxu0
  %v663 = vadd.f32 %v408, %v662
  %664 = vmatmul.f32.gmra.mxu0 %v89
  %v665 = vpop.f32.mrf.mxu0
  %v666 = vadd.f32 %v408, %v665
  %667 = vmatmul.f32.gmra.mxu0 %v94
  %v668 = vpop.f32.mrf.mxu0
  %v669 = vadd.f32 %v408, %v668
  %670 = vmatmul.f32.gmra.mxu0 %v99
  %v671 = vpop.f32.mrf.mxu0
  %v672 = vadd.f32 %v408, %v671
  %673 = vmatmul.f32.gmra.mxu0 %v104
  %v674 = vpop.f32.mrf.mxu0
  %v675 = vadd.f32 %v408, %v674
  %676 = vmatmul.f32.gmra.mxu0 %v109
  %v677 = vpop.f32.mrf.mxu0
  %v678 = vadd.f32 %v408, %v677
  %679 = vmatmul.f32.gmra.mxu0 %v114
  %v680 = vpop.f32.mrf.mxu0
  %v681 = vadd.f32 %v408, %v680
  %682 = vmatmul.f32.gmra.mxu0 %v119
  %v683 = vpop.f32.mrf.mxu0
  %v684 = vadd.f32 %v408, %v683
  %685 = vmatmul.f32.gmra.mxu0 %v124
  %v686 = vpop.f32.mrf.mxu0
  %v687 = vadd.f32 %v408, %v686
  %688 = vmatmul.f32.gmra.mxu0 %v129
  %v689 = vpop.f32.mrf.mxu0
  %v690 = vadd.f32 %v408, %v689
  %691 = vmatmul.f32.gmra.mxu0 %v134
  %v692 = vpop.f32.mrf.mxu0
  %v693 = vadd.f32 %v408, %v692
  %694 = vmatmul.f32.gmra.mxu0 %v139
  %v695 = vpop.f32.mrf.mxu0
  %v696 = vadd.f32 %v408, %v695
  %697 = vmatmul.f32.gmra.mxu0 %v144
  %v698 = vpop.f32.mrf.mxu0
  %v699 = vadd.f32 %v408, %v698
  %700 = vmatmul.f32.gmra.mxu0 %v149
  %v701 = vpop.f32.mrf.mxu0
  %v702 = vadd.f32 %v408, %v701
  %703 = vmatmul.f32.gmra.mxu0 %v154
  %v704 = vpop.f32.mrf.mxu0
  %v705 = vadd.f32 %v408, %v704
  %706 = vmatmul.f32.gmra.mxu0 %v159
  %v707 = vpop.f32.mrf.mxu0
  %v708 = vadd.f32 %v408, %v707
  %709 = vmatmul.f32.gmra.mxu0 %v164
  %v710 = vpop.f32.mrf.mxu0
  %v711 = vadd.f32 %v408, %v710
  %712 = vmatmul.f32.gmra.mxu0 %v169
  %v713 = vpop.f32.mrf.mxu0
  %v714 = vadd.f32 %v408, %v713
  %715 = vmatmul.f32.gmra.mxu0 %v174
  %v716 = vpop.f32.mrf.mxu0
  %v717 = vadd.f32 %v408, %v716
  %718 = vmatmul.f32.gmra.mxu0 %v179
  %v719 = vpop.f32.mrf.mxu0
  %v720 = vadd.f32 %v408, %v719
  %721 = vmatmul.f32.gmra.mxu0 %v184
  %v722 = vpop.f32.mrf.mxu0
  %v723 = vadd.f32 %v408, %v722
  %724 = vmatmul.f32.gmra.mxu0 %v189
  %v725 = vpop.f32.mrf.mxu0
  %v726 = vadd.f32 %v408, %v725
  %727 = vmatmul.f32.gmra.mxu0 %v194
  %v728 = vpop.f32.mrf.mxu0
  %v729 = vadd.f32 %v408, %v728
  %730 = vmatmul.f32.gmra.mxu0 %v199
  %v731 = vpop.f32.mrf.mxu0
  %v732 = vadd.f32 %v408, %v731
  %733 = vmatmul.f32.gmra.mxu0 %v204
  %v734 = vpop.f32.mrf.mxu0
  %v735 = vadd.f32 %v408, %v734
  %736 = vmatmul.f32.gmra.mxu0 %v209
  %v737 = vpop.f32.mrf.mxu0
  %v738 = vadd.f32 %v408, %v737
  %739 = vmatmul.f32.gmra.mxu0 %v214
  %v740 = vpop.f32.mrf.mxu0
  %v741 = vadd.f32 %v408, %v740
  %742 = vmatmul.f32.gmra.mxu0 %v219
  %v743 = vpop.f32.mrf.mxu0
  %v744 = vadd.f32 %v408, %v743
  %745 = vmatmul.f32.gmra.mxu0 %v224
  %v746 = vpop.f32.mrf.mxu0
  %v747 = vadd.f32 %v408, %v746
  %748 = vmatmul.f32.gmra.mxu0 %v229
  %v749 = vpop.f32.mrf.mxu0
  %v750 = vadd.f32 %v408, %v749
  %751 = vmatmul.f32.gmra.mxu0 %v234
  %v752 = vpop.f32.mrf.mxu0
  %v753 = vadd.f32 %v408, %v752
  %754 = vmatmul.f32.gmra.mxu0 %v239
  %v755 = vpop.f32.mrf.mxu0
  %v756 = vadd.f32 %v408, %v755
  %757 = vmatmul.f32.gmra.mxu0 %v244
  %v758 = vpop.f32.mrf.mxu0
  %v759 = vadd.f32 %v408, %v758
  %760 = vmatmul.f32.gmra.mxu0 %v249
  %v761 = vpop.f32.mrf.mxu0
  %v762 = vadd.f32 %v408, %v761
  %763 = vmatmul.f32.gmra.mxu0 %v254
  %v764 = vpop.f32.mrf.mxu0
  %v765 = vadd.f32 %v408, %v764
  %766 = vmatmul.f32.gmra.mxu0 %v259
  %v767 = vpop.f32.mrf.mxu0
  %v768 = vadd.f32 %v408, %v767
  %769 = vmatmul.f32.gmra.mxu0 %v264
  %v770 = vpop.f32.mrf.mxu0
  %v771 = vadd.f32 %v408, %v770
  %772 = vmatmul.f32.gmra.mxu0 %v269
  %v773 = vpop.f32.mrf.mxu0
  %v774 = vadd.f32 %v408, %v773
  %775 = vmatmul.f32.gmra.mxu0 %v274
  %v776 = vpop.f32.mrf.mxu0
  %v777 = vadd.f32 %v408, %v776
  %778 = vmatmul.f32.gmra.mxu0 %v279
  %v779 = vpop.f32.mrf.mxu0
  %v780 = vadd.f32 %v408, %v779
  %781 = vmatmul.f32.gmra.mxu0 %v284
  %v782 = vpop.f32.mrf.mxu0
  %v783 = vadd.f32 %v408, %v782
  %784 = vmatmul.f32.gmra.mxu0 %v289
  %v785 = vpop.f32.mrf.mxu0
  %v786 = vadd.f32 %v408, %v785
  %787 = vmatmul.f32.gmra.mxu0 %v294
  %v788 = vpop.f32.mrf.mxu0
  %v789 = vadd.f32 %v408, %v788
  %790 = vmatmul.f32.gmra.mxu0 %v299
  %v791 = vpop.f32.mrf.mxu0
  %v792 = vadd.f32 %v408, %v791
  %793 = vmatmul.f32.gmra.mxu0 %v304
  %v794 = vpop.f32.mrf.mxu0
  %v795 = vadd.f32 %v408, %v794
  %796 = vmatmul.f32.gmra.mxu0 %v309
  %v797 = vpop.f32.mrf.mxu0
  %v798 = vadd.f32 %v408, %v797
  %799 = vmatmul.f32.gmra.mxu0 %v314
  %v800 = vpop.f32.mrf.mxu0
  %v801 = vadd.f32 %v408, %v800
  %802 = vmatmul.f32.gmra.mxu0 %v319
  %v803 = vpop.f32.mrf.mxu0
  %v804 = vadd.f32 %v408, %v803
  %805 = vmatmul.f32.gmra.mxu0 %v324
  %v806 = vpop.f32.mrf.mxu0
  %v807 = vadd.f32 %v408, %v806
  %808 = vmatmul.f32.gmra.mxu0 %v329
  %v809 = vpop.f32.mrf.mxu0
  %v810 = vadd.f32 %v408, %v809
  %811 = vdwg.mxu0
  %812 = vmatpush.msra.mxu0 %v365
  %813 = vmatpush.msra.mxu0 %v364
  %814 = vmatpush.msra.mxu0 %v363
  %815 = vmatpush.msra.mxu0 %v362
  %816 = vmatpush.msra.mxu0 %v361
  %817 = vmatpush.msra.mxu0 %v360
  %818 = vmatpush.msra.mxu0 %v359
  %819 = vmatpush.msra.mxu0 %v358
  %820 = vmatpush.msra.mxu0 %v357
  %821 = vmatpush.msra.mxu0 %v356
  %822 = vmatpush.msra.mxu0 %v355
  %823 = vmatpush.msra.mxu0 %v354
  %824 = vmatpush.msra.mxu0 %v353
  %825 = vmatpush.msra.mxu0 %v352
  %826 = vmatpush.msra.mxu0 %v351
  %827 = vmatpush.msra.mxu0 %v350
  %828 = vmatmul.f32.gmra.mxu0 %v15
  %v829 = vpop.f32.mrf.mxu0
  %v830 = vadd.f32 %v621, %v829
  %831 = vmatmul.f32.gmra.mxu0 %v20
  %v832 = vpop.f32.mrf.mxu0
  %v833 = vadd.f32 %v624, %v832
  %834 = vmatmul.f32.gmra.mxu0 %v25
  %v835 = vpop.f32.mrf.mxu0
  %v836 = vadd.f32 %v627, %v835
  %837 = vmatmul.f32.gmra.mxu0 %v30
  %v838 = vpop.f32.mrf.mxu0
  %v839 = vadd.f32 %v630, %v838
  %840 = vmatmul.f32.gmra.mxu0 %v35
  %v841 = vpop.f32.mrf.mxu0
  %v842 = vadd.f32 %v633, %v841
  %843 = vmatmul.f32.gmra.mxu0 %v40
  %v844 = vpop.f32.mrf.mxu0
  %v845 = vadd.f32 %v636, %v844
  %846 = vmatmul.f32.gmra.mxu0 %v45
  %v847 = vpop.f32.mrf.mxu0
  %v848 = vadd.f32 %v639, %v847
  %849 = vmatmul.f32.gmra.mxu0 %v50
  %v850 = vpop.f32.mrf.mxu0
  %v851 = vadd.f32 %v642, %v850
  %852 = vmatmul.f32.gmra.mxu0 %v55
  %v853 = vpop.f32.mrf.mxu0
  %v854 = vadd.f32 %v645, %v853
  %855 = vmatmul.f32.gmra.mxu0 %v60
  %v856 = vpop.f32.mrf.mxu0
  %v857 = vadd.f32 %v648, %v856
  %858 = vmatmul.f32.gmra.mxu0 %v65
  %v859 = vpop.f32.mrf.mxu0
  %v860 = vadd.f32 %v651, %v859
  %861 = vmatmul.f32.gmra.mxu0 %v70
  %v862 = vpop.f32.mrf.mxu0
  %v863 = vadd.f32 %v654, %v862
  %864 = vmatmul.f32.gmra.mxu0 %v75
  %v865 = vpop.f32.mrf.mxu0
  %v866 = vadd.f32 %v657, %v865
  %867 = vmatmul.f32.gmra.mxu0 %v80
  %v868 = vpop.f32.mrf.mxu0
  %v869 = vadd.f32 %v660, %v868
  %870 = vmatmul.f32.gmra.mxu0 %v85
  %v871 = vpop.f32.mrf.mxu0
  %v872 = vadd.f32 %v663, %v871
  %873 = vmatmul.f32.gmra.mxu0 %v90
  %v874 = vpop.f32.mrf.mxu0
  %v875 = vadd.f32 %v666, %v874
  %876 = vmatmul.f32.gmra.mxu0 %v95
  %v877 = vpop.f32.mrf.mxu0
  %v878 = vadd.f32 %v669, %v877
  %879 = vmatmul.f32.gmra.mxu0 %v100
  %v880 = vpop.f32.mrf.mxu0
  %v881 = vadd.f32 %v672, %v880
  %882 = vmatmul.f32.gmra.mxu0 %v105
  %v883 = vpop.f32.mrf.mxu0
  %v884 = vadd.f32 %v675, %v883
  %885 = vmatmul.f32.gmra.mxu0 %v110
  %v886 = vpop.f32.mrf.mxu0
  %v887 = vadd.f32 %v678, %v886
  %888 = vmatmul.f32.gmra.mxu0 %v115
  %v889 = vpop.f32.mrf.mxu0
  %v890 = vadd.f32 %v681, %v889
  %891 = vmatmul.f32.gmra.mxu0 %v120
  %v892 = vpop.f32.mrf.mxu0
  %v893 = vadd.f32 %v684, %v892
  %894 = vmatmul.f32.gmra.mxu0 %v125
  %v895 = vpop.f32.mrf.mxu0
  %v896 = vadd.f32 %v687, %v895
  %897 = vmatmul.f32.gmra.mxu0 %v130
  %v898 = vpop.f32.mrf.mxu0
  %v899 = vadd.f32 %v690, %v898
  %900 = vmatmul.f32.gmra.mxu0 %v135
  %v901 = vpop.f32.mrf.mxu0
  %v902 = vadd.f32 %v693, %v901
  %903 = vmatmul.f32.gmra.mxu0 %v140
  %v904 = vpop.f32.mrf.mxu0
  %v905 = vadd.f32 %v696, %v904
  %906 = vmatmul.f32.gmra.mxu0 %v145
  %v907 = vpop.f32.mrf.mxu0
  %v908 = vadd.f32 %v699, %v907
  %909 = vmatmul.f32.gmra.mxu0 %v150
  %v910 = vpop.f32.mrf.mxu0
  %v911 = vadd.f32 %v702, %v910
  %912 = vmatmul.f32.gmra.mxu0 %v155
  %v913 = vpop.f32.mrf.mxu0
  %v914 = vadd.f32 %v705, %v913
  %915 = vmatmul.f32.gmra.mxu0 %v160
  %v916 = vpop.f32.mrf.mxu0
  %v917 = vadd.f32 %v708, %v916
  %918 = vmatmul.f32.gmra.mxu0 %v165
  %v919 = vpop.f32.mrf.mxu0
  %v920 = vadd.f32 %v711, %v919
  %921 = vmatmul.f32.gmra.mxu0 %v170
  %v922 = vpop.f32.mrf.mxu0
  %v923 = vadd.f32 %v714, %v922
  %924 = vmatmul.f32.gmra.mxu0 %v175
  %v925 = vpop.f32.mrf.mxu0
  %v926 = vadd.f32 %v717, %v925
  %927 = vmatmul.f32.gmra.mxu0 %v180
  %v928 = vpop.f32.mrf.mxu0
  %v929 = vadd.f32 %v720, %v928
  %930 = vmatmul.f32.gmra.mxu0 %v185
  %v931 = vpop.f32.mrf.mxu0
  %v932 = vadd.f32 %v723, %v931
  %933 = vmatmul.f32.gmra.mxu0 %v190
  %v934 = vpop.f32.mrf.mxu0
  %v935 = vadd.f32 %v726, %v934
  %936 = vmatmul.f32.gmra.mxu0 %v195
  %v937 = vpop.f32.mrf.mxu0
  %v938 = vadd.f32 %v729, %v937
  %939 = vmatmul.f32.gmra.mxu0 %v200
  %v940 = vpop.f32.mrf.mxu0
  %v941 = vadd.f32 %v732, %v940
  %942 = vmatmul.f32.gmra.mxu0 %v205
  %v943 = vpop.f32.mrf.mxu0
  %v944 = vadd.f32 %v735, %v943
  %945 = vmatmul.f32.gmra.mxu0 %v210
  %v946 = vpop.f32.mrf.mxu0
  %v947 = vadd.f32 %v738, %v946
  %948 = vmatmul.f32.gmra.mxu0 %v215
  %v949 = vpop.f32.mrf.mxu0
  %v950 = vadd.f32 %v741, %v949
  %951 = vmatmul.f32.gmra.mxu0 %v220
  %v952 = vpop.f32.mrf.mxu0
  %v953 = vadd.f32 %v744, %v952
  %954 = vmatmul.f32.gmra.mxu0 %v225
  %v955 = vpop.f32.mrf.mxu0
  %v956 = vadd.f32 %v747, %v955
  %957 = vmatmul.f32.gmra.mxu0 %v230
  %v958 = vpop.f32.mrf.mxu0
  %v959 = vadd.f32 %v750, %v958
  %960 = vmatmul.f32.gmra.mxu0 %v235
  %v961 = vpop.f32.mrf.mxu0
  %v962 = vadd.f32 %v753, %v961
  %963 = vmatmul.f32.gmra.mxu0 %v240
  %v964 = vpop.f32.mrf.mxu0
  %v965 = vadd.f32 %v756, %v964
  %966 = vmatmul.f32.gmra.mxu0 %v245
  %v967 = vpop.f32.mrf.mxu0
  %v968 = vadd.f32 %v759, %v967
  %969 = vmatmul.f32.gmra.mxu0 %v250
  %v970 = vpop.f32.mrf.mxu0
  %v971 = vadd.f32 %v762, %v970
  %972 = vmatmul.f32.gmra.mxu0 %v255
  %v973 = vpop.f32.mrf.mxu0
  %v974 = vadd.f32 %v765, %v973
  %975 = vmatmul.f32.gmra.mxu0 %v260
  %v976 = vpop.f32.mrf.mxu0
  %v977 = vadd.f32 %v768, %v976
  %978 = vmatmul.f32.gmra.mxu0 %v265
  %v979 = vpop.f32.mrf.mxu0
  %v980 = vadd.f32 %v771, %v979
  %981 = vmatmul.f32.gmra.mxu0 %v270
  %v982 = vpop.f32.mrf.mxu0
  %v983 = vadd.f32 %v774, %v982
  %984 = vmatmul.f32.gmra.mxu0 %v275
  %v985 = vpop.f32.mrf.mxu0
  %v986 = vadd.f32 %v777, %v985
  %987 = vmatmul.f32.gmra.mxu0 %v280
  %v988 = vpop.f32.mrf.mxu0
  %v989 = vadd.f32 %v780, %v988
  %990 = vmatmul.f32.gmra.mxu0 %v285
  %v991 = vpop.f32.mrf.mxu0
  %v992 = vadd.f32 %v783, %v991
  %993 = vmatmul.f32.gmra.mxu0 %v290
  %v994 = vpop.f32.mrf.mxu0
  %v995 = vadd.f32 %v786, %v994
  %996 = vmatmul.f32.gmra.mxu0 %v295
  %v997 = vpop.f32.mrf.mxu0
  %v998 = vadd.f32 %v789, %v997
  %999 = vmatmul.f32.gmra.mxu0 %v300
  %v1000 = vpop.f32.mrf.mxu0
  %v1001 = vadd.f32 %v792, %v1000
  %1002 = vmatmul.f32.gmra.mxu0 %v305
  %v1003 = vpop.f32.mrf.mxu0
  %v1004 = vadd.f32 %v795, %v1003
  %1005 = vmatmul.f32.gmra.mxu0 %v310
  %v1006 = vpop.f32.mrf.mxu0
  %v1007 = vadd.f32 %v798, %v1006
  %1008 = vmatmul.f32.gmra.mxu0 %v315
  %v1009 = vpop.f32.mrf.mxu0
  %v1010 = vadd.f32 %v801, %v1009
  %1011 = vmatmul.f32.gmra.mxu0 %v320
  %v1012 = vpop.f32.mrf.mxu0
  %v1013 = vadd.f32 %v804, %v1012
  %1014 = vmatmul.f32.gmra.mxu0 %v325
  %v1015 = vpop.f32.mrf.mxu0
  %v1016 = vadd.f32 %v807, %v1015
  %1017 = vmatmul.f32.gmra.mxu0 %v330
  %v1018 = vpop.f32.mrf.mxu0
  %v1019 = vadd.f32 %v810, %v1018
  %1020 = vdwg.mxu0
  %1021 = vmatpush.msra.mxu0 %v381
  %1022 = vmatpush.msra.mxu0 %v380
  %1023 = vmatpush.msra.mxu0 %v379
  %1024 = vmatpush.msra.mxu0 %v378
  %1025 = vmatpush.msra.mxu0 %v377
  %1026 = vmatpush.msra.mxu0 %v376
  %1027 = vmatpush.msra.mxu0 %v375
  %1028 = vmatpush.msra.mxu0 %v374
  %1029 = vmatpush.msra.mxu0 %v373
  %1030 = vmatpush.msra.mxu0 %v372
  %1031 = vmatpush.msra.mxu0 %v371
  %1032 = vmatpush.msra.mxu0 %v370
  %1033 = vmatpush.msra.mxu0 %v369
  %1034 = vmatpush.msra.mxu0 %v368
  %1035 = vmatpush.msra.mxu0 %v367
  %1036 = vmatpush.msra.mxu0 %v366
  %1037 = vmatmul.f32.gmra.mxu0 %v16
  %v1038 = vpop.f32.mrf.mxu0
  %v1039 = vadd.f32 %v830, %v1038
  %1040 = vmatmul.f32.gmra.mxu0 %v21
  %v1041 = vpop.f32.mrf.mxu0
  %v1042 = vadd.f32 %v833, %v1041
  %1043 = vmatmul.f32.gmra.mxu0 %v26
  %v1044 = vpop.f32.mrf.mxu0
  %v1045 = vadd.f32 %v836, %v1044
  %1046 = vmatmul.f32.gmra.mxu0 %v31
  %v1047 = vpop.f32.mrf.mxu0
  %v1048 = vadd.f32 %v839, %v1047
  %1049 = vmatmul.f32.gmra.mxu0 %v36
  %v1050 = vpop.f32.mrf.mxu0
  %v1051 = vadd.f32 %v842, %v1050
  %1052 = vmatmul.f32.gmra.mxu0 %v41
  %v1053 = vpop.f32.mrf.mxu0
  %v1054 = vadd.f32 %v845, %v1053
  %1055 = vmatmul.f32.gmra.mxu0 %v46
  %v1056 = vpop.f32.mrf.mxu0
  %v1057 = vadd.f32 %v848, %v1056
  %1058 = vmatmul.f32.gmra.mxu0 %v51
  %v1059 = vpop.f32.mrf.mxu0
  %v1060 = vadd.f32 %v851, %v1059
  %1061 = vmatmul.f32.gmra.mxu0 %v56
  %v1062 = vpop.f32.mrf.mxu0
  %v1063 = vadd.f32 %v854, %v1062
  %1064 = vmatmul.f32.gmra.mxu0 %v61
  %v1065 = vpop.f32.mrf.mxu0
  %v1066 = vadd.f32 %v857, %v1065
  %1067 = vmatmul.f32.gmra.mxu0 %v66
  %v1068 = vpop.f32.mrf.mxu0
  %v1069 = vadd.f32 %v860, %v1068
  %1070 = vmatmul.f32.gmra.mxu0 %v71
  %v1071 = vpop.f32.mrf.mxu0
  %v1072 = vadd.f32 %v863, %v1071
  %1073 = vmatmul.f32.gmra.mxu0 %v76
  %v1074 = vpop.f32.mrf.mxu0
  %v1075 = vadd.f32 %v866, %v1074
  %1076 = vmatmul.f32.gmra.mxu0 %v81
  %v1077 = vpop.f32.mrf.mxu0
  %v1078 = vadd.f32 %v869, %v1077
  %1079 = vmatmul.f32.gmra.mxu0 %v86
  %v1080 = vpop.f32.mrf.mxu0
  %v1081 = vadd.f32 %v872, %v1080
  %1082 = vmatmul.f32.gmra.mxu0 %v91
  %v1083 = vpop.f32.mrf.mxu0
  %v1084 = vadd.f32 %v875, %v1083
  %1085 = vmatmul.f32.gmra.mxu0 %v96
  %v1086 = vpop.f32.mrf.mxu0
  %v1087 = vadd.f32 %v878, %v1086
  %1088 = vmatmul.f32.gmra.mxu0 %v101
  %v1089 = vpop.f32.mrf.mxu0
  %v1090 = vadd.f32 %v881, %v1089
  %1091 = vmatmul.f32.gmra.mxu0 %v106
  %v1092 = vpop.f32.mrf.mxu0
  %v1093 = vadd.f32 %v884, %v1092
  %1094 = vmatmul.f32.gmra.mxu0 %v111
  %v1095 = vpop.f32.mrf.mxu0
  %v1096 = vadd.f32 %v887, %v1095
  %1097 = vmatmul.f32.gmra.mxu0 %v116
  %v1098 = vpop.f32.mrf.mxu0
  %v1099 = vadd.f32 %v890, %v1098
  %1100 = vmatmul.f32.gmra.mxu0 %v121
  %v1101 = vpop.f32.mrf.mxu0
  %v1102 = vadd.f32 %v893, %v1101
  %1103 = vmatmul.f32.gmra.mxu0 %v126
  %v1104 = vpop.f32.mrf.mxu0
  %v1105 = vadd.f32 %v896, %v1104
  %1106 = vmatmul.f32.gmra.mxu0 %v131
  %v1107 = vpop.f32.mrf.mxu0
  %v1108 = vadd.f32 %v899, %v1107
  %1109 = vmatmul.f32.gmra.mxu0 %v136
  %v1110 = vpop.f32.mrf.mxu0
  %v1111 = vadd.f32 %v902, %v1110
  %1112 = vmatmul.f32.gmra.mxu0 %v141
  %v1113 = vpop.f32.mrf.mxu0
  %v1114 = vadd.f32 %v905, %v1113
  %1115 = vmatmul.f32.gmra.mxu0 %v146
  %v1116 = vpop.f32.mrf.mxu0
  %v1117 = vadd.f32 %v908, %v1116
  %1118 = vmatmul.f32.gmra.mxu0 %v151
  %v1119 = vpop.f32.mrf.mxu0
  %v1120 = vadd.f32 %v911, %v1119
  %1121 = vmatmul.f32.gmra.mxu0 %v156
  %v1122 = vpop.f32.mrf.mxu0
  %v1123 = vadd.f32 %v914, %v1122
  %1124 = vmatmul.f32.gmra.mxu0 %v161
  %v1125 = vpop.f32.mrf.mxu0
  %v1126 = vadd.f32 %v917, %v1125
  %1127 = vmatmul.f32.gmra.mxu0 %v166
  %v1128 = vpop.f32.mrf.mxu0
  %v1129 = vadd.f32 %v920, %v1128
  %1130 = vmatmul.f32.gmra.mxu0 %v171
  %v1131 = vpop.f32.mrf.mxu0
  %v1132 = vadd.f32 %v923, %v1131
  %1133 = vmatmul.f32.gmra.mxu0 %v176
  %v1134 = vpop.f32.mrf.mxu0
  %v1135 = vadd.f32 %v926, %v1134
  %1136 = vmatmul.f32.gmra.mxu0 %v181
  %v1137 = vpop.f32.mrf.mxu0
  %v1138 = vadd.f32 %v929, %v1137
  %1139 = vmatmul.f32.gmra.mxu0 %v186
  %v1140 = vpop.f32.mrf.mxu0
  %v1141 = vadd.f32 %v932, %v1140
  %1142 = vmatmul.f32.gmra.mxu0 %v191
  %v1143 = vpop.f32.mrf.mxu0
  %v1144 = vadd.f32 %v935, %v1143
  %1145 = vmatmul.f32.gmra.mxu0 %v196
  %v1146 = vpop.f32.mrf.mxu0
  %v1147 = vadd.f32 %v938, %v1146
  %1148 = vmatmul.f32.gmra.mxu0 %v201
  %v1149 = vpop.f32.mrf.mxu0
  %v1150 = vadd.f32 %v941, %v1149
  %1151 = vmatmul.f32.gmra.mxu0 %v206
  %v1152 = vpop.f32.mrf.mxu0
  %v1153 = vadd.f32 %v944, %v1152
  %1154 = vmatmul.f32.gmra.mxu0 %v211
  %v1155 = vpop.f32.mrf.mxu0
  %v1156 = vadd.f32 %v947, %v1155
  %1157 = vmatmul.f32.gmra.mxu0 %v216
  %v1158 = vpop.f32.mrf.mxu0
  %v1159 = vadd.f32 %v950, %v1158
  %1160 = vmatmul.f32.gmra.mxu0 %v221
  %v1161 = vpop.f32.mrf.mxu0
  %v1162 = vadd.f32 %v953, %v1161
  %1163 = vmatmul.f32.gmra.mxu0 %v226
  %v1164 = vpop.f32.mrf.mxu0
  %v1165 = vadd.f32 %v956, %v1164
  %1166 = vmatmul.f32.gmra.mxu0 %v231
  %v1167 = vpop.f32.mrf.mxu0
  %v1168 = vadd.f32 %v959, %v1167
  %1169 = vmatmul.f32.gmra.mxu0 %v236
  %v1170 = vpop.f32.mrf.mxu0
  %v1171 = vadd.f32 %v962, %v1170
  %1172 = vmatmul.f32.gmra.mxu0 %v241
  %v1173 = vpop.f32.mrf.mxu0
  %v1174 = vadd.f32 %v965, %v1173
  %1175 = vmatmul.f32.gmra.mxu0 %v246
  %v1176 = vpop.f32.mrf.mxu0
  %v1177 = vadd.f32 %v968, %v1176
  %1178 = vmatmul.f32.gmra.mxu0 %v251
  %v1179 = vpop.f32.mrf.mxu0
  %v1180 = vadd.f32 %v971, %v1179
  %1181 = vmatmul.f32.gmra.mxu0 %v256
  %v1182 = vpop.f32.mrf.mxu0
  %v1183 = vadd.f32 %v974, %v1182
  %1184 = vmatmul.f32.gmra.mxu0 %v261
  %v1185 = vpop.f32.mrf.mxu0
  %v1186 = vadd.f32 %v977, %v1185
  %1187 = vmatmul.f32.gmra.mxu0 %v266
  %v1188 = vpop.f32.mrf.mxu0
  %v1189 = vadd.f32 %v980, %v1188
  %1190 = vmatmul.f32.gmra.mxu0 %v271
  %v1191 = vpop.f32.mrf.mxu0
  %v1192 = vadd.f32 %v983, %v1191
  %1193 = vmatmul.f32.gmra.mxu0 %v276
  %v1194 = vpop.f32.mrf.mxu0
  %v1195 = vadd.f32 %v986, %v1194
  %1196 = vmatmul.f32.gmra.mxu0 %v281
  %v1197 = vpop.f32.mrf.mxu0
  %v1198 = vadd.f32 %v989, %v1197
  %1199 = vmatmul.f32.gmra.mxu0 %v286
  %v1200 = vpop.f32.mrf.mxu0
  %v1201 = vadd.f32 %v992, %v1200
  %1202 = vmatmul.f32.gmra.mxu0 %v291
  %v1203 = vpop.f32.mrf.mxu0
  %v1204 = vadd.f32 %v995, %v1203
  %1205 = vmatmul.f32.gmra.mxu0 %v296
  %v1206 = vpop.f32.mrf.mxu0
  %v1207 = vadd.f32 %v998, %v1206
  %1208 = vmatmul.f32.gmra.mxu0 %v301
  %v1209 = vpop.f32.mrf.mxu0
  %v1210 = vadd.f32 %v1001, %v1209
  %1211 = vmatmul.f32.gmra.mxu0 %v306
  %v1212 = vpop.f32.mrf.mxu0
  %v1213 = vadd.f32 %v1004, %v1212
  %1214 = vmatmul.f32.gmra.mxu0 %v311
  %v1215 = vpop.f32.mrf.mxu0
  %v1216 = vadd.f32 %v1007, %v1215
  %1217 = vmatmul.f32.gmra.mxu0 %v316
  %v1218 = vpop.f32.mrf.mxu0
  %v1219 = vadd.f32 %v1010, %v1218
  %1220 = vmatmul.f32.gmra.mxu0 %v321
  %v1221 = vpop.f32.mrf.mxu0
  %v1222 = vadd.f32 %v1013, %v1221
  %1223 = vmatmul.f32.gmra.mxu0 %v326
  %v1224 = vpop.f32.mrf.mxu0
  %v1225 = vadd.f32 %v1016, %v1224
  %1226 = vmatmul.f32.gmra.mxu0 %v331
  %v1227 = vpop.f32.mrf.mxu0
  %v1228 = vadd.f32 %v1019, %v1227
  %1229 = vdwg.mxu0
  %1230 = vmatpush.msra.mxu0 %v397
  %1231 = vmatpush.msra.mxu0 %v396
  %1232 = vmatpush.msra.mxu0 %v395
  %1233 = vmatpush.msra.mxu0 %v394
  %1234 = vmatpush.msra.mxu0 %v393
  %1235 = vmatpush.msra.mxu0 %v392
  %1236 = vmatpush.msra.mxu0 %v391
  %1237 = vmatpush.msra.mxu0 %v390
  %1238 = vmatpush.msra.mxu0 %v389
  %1239 = vmatpush.msra.mxu0 %v388
  %1240 = vmatpush.msra.mxu0 %v387
  %1241 = vmatpush.msra.mxu0 %v386
  %1242 = vmatpush.msra.mxu0 %v385
  %1243 = vmatpush.msra.mxu0 %v384
  %1244 = vmatpush.msra.mxu0 %v383
  %1245 = vmatpush.msra.mxu0 %v382
  %1246 = vmatmul.f32.gmra.mxu0 %v17
  %v1247 = vpop.f32.mrf.mxu0
  %v1248 = vadd.f32 %v1039, %v1247
  %1249 = vmatmul.f32.gmra.mxu0 %v22
  %v1250 = vpop.f32.mrf.mxu0
  %v1251 = vadd.f32 %v1042, %v1250
  %1252 = vmatmul.f32.gmra.mxu0 %v27
  %v1253 = vpop.f32.mrf.mxu0
  %v1254 = vadd.f32 %v1045, %v1253
  %1255 = vmatmul.f32.gmra.mxu0 %v32
  %v1256 = vpop.f32.mrf.mxu0
  %v1257 = vadd.f32 %v1048, %v1256
  %1258 = vmatmul.f32.gmra.mxu0 %v37
  %v1259 = vpop.f32.mrf.mxu0
  %v1260 = vadd.f32 %v1051, %v1259
  %1261 = vmatmul.f32.gmra.mxu0 %v42
  %v1262 = vpop.f32.mrf.mxu0
  %v1263 = vadd.f32 %v1054, %v1262
  %1264 = vmatmul.f32.gmra.mxu0 %v47
  %v1265 = vpop.f32.mrf.mxu0
  %v1266 = vadd.f32 %v1057, %v1265
  %1267 = vmatmul.f32.gmra.mxu0 %v52
  %v1268 = vpop.f32.mrf.mxu0
  %v1269 = vadd.f32 %v1060, %v1268
  %1270 = vmatmul.f32.gmra.mxu0 %v57
  %v1271 = vpop.f32.mrf.mxu0
  %v1272 = vadd.f32 %v1063, %v1271
  %1273 = vmatmul.f32.gmra.mxu0 %v62
  %v1274 = vpop.f32.mrf.mxu0
  %v1275 = vadd.f32 %v1066, %v1274
  %1276 = vmatmul.f32.gmra.mxu0 %v67
  %v1277 = vpop.f32.mrf.mxu0
  %v1278 = vadd.f32 %v1069, %v1277
  %1279 = vmatmul.f32.gmra.mxu0 %v72
  %v1280 = vpop.f32.mrf.mxu0
  %v1281 = vadd.f32 %v1072, %v1280
  %1282 = vmatmul.f32.gmra.mxu0 %v77
  %v1283 = vpop.f32.mrf.mxu0
  %v1284 = vadd.f32 %v1075, %v1283
  %1285 = vmatmul.f32.gmra.mxu0 %v82
  %v1286 = vpop.f32.mrf.mxu0
  %v1287 = vadd.f32 %v1078, %v1286
  %1288 = vmatmul.f32.gmra.mxu0 %v87
  %v1289 = vpop.f32.mrf.mxu0
  %v1290 = vadd.f32 %v1081, %v1289
  %1291 = vmatmul.f32.gmra.mxu0 %v92
  %v1292 = vpop.f32.mrf.mxu0
  %v1293 = vadd.f32 %v1084, %v1292
  %1294 = vmatmul.f32.gmra.mxu0 %v97
  %v1295 = vpop.f32.mrf.mxu0
  %v1296 = vadd.f32 %v1087, %v1295
  %1297 = vmatmul.f32.gmra.mxu0 %v102
  %v1298 = vpop.f32.mrf.mxu0
  %v1299 = vadd.f32 %v1090, %v1298
  %1300 = vmatmul.f32.gmra.mxu0 %v107
  %v1301 = vpop.f32.mrf.mxu0
  %v1302 = vadd.f32 %v1093, %v1301
  %1303 = vmatmul.f32.gmra.mxu0 %v112
  %v1304 = vpop.f32.mrf.mxu0
  %v1305 = vadd.f32 %v1096, %v1304
  %1306 = vmatmul.f32.gmra.mxu0 %v117
  %v1307 = vpop.f32.mrf.mxu0
  %v1308 = vadd.f32 %v1099, %v1307
  %1309 = vmatmul.f32.gmra.mxu0 %v122
  %v1310 = vpop.f32.mrf.mxu0
  %v1311 = vadd.f32 %v1102, %v1310
  %1312 = vmatmul.f32.gmra.mxu0 %v127
  %v1313 = vpop.f32.mrf.mxu0
  %v1314 = vadd.f32 %v1105, %v1313
  %1315 = vmatmul.f32.gmra.mxu0 %v132
  %v1316 = vpop.f32.mrf.mxu0
  %v1317 = vadd.f32 %v1108, %v1316
  %1318 = vmatmul.f32.gmra.mxu0 %v137
  %v1319 = vpop.f32.mrf.mxu0
  %v1320 = vadd.f32 %v1111, %v1319
  %1321 = vmatmul.f32.gmra.mxu0 %v142
  %v1322 = vpop.f32.mrf.mxu0
  %v1323 = vadd.f32 %v1114, %v1322
  %1324 = vmatmul.f32.gmra.mxu0 %v147
  %v1325 = vpop.f32.mrf.mxu0
  %v1326 = vadd.f32 %v1117, %v1325
  %1327 = vmatmul.f32.gmra.mxu0 %v152
  %v1328 = vpop.f32.mrf.mxu0
  %v1329 = vadd.f32 %v1120, %v1328
  %1330 = vmatmul.f32.gmra.mxu0 %v157
  %v1331 = vpop.f32.mrf.mxu0
  %v1332 = vadd.f32 %v1123, %v1331
  %1333 = vmatmul.f32.gmra.mxu0 %v162
  %v1334 = vpop.f32.mrf.mxu0
  %v1335 = vadd.f32 %v1126, %v1334
  %1336 = vmatmul.f32.gmra.mxu0 %v167
  %v1337 = vpop.f32.mrf.mxu0
  %v1338 = vadd.f32 %v1129, %v1337
  %1339 = vmatmul.f32.gmra.mxu0 %v172
  %v1340 = vpop.f32.mrf.mxu0
  %v1341 = vadd.f32 %v1132, %v1340
  %1342 = vmatmul.f32.gmra.mxu0 %v177
  %v1343 = vpop.f32.mrf.mxu0
  %v1344 = vadd.f32 %v1135, %v1343
  %1345 = vmatmul.f32.gmra.mxu0 %v182
  %v1346 = vpop.f32.mrf.mxu0
  %v1347 = vadd.f32 %v1138, %v1346
  %1348 = vmatmul.f32.gmra.mxu0 %v187
  %v1349 = vpop.f32.mrf.mxu0
  %v1350 = vadd.f32 %v1141, %v1349
  %1351 = vmatmul.f32.gmra.mxu0 %v192
  %v1352 = vpop.f32.mrf.mxu0
  %v1353 = vadd.f32 %v1144, %v1352
  %1354 = vmatmul.f32.gmra.mxu0 %v197
  %v1355 = vpop.f32.mrf.mxu0
  %v1356 = vadd.f32 %v1147, %v1355
  %1357 = vmatmul.f32.gmra.mxu0 %v202
  %v1358 = vpop.f32.mrf.mxu0
  %v1359 = vadd.f32 %v1150, %v1358
  %1360 = vmatmul.f32.gmra.mxu0 %v207
  %v1361 = vpop.f32.mrf.mxu0
  %v1362 = vadd.f32 %v1153, %v1361
  %1363 = vmatmul.f32.gmra.mxu0 %v212
  %v1364 = vpop.f32.mrf.mxu0
  %v1365 = vadd.f32 %v1156, %v1364
  %1366 = vmatmul.f32.gmra.mxu0 %v217
  %v1367 = vpop.f32.mrf.mxu0
  %v1368 = vadd.f32 %v1159, %v1367
  %1369 = vmatmul.f32.gmra.mxu0 %v222
  %v1370 = vpop.f32.mrf.mxu0
  %v1371 = vadd.f32 %v1162, %v1370
  %1372 = vmatmul.f32.gmra.mxu0 %v227
  %v1373 = vpop.f32.mrf.mxu0
  %v1374 = vadd.f32 %v1165, %v1373
  %1375 = vmatmul.f32.gmra.mxu0 %v232
  %v1376 = vpop.f32.mrf.mxu0
  %v1377 = vadd.f32 %v1168, %v1376
  %1378 = vmatmul.f32.gmra.mxu0 %v237
  %v1379 = vpop.f32.mrf.mxu0
  %v1380 = vadd.f32 %v1171, %v1379
  %1381 = vmatmul.f32.gmra.mxu0 %v242
  %v1382 = vpop.f32.mrf.mxu0
  %v1383 = vadd.f32 %v1174, %v1382
  %1384 = vmatmul.f32.gmra.mxu0 %v247
  %v1385 = vpop.f32.mrf.mxu0
  %v1386 = vadd.f32 %v1177, %v1385
  %1387 = vmatmul.f32.gmra.mxu0 %v252
  %v1388 = vpop.f32.mrf.mxu0
  %v1389 = vadd.f32 %v1180, %v1388
  %1390 = vmatmul.f32.gmra.mxu0 %v257
  %v1391 = vpop.f32.mrf.mxu0
  %v1392 = vadd.f32 %v1183, %v1391
  %1393 = vmatmul.f32.gmra.mxu0 %v262
  %v1394 = vpop.f32.mrf.mxu0
  %v1395 = vadd.f32 %v1186, %v1394
  %1396 = vmatmul.f32.gmra.mxu0 %v267
  %v1397 = vpop.f32.mrf.mxu0
  %v1398 = vadd.f32 %v1189, %v1397
  %1399 = vmatmul.f32.gmra.mxu0 %v272
  %v1400 = vpop.f32.mrf.mxu0
  %v1401 = vadd.f32 %v1192, %v1400
  %1402 = vmatmul.f32.gmra.mxu0 %v277
  %v1403 = vpop.f32.mrf.mxu0
  %v1404 = vadd.f32 %v1195, %v1403
  %1405 = vmatmul.f32.gmra.mxu0 %v282
  %v1406 = vpop.f32.mrf.mxu0
  %v1407 = vadd.f32 %v1198, %v1406
  %1408 = vmatmul.f32.gmra.mxu0 %v287
  %v1409 = vpop.f32.mrf.mxu0
  %v1410 = vadd.f32 %v1201, %v1409
  %1411 = vmatmul.f32.gmra.mxu0 %v292
  %v1412 = vpop.f32.mrf.mxu0
  %v1413 = vadd.f32 %v1204, %v1412
  %1414 = vmatmul.f32.gmra.mxu0 %v297
  %v1415 = vpop.f32.mrf.mxu0
  %v1416 = vadd.f32 %v1207, %v1415
  %1417 = vmatmul.f32.gmra.mxu0 %v302
  %v1418 = vpop.f32.mrf.mxu0
  %v1419 = vadd.f32 %v1210, %v1418
  %1420 = vmatmul.f32.gmra.mxu0 %v307
  %v1421 = vpop.f32.mrf.mxu0
  %v1422 = vadd.f32 %v1213, %v1421
  %1423 = vmatmul.f32.gmra.mxu0 %v312
  %v1424 = vpop.f32.mrf.mxu0
  %v1425 = vadd.f32 %v1216, %v1424
  %1426 = vmatmul.f32.gmra.mxu0 %v317
  %v1427 = vpop.f32.mrf.mxu0
  %v1428 = vadd.f32 %v1219, %v1427
  %1429 = vmatmul.f32.gmra.mxu0 %v322
  %v1430 = vpop.f32.mrf.mxu0
  %v1431 = vadd.f32 %v1222, %v1430
  %1432 = vmatmul.f32.gmra.mxu0 %v327
  %v1433 = vpop.f32.mrf.mxu0
  %v1434 = vadd.f32 %v1225, %v1433
  %1435 = vmatmul.f32.gmra.mxu0 %v332
  %v1436 = vpop.f32.mrf.mxu0
  %v1437 = vadd.f32 %v1228, %v1436
  %1438 = vdwg.mxu0
  %1439 = vmatpush.msra.mxu0 0.0
  %1440 = vmatpush.msra.mxu0 0.0
  %1441 = vmatpush.msra.mxu0 0.0
  %1442 = vmatpush.msra.mxu0 0.0
  %1443 = vmatpush.msra.mxu0 0.0
  %1444 = vmatpush.msra.mxu0 0.0
  %1445 = vmatpush.msra.mxu0 0.0
  %1446 = vmatpush.msra.mxu0 0.0
  %1447 = vmatpush.msra.mxu0 %v405
  %1448 = vmatpush.msra.mxu0 %v404
  %1449 = vmatpush.msra.mxu0 %v403
  %1450 = vmatpush.msra.mxu0 %v402
  %1451 = vmatpush.msra.mxu0 %v401
  %1452 = vmatpush.msra.mxu0 %v400
  %1453 = vmatpush.msra.mxu0 %v399
  %1454 = vmatpush.msra.mxu0 %v398
  %1455 = vmatmul.f32.gmra.mxu0 %v412
  %v1456 = vpop.f32.mrf.mxu0
  %v1457 = vadd.f32 %v1248, %v1456
  %1458 = vmatmul.f32.gmra.mxu0 %v415
  %v1459 = vpop.f32.mrf.mxu0
  %v1460 = vadd.f32 %v1251, %v1459
  %1461 = vmatmul.f32.gmra.mxu0 %v418
  %v1462 = vpop.f32.mrf.mxu0
  %v1463 = vadd.f32 %v1254, %v1462
  %1464 = vmatmul.f32.gmra.mxu0 %v421
  %v1465 = vpop.f32.mrf.mxu0
  %v1466 = vadd.f32 %v1257, %v1465
  %1467 = vmatmul.f32.gmra.mxu0 %v424
  %v1468 = vpop.f32.mrf.mxu0
  %v1469 = vadd.f32 %v1260, %v1468
  %1470 = vmatmul.f32.gmra.mxu0 %v427
  %v1471 = vpop.f32.mrf.mxu0
  %v1472 = vadd.f32 %v1263, %v1471
  %1473 = vmatmul.f32.gmra.mxu0 %v430
  %v1474 = vpop.f32.mrf.mxu0
  %v1475 = vadd.f32 %v1266, %v1474
  %1476 = vmatmul.f32.gmra.mxu0 %v433
  %v1477 = vpop.f32.mrf.mxu0
  %v1478 = vadd.f32 %v1269, %v1477
  %1479 = vmatmul.f32.gmra.mxu0 %v436
  %v1480 = vpop.f32.mrf.mxu0
  %v1481 = vadd.f32 %v1272, %v1480
  %1482 = vmatmul.f32.gmra.mxu0 %v439
  %v1483 = vpop.f32.mrf.mxu0
  %v1484 = vadd.f32 %v1275, %v1483
  %1485 = vmatmul.f32.gmra.mxu0 %v442
  %v1486 = vpop.f32.mrf.mxu0
  %v1487 = vadd.f32 %v1278, %v1486
  %1488 = vmatmul.f32.gmra.mxu0 %v445
  %v1489 = vpop.f32.mrf.mxu0
  %v1490 = vadd.f32 %v1281, %v1489
  %1491 = vmatmul.f32.gmra.mxu0 %v448
  %v1492 = vpop.f32.mrf.mxu0
  %v1493 = vadd.f32 %v1284, %v1492
  %1494 = vmatmul.f32.gmra.mxu0 %v451
  %v1495 = vpop.f32.mrf.mxu0
  %v1496 = vadd.f32 %v1287, %v1495
  %1497 = vmatmul.f32.gmra.mxu0 %v454
  %v1498 = vpop.f32.mrf.mxu0
  %v1499 = vadd.f32 %v1290, %v1498
  %1500 = vmatmul.f32.gmra.mxu0 %v457
  %v1501 = vpop.f32.mrf.mxu0
  %v1502 = vadd.f32 %v1293, %v1501
  %1503 = vmatmul.f32.gmra.mxu0 %v460
  %v1504 = vpop.f32.mrf.mxu0
  %v1505 = vadd.f32 %v1296, %v1504
  %1506 = vmatmul.f32.gmra.mxu0 %v463
  %v1507 = vpop.f32.mrf.mxu0
  %v1508 = vadd.f32 %v1299, %v1507
  %1509 = vmatmul.f32.gmra.mxu0 %v466
  %v1510 = vpop.f32.mrf.mxu0
  %v1511 = vadd.f32 %v1302, %v1510
  %1512 = vmatmul.f32.gmra.mxu0 %v469
  %v1513 = vpop.f32.mrf.mxu0
  %v1514 = vadd.f32 %v1305, %v1513
  %1515 = vmatmul.f32.gmra.mxu0 %v472
  %v1516 = vpop.f32.mrf.mxu0
  %v1517 = vadd.f32 %v1308, %v1516
  %1518 = vmatmul.f32.gmra.mxu0 %v475
  %v1519 = vpop.f32.mrf.mxu0
  %v1520 = vadd.f32 %v1311, %v1519
  %1521 = vmatmul.f32.gmra.mxu0 %v478
  %v1522 = vpop.f32.mrf.mxu0
  %v1523 = vadd.f32 %v1314, %v1522
  %1524 = vmatmul.f32.gmra.mxu0 %v481
  %v1525 = vpop.f32.mrf.mxu0
  %v1526 = vadd.f32 %v1317, %v1525
  %1527 = vmatmul.f32.gmra.mxu0 %v484
  %v1528 = vpop.f32.mrf.mxu0
  %v1529 = vadd.f32 %v1320, %v1528
  %1530 = vmatmul.f32.gmra.mxu0 %v487
  %v1531 = vpop.f32.mrf.mxu0
  %v1532 = vadd.f32 %v1323, %v1531
  %1533 = vmatmul.f32.gmra.mxu0 %v490
  %v1534 = vpop.f32.mrf.mxu0
  %v1535 = vadd.f32 %v1326, %v1534
  %1536 = vmatmul.f32.gmra.mxu0 %v493
  %v1537 = vpop.f32.mrf.mxu0
  %v1538 = vadd.f32 %v1329, %v1537
  %1539 = vmatmul.f32.gmra.mxu0 %v496
  %v1540 = vpop.f32.mrf.mxu0
  %v1541 = vadd.f32 %v1332, %v1540
  %1542 = vmatmul.f32.gmra.mxu0 %v499
  %v1543 = vpop.f32.mrf.mxu0
  %v1544 = vadd.f32 %v1335, %v1543
  %1545 = vmatmul.f32.gmra.mxu0 %v502
  %v1546 = vpop.f32.mrf.mxu0
  %v1547 = vadd.f32 %v1338, %v1546
  %1548 = vmatmul.f32.gmra.mxu0 %v505
  %v1549 = vpop.f32.mrf.mxu0
  %v1550 = vadd.f32 %v1341, %v1549
  %1551 = vmatmul.f32.gmra.mxu0 %v508
  %v1552 = vpop.f32.mrf.mxu0
  %v1553 = vadd.f32 %v1344, %v1552
  %1554 = vmatmul.f32.gmra.mxu0 %v511
  %v1555 = vpop.f32.mrf.mxu0
  %v1556 = vadd.f32 %v1347, %v1555
  %1557 = vmatmul.f32.gmra.mxu0 %v514
  %v1558 = vpop.f32.mrf.mxu0
  %v1559 = vadd.f32 %v1350, %v1558
  %1560 = vmatmul.f32.gmra.mxu0 %v517
  %v1561 = vpop.f32.mrf.mxu0
  %v1562 = vadd.f32 %v1353, %v1561
  %1563 = vmatmul.f32.gmra.mxu0 %v520
  %v1564 = vpop.f32.mrf.mxu0
  %v1565 = vadd.f32 %v1356, %v1564
  %1566 = vmatmul.f32.gmra.mxu0 %v523
  %v1567 = vpop.f32.mrf.mxu0
  %v1568 = vadd.f32 %v1359, %v1567
  %1569 = vmatmul.f32.gmra.mxu0 %v526
  %v1570 = vpop.f32.mrf.mxu0
  %v1571 = vadd.f32 %v1362, %v1570
  %1572 = vmatmul.f32.gmra.mxu0 %v529
  %v1573 = vpop.f32.mrf.mxu0
  %v1574 = vadd.f32 %v1365, %v1573
  %1575 = vmatmul.f32.gmra.mxu0 %v532
  %v1576 = vpop.f32.mrf.mxu0
  %v1577 = vadd.f32 %v1368, %v1576
  %1578 = vmatmul.f32.gmra.mxu0 %v535
  %v1579 = vpop.f32.mrf.mxu0
  %v1580 = vadd.f32 %v1371, %v1579
  %1581 = vmatmul.f32.gmra.mxu0 %v538
  %v1582 = vpop.f32.mrf.mxu0
  %v1583 = vadd.f32 %v1374, %v1582
  %1584 = vmatmul.f32.gmra.mxu0 %v541
  %v1585 = vpop.f32.mrf.mxu0
  %v1586 = vadd.f32 %v1377, %v1585
  %1587 = vmatmul.f32.gmra.mxu0 %v544
  %v1588 = vpop.f32.mrf.mxu0
  %v1589 = vadd.f32 %v1380, %v1588
  %1590 = vmatmul.f32.gmra.mxu0 %v547
  %v1591 = vpop.f32.mrf.mxu0
  %v1592 = vadd.f32 %v1383, %v1591
  %1593 = vmatmul.f32.gmra.mxu0 %v550
  %v1594 = vpop.f32.mrf.mxu0
  %v1595 = vadd.f32 %v1386, %v1594
  %1596 = vmatmul.f32.gmra.mxu0 %v553
  %v1597 = vpop.f32.mrf.mxu0
  %v1598 = vadd.f32 %v1389, %v1597
  %1599 = vmatmul.f32.gmra.mxu0 %v556
  %v1600 = vpop.f32.mrf.mxu0
  %v1601 = vadd.f32 %v1392, %v1600
  %1602 = vmatmul.f32.gmra.mxu0 %v559
  %v1603 = vpop.f32.mrf.mxu0
  %v1604 = vadd.f32 %v1395, %v1603
  %1605 = vmatmul.f32.gmra.mxu0 %v562
  %v1606 = vpop.f32.mrf.mxu0
  %v1607 = vadd.f32 %v1398, %v1606
  %1608 = vmatmul.f32.gmra.mxu0 %v565
  %v1609 = vpop.f32.mrf.mxu0
  %v1610 = vadd.f32 %v1401, %v1609
  %1611 = vmatmul.f32.gmra.mxu0 %v568
  %v1612 = vpop.f32.mrf.mxu0
  %v1613 = vadd.f32 %v1404, %v1612
  %1614 = vmatmul.f32.gmra.mxu0 %v571
  %v1615 = vpop.f32.mrf.mxu0
  %v1616 = vadd.f32 %v1407, %v1615
  %1617 = vmatmul.f32.gmra.mxu0 %v574
  %v1618 = vpop.f32.mrf.mxu0
  %v1619 = vadd.f32 %v1410, %v1618
  %1620 = vmatmul.f32.gmra.mxu0 %v577
  %v1621 = vpop.f32.mrf.mxu0
  %v1622 = vadd.f32 %v1413, %v1621
  %1623 = vmatmul.f32.gmra.mxu0 %v580
  %v1624 = vpop.f32.mrf.mxu0
  %v1625 = vadd.f32 %v1416, %v1624
  %1626 = vmatmul.f32.gmra.mxu0 %v583
  %v1627 = vpop.f32.mrf.mxu0
  %v1628 = vadd.f32 %v1419, %v1627
  %1629 = vmatmul.f32.gmra.mxu0 %v586
  %v1630 = vpop.f32.mrf.mxu0
  %v1631 = vadd.f32 %v1422, %v1630
  %1632 = vmatmul.f32.gmra.mxu0 %v589
  %v1633 = vpop.f32.mrf.mxu0
  %v1634 = vadd.f32 %v1425, %v1633
  %1635 = vmatmul.f32.gmra.mxu0 %v592
  %v1636 = vpop.f32.mrf.mxu0
  %v1637 = vadd.f32 %v1428, %v1636
  %1638 = vmatmul.f32.gmra.mxu0 %v595
  %v1639 = vpop.f32.mrf.mxu0
  %v1640 = vadd.f32 %v1431, %v1639
  %1641 = vmatmul.f32.gmra.mxu0 %v598
  %v1642 = vpop.f32.mrf.mxu0
  %v1643 = vadd.f32 %v1434, %v1642
  %1644 = vmatmul.f32.gmra.mxu0 %v601
  %v1645 = vpop.f32.mrf.mxu0
  %v1646 = vadd.f32 %v1437, %v1645
  %1647 = vdwg.mxu0
  %v1648 = vmax.f32 %v1457, 0.0
  %v1649 = vmax.f32 %v1460, 0.0
  %v1650 = vmax.f32 %v1463, 0.0
  %v1651 = vmax.f32 %v1466, 0.0
  %v1652 = vmax.f32 %v1469, 0.0
  %v1653 = vmax.f32 %v1472, 0.0
  %v1654 = vmax.f32 %v1475, 0.0
  %v1655 = vmax.f32 %v1478, 0.0
  %v1656 = vmax.f32 %v1481, 0.0
  %v1657 = vmax.f32 %v1484, 0.0
  %v1658 = vmax.f32 %v1487, 0.0
  %v1659 = vmax.f32 %v1490, 0.0
  %v1660 = vmax.f32 %v1493, 0.0
  %v1661 = vmax.f32 %v1496, 0.0
  %v1662 = vmax.f32 %v1499, 0.0
  %v1663 = vmax.f32 %v1502, 0.0
  %v1664 = vmax.f32 %v1505, 0.0
  %v1665 = vmax.f32 %v1508, 0.0
  %v1666 = vmax.f32 %v1511, 0.0
  %v1667 = vmax.f32 %v1514, 0.0
  %v1668 = vmax.f32 %v1517, 0.0
  %v1669 = vmax.f32 %v1520, 0.0
  %v1670 = vmax.f32 %v1523, 0.0
  %v1671 = vmax.f32 %v1526, 0.0
  %v1672 = vmax.f32 %v1529, 0.0
  %v1673 = vmax.f32 %v1532, 0.0
  %v1674 = vmax.f32 %v1535, 0.0
  %v1675 = vmax.f32 %v1538, 0.0
  %v1676 = vmax.f32 %v1541, 0.0
  %v1677 = vmax.f32 %v1544, 0.0
  %v1678 = vmax.f32 %v1547, 0.0
  %v1679 = vmax.f32 %v1550, 0.0
  %v1680 = vmax.f32 %v1553, 0.0
  %v1681 = vmax.f32 %v1556, 0.0
  %v1682 = vmax.f32 %v1559, 0.0
  %v1683 = vmax.f32 %v1562, 0.0
  %v1684 = vmax.f32 %v1565, 0.0
  %v1685 = vmax.f32 %v1568, 0.0
  %v1686 = vmax.f32 %v1571, 0.0
  %v1687 = vmax.f32 %v1574, 0.0
  %v1688 = vmax.f32 %v1577, 0.0
  %v1689 = vmax.f32 %v1580, 0.0
  %v1690 = vmax.f32 %v1583, 0.0
  %v1691 = vmax.f32 %v1586, 0.0
  %v1692 = vmax.f32 %v1589, 0.0
  %v1693 = vmax.f32 %v1592, 0.0
  %v1694 = vmax.f32 %v1595, 0.0
  %v1695 = vmax.f32 %v1598, 0.0
  %v1696 = vmax.f32 %v1601, 0.0
  %v1697 = vmax.f32 %v1604, 0.0
  %v1698 = vmax.f32 %v1607, 0.0
  %v1699 = vmax.f32 %v1610, 0.0
  %v1700 = vmax.f32 %v1613, 0.0
  %v1701 = vmax.f32 %v1616, 0.0
  %v1702 = vmax.f32 %v1619, 0.0
  %v1703 = vmax.f32 %v1622, 0.0
  %v1704 = vmax.f32 %v1625, 0.0
  %v1705 = vmax.f32 %v1628, 0.0
  %v1706 = vmax.f32 %v1631, 0.0
  %v1707 = vmax.f32 %v1634, 0.0
  %v1708 = vmax.f32 %v1637, 0.0
  %v1709 = vmax.f32 %v1640, 0.0
  %v1710 = vmax.f32 %v1643, 0.0
  %v1711 = vmax.f32 %v1646, 0.0
  %1712 = vst [vmem:[%s3] sm:$0xff] %v1648
  %1713 = vst [vmem:[%s3 + $0x8] sm:$0xff] %v1649
  %1714 = vst [vmem:[%s3 + $0x10] sm:$0xff] %v1650
  %1715 = vst [vmem:[%s3 + $0x18] sm:$0xff] %v1651
  %1716 = vst [vmem:[%s3 + $0x20] sm:$0xff] %v1652
  %1717 = vst [vmem:[%s3 + $0x28] sm:$0xff] %v1653
  %1718 = vst [vmem:[%s3 + $0x30] sm:$0xff] %v1654
  %1719 = vst [vmem:[%s3 + $0x38] sm:$0xff] %v1655
  %1720 = vst [vmem:[%s3 + $0x40] sm:$0xff] %v1656
  %1721 = vst [vmem:[%s3 + $0x48] sm:$0xff] %v1657
  %1722 = vst [vmem:[%s3 + $0x50] sm:$0xff] %v1658
  %1723 = vst [vmem:[%s3 + $0x58] sm:$0xff] %v1659
  %1724 = vst [vmem:[%s3 + $0x60] sm:$0xff] %v1660
  %1725 = vst [vmem:[%s3 + $0x68] sm:$0xff] %v1661
  %1726 = vst [vmem:[%s3 + $0x70] sm:$0xff] %v1662
  %1727 = vst [vmem:[%s3 + $0x78] sm:$0xff] %v1663
  %1728 = vst [vmem:[%s3 + $0x80] sm:$0xff] %v1664
  %1729 = vst [vmem:[%s3 + $0x88] sm:$0xff] %v1665
  %1730 = vst [vmem:[%s3 + $0x90] sm:$0xff] %v1666
  %1731 = vst [vmem:[%s3 + $0x98] sm:$0xff] %v1667
  %1732 = vst [vmem:[%s3 + $0xa0] sm:$0xff] %v1668
  %1733 = vst [vmem:[%s3 + $0xa8] sm:$0xff] %v1669
  %1734 = vst [vmem:[%s3 + $0xb0] sm:$0xff] %v1670
  %1735 = vst [vmem:[%s3 + $0xb8] sm:$0xff] %v1671
  %1736 = vst [vmem:[%s3 + $0xc0] sm:$0xff] %v1672
  %1737 = vst [vmem:[%s3 + $0xc8] sm:$0xff] %v1673
  %1738 = vst [vmem:[%s3 + $0xd0] sm:$0xff] %v1674
  %1739 = vst [vmem:[%s3 + $0xd8] sm:$0xff] %v1675
  %1740 = vst [vmem:[%s3 + $0xe0] sm:$0xff] %v1676
  %1741 = vst [vmem:[%s3 + $0xe8] sm:$0xff] %v1677
  %1742 = vst [vmem:[%s3 + $0xf0] sm:$0xff] %v1678
  %1743 = vst [vmem:[%s3 + $0xf8] sm:$0xff] %v1679
  %1744 = vst [vmem:[%s3 + $0x100] sm:$0xff] %v1680
  %1745 = vst [vmem:[%s3 + $0x108] sm:$0xff] %v1681
  %1746 = vst [vmem:[%s3 + $0x110] sm:$0xff] %v1682
  %1747 = vst [vmem:[%s3 + $0x118] sm:$0xff] %v1683
  %1748 = vst [vmem:[%s3 + $0x120] sm:$0xff] %v1684
  %1749 = vst [vmem:[%s3 + $0x128] sm:$0xff] %v1685
  %1750 = vst [vmem:[%s3 + $0x130] sm:$0xff] %v1686
  %1751 = vst [vmem:[%s3 + $0x138] sm:$0xff] %v1687
  %1752 = vst [vmem:[%s3 + $0x140] sm:$0xff] %v1688
  %1753 = vst [vmem:[%s3 + $0x148] sm:$0xff] %v1689
  %1754 = vst [vmem:[%s3 + $0x150] sm:$0xff] %v1690
  %1755 = vst [vmem:[%s3 + $0x158] sm:$0xff] %v1691
  %1756 = vst [vmem:[%s3 + $0x160] sm:$0xff] %v1692
  %1757 = vst [vmem:[%s3 + $0x168] sm:$0xff] %v1693
  %1758 = vst [vmem:[%s3 + $0x170] sm:$0xff] %v1694
  %1759 = vst [vmem:[%s3 + $0x178] sm:$0xff] %v1695
  %1760 = vst [vmem:[%s3 + $0x180] sm:$0xff] %v1696
  %1761 = vst [vmem:[%s3 + $0x188] sm:$0xff] %v1697
  %1762 = vst [vmem:[%s3 + $0x190] sm:$0xff] %v1698
  %1763 = vst [vmem:[%s3 + $0x198] sm:$0xff] %v1699
  %1764 = vst [vmem:[%s3 + $0x1a0] sm:$0xff] %v1700
  %1765 = vst [vmem:[%s3 + $0x1a8] sm:$0xff] %v1701
  %1766 = vst [vmem:[%s3 + $0x1b0] sm:$0xff] %v1702
  %1767 = vst [vmem:[%s3 + $0x1b8] sm:$0xff] %v1703
  %1768 = vst [vmem:[%s3 + $0x1c0] sm:$0xff] %v1704
  %1769 = vst [vmem:[%s3 + $0x1c8] sm:$0xff] %v1705
  %1770 = vst [vmem:[%s3 + $0x1d0] sm:$0xff] %v1706
  %1771 = vst [vmem:[%s3 + $0x1d8] sm:$0xff] %v1707
  %1772 = vst [vmem:[%s3 + $0x1e0] sm:$0xff] %v1708
  %1773 = vst [vmem:[%s3 + $0x1e8] sm:$0xff] %v1709
  %1774 = vst [vmem:[%s3 + $0x1f0] sm:$0xff] %v1710
  %1775 = vst [vmem:[%s3 + $0x1f8] sm:$0xff] %v1711
  // Predicated region
  $region14: #{_lambda_.15} parent=0 // pred_check
    _
  $region15: #{_lambda_.15} parent=0 // pred_check_branch
    %1777 = sbr.rel (0) target = $region17
  $region16: #{_lambda_.15} parent=0 // pred_region
    _
  $region17: #{_lambda_.15} parent=0 // pred_fallthru
    _
  // Predicated region
  $region18: #{_lambda_.15} parent=0 // pred_check
    _
  $region19: #{_lambda_.15} parent=0 // pred_check_branch
    %1779 = sbr.rel (0) target = $region21
  $region20: #{_lambda_.15} parent=0 // pred_region
    _
  $region21: #{_lambda_.15} parent=0 // pred_fallthru
    _

// kernel: _lambda_.16
$region0: #{_lambda_.16}
  #allocation0 [shape = 'u32[]', space=smem, size = 0x4, offset = 0x4, fixed_abs, tag = 'smem constant byte address 0x4 - core index']
  #allocation1 [shape = 'u32[72,128]{1,0:T(1,128)}', space=vmem, size = 0x9000, scoped, tag = 'internal scratch']
  %s0 = inlined_call_operand.vmem [shape: f32[128,64], index: 0, kind: input, shape index: {}]
  %s1 = inlined_call_operand.vmem [shape: f32[128,64], index: 1, kind: input, shape index: {}]
  %s2 = inlined_call_operand.vmem [shape: f32[128,64], index: 2, kind: input, shape index: {}]
  %s3 = inlined_call_operand.vmem [shape: f32[128,64], index: 3, kind: input, shape index: {}]
  %s4 = inlined_call_operand.vmem [shape: s32[128,1], index: 4, kind: input, shape index: {}]
  %s5 = inlined_call_operand.vmem [shape: f32[128,64], index: 5, kind: output, shape index: {0}]
  %s6 = inlined_call_operand.hbm [shape: s32[128,64], index: 6, kind: output, shape index: {1}]
  %7 = xla_tuple %s5, %s6
  %s8 = sld [smem:[#allocation0]]
  $region38: #{_lambda_.16} parent=0
    _
  %s10 = ssub.s32 1, %s8
  %s11 = scalar_select 0, %s10, %s8
  $region1: #{_lambda_.16} parent=0
    #allocation2 [shape = 'u8[65536]{0}', space=vmem, size = 0x10000, scoped, tag = 'output window, operand 1, single buffered']
    #allocation3 [shape = 's32[1]{0}', space=sflag, size = 0x4, scoped, tag = 'scoped memory for _lambda_.16']
    %12 = vsyncpa [#allocation3], 0
    // Predicated region
    $region2: #{_lambda_.16} parent=1 // pred_check
      _
    $region3: #{_lambda_.16} parent=1 // pred_check_branch
      %14 = sbr.rel (0) target = $region5
    $region4: #{_lambda_.16} parent=1 // pred_region
      _
    $region5: #{_lambda_.16} parent=1 // pred_fallthru
      _
    // Predicated region
    $region6: #{_lambda_.16} parent=1 // pred_check
      _
    $region7: #{_lambda_.16} parent=1 // pred_check_branch
      %16 = sbr.rel (0) target = $region9
    $region8: #{_lambda_.16} parent=1 // pred_region
      _
    $region9: #{_lambda_.16} parent=1 // pred_fallthru
      _
    // Predicated region
    $region10: #{_lambda_.16} parent=1 // pred_check
      _
    $region11: #{_lambda_.16} parent=1 // pred_check_branch
      %18 = sbr.rel (0) target = $region13
    $region12: #{_lambda_.16} parent=1 // pred_region
      _
    $region13: #{_lambda_.16} parent=1 // pred_fallthru
      _
    // Predicated region
    $region14: #{_lambda_.16} parent=1 // pred_check
      _
    $region15: #{_lambda_.16} parent=1 // pred_check_branch
      %20 = sbr.rel (0) target = $region17
    $region16: #{_lambda_.16} parent=1 // pred_region
      _
    $region17: #{_lambda_.16} parent=1 // pred_fallthru
      _
    // Predicated region
    $region18: #{_lambda_.16} parent=1 // pred_check
      _
    $region19: #{_lambda_.16} parent=1 // pred_check_branch
      %22 = sbr.rel (0) target = $region21
    $region20: #{_lambda_.16} parent=1 // pred_region
      _
    $region21: #{_lambda_.16} parent=1 // pred_fallthru
      _
    %v23 = vld [vmem:[%s0] sm:$0xff]
    %v24 = vld [vmem:[%s0 + $0x8] sm:$0xff]
    %v25 = vld [vmem:[%s0 + $0x10] sm:$0xff]
    %v26 = vld [vmem:[%s0 + $0x18] sm:$0xff]
    %v27 = vld [vmem:[%s0 + $0x20] sm:$0xff]
    %v28 = vld [vmem:[%s0 + $0x28] sm:$0xff]
    %v29 = vld [vmem:[%s0 + $0x30] sm:$0xff]
    %v30 = vld [vmem:[%s0 + $0x38] sm:$0xff]
    %v31 = vld [vmem:[%s0 + $0x40] sm:$0xff]
    %v32 = vld [vmem:[%s0 + $0x48] sm:$0xff]
    %v33 = vld [vmem:[%s0 + $0x50] sm:$0xff]
    %v34 = vld [vmem:[%s0 + $0x58] sm:$0xff]
    %v35 = vld [vmem:[%s0 + $0x60] sm:$0xff]
    %v36 = vld [vmem:[%s0 + $0x68] sm:$0xff]
    %v37 = vld [vmem:[%s0 + $0x70] sm:$0xff]
    %v38 = vld [vmem:[%s0 + $0x78] sm:$0xff]
    %v39 = vld [vmem:[%s1] sm:$0xff]
    %v40 = vld [vmem:[%s1 + $0x8] sm:$0xff]
    %v41 = vld [vmem:[%s1 + $0x10] sm:$0xff]
    %v42 = vld [vmem:[%s1 + $0x18] sm:$0xff]
    %v43 = vld [vmem:[%s1 + $0x20] sm:$0xff]
    %v44 = vld [vmem:[%s1 + $0x28] sm:$0xff]
    %v45 = vld [vmem:[%s1 + $0x30] sm:$0xff]
    %v46 = vld [vmem:[%s1 + $0x38] sm:$0xff]
    %v47 = vld [vmem:[%s1 + $0x40] sm:$0xff]
    %v48 = vld [vmem:[%s1 + $0x48] sm:$0xff]
    %v49 = vld [vmem:[%s1 + $0x50] sm:$0xff]
    %v50 = vld [vmem:[%s1 + $0x58] sm:$0xff]
    %v51 = vld [vmem:[%s1 + $0x60] sm:$0xff]
    %v52 = vld [vmem:[%s1 + $0x68] sm:$0xff]
    %v53 = vld [vmem:[%s1 + $0x70] sm:$0xff]
    %v54 = vld [vmem:[%s1 + $0x78] sm:$0xff]
    %vm55 = vcmp.gt.f32.partialorder %v39, %v23
    %vm56 = vcmp.gt.f32.partialorder %v40, %v24
    %vm57 = vcmp.gt.f32.partialorder %v41, %v25
    %vm58 = vcmp.gt.f32.partialorder %v42, %v26
    %vm59 = vcmp.gt.f32.partialorder %v43, %v27
    %vm60 = vcmp.gt.f32.partialorder %v44, %v28
    %vm61 = vcmp.gt.f32.partialorder %v45, %v29
    %vm62 = vcmp.gt.f32.partialorder %v46, %v30
    %vm63 = vcmp.gt.f32.partialorder %v47, %v31
    %vm64 = vcmp.gt.f32.partialorder %v48, %v32
    %vm65 = vcmp.gt.f32.partialorder %v49, %v33
    %vm66 = vcmp.gt.f32.partialorder %v50, %v34
    %vm67 = vcmp.gt.f32.partialorder %v51, %v35
    %vm68 = vcmp.gt.f32.partialorder %v52, %v36
    %vm69 = vcmp.gt.f32.partialorder %v53, %v37
    %vm70 = vcmp.gt.f32.partialorder %v54, %v38
    %v71 = vsel %vm55, %v39, %v23
    %v72 = vsel %vm56, %v40, %v24
    %v73 = vsel %vm57, %v41, %v25
    %v74 = vsel %vm58, %v42, %v26
    %v75 = vsel %vm59, %v43, %v27
    %v76 = vsel %vm60, %v44, %v28
    %v77 = vsel %vm61, %v45, %v29
    %v78 = vsel %vm62, %v46, %v30
    %v79 = vsel %vm63, %v47, %v31
    %v80 = vsel %vm64, %v48, %v32
    %v81 = vsel %vm65, %v49, %v33
    %v82 = vsel %vm66, %v50, %v34
    %v83 = vsel %vm67, %v51, %v35
    %v84 = vsel %vm68, %v52, %v36
    %v85 = vsel %vm69, %v53, %v37
    %v86 = vsel %vm70, %v54, %v38
    %v87 = vsel %vm55, 1, 0
    %v88 = vsel %vm56, 1, 0
    %v89 = vsel %vm57, 1, 0
    %v90 = vsel %vm58, 1, 0
    %v91 = vsel %vm59, 1, 0
    %v92 = vsel %vm60, 1, 0
    %v93 = vsel %vm61, 1, 0
    %v94 = vsel %vm62, 1, 0
    %v95 = vsel %vm63, 1, 0
    %v96 = vsel %vm64, 1, 0
    %v97 = vsel %vm65, 1, 0
    %v98 = vsel %vm66, 1, 0
    %v99 = vsel %vm67, 1, 0
    %v100 = vsel %vm68, 1, 0
    %v101 = vsel %vm69, 1, 0
    %v102 = vsel %vm70, 1, 0
    %v103 = vld [vmem:[%s2] sm:$0xff]
    %v104 = vld [vmem:[%s2 + $0x8] sm:$0xff]
    %v105 = vld [vmem:[%s2 + $0x10] sm:$0xff]
    %v106 = vld [vmem:[%s2 + $0x18] sm:$0xff]
    %v107 = vld [vmem:[%s2 + $0x20] sm:$0xff]
    %v108 = vld [vmem:[%s2 + $0x28] sm:$0xff]
    %v109 = vld [vmem:[%s2 + $0x30] sm:$0xff]
    %v110 = vld [vmem:[%s2 + $0x38] sm:$0xff]
    %v111 = vld [vmem:[%s2 + $0x40] sm:$0xff]
    %v112 = vld [vmem:[%s2 + $0x48] sm:$0xff]
    %v113 = vld [vmem:[%s2 + $0x50] sm:$0xff]
    %v114 = vld [vmem:[%s2 + $0x58] sm:$0xff]
    %v115 = vld [vmem:[%s2 + $0x60] sm:$0xff]
    %v116 = vld [vmem:[%s2 + $0x68] sm:$0xff]
    %v117 = vld [vmem:[%s2 + $0x70] sm:$0xff]
    %v118 = vld [vmem:[%s2 + $0x78] sm:$0xff]
    %vm119 = vcmp.gt.f32.partialorder %v103, %v71
    %vm120 = vcmp.gt.f32.partialorder %v104, %v72
    %vm121 = vcmp.gt.f32.partialorder %v105, %v73
    %vm122 = vcmp.gt.f32.partialorder %v106, %v74
    %vm123 = vcmp.gt.f32.partialorder %v107, %v75
    %vm124 = vcmp.gt.f32.partialorder %v108, %v76
    %vm125 = vcmp.gt.f32.partialorder %v109, %v77
    %vm126 = vcmp.gt.f32.partialorder %v110, %v78
    %vm127 = vcmp.gt.f32.partialorder %v111, %v79
    %vm128 = vcmp.gt.f32.partialorder %v112, %v80
    %vm129 = vcmp.gt.f32.partialorder %v113, %v81
    %vm130 = vcmp.gt.f32.partialorder %v114, %v82
    %vm131 = vcmp.gt.f32.partialorder %v115, %v83
    %vm132 = vcmp.gt.f32.partialorder %v116, %v84
    %vm133 = vcmp.gt.f32.partialorder %v117, %v85
    %vm134 = vcmp.gt.f32.partialorder %v118, %v86
    %v135 = vsel %vm119, %v103, %v71
    %v136 = vsel %vm120, %v104, %v72
    %v137 = vsel %vm121, %v105, %v73
    %v138 = vsel %vm122, %v106, %v74
    %v139 = vsel %vm123, %v107, %v75
    %v140 = vsel %vm124, %v108, %v76
    %v141 = vsel %vm125, %v109, %v77
    %v142 = vsel %vm126, %v110, %v78
    %v143 = vsel %vm127, %v111, %v79
    %v144 = vsel %vm128, %v112, %v80
    %v145 = vsel %vm129, %v113, %v81
    %v146 = vsel %vm130, %v114, %v82
    %v147 = vsel %vm131, %v115, %v83
    %v148 = vsel %vm132, %v116, %v84
    %v149 = vsel %vm133, %v117, %v85
    %v150 = vsel %vm134, %v118, %v86
    %v151 = vsel %vm119, 16, %v87
    %v152 = vsel %vm120, 16, %v88
    %v153 = vsel %vm121, 16, %v89
    %v154 = vsel %vm122, 16, %v90
    %v155 = vsel %vm123, 16, %v91
    %v156 = vsel %vm124, 16, %v92
    %v157 = vsel %vm125, 16, %v93
    %v158 = vsel %vm126, 16, %v94
    %v159 = vsel %vm127, 16, %v95
    %v160 = vsel %vm128, 16, %v96
    %v161 = vsel %vm129, 16, %v97
    %v162 = vsel %vm130, 16, %v98
    %v163 = vsel %vm131, 16, %v99
    %v164 = vsel %vm132, 16, %v100
    %v165 = vsel %vm133, 16, %v101
    %v166 = vsel %vm134, 16, %v102
    %v167 = vld [vmem:[%s3] sm:$0xff]
    %v168 = vld [vmem:[%s3 + $0x8] sm:$0xff]
    %v169 = vld [vmem:[%s3 + $0x10] sm:$0xff]
    %v170 = vld [vmem:[%s3 + $0x18] sm:$0xff]
    %v171 = vld [vmem:[%s3 + $0x20] sm:$0xff]
    %v172 = vld [vmem:[%s3 + $0x28] sm:$0xff]
    %v173 = vld [vmem:[%s3 + $0x30] sm:$0xff]
    %v174 = vld [vmem:[%s3 + $0x38] sm:$0xff]
    %v175 = vld [vmem:[%s3 + $0x40] sm:$0xff]
    %v176 = vld [vmem:[%s3 + $0x48] sm:$0xff]
    %v177 = vld [vmem:[%s3 + $0x50] sm:$0xff]
    %v178 = vld [vmem:[%s3 + $0x58] sm:$0xff]
    %v179 = vld [vmem:[%s3 + $0x60] sm:$0xff]
    %v180 = vld [vmem:[%s3 + $0x68] sm:$0xff]
    %v181 = vld [vmem:[%s3 + $0x70] sm:$0xff]
    %v182 = vld [vmem:[%s3 + $0x78] sm:$0xff]
    %vm183 = vcmp.gt.f32.partialorder %v167, %v135
    %vm184 = vcmp.gt.f32.partialorder %v168, %v136
    %vm185 = vcmp.gt.f32.partialorder %v169, %v137
    %vm186 = vcmp.gt.f32.partialorder %v170, %v138
    %vm187 = vcmp.gt.f32.partialorder %v171, %v139
    %vm188 = vcmp.gt.f32.partialorder %v172, %v140
    %vm189 = vcmp.gt.f32.partialorder %v173, %v141
    %vm190 = vcmp.gt.f32.partialorder %v174, %v142
    %vm191 = vcmp.gt.f32.partialorder %v175, %v143
    %vm192 = vcmp.gt.f32.partialorder %v176, %v144
    %vm193 = vcmp.gt.f32.partialorder %v177, %v145
    %vm194 = vcmp.gt.f32.partialorder %v178, %v146
    %vm195 = vcmp.gt.f32.partialorder %v179, %v147
    %vm196 = vcmp.gt.f32.partialorder %v180, %v148
    %vm197 = vcmp.gt.f32.partialorder %v181, %v149
    %vm198 = vcmp.gt.f32.partialorder %v182, %v150
    %v199 = vsel %vm183, %v167, %v135
    %v200 = vsel %vm184, %v168, %v136
    %v201 = vsel %vm185, %v169, %v137
    %v202 = vsel %vm186, %v170, %v138
    %v203 = vsel %vm187, %v171, %v139
    %v204 = vsel %vm188, %v172, %v140
    %v205 = vsel %vm189, %v173, %v141
    %v206 = vsel %vm190, %v174, %v142
    %v207 = vsel %vm191, %v175, %v143
    %v208 = vsel %vm192, %v176, %v144
    %v209 = vsel %vm193, %v177, %v145
    %v210 = vsel %vm194, %v178, %v146
    %v211 = vsel %vm195, %v179, %v147
    %v212 = vsel %vm196, %v180, %v148
    %v213 = vsel %vm197, %v181, %v149
    %v214 = vsel %vm198, %v182, %v150
    %v215 = vsel %vm183, 17, %v151
    %v216 = vsel %vm184, 17, %v152
    %v217 = vsel %vm185, 17, %v153
    %v218 = vsel %vm186, 17, %v154
    %v219 = vsel %vm187, 17, %v155
    %v220 = vsel %vm188, 17, %v156
    %v221 = vsel %vm189, 17, %v157
    %v222 = vsel %vm190, 17, %v158
    %v223 = vsel %vm191, 17, %v159
    %v224 = vsel %vm192, 17, %v160
    %v225 = vsel %vm193, 17, %v161
    %v226 = vsel %vm194, 17, %v162
    %v227 = vsel %vm195, 17, %v163
    %v228 = vsel %vm196, 17, %v164
    %v229 = vsel %vm197, 17, %v165
    %v230 = vsel %vm198, 17, %v166
    %vm231 = vcmask 523264
    %232 = vst.msk [vmem:[%s5] sm:$0xff] %vm231, %v199
    %233 = vst.msk [vmem:[%s5 + $0x8] sm:$0xff] %vm231, %v200
    %234 = vst.msk [vmem:[%s5 + $0x10] sm:$0xff] %vm231, %v201
    %235 = vst.msk [vmem:[%s5 + $0x18] sm:$0xff] %vm231, %v202
    %236 = vst.msk [vmem:[%s5 + $0x20] sm:$0xff] %vm231, %v203
    %237 = vst.msk [vmem:[%s5 + $0x28] sm:$0xff] %vm231, %v204
    %238 = vst.msk [vmem:[%s5 + $0x30] sm:$0xff] %vm231, %v205
    %239 = vst.msk [vmem:[%s5 + $0x38] sm:$0xff] %vm231, %v206
    %240 = vst.msk [vmem:[%s5 + $0x40] sm:$0xff] %vm231, %v207
    %241 = vst.msk [vmem:[%s5 + $0x48] sm:$0xff] %vm231, %v208
    %242 = vst.msk [vmem:[%s5 + $0x50] sm:$0xff] %vm231, %v209
    %243 = vst.msk [vmem:[%s5 + $0x58] sm:$0xff] %vm231, %v210
    %244 = vst.msk [vmem:[%s5 + $0x60] sm:$0xff] %vm231, %v211
    %245 = vst.msk [vmem:[%s5 + $0x68] sm:$0xff] %vm231, %v212
    %246 = vst.msk [vmem:[%s5 + $0x70] sm:$0xff] %vm231, %v213
    %247 = vst.msk [vmem:[%s5 + $0x78] sm:$0xff] %vm231, %v214
    %v248 = vld [vmem:[%s4] sm:$0xff]
    %v249 = vld [vmem:[%s4 + $0x8] sm:$0xff]
    %v250 = vld [vmem:[%s4 + $0x10] sm:$0xff]
    %v251 = vld [vmem:[%s4 + $0x18] sm:$0xff]
    %v252 = vld [vmem:[%s4 + $0x20] sm:$0xff]
    %v253 = vld [vmem:[%s4 + $0x28] sm:$0xff]
    %v254 = vld [vmem:[%s4 + $0x30] sm:$0xff]
    %v255 = vld [vmem:[%s4 + $0x38] sm:$0xff]
    %v256 = vld [vmem:[%s4 + $0x40] sm:$0xff]
    %v257 = vld [vmem:[%s4 + $0x48] sm:$0xff]
    %v258 = vld [vmem:[%s4 + $0x50] sm:$0xff]
    %v259 = vld [vmem:[%s4 + $0x58] sm:$0xff]
    %v260 = vld [vmem:[%s4 + $0x60] sm:$0xff]
    %v261 = vld [vmem:[%s4 + $0x68] sm:$0xff]
    %v262 = vld [vmem:[%s4 + $0x70] sm:$0xff]
    %v263 = vld [vmem:[%s4 + $0x78] sm:$0xff]
    %264 = vset.pattern.permute.xlu0 0
    %265 = vperm.xlu0 %264, %v248
    %v266 = vpop.permute.xlu0 %265
    %267 = vset.pattern.permute.xlu0 0
    %268 = vperm.xlu0 %267, %v249
    %v269 = vpop.permute.xlu0 %268
    %270 = vset.pattern.permute.xlu0 0
    %271 = vperm.xlu0 %270, %v250
    %v272 = vpop.permute.xlu0 %271
    %273 = vset.pattern.permute.xlu0 0
    %274 = vperm.xlu0 %273, %v251
    %v275 = vpop.permute.xlu0 %274
    %276 = vset.pattern.permute.xlu0 0
    %277 = vperm.xlu0 %276, %v252
    %v278 = vpop.permute.xlu0 %277
    %279 = vset.pattern.permute.xlu0 0
    %280 = vperm.xlu0 %279, %v253
    %v281 = vpop.permute.xlu0 %280
    %282 = vset.pattern.permute.xlu0 0
    %283 = vperm.xlu0 %282, %v254
    %v284 = vpop.permute.xlu0 %283
    %285 = vset.pattern.permute.xlu0 0
    %286 = vperm.xlu0 %285, %v255
    %v287 = vpop.permute.xlu0 %286
    %288 = vset.pattern.permute.xlu0 0
    %289 = vperm.xlu0 %288, %v256
    %v290 = vpop.permute.xlu0 %289
    %291 = vset.pattern.permute.xlu0 0
    %292 = vperm.xlu0 %291, %v257
    %v293 = vpop.permute.xlu0 %292
    %294 = vset.pattern.permute.xlu0 0
    %295 = vperm.xlu0 %294, %v258
    %v296 = vpop.permute.xlu0 %295
    %297 = vset.pattern.permute.xlu0 0
    %298 = vperm.xlu0 %297, %v259
    %v299 = vpop.permute.xlu0 %298
    %300 = vset.pattern.permute.xlu0 0
    %301 = vperm.xlu0 %300, %v260
    %v302 = vpop.permute.xlu0 %301
    %303 = vset.pattern.permute.xlu0 0
    %304 = vperm.xlu0 %303, %v261
    %v305 = vpop.permute.xlu0 %304
    %306 = vset.pattern.permute.xlu0 0
    %307 = vperm.xlu0 %306, %v262
    %v308 = vpop.permute.xlu0 %307
    %309 = vset.pattern.permute.xlu0 0
    %310 = vperm.xlu0 %309, %v263
    %v311 = vpop.permute.xlu0 %310
    %v312 = vadd.s32 %v266, %v215
    %v313 = vadd.s32 %v269, %v216
    %v314 = vadd.s32 %v272, %v217
    %v315 = vadd.s32 %v275, %v218
    %v316 = vadd.s32 %v278, %v219
    %v317 = vadd.s32 %v281, %v220
    %v318 = vadd.s32 %v284, %v221
    %v319 = vadd.s32 %v287, %v222
    %v320 = vadd.s32 %v290, %v223
    %v321 = vadd.s32 %v293, %v224
    %v322 = vadd.s32 %v296, %v225
    %v323 = vadd.s32 %v299, %v226
    %v324 = vadd.s32 %v302, %v227
    %v325 = vadd.s32 %v305, %v228
    %v326 = vadd.s32 %v308, %v229
    %v327 = vadd.s32 %v311, %v230
    %328 = vst.msk [vmem:[#allocation2] sm:$0xff] %vm231, %v312
    %329 = vst.msk [vmem:[#allocation2 + $0x8] sm:$0xff] %vm231, %v313
    %330 = vst.msk [vmem:[#allocation2 + $0x10] sm:$0xff] %vm231, %v314
    %331 = vst.msk [vmem:[#allocation2 + $0x18] sm:$0xff] %vm231, %v315
    %332 = vst.msk [vmem:[#allocation2 + $0x20] sm:$0xff] %vm231, %v316
    %333 = vst.msk [vmem:[#allocation2 + $0x28] sm:$0xff] %vm231, %v317
    %334 = vst.msk [vmem:[#allocation2 + $0x30] sm:$0xff] %vm231, %v318
    %335 = vst.msk [vmem:[#allocation2 + $0x38] sm:$0xff] %vm231, %v319
    %336 = vst.msk [vmem:[#allocation2 + $0x40] sm:$0xff] %vm231, %v320
    %337 = vst.msk [vmem:[#allocation2 + $0x48] sm:$0xff] %vm231, %v321
    %338 = vst.msk [vmem:[#allocation2 + $0x50] sm:$0xff] %vm231, %v322
    %339 = vst.msk [vmem:[#allocation2 + $0x58] sm:$0xff] %vm231, %v323
    %340 = vst.msk [vmem:[#allocation2 + $0x60] sm:$0xff] %vm231, %v324
    %341 = vst.msk [vmem:[#allocation2 + $0x68] sm:$0xff] %vm231, %v325
    %342 = vst.msk [vmem:[#allocation2 + $0x70] sm:$0xff] %vm231, %v326
    %343 = vst.msk [vmem:[#allocation2 + $0x78] sm:$0xff] %vm231, %v327
    // Predicated region
    $region22: #{_lambda_.16} parent=1 // pred_check
      _
    $region23: #{_lambda_.16} parent=1 // pred_check_branch
      %345 = sbr.rel (0) target = $region25
    $region24: #{_lambda_.16} parent=1 // pred_region
      _
    $region25: #{_lambda_.16} parent=1 // pred_fallthru
      _
    // Predicated region
    $region26: #{_lambda_.16} parent=1 // pred_check
      _
    $region27: #{_lambda_.16} parent=1 // pred_check_branch
      %347 = sbr.rel (0) target = $region29
    $region28: #{_lambda_.16} parent=1 // pred_region
      %349 = vsyncadd [#allocation3], 0
      %s350 = sshll.u32 [#allocation2], 4
      %s351 = int_to_ptr.vmem [resolvable:$true] %s350
      %s352 = sshll.u32 %s6, 4
      %s353 = int_to_ptr.hbm [resolvable:$true] %s352
      %358 = dma.vmem_to_hbm [thread:$0]  %s351, 2048, %s353, [#allocation3], 128, 128, 8
    $region29: #{_lambda_.16} parent=1 // pred_fallthru
      _
    // Predicated region
    $region30: #{_lambda_.16} parent=1 // pred_check
      _
    $region31: #{_lambda_.16} parent=1 // pred_check_branch
      %360 = sbr.rel (0) target = $region33
    $region32: #{_lambda_.16} parent=1 // pred_region
      _
    $region33: #{_lambda_.16} parent=1 // pred_fallthru
      _
    // Predicated region
    $region34: #{_lambda_.16} parent=1 // pred_check
      _
    $region35: #{_lambda_.16} parent=1 // pred_check_branch
      %362 = sbr.rel (0) target = $region37
    $region36: #{_lambda_.16} parent=1 // pred_region
      %364 = dma.done [#allocation3], 2048
    $region37: #{_lambda_.16} parent=1 // pred_fallthru
      _
    %365 = vsyncpa [#allocation3], 1

// kernel: _lambda_.17
$region0: #{_lambda_.17}
  #allocation0 [shape = 'u32[]', space=smem, size = 0x4, offset = 0x4, fixed_abs, tag = 'smem constant byte address 0x4 - core index']
  #allocation1 [shape = 'u32[72,128]{1,0:T(1,128)}', space=vmem, size = 0x9000, scoped, tag = 'internal scratch']
  %s0 = inlined_call_operand.vmem [shape: f32[128,576], index: 0, kind: input, shape index: {}]
  %s1 = inlined_call_operand.vmem [shape: f32[576,128], index: 1, kind: input, shape index: {}]
  %s2 = inlined_call_operand.vmem [shape: f32[1,128], index: 2, kind: input, shape index: {}]
  %s3 = inlined_call_operand.vmem [shape: f32[128,128], index: 3, kind: output, shape index: {}]
  %s4 = sld [smem:[#allocation0]]
  $region22: #{_lambda_.17} parent=0
    _
  %s6 = ssub.s32 1, %s4
  %s7 = scalar_select 0, %s6, %s4
  // Predicated region
  $region2: #{_lambda_.17} parent=0 // pred_check
    _
  $region3: #{_lambda_.17} parent=0 // pred_check_branch
    %9 = sbr.rel (0) target = $region5
  $region4: #{_lambda_.17} parent=0 // pred_region
    _
  $region5: #{_lambda_.17} parent=0 // pred_fallthru
    _
  // Predicated region
  $region6: #{_lambda_.17} parent=0 // pred_check
    _
  $region7: #{_lambda_.17} parent=0 // pred_check_branch
    %11 = sbr.rel (0) target = $region9
  $region8: #{_lambda_.17} parent=0 // pred_region
    _
  $region9: #{_lambda_.17} parent=0 // pred_fallthru
    _
  // Predicated region
  $region10: #{_lambda_.17} parent=0 // pred_check
    _
  $region11: #{_lambda_.17} parent=0 // pred_check_branch
    %13 = sbr.rel (0) target = $region13
  $region12: #{_lambda_.17} parent=0 // pred_region
    _
  $region13: #{_lambda_.17} parent=0 // pred_fallthru
    _
  %v14 = vld [vmem:[%s0] sm:$0xff]
  %v15 = vld [vmem:[%s0 + $0x8] sm:$0xff]
  %v16 = vld [vmem:[%s0 + $0x10] sm:$0xff]
  %v17 = vld [vmem:[%s0 + $0x18] sm:$0xff]
  %v18 = vld [vmem:[%s0 + $0x20] sm:$0xff]
  %v19 = vld [vmem:[%s0 + $0x28] sm:$0xff]
  %v20 = vld [vmem:[%s0 + $0x30] sm:$0xff]
  %v21 = vld [vmem:[%s0 + $0x38] sm:$0xff]
  %v22 = vld [vmem:[%s0 + $0x40] sm:$0xff]
  %v23 = vld [vmem:[%s0 + $0x48] sm:$0xff]
  %v24 = vld [vmem:[%s0 + $0x50] sm:$0xff]
  %v25 = vld [vmem:[%s0 + $0x58] sm:$0xff]
  %v26 = vld [vmem:[%s0 + $0x60] sm:$0xff]
  %v27 = vld [vmem:[%s0 + $0x68] sm:$0xff]
  %v28 = vld [vmem:[%s0 + $0x70] sm:$0xff]
  %v29 = vld [vmem:[%s0 + $0x78] sm:$0xff]
  %v30 = vld [vmem:[%s0 + $0x80] sm:$0xff]
  %v31 = vld [vmem:[%s0 + $0x88] sm:$0xff]
  %v32 = vld [vmem:[%s0 + $0x90] sm:$0xff]
  %v33 = vld [vmem:[%s0 + $0x98] sm:$0xff]
  %v34 = vld [vmem:[%s0 + $0xa0] sm:$0xff]
  %v35 = vld [vmem:[%s0 + $0xa8] sm:$0xff]
  %v36 = vld [vmem:[%s0 + $0xb0] sm:$0xff]
  %v37 = vld [vmem:[%s0 + $0xb8] sm:$0xff]
  %v38 = vld [vmem:[%s0 + $0xc0] sm:$0xff]
  %v39 = vld [vmem:[%s0 + $0xc8] sm:$0xff]
  %v40 = vld [vmem:[%s0 + $0xd0] sm:$0xff]
  %v41 = vld [vmem:[%s0 + $0xd8] sm:$0xff]
  %v42 = vld [vmem:[%s0 + $0xe0] sm:$0xff]
  %v43 = vld [vmem:[%s0 + $0xe8] sm:$0xff]
  %v44 = vld [vmem:[%s0 + $0xf0] sm:$0xff]
  %v45 = vld [vmem:[%s0 + $0xf8] sm:$0xff]
  %v46 = vld [vmem:[%s0 + $0x100] sm:$0xff]
  %v47 = vld [vmem:[%s0 + $0x108] sm:$0xff]
  %v48 = vld [vmem:[%s0 + $0x110] sm:$0xff]
  %v49 = vld [vmem:[%s0 + $0x118] sm:$0xff]
  %v50 = vld [vmem:[%s0 + $0x120] sm:$0xff]
  %v51 = vld [vmem:[%s0 + $0x128] sm:$0xff]
  %v52 = vld [vmem:[%s0 + $0x130] sm:$0xff]
  %v53 = vld [vmem:[%s0 + $0x138] sm:$0xff]
  %v54 = vld [vmem:[%s0 + $0x140] sm:$0xff]
  %v55 = vld [vmem:[%s0 + $0x148] sm:$0xff]
  %v56 = vld [vmem:[%s0 + $0x150] sm:$0xff]
  %v57 = vld [vmem:[%s0 + $0x158] sm:$0xff]
  %v58 = vld [vmem:[%s0 + $0x160] sm:$0xff]
  %v59 = vld [vmem:[%s0 + $0x168] sm:$0xff]
  %v60 = vld [vmem:[%s0 + $0x170] sm:$0xff]
  %v61 = vld [vmem:[%s0 + $0x178] sm:$0xff]
  %v62 = vld [vmem:[%s0 + $0x180] sm:$0xff]
  %v63 = vld [vmem:[%s0 + $0x188] sm:$0xff]
  %v64 = vld [vmem:[%s0 + $0x190] sm:$0xff]
  %v65 = vld [vmem:[%s0 + $0x198] sm:$0xff]
  %v66 = vld [vmem:[%s0 + $0x1a0] sm:$0xff]
  %v67 = vld [vmem:[%s0 + $0x1a8] sm:$0xff]
  %v68 = vld [vmem:[%s0 + $0x1b0] sm:$0xff]
  %v69 = vld [vmem:[%s0 + $0x1b8] sm:$0xff]
  %v70 = vld [vmem:[%s0 + $0x1c0] sm:$0xff]
  %v71 = vld [vmem:[%s0 + $0x1c8] sm:$0xff]
  %v72 = vld [vmem:[%s0 + $0x1d0] sm:$0xff]
  %v73 = vld [vmem:[%s0 + $0x1d8] sm:$0xff]
  %v74 = vld [vmem:[%s0 + $0x1e0] sm:$0xff]
  %v75 = vld [vmem:[%s0 + $0x1e8] sm:$0xff]
  %v76 = vld [vmem:[%s0 + $0x1f0] sm:$0xff]
  %v77 = vld [vmem:[%s0 + $0x1f8] sm:$0xff]
  %v78 = vld [vmem:[%s0 + $0x200] sm:$0xff]
  %v79 = vld [vmem:[%s0 + $0x208] sm:$0xff]
  %v80 = vld [vmem:[%s0 + $0x210] sm:$0xff]
  %v81 = vld [vmem:[%s0 + $0x218] sm:$0xff]
  %v82 = vld [vmem:[%s0 + $0x220] sm:$0xff]
  %v83 = vld [vmem:[%s0 + $0x228] sm:$0xff]
  %v84 = vld [vmem:[%s0 + $0x230] sm:$0xff]
  %v85 = vld [vmem:[%s0 + $0x238] sm:$0xff]
  %v86 = vld [vmem:[%s0 + $0x240] sm:$0xff]
  %v87 = vld [vmem:[%s0 + $0x248] sm:$0xff]
  %v88 = vld [vmem:[%s0 + $0x250] sm:$0xff]
  %v89 = vld [vmem:[%s0 + $0x258] sm:$0xff]
  %v90 = vld [vmem:[%s0 + $0x260] sm:$0xff]
  %v91 = vld [vmem:[%s0 + $0x268] sm:$0xff]
  %v92 = vld [vmem:[%s0 + $0x270] sm:$0xff]
  %v93 = vld [vmem:[%s0 + $0x278] sm:$0xff]
  %v94 = vld [vmem:[%s1] sm:$0xff]
  %v95 = vld [vmem:[%s1 + $0x8] sm:$0xff]
  %v96 = vld [vmem:[%s1 + $0x10] sm:$0xff]
  %v97 = vld [vmem:[%s1 + $0x18] sm:$0xff]
  %v98 = vld [vmem:[%s1 + $0x20] sm:$0xff]
  %v99 = vld [vmem:[%s1 + $0x28] sm:$0xff]
  %v100 = vld [vmem:[%s1 + $0x30] sm:$0xff]
  %v101 = vld [vmem:[%s1 + $0x38] sm:$0xff]
  %v102 = vld [vmem:[%s1 + $0x40] sm:$0xff]
  %v103 = vld [vmem:[%s1 + $0x48] sm:$0xff]
  %v104 = vld [vmem:[%s1 + $0x50] sm:$0xff]
  %v105 = vld [vmem:[%s1 + $0x58] sm:$0xff]
  %v106 = vld [vmem:[%s1 + $0x60] sm:$0xff]
  %v107 = vld [vmem:[%s1 + $0x68] sm:$0xff]
  %v108 = vld [vmem:[%s1 + $0x70] sm:$0xff]
  %v109 = vld [vmem:[%s1 + $0x78] sm:$0xff]
  %v110 = vld [vmem:[%s1 + $0x80] sm:$0xff]
  %v111 = vld [vmem:[%s1 + $0x88] sm:$0xff]
  %v112 = vld [vmem:[%s1 + $0x90] sm:$0xff]
  %v113 = vld [vmem:[%s1 + $0x98] sm:$0xff]
  %v114 = vld [vmem:[%s1 + $0xa0] sm:$0xff]
  %v115 = vld [vmem:[%s1 + $0xa8] sm:$0xff]
  %v116 = vld [vmem:[%s1 + $0xb0] sm:$0xff]
  %v117 = vld [vmem:[%s1 + $0xb8] sm:$0xff]
  %v118 = vld [vmem:[%s1 + $0xc0] sm:$0xff]
  %v119 = vld [vmem:[%s1 + $0xc8] sm:$0xff]
  %v120 = vld [vmem:[%s1 + $0xd0] sm:$0xff]
  %v121 = vld [vmem:[%s1 + $0xd8] sm:$0xff]
  %v122 = vld [vmem:[%s1 + $0xe0] sm:$0xff]
  %v123 = vld [vmem:[%s1 + $0xe8] sm:$0xff]
  %v124 = vld [vmem:[%s1 + $0xf0] sm:$0xff]
  %v125 = vld [vmem:[%s1 + $0xf8] sm:$0xff]
  %v126 = vld [vmem:[%s1 + $0x100] sm:$0xff]
  %v127 = vld [vmem:[%s1 + $0x108] sm:$0xff]
  %v128 = vld [vmem:[%s1 + $0x110] sm:$0xff]
  %v129 = vld [vmem:[%s1 + $0x118] sm:$0xff]
  %v130 = vld [vmem:[%s1 + $0x120] sm:$0xff]
  %v131 = vld [vmem:[%s1 + $0x128] sm:$0xff]
  %v132 = vld [vmem:[%s1 + $0x130] sm:$0xff]
  %v133 = vld [vmem:[%s1 + $0x138] sm:$0xff]
  %v134 = vld [vmem:[%s1 + $0x140] sm:$0xff]
  %v135 = vld [vmem:[%s1 + $0x148] sm:$0xff]
  %v136 = vld [vmem:[%s1 + $0x150] sm:$0xff]
  %v137 = vld [vmem:[%s1 + $0x158] sm:$0xff]
  %v138 = vld [vmem:[%s1 + $0x160] sm:$0xff]
  %v139 = vld [vmem:[%s1 + $0x168] sm:$0xff]
  %v140 = vld [vmem:[%s1 + $0x170] sm:$0xff]
  %v141 = vld [vmem:[%s1 + $0x178] sm:$0xff]
  %v142 = vld [vmem:[%s1 + $0x180] sm:$0xff]
  %v143 = vld [vmem:[%s1 + $0x188] sm:$0xff]
  %v144 = vld [vmem:[%s1 + $0x190] sm:$0xff]
  %v145 = vld [vmem:[%s1 + $0x198] sm:$0xff]
  %v146 = vld [vmem:[%s1 + $0x1a0] sm:$0xff]
  %v147 = vld [vmem:[%s1 + $0x1a8] sm:$0xff]
  %v148 = vld [vmem:[%s1 + $0x1b0] sm:$0xff]
  %v149 = vld [vmem:[%s1 + $0x1b8] sm:$0xff]
  %v150 = vld [vmem:[%s1 + $0x1c0] sm:$0xff]
  %v151 = vld [vmem:[%s1 + $0x1c8] sm:$0xff]
  %v152 = vld [vmem:[%s1 + $0x1d0] sm:$0xff]
  %v153 = vld [vmem:[%s1 + $0x1d8] sm:$0xff]
  %v154 = vld [vmem:[%s1 + $0x1e0] sm:$0xff]
  %v155 = vld [vmem:[%s1 + $0x1e8] sm:$0xff]
  %v156 = vld [vmem:[%s1 + $0x1f0] sm:$0xff]
  %v157 = vld [vmem:[%s1 + $0x1f8] sm:$0xff]
  %v158 = vld [vmem:[%s1 + $0x200] sm:$0xff]
  %v159 = vld [vmem:[%s1 + $0x208] sm:$0xff]
  %v160 = vld [vmem:[%s1 + $0x210] sm:$0xff]
  %v161 = vld [vmem:[%s1 + $0x218] sm:$0xff]
  %v162 = vld [vmem:[%s1 + $0x220] sm:$0xff]
  %v163 = vld [vmem:[%s1 + $0x228] sm:$0xff]
  %v164 = vld [vmem:[%s1 + $0x230] sm:$0xff]
  %v165 = vld [vmem:[%s1 + $0x238] sm:$0xff]
  %v166 = vld [vmem:[%s2] sm:$0x1]
  %v168 = vperm.slane %v166, 0
  %vm170 = vcmask 523264
  %v172 = vsel %vm170, %v18, 0
  %v175 = vsel %vm170, %v23, 0
  %v178 = vsel %vm170, %v28, 0
  %v181 = vsel %vm170, %v33, 0
  %v184 = vsel %vm170, %v38, 0
  %v187 = vsel %vm170, %v43, 0
  %v190 = vsel %vm170, %v48, 0
  %v193 = vsel %vm170, %v53, 0
  %v196 = vsel %vm170, %v58, 0
  %v199 = vsel %vm170, %v63, 0
  %v202 = vsel %vm170, %v68, 0
  %v205 = vsel %vm170, %v73, 0
  %v208 = vsel %vm170, %v78, 0
  %v211 = vsel %vm170, %v83, 0
  %v214 = vsel %vm170, %v88, 0
  %v217 = vsel %vm170, %v93, 0
  %219 = vmatpush.msra.mxu0 %v109
  %220 = vmatpush.msra.mxu0 %v108
  %221 = vmatpush.msra.mxu0 %v107
  %222 = vmatpush.msra.mxu0 %v106
  %223 = vmatpush.msra.mxu0 %v105
  %224 = vmatpush.msra.mxu0 %v104
  %225 = vmatpush.msra.mxu0 %v103
  %226 = vmatpush.msra.mxu0 %v102
  %227 = vmatpush.msra.mxu0 %v101
  %228 = vmatpush.msra.mxu0 %v100
  %229 = vmatpush.msra.mxu0 %v99
  %230 = vmatpush.msra.mxu0 %v98
  %231 = vmatpush.msra.mxu0 %v97
  %232 = vmatpush.msra.mxu0 %v96
  %233 = vmatpush.msra.mxu0 %v95
  %234 = vmatpush.msra.mxu0 %v94
  %235 = vmatmul.f32.gmra.mxu0 %v14
  %v236 = vpop.f32.mrf.mxu0
  %v237 = vadd.f32 %v168, %v236
  %238 = vmatmul.f32.gmra.mxu0 %v19
  %v239 = vpop.f32.mrf.mxu0
  %v240 = vadd.f32 %v168, %v239
  %241 = vmatmul.f32.gmra.mxu0 %v24
  %v242 = vpop.f32.mrf.mxu0
  %v243 = vadd.f32 %v168, %v242
  %244 = vmatmul.f32.gmra.mxu0 %v29
  %v245 = vpop.f32.mrf.mxu0
  %v246 = vadd.f32 %v168, %v245
  %247 = vmatmul.f32.gmra.mxu0 %v34
  %v248 = vpop.f32.mrf.mxu0
  %v249 = vadd.f32 %v168, %v248
  %250 = vmatmul.f32.gmra.mxu0 %v39
  %v251 = vpop.f32.mrf.mxu0
  %v252 = vadd.f32 %v168, %v251
  %253 = vmatmul.f32.gmra.mxu0 %v44
  %v254 = vpop.f32.mrf.mxu0
  %v255 = vadd.f32 %v168, %v254
  %256 = vmatmul.f32.gmra.mxu0 %v49
  %v257 = vpop.f32.mrf.mxu0
  %v258 = vadd.f32 %v168, %v257
  %259 = vmatmul.f32.gmra.mxu0 %v54
  %v260 = vpop.f32.mrf.mxu0
  %v261 = vadd.f32 %v168, %v260
  %262 = vmatmul.f32.gmra.mxu0 %v59
  %v263 = vpop.f32.mrf.mxu0
  %v264 = vadd.f32 %v168, %v263
  %265 = vmatmul.f32.gmra.mxu0 %v64
  %v266 = vpop.f32.mrf.mxu0
  %v267 = vadd.f32 %v168, %v266
  %268 = vmatmul.f32.gmra.mxu0 %v69
  %v269 = vpop.f32.mrf.mxu0
  %v270 = vadd.f32 %v168, %v269
  %271 = vmatmul.f32.gmra.mxu0 %v74
  %v272 = vpop.f32.mrf.mxu0
  %v273 = vadd.f32 %v168, %v272
  %274 = vmatmul.f32.gmra.mxu0 %v79
  %v275 = vpop.f32.mrf.mxu0
  %v276 = vadd.f32 %v168, %v275
  %277 = vmatmul.f32.gmra.mxu0 %v84
  %v278 = vpop.f32.mrf.mxu0
  %v279 = vadd.f32 %v168, %v278
  %280 = vmatmul.f32.gmra.mxu0 %v89
  %v281 = vpop.f32.mrf.mxu0
  %v282 = vadd.f32 %v168, %v281
  %283 = vdwg.mxu0
  %284 = vmatpush.msra.mxu0 %v125
  %285 = vmatpush.msra.mxu0 %v124
  %286 = vmatpush.msra.mxu0 %v123
  %287 = vmatpush.msra.mxu0 %v122
  %288 = vmatpush.msra.mxu0 %v121
  %289 = vmatpush.msra.mxu0 %v120
  %290 = vmatpush.msra.mxu0 %v119
  %291 = vmatpush.msra.mxu0 %v118
  %292 = vmatpush.msra.mxu0 %v117
  %293 = vmatpush.msra.mxu0 %v116
  %294 = vmatpush.msra.mxu0 %v115
  %295 = vmatpush.msra.mxu0 %v114
  %296 = vmatpush.msra.mxu0 %v113
  %297 = vmatpush.msra.mxu0 %v112
  %298 = vmatpush.msra.mxu0 %v111
  %299 = vmatpush.msra.mxu0 %v110
  %300 = vmatmul.f32.gmra.mxu0 %v15
  %v301 = vpop.f32.mrf.mxu0
  %v302 = vadd.f32 %v237, %v301
  %303 = vmatmul.f32.gmra.mxu0 %v20
  %v304 = vpop.f32.mrf.mxu0
  %v305 = vadd.f32 %v240, %v304
  %306 = vmatmul.f32.gmra.mxu0 %v25
  %v307 = vpop.f32.mrf.mxu0
  %v308 = vadd.f32 %v243, %v307
  %309 = vmatmul.f32.gmra.mxu0 %v30
  %v310 = vpop.f32.mrf.mxu0
  %v311 = vadd.f32 %v246, %v310
  %312 = vmatmul.f32.gmra.mxu0 %v35
  %v313 = vpop.f32.mrf.mxu0
  %v314 = vadd.f32 %v249, %v313
  %315 = vmatmul.f32.gmra.mxu0 %v40
  %v316 = vpop.f32.mrf.mxu0
  %v317 = vadd.f32 %v252, %v316
  %318 = vmatmul.f32.gmra.mxu0 %v45
  %v319 = vpop.f32.mrf.mxu0
  %v320 = vadd.f32 %v255, %v319
  %321 = vmatmul.f32.gmra.mxu0 %v50
  %v322 = vpop.f32.mrf.mxu0
  %v323 = vadd.f32 %v258, %v322
  %324 = vmatmul.f32.gmra.mxu0 %v55
  %v325 = vpop.f32.mrf.mxu0
  %v326 = vadd.f32 %v261, %v325
  %327 = vmatmul.f32.gmra.mxu0 %v60
  %v328 = vpop.f32.mrf.mxu0
  %v329 = vadd.f32 %v264, %v328
  %330 = vmatmul.f32.gmra.mxu0 %v65
  %v331 = vpop.f32.mrf.mxu0
  %v332 = vadd.f32 %v267, %v331
  %333 = vmatmul.f32.gmra.mxu0 %v70
  %v334 = vpop.f32.mrf.mxu0
  %v335 = vadd.f32 %v270, %v334
  %336 = vmatmul.f32.gmra.mxu0 %v75
  %v337 = vpop.f32.mrf.mxu0
  %v338 = vadd.f32 %v273, %v337
  %339 = vmatmul.f32.gmra.mxu0 %v80
  %v340 = vpop.f32.mrf.mxu0
  %v341 = vadd.f32 %v276, %v340
  %342 = vmatmul.f32.gmra.mxu0 %v85
  %v343 = vpop.f32.mrf.mxu0
  %v344 = vadd.f32 %v279, %v343
  %345 = vmatmul.f32.gmra.mxu0 %v90
  %v346 = vpop.f32.mrf.mxu0
  %v347 = vadd.f32 %v282, %v346
  %348 = vdwg.mxu0
  %349 = vmatpush.msra.mxu0 %v141
  %350 = vmatpush.msra.mxu0 %v140
  %351 = vmatpush.msra.mxu0 %v139
  %352 = vmatpush.msra.mxu0 %v138
  %353 = vmatpush.msra.mxu0 %v137
  %354 = vmatpush.msra.mxu0 %v136
  %355 = vmatpush.msra.mxu0 %v135
  %356 = vmatpush.msra.mxu0 %v134
  %357 = vmatpush.msra.mxu0 %v133
  %358 = vmatpush.msra.mxu0 %v132
  %359 = vmatpush.msra.mxu0 %v131
  %360 = vmatpush.msra.mxu0 %v130
  %361 = vmatpush.msra.mxu0 %v129
  %362 = vmatpush.msra.mxu0 %v128
  %363 = vmatpush.msra.mxu0 %v127
  %364 = vmatpush.msra.mxu0 %v126
  %365 = vmatmul.f32.gmra.mxu0 %v16
  %v366 = vpop.f32.mrf.mxu0
  %v367 = vadd.f32 %v302, %v366
  %368 = vmatmul.f32.gmra.mxu0 %v21
  %v369 = vpop.f32.mrf.mxu0
  %v370 = vadd.f32 %v305, %v369
  %371 = vmatmul.f32.gmra.mxu0 %v26
  %v372 = vpop.f32.mrf.mxu0
  %v373 = vadd.f32 %v308, %v372
  %374 = vmatmul.f32.gmra.mxu0 %v31
  %v375 = vpop.f32.mrf.mxu0
  %v376 = vadd.f32 %v311, %v375
  %377 = vmatmul.f32.gmra.mxu0 %v36
  %v378 = vpop.f32.mrf.mxu0
  %v379 = vadd.f32 %v314, %v378
  %380 = vmatmul.f32.gmra.mxu0 %v41
  %v381 = vpop.f32.mrf.mxu0
  %v382 = vadd.f32 %v317, %v381
  %383 = vmatmul.f32.gmra.mxu0 %v46
  %v384 = vpop.f32.mrf.mxu0
  %v385 = vadd.f32 %v320, %v384
  %386 = vmatmul.f32.gmra.mxu0 %v51
  %v387 = vpop.f32.mrf.mxu0
  %v388 = vadd.f32 %v323, %v387
  %389 = vmatmul.f32.gmra.mxu0 %v56
  %v390 = vpop.f32.mrf.mxu0
  %v391 = vadd.f32 %v326, %v390
  %392 = vmatmul.f32.gmra.mxu0 %v61
  %v393 = vpop.f32.mrf.mxu0
  %v394 = vadd.f32 %v329, %v393
  %395 = vmatmul.f32.gmra.mxu0 %v66
  %v396 = vpop.f32.mrf.mxu0
  %v397 = vadd.f32 %v332, %v396
  %398 = vmatmul.f32.gmra.mxu0 %v71
  %v399 = vpop.f32.mrf.mxu0
  %v400 = vadd.f32 %v335, %v399
  %401 = vmatmul.f32.gmra.mxu0 %v76
  %v402 = vpop.f32.mrf.mxu0
  %v403 = vadd.f32 %v338, %v402
  %404 = vmatmul.f32.gmra.mxu0 %v81
  %v405 = vpop.f32.mrf.mxu0
  %v406 = vadd.f32 %v341, %v405
  %407 = vmatmul.f32.gmra.mxu0 %v86
  %v408 = vpop.f32.mrf.mxu0
  %v409 = vadd.f32 %v344, %v408
  %410 = vmatmul.f32.gmra.mxu0 %v91
  %v411 = vpop.f32.mrf.mxu0
  %v412 = vadd.f32 %v347, %v411
  %413 = vdwg.mxu0
  %414 = vmatpush.msra.mxu0 %v157
  %415 = vmatpush.msra.mxu0 %v156
  %416 = vmatpush.msra.mxu0 %v155
  %417 = vmatpush.msra.mxu0 %v154
  %418 = vmatpush.msra.mxu0 %v153
  %419 = vmatpush.msra.mxu0 %v152
  %420 = vmatpush.msra.mxu0 %v151
  %421 = vmatpush.msra.mxu0 %v150
  %422 = vmatpush.msra.mxu0 %v149
  %423 = vmatpush.msra.mxu0 %v148
  %424 = vmatpush.msra.mxu0 %v147
  %425 = vmatpush.msra.mxu0 %v146
  %426 = vmatpush.msra.mxu0 %v145
  %427 = vmatpush.msra.mxu0 %v144
  %428 = vmatpush.msra.mxu0 %v143
  %429 = vmatpush.msra.mxu0 %v142
  %430 = vmatmul.f32.gmra.mxu0 %v17
  %v431 = vpop.f32.mrf.mxu0
  %v432 = vadd.f32 %v367, %v431
  %433 = vmatmul.f32.gmra.mxu0 %v22
  %v434 = vpop.f32.mrf.mxu0
  %v435 = vadd.f32 %v370, %v434
  %436 = vmatmul.f32.gmra.mxu0 %v27
  %v437 = vpop.f32.mrf.mxu0
  %v438 = vadd.f32 %v373, %v437
  %439 = vmatmul.f32.gmra.mxu0 %v32
  %v440 = vpop.f32.mrf.mxu0
  %v441 = vadd.f32 %v376, %v440
  %442 = vmatmul.f32.gmra.mxu0 %v37
  %v443 = vpop.f32.mrf.mxu0
  %v444 = vadd.f32 %v379, %v443
  %445 = vmatmul.f32.gmra.mxu0 %v42
  %v446 = vpop.f32.mrf.mxu0
  %v447 = vadd.f32 %v382, %v446
  %448 = vmatmul.f32.gmra.mxu0 %v47
  %v449 = vpop.f32.mrf.mxu0
  %v450 = vadd.f32 %v385, %v449
  %451 = vmatmul.f32.gmra.mxu0 %v52
  %v452 = vpop.f32.mrf.mxu0
  %v453 = vadd.f32 %v388, %v452
  %454 = vmatmul.f32.gmra.mxu0 %v57
  %v455 = vpop.f32.mrf.mxu0
  %v456 = vadd.f32 %v391, %v455
  %457 = vmatmul.f32.gmra.mxu0 %v62
  %v458 = vpop.f32.mrf.mxu0
  %v459 = vadd.f32 %v394, %v458
  %460 = vmatmul.f32.gmra.mxu0 %v67
  %v461 = vpop.f32.mrf.mxu0
  %v462 = vadd.f32 %v397, %v461
  %463 = vmatmul.f32.gmra.mxu0 %v72
  %v464 = vpop.f32.mrf.mxu0
  %v465 = vadd.f32 %v400, %v464
  %466 = vmatmul.f32.gmra.mxu0 %v77
  %v467 = vpop.f32.mrf.mxu0
  %v468 = vadd.f32 %v403, %v467
  %469 = vmatmul.f32.gmra.mxu0 %v82
  %v470 = vpop.f32.mrf.mxu0
  %v471 = vadd.f32 %v406, %v470
  %472 = vmatmul.f32.gmra.mxu0 %v87
  %v473 = vpop.f32.mrf.mxu0
  %v474 = vadd.f32 %v409, %v473
  %475 = vmatmul.f32.gmra.mxu0 %v92
  %v476 = vpop.f32.mrf.mxu0
  %v477 = vadd.f32 %v412, %v476
  %478 = vdwg.mxu0
  %479 = vmatpush.msra.mxu0 0.0
  %480 = vmatpush.msra.mxu0 0.0
  %481 = vmatpush.msra.mxu0 0.0
  %482 = vmatpush.msra.mxu0 0.0
  %483 = vmatpush.msra.mxu0 0.0
  %484 = vmatpush.msra.mxu0 0.0
  %485 = vmatpush.msra.mxu0 0.0
  %486 = vmatpush.msra.mxu0 0.0
  %487 = vmatpush.msra.mxu0 %v165
  %488 = vmatpush.msra.mxu0 %v164
  %489 = vmatpush.msra.mxu0 %v163
  %490 = vmatpush.msra.mxu0 %v162
  %491 = vmatpush.msra.mxu0 %v161
  %492 = vmatpush.msra.mxu0 %v160
  %493 = vmatpush.msra.mxu0 %v159
  %494 = vmatpush.msra.mxu0 %v158
  %495 = vmatmul.f32.gmra.mxu0 %v172
  %v496 = vpop.f32.mrf.mxu0
  %v497 = vadd.f32 %v432, %v496
  %498 = vmatmul.f32.gmra.mxu0 %v175
  %v499 = vpop.f32.mrf.mxu0
  %v500 = vadd.f32 %v435, %v499
  %501 = vmatmul.f32.gmra.mxu0 %v178
  %v502 = vpop.f32.mrf.mxu0
  %v503 = vadd.f32 %v438, %v502
  %504 = vmatmul.f32.gmra.mxu0 %v181
  %v505 = vpop.f32.mrf.mxu0
  %v506 = vadd.f32 %v441, %v505
  %507 = vmatmul.f32.gmra.mxu0 %v184
  %v508 = vpop.f32.mrf.mxu0
  %v509 = vadd.f32 %v444, %v508
  %510 = vmatmul.f32.gmra.mxu0 %v187
  %v511 = vpop.f32.mrf.mxu0
  %v512 = vadd.f32 %v447, %v511
  %513 = vmatmul.f32.gmra.mxu0 %v190
  %v514 = vpop.f32.mrf.mxu0
  %v515 = vadd.f32 %v450, %v514
  %516 = vmatmul.f32.gmra.mxu0 %v193
  %v517 = vpop.f32.mrf.mxu0
  %v518 = vadd.f32 %v453, %v517
  %519 = vmatmul.f32.gmra.mxu0 %v196
  %v520 = vpop.f32.mrf.mxu0
  %v521 = vadd.f32 %v456, %v520
  %522 = vmatmul.f32.gmra.mxu0 %v199
  %v523 = vpop.f32.mrf.mxu0
  %v524 = vadd.f32 %v459, %v523
  %525 = vmatmul.f32.gmra.mxu0 %v202
  %v526 = vpop.f32.mrf.mxu0
  %v527 = vadd.f32 %v462, %v526
  %528 = vmatmul.f32.gmra.mxu0 %v205
  %v529 = vpop.f32.mrf.mxu0
  %v530 = vadd.f32 %v465, %v529
  %531 = vmatmul.f32.gmra.mxu0 %v208
  %v532 = vpop.f32.mrf.mxu0
  %v533 = vadd.f32 %v468, %v532
  %534 = vmatmul.f32.gmra.mxu0 %v211
  %v535 = vpop.f32.mrf.mxu0
  %v536 = vadd.f32 %v471, %v535
  %537 = vmatmul.f32.gmra.mxu0 %v214
  %v538 = vpop.f32.mrf.mxu0
  %v539 = vadd.f32 %v474, %v538
  %540 = vmatmul.f32.gmra.mxu0 %v217
  %v541 = vpop.f32.mrf.mxu0
  %v542 = vadd.f32 %v477, %v541
  %543 = vdwg.mxu0
  %v544 = vmax.f32 %v497, 0.0
  %v545 = vmax.f32 %v500, 0.0
  %v546 = vmax.f32 %v503, 0.0
  %v547 = vmax.f32 %v506, 0.0
  %v548 = vmax.f32 %v509, 0.0
  %v549 = vmax.f32 %v512, 0.0
  %v550 = vmax.f32 %v515, 0.0
  %v551 = vmax.f32 %v518, 0.0
  %v552 = vmax.f32 %v521, 0.0
  %v553 = vmax.f32 %v524, 0.0
  %v554 = vmax.f32 %v527, 0.0
  %v555 = vmax.f32 %v530, 0.0
  %v556 = vmax.f32 %v533, 0.0
  %v557 = vmax.f32 %v536, 0.0
  %v558 = vmax.f32 %v539, 0.0
  %v559 = vmax.f32 %v542, 0.0
  %560 = vst [vmem:[%s3] sm:$0xff] %v544
  %561 = vst [vmem:[%s3 + $0x8] sm:$0xff] %v545
  %562 = vst [vmem:[%s3 + $0x10] sm:$0xff] %v546
  %563 = vst [vmem:[%s3 + $0x18] sm:$0xff] %v547
  %564 = vst [vmem:[%s3 + $0x20] sm:$0xff] %v548
  %565 = vst [vmem:[%s3 + $0x28] sm:$0xff] %v549
  %566 = vst [vmem:[%s3 + $0x30] sm:$0xff] %v550
  %567 = vst [vmem:[%s3 + $0x38] sm:$0xff] %v551
  %568 = vst [vmem:[%s3 + $0x40] sm:$0xff] %v552
  %569 = vst [vmem:[%s3 + $0x48] sm:$0xff] %v553
  %570 = vst [vmem:[%s3 + $0x50] sm:$0xff] %v554
  %571 = vst [vmem:[%s3 + $0x58] sm:$0xff] %v555
  %572 = vst [vmem:[%s3 + $0x60] sm:$0xff] %v556
  %573 = vst [vmem:[%s3 + $0x68] sm:$0xff] %v557
  %574 = vst [vmem:[%s3 + $0x70] sm:$0xff] %v558
  %575 = vst [vmem:[%s3 + $0x78] sm:$0xff] %v559
  // Predicated region
  $region14: #{_lambda_.17} parent=0 // pred_check
    _
  $region15: #{_lambda_.17} parent=0 // pred_check_branch
    %577 = sbr.rel (0) target = $region17
  $region16: #{_lambda_.17} parent=0 // pred_region
    _
  $region17: #{_lambda_.17} parent=0 // pred_fallthru
    _
  // Predicated region
  $region18: #{_lambda_.17} parent=0 // pred_check
    _
  $region19: #{_lambda_.17} parent=0 // pred_check_branch
    %579 = sbr.rel (0) target = $region21
  $region20: #{_lambda_.17} parent=0 // pred_region
    _
  $region21: #{_lambda_.17} parent=0 // pred_fallthru
    _

// kernel: _lambda_.18
$region0: #{_lambda_.18}
  #allocation0 [shape = 'u32[]', space=smem, size = 0x4, offset = 0x4, fixed_abs, tag = 'smem constant byte address 0x4 - core index']
  #allocation1 [shape = 'u32[72,128]{1,0:T(1,128)}', space=vmem, size = 0x9000, scoped, tag = 'internal scratch']
  %s0 = inlined_call_operand.vmem [shape: f32[128,1152], index: 0, kind: input, shape index: {}]
  %s1 = inlined_call_operand.vmem [shape: f32[1152,128], index: 1, kind: input, shape index: {}]
  %s2 = inlined_call_operand.vmem [shape: f32[1,128], index: 2, kind: input, shape index: {}]
  %s3 = inlined_call_operand.vmem [shape: f32[128,128], index: 3, kind: output, shape index: {}]
  %s4 = sld [smem:[#allocation0]]
  $region22: #{_lambda_.18} parent=0
    _
  %s6 = ssub.s32 1, %s4
  %s7 = scalar_select 0, %s6, %s4
  // Predicated region
  $region2: #{_lambda_.18} parent=0 // pred_check
    _
  $region3: #{_lambda_.18} parent=0 // pred_check_branch
    %9 = sbr.rel (0) target = $region5
  $region4: #{_lambda_.18} parent=0 // pred_region
    _
  $region5: #{_lambda_.18} parent=0 // pred_fallthru
    _
  // Predicated region
  $region6: #{_lambda_.18} parent=0 // pred_check
    _
  $region7: #{_lambda_.18} parent=0 // pred_check_branch
    %11 = sbr.rel (0) target = $region9
  $region8: #{_lambda_.18} parent=0 // pred_region
    _
  $region9: #{_lambda_.18} parent=0 // pred_fallthru
    _
  // Predicated region
  $region10: #{_lambda_.18} parent=0 // pred_check
    _
  $region11: #{_lambda_.18} parent=0 // pred_check_branch
    %13 = sbr.rel (0) target = $region13
  $region12: #{_lambda_.18} parent=0 // pred_region
    _
  $region13: #{_lambda_.18} parent=0 // pred_fallthru
    _
  %v14 = vld [vmem:[%s0] sm:$0xff]
  %v15 = vld [vmem:[%s0 + $0x8] sm:$0xff]
  %v16 = vld [vmem:[%s0 + $0x10] sm:$0xff]
  %v17 = vld [vmem:[%s0 + $0x18] sm:$0xff]
  %v18 = vld [vmem:[%s0 + $0x20] sm:$0xff]
  %v19 = vld [vmem:[%s0 + $0x28] sm:$0xff]
  %v20 = vld [vmem:[%s0 + $0x30] sm:$0xff]
  %v21 = vld [vmem:[%s0 + $0x38] sm:$0xff]
  %v22 = vld [vmem:[%s0 + $0x40] sm:$0xff]
  %v23 = vld [vmem:[%s0 + $0x48] sm:$0xff]
  %v24 = vld [vmem:[%s0 + $0x50] sm:$0xff]
  %v25 = vld [vmem:[%s0 + $0x58] sm:$0xff]
  %v26 = vld [vmem:[%s0 + $0x60] sm:$0xff]
  %v27 = vld [vmem:[%s0 + $0x68] sm:$0xff]
  %v28 = vld [vmem:[%s0 + $0x70] sm:$0xff]
  %v29 = vld [vmem:[%s0 + $0x78] sm:$0xff]
  %v30 = vld [vmem:[%s0 + $0x80] sm:$0xff]
  %v31 = vld [vmem:[%s0 + $0x88] sm:$0xff]
  %v32 = vld [vmem:[%s0 + $0x90] sm:$0xff]
  %v33 = vld [vmem:[%s0 + $0x98] sm:$0xff]
  %v34 = vld [vmem:[%s0 + $0xa0] sm:$0xff]
  %v35 = vld [vmem:[%s0 + $0xa8] sm:$0xff]
  %v36 = vld [vmem:[%s0 + $0xb0] sm:$0xff]
  %v37 = vld [vmem:[%s0 + $0xb8] sm:$0xff]
  %v38 = vld [vmem:[%s0 + $0xc0] sm:$0xff]
  %v39 = vld [vmem:[%s0 + $0xc8] sm:$0xff]
  %v40 = vld [vmem:[%s0 + $0xd0] sm:$0xff]
  %v41 = vld [vmem:[%s0 + $0xd8] sm:$0xff]
  %v42 = vld [vmem:[%s0 + $0xe0] sm:$0xff]
  %v43 = vld [vmem:[%s0 + $0xe8] sm:$0xff]
  %v44 = vld [vmem:[%s0 + $0xf0] sm:$0xff]
  %v45 = vld [vmem:[%s0 + $0xf8] sm:$0xff]
  %v46 = vld [vmem:[%s0 + $0x100] sm:$0xff]
  %v47 = vld [vmem:[%s0 + $0x108] sm:$0xff]
  %v48 = vld [vmem:[%s0 + $0x110] sm:$0xff]
  %v49 = vld [vmem:[%s0 + $0x118] sm:$0xff]
  %v50 = vld [vmem:[%s0 + $0x120] sm:$0xff]
  %v51 = vld [vmem:[%s0 + $0x128] sm:$0xff]
  %v52 = vld [vmem:[%s0 + $0x130] sm:$0xff]
  %v53 = vld [vmem:[%s0 + $0x138] sm:$0xff]
  %v54 = vld [vmem:[%s0 + $0x140] sm:$0xff]
  %v55 = vld [vmem:[%s0 + $0x148] sm:$0xff]
  %v56 = vld [vmem:[%s0 + $0x150] sm:$0xff]
  %v57 = vld [vmem:[%s0 + $0x158] sm:$0xff]
  %v58 = vld [vmem:[%s0 + $0x160] sm:$0xff]
  %v59 = vld [vmem:[%s0 + $0x168] sm:$0xff]
  %v60 = vld [vmem:[%s0 + $0x170] sm:$0xff]
  %v61 = vld [vmem:[%s0 + $0x178] sm:$0xff]
  %v62 = vld [vmem:[%s0 + $0x180] sm:$0xff]
  %v63 = vld [vmem:[%s0 + $0x188] sm:$0xff]
  %v64 = vld [vmem:[%s0 + $0x190] sm:$0xff]
  %v65 = vld [vmem:[%s0 + $0x198] sm:$0xff]
  %v66 = vld [vmem:[%s0 + $0x1a0] sm:$0xff]
  %v67 = vld [vmem:[%s0 + $0x1a8] sm:$0xff]
  %v68 = vld [vmem:[%s0 + $0x1b0] sm:$0xff]
  %v69 = vld [vmem:[%s0 + $0x1b8] sm:$0xff]
  %v70 = vld [vmem:[%s0 + $0x1c0] sm:$0xff]
  %v71 = vld [vmem:[%s0 + $0x1c8] sm:$0xff]
  %v72 = vld [vmem:[%s0 + $0x1d0] sm:$0xff]
  %v73 = vld [vmem:[%s0 + $0x1d8] sm:$0xff]
  %v74 = vld [vmem:[%s0 + $0x1e0] sm:$0xff]
  %v75 = vld [vmem:[%s0 + $0x1e8] sm:$0xff]
  %v76 = vld [vmem:[%s0 + $0x1f0] sm:$0xff]
  %v77 = vld [vmem:[%s0 + $0x1f8] sm:$0xff]
  %v78 = vld [vmem:[%s0 + $0x200] sm:$0xff]
  %v79 = vld [vmem:[%s0 + $0x208] sm:$0xff]
  %v80 = vld [vmem:[%s0 + $0x210] sm:$0xff]
  %v81 = vld [vmem:[%s0 + $0x218] sm:$0xff]
  %v82 = vld [vmem:[%s0 + $0x220] sm:$0xff]
  %v83 = vld [vmem:[%s0 + $0x228] sm:$0xff]
  %v84 = vld [vmem:[%s0 + $0x230] sm:$0xff]
  %v85 = vld [vmem:[%s0 + $0x238] sm:$0xff]
  %v86 = vld [vmem:[%s0 + $0x240] sm:$0xff]
  %v87 = vld [vmem:[%s0 + $0x248] sm:$0xff]
  %v88 = vld [vmem:[%s0 + $0x250] sm:$0xff]
  %v89 = vld [vmem:[%s0 + $0x258] sm:$0xff]
  %v90 = vld [vmem:[%s0 + $0x260] sm:$0xff]
  %v91 = vld [vmem:[%s0 + $0x268] sm:$0xff]
  %v92 = vld [vmem:[%s0 + $0x270] sm:$0xff]
  %v93 = vld [vmem:[%s0 + $0x278] sm:$0xff]
  %v94 = vld [vmem:[%s0 + $0x280] sm:$0xff]
  %v95 = vld [vmem:[%s0 + $0x288] sm:$0xff]
  %v96 = vld [vmem:[%s0 + $0x290] sm:$0xff]
  %v97 = vld [vmem:[%s0 + $0x298] sm:$0xff]
  %v98 = vld [vmem:[%s0 + $0x2a0] sm:$0xff]
  %v99 = vld [vmem:[%s0 + $0x2a8] sm:$0xff]
  %v100 = vld [vmem:[%s0 + $0x2b0] sm:$0xff]
  %v101 = vld [vmem:[%s0 + $0x2b8] sm:$0xff]
  %v102 = vld [vmem:[%s0 + $0x2c0] sm:$0xff]
  %v103 = vld [vmem:[%s0 + $0x2c8] sm:$0xff]
  %v104 = vld [vmem:[%s0 + $0x2d0] sm:$0xff]
  %v105 = vld [vmem:[%s0 + $0x2d8] sm:$0xff]
  %v106 = vld [vmem:[%s0 + $0x2e0] sm:$0xff]
  %v107 = vld [vmem:[%s0 + $0x2e8] sm:$0xff]
  %v108 = vld [vmem:[%s0 + $0x2f0] sm:$0xff]
  %v109 = vld [vmem:[%s0 + $0x2f8] sm:$0xff]
  %v110 = vld [vmem:[%s0 + $0x300] sm:$0xff]
  %v111 = vld [vmem:[%s0 + $0x308] sm:$0xff]
  %v112 = vld [vmem:[%s0 + $0x310] sm:$0xff]
  %v113 = vld [vmem:[%s0 + $0x318] sm:$0xff]
  %v114 = vld [vmem:[%s0 + $0x320] sm:$0xff]
  %v115 = vld [vmem:[%s0 + $0x328] sm:$0xff]
  %v116 = vld [vmem:[%s0 + $0x330] sm:$0xff]
  %v117 = vld [vmem:[%s0 + $0x338] sm:$0xff]
  %v118 = vld [vmem:[%s0 + $0x340] sm:$0xff]
  %v119 = vld [vmem:[%s0 + $0x348] sm:$0xff]
  %v120 = vld [vmem:[%s0 + $0x350] sm:$0xff]
  %v121 = vld [vmem:[%s0 + $0x358] sm:$0xff]
  %v122 = vld [vmem:[%s0 + $0x360] sm:$0xff]
  %v123 = vld [vmem:[%s0 + $0x368] sm:$0xff]
  %v124 = vld [vmem:[%s0 + $0x370] sm:$0xff]
  %v125 = vld [vmem:[%s0 + $0x378] sm:$0xff]
  %v126 = vld [vmem:[%s0 + $0x380] sm:$0xff]
  %v127 = vld [vmem:[%s0 + $0x388] sm:$0xff]
  %v128 = vld [vmem:[%s0 + $0x390] sm:$0xff]
  %v129 = vld [vmem:[%s0 + $0x398] sm:$0xff]
  %v130 = vld [vmem:[%s0 + $0x3a0] sm:$0xff]
  %v131 = vld [vmem:[%s0 + $0x3a8] sm:$0xff]
  %v132 = vld [vmem:[%s0 + $0x3b0] sm:$0xff]
  %v133 = vld [vmem:[%s0 + $0x3b8] sm:$0xff]
  %v134 = vld [vmem:[%s0 + $0x3c0] sm:$0xff]
  %v135 = vld [vmem:[%s0 + $0x3c8] sm:$0xff]
  %v136 = vld [vmem:[%s0 + $0x3d0] sm:$0xff]
  %v137 = vld [vmem:[%s0 + $0x3d8] sm:$0xff]
  %v138 = vld [vmem:[%s0 + $0x3e0] sm:$0xff]
  %v139 = vld [vmem:[%s0 + $0x3e8] sm:$0xff]
  %v140 = vld [vmem:[%s0 + $0x3f0] sm:$0xff]
  %v141 = vld [vmem:[%s0 + $0x3f8] sm:$0xff]
  %v142 = vld [vmem:[%s0 + $0x400] sm:$0xff]
  %v143 = vld [vmem:[%s0 + $0x408] sm:$0xff]
  %v144 = vld [vmem:[%s0 + $0x410] sm:$0xff]
  %v145 = vld [vmem:[%s0 + $0x418] sm:$0xff]
  %v146 = vld [vmem:[%s0 + $0x420] sm:$0xff]
  %v147 = vld [vmem:[%s0 + $0x428] sm:$0xff]
  %v148 = vld [vmem:[%s0 + $0x430] sm:$0xff]
  %v149 = vld [vmem:[%s0 + $0x438] sm:$0xff]
  %v150 = vld [vmem:[%s0 + $0x440] sm:$0xff]
  %v151 = vld [vmem:[%s0 + $0x448] sm:$0xff]
  %v152 = vld [vmem:[%s0 + $0x450] sm:$0xff]
  %v153 = vld [vmem:[%s0 + $0x458] sm:$0xff]
  %v154 = vld [vmem:[%s0 + $0x460] sm:$0xff]
  %v155 = vld [vmem:[%s0 + $0x468] sm:$0xff]
  %v156 = vld [vmem:[%s0 + $0x470] sm:$0xff]
  %v157 = vld [vmem:[%s0 + $0x478] sm:$0xff]
  %v158 = vld [vmem:[%s1] sm:$0xff]
  %v159 = vld [vmem:[%s1 + $0x8] sm:$0xff]
  %v160 = vld [vmem:[%s1 + $0x10] sm:$0xff]
  %v161 = vld [vmem:[%s1 + $0x18] sm:$0xff]
  %v162 = vld [vmem:[%s1 + $0x20] sm:$0xff]
  %v163 = vld [vmem:[%s1 + $0x28] sm:$0xff]
  %v164 = vld [vmem:[%s1 + $0x30] sm:$0xff]
  %v165 = vld [vmem:[%s1 + $0x38] sm:$0xff]
  %v166 = vld [vmem:[%s1 + $0x40] sm:$0xff]
  %v167 = vld [vmem:[%s1 + $0x48] sm:$0xff]
  %v168 = vld [vmem:[%s1 + $0x50] sm:$0xff]
  %v169 = vld [vmem:[%s1 + $0x58] sm:$0xff]
  %v170 = vld [vmem:[%s1 + $0x60] sm:$0xff]
  %v171 = vld [vmem:[%s1 + $0x68] sm:$0xff]
  %v172 = vld [vmem:[%s1 + $0x70] sm:$0xff]
  %v173 = vld [vmem:[%s1 + $0x78] sm:$0xff]
  %v174 = vld [vmem:[%s1 + $0x80] sm:$0xff]
  %v175 = vld [vmem:[%s1 + $0x88] sm:$0xff]
  %v176 = vld [vmem:[%s1 + $0x90] sm:$0xff]
  %v177 = vld [vmem:[%s1 + $0x98] sm:$0xff]
  %v178 = vld [vmem:[%s1 + $0xa0] sm:$0xff]
  %v179 = vld [vmem:[%s1 + $0xa8] sm:$0xff]
  %v180 = vld [vmem:[%s1 + $0xb0] sm:$0xff]
  %v181 = vld [vmem:[%s1 + $0xb8] sm:$0xff]
  %v182 = vld [vmem:[%s1 + $0xc0] sm:$0xff]
  %v183 = vld [vmem:[%s1 + $0xc8] sm:$0xff]
  %v184 = vld [vmem:[%s1 + $0xd0] sm:$0xff]
  %v185 = vld [vmem:[%s1 + $0xd8] sm:$0xff]
  %v186 = vld [vmem:[%s1 + $0xe0] sm:$0xff]
  %v187 = vld [vmem:[%s1 + $0xe8] sm:$0xff]
  %v188 = vld [vmem:[%s1 + $0xf0] sm:$0xff]
  %v189 = vld [vmem:[%s1 + $0xf8] sm:$0xff]
  %v190 = vld [vmem:[%s1 + $0x100] sm:$0xff]
  %v191 = vld [vmem:[%s1 + $0x108] sm:$0xff]
  %v192 = vld [vmem:[%s1 + $0x110] sm:$0xff]
  %v193 = vld [vmem:[%s1 + $0x118] sm:$0xff]
  %v194 = vld [vmem:[%s1 + $0x120] sm:$0xff]
  %v195 = vld [vmem:[%s1 + $0x128] sm:$0xff]
  %v196 = vld [vmem:[%s1 + $0x130] sm:$0xff]
  %v197 = vld [vmem:[%s1 + $0x138] sm:$0xff]
  %v198 = vld [vmem:[%s1 + $0x140] sm:$0xff]
  %v199 = vld [vmem:[%s1 + $0x148] sm:$0xff]
  %v200 = vld [vmem:[%s1 + $0x150] sm:$0xff]
  %v201 = vld [vmem:[%s1 + $0x158] sm:$0xff]
  %v202 = vld [vmem:[%s1 + $0x160] sm:$0xff]
  %v203 = vld [vmem:[%s1 + $0x168] sm:$0xff]
  %v204 = vld [vmem:[%s1 + $0x170] sm:$0xff]
  %v205 = vld [vmem:[%s1 + $0x178] sm:$0xff]
  %v206 = vld [vmem:[%s1 + $0x180] sm:$0xff]
  %v207 = vld [vmem:[%s1 + $0x188] sm:$0xff]
  %v208 = vld [vmem:[%s1 + $0x190] sm:$0xff]
  %v209 = vld [vmem:[%s1 + $0x198] sm:$0xff]
  %v210 = vld [vmem:[%s1 + $0x1a0] sm:$0xff]
  %v211 = vld [vmem:[%s1 + $0x1a8] sm:$0xff]
  %v212 = vld [vmem:[%s1 + $0x1b0] sm:$0xff]
  %v213 = vld [vmem:[%s1 + $0x1b8] sm:$0xff]
  %v214 = vld [vmem:[%s1 + $0x1c0] sm:$0xff]
  %v215 = vld [vmem:[%s1 + $0x1c8] sm:$0xff]
  %v216 = vld [vmem:[%s1 + $0x1d0] sm:$0xff]
  %v217 = vld [vmem:[%s1 + $0x1d8] sm:$0xff]
  %v218 = vld [vmem:[%s1 + $0x1e0] sm:$0xff]
  %v219 = vld [vmem:[%s1 + $0x1e8] sm:$0xff]
  %v220 = vld [vmem:[%s1 + $0x1f0] sm:$0xff]
  %v221 = vld [vmem:[%s1 + $0x1f8] sm:$0xff]
  %v222 = vld [vmem:[%s1 + $0x200] sm:$0xff]
  %v223 = vld [vmem:[%s1 + $0x208] sm:$0xff]
  %v224 = vld [vmem:[%s1 + $0x210] sm:$0xff]
  %v225 = vld [vmem:[%s1 + $0x218] sm:$0xff]
  %v226 = vld [vmem:[%s1 + $0x220] sm:$0xff]
  %v227 = vld [vmem:[%s1 + $0x228] sm:$0xff]
  %v228 = vld [vmem:[%s1 + $0x230] sm:$0xff]
  %v229 = vld [vmem:[%s1 + $0x238] sm:$0xff]
  %v230 = vld [vmem:[%s1 + $0x240] sm:$0xff]
  %v231 = vld [vmem:[%s1 + $0x248] sm:$0xff]
  %v232 = vld [vmem:[%s1 + $0x250] sm:$0xff]
  %v233 = vld [vmem:[%s1 + $0x258] sm:$0xff]
  %v234 = vld [vmem:[%s1 + $0x260] sm:$0xff]
  %v235 = vld [vmem:[%s1 + $0x268] sm:$0xff]
  %v236 = vld [vmem:[%s1 + $0x270] sm:$0xff]
  %v237 = vld [vmem:[%s1 + $0x278] sm:$0xff]
  %v238 = vld [vmem:[%s1 + $0x280] sm:$0xff]
  %v239 = vld [vmem:[%s1 + $0x288] sm:$0xff]
  %v240 = vld [vmem:[%s1 + $0x290] sm:$0xff]
  %v241 = vld [vmem:[%s1 + $0x298] sm:$0xff]
  %v242 = vld [vmem:[%s1 + $0x2a0] sm:$0xff]
  %v243 = vld [vmem:[%s1 + $0x2a8] sm:$0xff]
  %v244 = vld [vmem:[%s1 + $0x2b0] sm:$0xff]
  %v245 = vld [vmem:[%s1 + $0x2b8] sm:$0xff]
  %v246 = vld [vmem:[%s1 + $0x2c0] sm:$0xff]
  %v247 = vld [vmem:[%s1 + $0x2c8] sm:$0xff]
  %v248 = vld [vmem:[%s1 + $0x2d0] sm:$0xff]
  %v249 = vld [vmem:[%s1 + $0x2d8] sm:$0xff]
  %v250 = vld [vmem:[%s1 + $0x2e0] sm:$0xff]
  %v251 = vld [vmem:[%s1 + $0x2e8] sm:$0xff]
  %v252 = vld [vmem:[%s1 + $0x2f0] sm:$0xff]
  %v253 = vld [vmem:[%s1 + $0x2f8] sm:$0xff]
  %v254 = vld [vmem:[%s1 + $0x300] sm:$0xff]
  %v255 = vld [vmem:[%s1 + $0x308] sm:$0xff]
  %v256 = vld [vmem:[%s1 + $0x310] sm:$0xff]
  %v257 = vld [vmem:[%s1 + $0x318] sm:$0xff]
  %v258 = vld [vmem:[%s1 + $0x320] sm:$0xff]
  %v259 = vld [vmem:[%s1 + $0x328] sm:$0xff]
  %v260 = vld [vmem:[%s1 + $0x330] sm:$0xff]
  %v261 = vld [vmem:[%s1 + $0x338] sm:$0xff]
  %v262 = vld [vmem:[%s1 + $0x340] sm:$0xff]
  %v263 = vld [vmem:[%s1 + $0x348] sm:$0xff]
  %v264 = vld [vmem:[%s1 + $0x350] sm:$0xff]
  %v265 = vld [vmem:[%s1 + $0x358] sm:$0xff]
  %v266 = vld [vmem:[%s1 + $0x360] sm:$0xff]
  %v267 = vld [vmem:[%s1 + $0x368] sm:$0xff]
  %v268 = vld [vmem:[%s1 + $0x370] sm:$0xff]
  %v269 = vld [vmem:[%s1 + $0x378] sm:$0xff]
  %v270 = vld [vmem:[%s1 + $0x380] sm:$0xff]
  %v271 = vld [vmem:[%s1 + $0x388] sm:$0xff]
  %v272 = vld [vmem:[%s1 + $0x390] sm:$0xff]
  %v273 = vld [vmem:[%s1 + $0x398] sm:$0xff]
  %v274 = vld [vmem:[%s1 + $0x3a0] sm:$0xff]
  %v275 = vld [vmem:[%s1 + $0x3a8] sm:$0xff]
  %v276 = vld [vmem:[%s1 + $0x3b0] sm:$0xff]
  %v277 = vld [vmem:[%s1 + $0x3b8] sm:$0xff]
  %v278 = vld [vmem:[%s1 + $0x3c0] sm:$0xff]
  %v279 = vld [vmem:[%s1 + $0x3c8] sm:$0xff]
  %v280 = vld [vmem:[%s1 + $0x3d0] sm:$0xff]
  %v281 = vld [vmem:[%s1 + $0x3d8] sm:$0xff]
  %v282 = vld [vmem:[%s1 + $0x3e0] sm:$0xff]
  %v283 = vld [vmem:[%s1 + $0x3e8] sm:$0xff]
  %v284 = vld [vmem:[%s1 + $0x3f0] sm:$0xff]
  %v285 = vld [vmem:[%s1 + $0x3f8] sm:$0xff]
  %v286 = vld [vmem:[%s1 + $0x400] sm:$0xff]
  %v287 = vld [vmem:[%s1 + $0x408] sm:$0xff]
  %v288 = vld [vmem:[%s1 + $0x410] sm:$0xff]
  %v289 = vld [vmem:[%s1 + $0x418] sm:$0xff]
  %v290 = vld [vmem:[%s1 + $0x420] sm:$0xff]
  %v291 = vld [vmem:[%s1 + $0x428] sm:$0xff]
  %v292 = vld [vmem:[%s1 + $0x430] sm:$0xff]
  %v293 = vld [vmem:[%s1 + $0x438] sm:$0xff]
  %v294 = vld [vmem:[%s1 + $0x440] sm:$0xff]
  %v295 = vld [vmem:[%s1 + $0x448] sm:$0xff]
  %v296 = vld [vmem:[%s1 + $0x450] sm:$0xff]
  %v297 = vld [vmem:[%s1 + $0x458] sm:$0xff]
  %v298 = vld [vmem:[%s1 + $0x460] sm:$0xff]
  %v299 = vld [vmem:[%s1 + $0x468] sm:$0xff]
  %v300 = vld [vmem:[%s1 + $0x470] sm:$0xff]
  %v301 = vld [vmem:[%s1 + $0x478] sm:$0xff]
  %v302 = vld [vmem:[%s2] sm:$0x1]
  %v304 = vperm.slane %v302, 0
  %306 = vmatpush.msra.mxu0 %v173
  %307 = vmatpush.msra.mxu0 %v172
  %308 = vmatpush.msra.mxu0 %v171
  %309 = vmatpush.msra.mxu0 %v170
  %310 = vmatpush.msra.mxu0 %v169
  %311 = vmatpush.msra.mxu0 %v168
  %312 = vmatpush.msra.mxu0 %v167
  %313 = vmatpush.msra.mxu0 %v166
  %314 = vmatpush.msra.mxu0 %v165
  %315 = vmatpush.msra.mxu0 %v164
  %316 = vmatpush.msra.mxu0 %v163
  %317 = vmatpush.msra.mxu0 %v162
  %318 = vmatpush.msra.mxu0 %v161
  %319 = vmatpush.msra.mxu0 %v160
  %320 = vmatpush.msra.mxu0 %v159
  %321 = vmatpush.msra.mxu0 %v158
  %322 = vmatmul.f32.gmra.mxu0 %v14
  %v323 = vpop.f32.mrf.mxu0
  %v324 = vadd.f32 %v304, %v323
  %325 = vmatmul.f32.gmra.mxu0 %v23
  %v326 = vpop.f32.mrf.mxu0
  %v327 = vadd.f32 %v304, %v326
  %328 = vmatmul.f32.gmra.mxu0 %v32
  %v329 = vpop.f32.mrf.mxu0
  %v330 = vadd.f32 %v304, %v329
  %331 = vmatmul.f32.gmra.mxu0 %v41
  %v332 = vpop.f32.mrf.mxu0
  %v333 = vadd.f32 %v304, %v332
  %334 = vmatmul.f32.gmra.mxu0 %v50
  %v335 = vpop.f32.mrf.mxu0
  %v336 = vadd.f32 %v304, %v335
  %337 = vmatmul.f32.gmra.mxu0 %v59
  %v338 = vpop.f32.mrf.mxu0
  %v339 = vadd.f32 %v304, %v338
  %340 = vmatmul.f32.gmra.mxu0 %v68
  %v341 = vpop.f32.mrf.mxu0
  %v342 = vadd.f32 %v304, %v341
  %343 = vmatmul.f32.gmra.mxu0 %v77
  %v344 = vpop.f32.mrf.mxu0
  %v345 = vadd.f32 %v304, %v344
  %346 = vmatmul.f32.gmra.mxu0 %v86
  %v347 = vpop.f32.mrf.mxu0
  %v348 = vadd.f32 %v304, %v347
  %349 = vmatmul.f32.gmra.mxu0 %v95
  %v350 = vpop.f32.mrf.mxu0
  %v351 = vadd.f32 %v304, %v350
  %352 = vmatmul.f32.gmra.mxu0 %v104
  %v353 = vpop.f32.mrf.mxu0
  %v354 = vadd.f32 %v304, %v353
  %355 = vmatmul.f32.gmra.mxu0 %v113
  %v356 = vpop.f32.mrf.mxu0
  %v357 = vadd.f32 %v304, %v356
  %358 = vmatmul.f32.gmra.mxu0 %v122
  %v359 = vpop.f32.mrf.mxu0
  %v360 = vadd.f32 %v304, %v359
  %361 = vmatmul.f32.gmra.mxu0 %v131
  %v362 = vpop.f32.mrf.mxu0
  %v363 = vadd.f32 %v304, %v362
  %364 = vmatmul.f32.gmra.mxu0 %v140
  %v365 = vpop.f32.mrf.mxu0
  %v366 = vadd.f32 %v304, %v365
  %367 = vmatmul.f32.gmra.mxu0 %v149
  %v368 = vpop.f32.mrf.mxu0
  %v369 = vadd.f32 %v304, %v368
  %370 = vdwg.mxu0
  %371 = vmatpush.msra.mxu0 %v189
  %372 = vmatpush.msra.mxu0 %v188
  %373 = vmatpush.msra.mxu0 %v187
  %374 = vmatpush.msra.mxu0 %v186
  %375 = vmatpush.msra.mxu0 %v185
  %376 = vmatpush.msra.mxu0 %v184
  %377 = vmatpush.msra.mxu0 %v183
  %378 = vmatpush.msra.mxu0 %v182
  %379 = vmatpush.msra.mxu0 %v181
  %380 = vmatpush.msra.mxu0 %v180
  %381 = vmatpush.msra.mxu0 %v179
  %382 = vmatpush.msra.mxu0 %v178
  %383 = vmatpush.msra.mxu0 %v177
  %384 = vmatpush.msra.mxu0 %v176
  %385 = vmatpush.msra.mxu0 %v175
  %386 = vmatpush.msra.mxu0 %v174
  %387 = vmatmul.f32.gmra.mxu0 %v15
  %v388 = vpop.f32.mrf.mxu0
  %v389 = vadd.f32 %v324, %v388
  %390 = vmatmul.f32.gmra.mxu0 %v24
  %v391 = vpop.f32.mrf.mxu0
  %v392 = vadd.f32 %v327, %v391
  %393 = vmatmul.f32.gmra.mxu0 %v33
  %v394 = vpop.f32.mrf.mxu0
  %v395 = vadd.f32 %v330, %v394
  %396 = vmatmul.f32.gmra.mxu0 %v42
  %v397 = vpop.f32.mrf.mxu0
  %v398 = vadd.f32 %v333, %v397
  %399 = vmatmul.f32.gmra.mxu0 %v51
  %v400 = vpop.f32.mrf.mxu0
  %v401 = vadd.f32 %v336, %v400
  %402 = vmatmul.f32.gmra.mxu0 %v60
  %v403 = vpop.f32.mrf.mxu0
  %v404 = vadd.f32 %v339, %v403
  %405 = vmatmul.f32.gmra.mxu0 %v69
  %v406 = vpop.f32.mrf.mxu0
  %v407 = vadd.f32 %v342, %v406
  %408 = vmatmul.f32.gmra.mxu0 %v78
  %v409 = vpop.f32.mrf.mxu0
  %v410 = vadd.f32 %v345, %v409
  %411 = vmatmul.f32.gmra.mxu0 %v87
  %v412 = vpop.f32.mrf.mxu0
  %v413 = vadd.f32 %v348, %v412
  %414 = vmatmul.f32.gmra.mxu0 %v96
  %v415 = vpop.f32.mrf.mxu0
  %v416 = vadd.f32 %v351, %v415
  %417 = vmatmul.f32.gmra.mxu0 %v105
  %v418 = vpop.f32.mrf.mxu0
  %v419 = vadd.f32 %v354, %v418
  %420 = vmatmul.f32.gmra.mxu0 %v114
  %v421 = vpop.f32.mrf.mxu0
  %v422 = vadd.f32 %v357, %v421
  %423 = vmatmul.f32.gmra.mxu0 %v123
  %v424 = vpop.f32.mrf.mxu0
  %v425 = vadd.f32 %v360, %v424
  %426 = vmatmul.f32.gmra.mxu0 %v132
  %v427 = vpop.f32.mrf.mxu0
  %v428 = vadd.f32 %v363, %v427
  %429 = vmatmul.f32.gmra.mxu0 %v141
  %v430 = vpop.f32.mrf.mxu0
  %v431 = vadd.f32 %v366, %v430
  %432 = vmatmul.f32.gmra.mxu0 %v150
  %v433 = vpop.f32.mrf.mxu0
  %v434 = vadd.f32 %v369, %v433
  %435 = vdwg.mxu0
  %436 = vmatpush.msra.mxu0 %v205
  %437 = vmatpush.msra.mxu0 %v204
  %438 = vmatpush.msra.mxu0 %v203
  %439 = vmatpush.msra.mxu0 %v202
  %440 = vmatpush.msra.mxu0 %v201
  %441 = vmatpush.msra.mxu0 %v200
  %442 = vmatpush.msra.mxu0 %v199
  %443 = vmatpush.msra.mxu0 %v198
  %444 = vmatpush.msra.mxu0 %v197
  %445 = vmatpush.msra.mxu0 %v196
  %446 = vmatpush.msra.mxu0 %v195
  %447 = vmatpush.msra.mxu0 %v194
  %448 = vmatpush.msra.mxu0 %v193
  %449 = vmatpush.msra.mxu0 %v192
  %450 = vmatpush.msra.mxu0 %v191
  %451 = vmatpush.msra.mxu0 %v190
  %452 = vmatmul.f32.gmra.mxu0 %v16
  %v453 = vpop.f32.mrf.mxu0
  %v454 = vadd.f32 %v389, %v453
  %455 = vmatmul.f32.gmra.mxu0 %v25
  %v456 = vpop.f32.mrf.mxu0
  %v457 = vadd.f32 %v392, %v456
  %458 = vmatmul.f32.gmra.mxu0 %v34
  %v459 = vpop.f32.mrf.mxu0
  %v460 = vadd.f32 %v395, %v459
  %461 = vmatmul.f32.gmra.mxu0 %v43
  %v462 = vpop.f32.mrf.mxu0
  %v463 = vadd.f32 %v398, %v462
  %464 = vmatmul.f32.gmra.mxu0 %v52
  %v465 = vpop.f32.mrf.mxu0
  %v466 = vadd.f32 %v401, %v465
  %467 = vmatmul.f32.gmra.mxu0 %v61
  %v468 = vpop.f32.mrf.mxu0
  %v469 = vadd.f32 %v404, %v468
  %470 = vmatmul.f32.gmra.mxu0 %v70
  %v471 = vpop.f32.mrf.mxu0
  %v472 = vadd.f32 %v407, %v471
  %473 = vmatmul.f32.gmra.mxu0 %v79
  %v474 = vpop.f32.mrf.mxu0
  %v475 = vadd.f32 %v410, %v474
  %476 = vmatmul.f32.gmra.mxu0 %v88
  %v477 = vpop.f32.mrf.mxu0
  %v478 = vadd.f32 %v413, %v477
  %479 = vmatmul.f32.gmra.mxu0 %v97
  %v480 = vpop.f32.mrf.mxu0
  %v481 = vadd.f32 %v416, %v480
  %482 = vmatmul.f32.gmra.mxu0 %v106
  %v483 = vpop.f32.mrf.mxu0
  %v484 = vadd.f32 %v419, %v483
  %485 = vmatmul.f32.gmra.mxu0 %v115
  %v486 = vpop.f32.mrf.mxu0
  %v487 = vadd.f32 %v422, %v486
  %488 = vmatmul.f32.gmra.mxu0 %v124
  %v489 = vpop.f32.mrf.mxu0
  %v490 = vadd.f32 %v425, %v489
  %491 = vmatmul.f32.gmra.mxu0 %v133
  %v492 = vpop.f32.mrf.mxu0
  %v493 = vadd.f32 %v428, %v492
  %494 = vmatmul.f32.gmra.mxu0 %v142
  %v495 = vpop.f32.mrf.mxu0
  %v496 = vadd.f32 %v431, %v495
  %497 = vmatmul.f32.gmra.mxu0 %v151
  %v498 = vpop.f32.mrf.mxu0
  %v499 = vadd.f32 %v434, %v498
  %500 = vdwg.mxu0
  %501 = vmatpush.msra.mxu0 %v221
  %502 = vmatpush.msra.mxu0 %v220
  %503 = vmatpush.msra.mxu0 %v219
  %504 = vmatpush.msra.mxu0 %v218
  %505 = vmatpush.msra.mxu0 %v217
  %506 = vmatpush.msra.mxu0 %v216
  %507 = vmatpush.msra.mxu0 %v215
  %508 = vmatpush.msra.mxu0 %v214
  %509 = vmatpush.msra.mxu0 %v213
  %510 = vmatpush.msra.mxu0 %v212
  %511 = vmatpush.msra.mxu0 %v211
  %512 = vmatpush.msra.mxu0 %v210
  %513 = vmatpush.msra.mxu0 %v209
  %514 = vmatpush.msra.mxu0 %v208
  %515 = vmatpush.msra.mxu0 %v207
  %516 = vmatpush.msra.mxu0 %v206
  %517 = vmatmul.f32.gmra.mxu0 %v17
  %v518 = vpop.f32.mrf.mxu0
  %v519 = vadd.f32 %v454, %v518
  %520 = vmatmul.f32.gmra.mxu0 %v26
  %v521 = vpop.f32.mrf.mxu0
  %v522 = vadd.f32 %v457, %v521
  %523 = vmatmul.f32.gmra.mxu0 %v35
  %v524 = vpop.f32.mrf.mxu0
  %v525 = vadd.f32 %v460, %v524
  %526 = vmatmul.f32.gmra.mxu0 %v44
  %v527 = vpop.f32.mrf.mxu0
  %v528 = vadd.f32 %v463, %v527
  %529 = vmatmul.f32.gmra.mxu0 %v53
  %v530 = vpop.f32.mrf.mxu0
  %v531 = vadd.f32 %v466, %v530
  %532 = vmatmul.f32.gmra.mxu0 %v62
  %v533 = vpop.f32.mrf.mxu0
  %v534 = vadd.f32 %v469, %v533
  %535 = vmatmul.f32.gmra.mxu0 %v71
  %v536 = vpop.f32.mrf.mxu0
  %v537 = vadd.f32 %v472, %v536
  %538 = vmatmul.f32.gmra.mxu0 %v80
  %v539 = vpop.f32.mrf.mxu0
  %v540 = vadd.f32 %v475, %v539
  %541 = vmatmul.f32.gmra.mxu0 %v89
  %v542 = vpop.f32.mrf.mxu0
  %v543 = vadd.f32 %v478, %v542
  %544 = vmatmul.f32.gmra.mxu0 %v98
  %v545 = vpop.f32.mrf.mxu0
  %v546 = vadd.f32 %v481, %v545
  %547 = vmatmul.f32.gmra.mxu0 %v107
  %v548 = vpop.f32.mrf.mxu0
  %v549 = vadd.f32 %v484, %v548
  %550 = vmatmul.f32.gmra.mxu0 %v116
  %v551 = vpop.f32.mrf.mxu0
  %v552 = vadd.f32 %v487, %v551
  %553 = vmatmul.f32.gmra.mxu0 %v125
  %v554 = vpop.f32.mrf.mxu0
  %v555 = vadd.f32 %v490, %v554
  %556 = vmatmul.f32.gmra.mxu0 %v134
  %v557 = vpop.f32.mrf.mxu0
  %v558 = vadd.f32 %v493, %v557
  %559 = vmatmul.f32.gmra.mxu0 %v143
  %v560 = vpop.f32.mrf.mxu0
  %v561 = vadd.f32 %v496, %v560
  %562 = vmatmul.f32.gmra.mxu0 %v152
  %v563 = vpop.f32.mrf.mxu0
  %v564 = vadd.f32 %v499, %v563
  %565 = vdwg.mxu0
  %566 = vmatpush.msra.mxu0 %v237
  %567 = vmatpush.msra.mxu0 %v236
  %568 = vmatpush.msra.mxu0 %v235
  %569 = vmatpush.msra.mxu0 %v234
  %570 = vmatpush.msra.mxu0 %v233
  %571 = vmatpush.msra.mxu0 %v232
  %572 = vmatpush.msra.mxu0 %v231
  %573 = vmatpush.msra.mxu0 %v230
  %574 = vmatpush.msra.mxu0 %v229
  %575 = vmatpush.msra.mxu0 %v228
  %576 = vmatpush.msra.mxu0 %v227
  %577 = vmatpush.msra.mxu0 %v226
  %578 = vmatpush.msra.mxu0 %v225
  %579 = vmatpush.msra.mxu0 %v224
  %580 = vmatpush.msra.mxu0 %v223
  %581 = vmatpush.msra.mxu0 %v222
  %582 = vmatmul.f32.gmra.mxu0 %v18
  %v583 = vpop.f32.mrf.mxu0
  %v584 = vadd.f32 %v519, %v583
  %585 = vmatmul.f32.gmra.mxu0 %v27
  %v586 = vpop.f32.mrf.mxu0
  %v587 = vadd.f32 %v522, %v586
  %588 = vmatmul.f32.gmra.mxu0 %v36
  %v589 = vpop.f32.mrf.mxu0
  %v590 = vadd.f32 %v525, %v589
  %591 = vmatmul.f32.gmra.mxu0 %v45
  %v592 = vpop.f32.mrf.mxu0
  %v593 = vadd.f32 %v528, %v592
  %594 = vmatmul.f32.gmra.mxu0 %v54
  %v595 = vpop.f32.mrf.mxu0
  %v596 = vadd.f32 %v531, %v595
  %597 = vmatmul.f32.gmra.mxu0 %v63
  %v598 = vpop.f32.mrf.mxu0
  %v599 = vadd.f32 %v534, %v598
  %600 = vmatmul.f32.gmra.mxu0 %v72
  %v601 = vpop.f32.mrf.mxu0
  %v602 = vadd.f32 %v537, %v601
  %603 = vmatmul.f32.gmra.mxu0 %v81
  %v604 = vpop.f32.mrf.mxu0
  %v605 = vadd.f32 %v540, %v604
  %606 = vmatmul.f32.gmra.mxu0 %v90
  %v607 = vpop.f32.mrf.mxu0
  %v608 = vadd.f32 %v543, %v607
  %609 = vmatmul.f32.gmra.mxu0 %v99
  %v610 = vpop.f32.mrf.mxu0
  %v611 = vadd.f32 %v546, %v610
  %612 = vmatmul.f32.gmra.mxu0 %v108
  %v613 = vpop.f32.mrf.mxu0
  %v614 = vadd.f32 %v549, %v613
  %615 = vmatmul.f32.gmra.mxu0 %v117
  %v616 = vpop.f32.mrf.mxu0
  %v617 = vadd.f32 %v552, %v616
  %618 = vmatmul.f32.gmra.mxu0 %v126
  %v619 = vpop.f32.mrf.mxu0
  %v620 = vadd.f32 %v555, %v619
  %621 = vmatmul.f32.gmra.mxu0 %v135
  %v622 = vpop.f32.mrf.mxu0
  %v623 = vadd.f32 %v558, %v622
  %624 = vmatmul.f32.gmra.mxu0 %v144
  %v625 = vpop.f32.mrf.mxu0
  %v626 = vadd.f32 %v561, %v625
  %627 = vmatmul.f32.gmra.mxu0 %v153
  %v628 = vpop.f32.mrf.mxu0
  %v629 = vadd.f32 %v564, %v628
  %630 = vdwg.mxu0
  %631 = vmatpush.msra.mxu0 %v253
  %632 = vmatpush.msra.mxu0 %v252
  %633 = vmatpush.msra.mxu0 %v251
  %634 = vmatpush.msra.mxu0 %v250
  %635 = vmatpush.msra.mxu0 %v249
  %636 = vmatpush.msra.mxu0 %v248
  %637 = vmatpush.msra.mxu0 %v247
  %638 = vmatpush.msra.mxu0 %v246
  %639 = vmatpush.msra.mxu0 %v245
  %640 = vmatpush.msra.mxu0 %v244
  %641 = vmatpush.msra.mxu0 %v243
  %642 = vmatpush.msra.mxu0 %v242
  %643 = vmatpush.msra.mxu0 %v241
  %644 = vmatpush.msra.mxu0 %v240
  %645 = vmatpush.msra.mxu0 %v239
  %646 = vmatpush.msra.mxu0 %v238
  %647 = vmatmul.f32.gmra.mxu0 %v19
  %v648 = vpop.f32.mrf.mxu0
  %v649 = vadd.f32 %v584, %v648
  %650 = vmatmul.f32.gmra.mxu0 %v28
  %v651 = vpop.f32.mrf.mxu0
  %v652 = vadd.f32 %v587, %v651
  %653 = vmatmul.f32.gmra.mxu0 %v37
  %v654 = vpop.f32.mrf.mxu0
  %v655 = vadd.f32 %v590, %v654
  %656 = vmatmul.f32.gmra.mxu0 %v46
  %v657 = vpop.f32.mrf.mxu0
  %v658 = vadd.f32 %v593, %v657
  %659 = vmatmul.f32.gmra.mxu0 %v55
  %v660 = vpop.f32.mrf.mxu0
  %v661 = vadd.f32 %v596, %v660
  %662 = vmatmul.f32.gmra.mxu0 %v64
  %v663 = vpop.f32.mrf.mxu0
  %v664 = vadd.f32 %v599, %v663
  %665 = vmatmul.f32.gmra.mxu0 %v73
  %v666 = vpop.f32.mrf.mxu0
  %v667 = vadd.f32 %v602, %v666
  %668 = vmatmul.f32.gmra.mxu0 %v82
  %v669 = vpop.f32.mrf.mxu0
  %v670 = vadd.f32 %v605, %v669
  %671 = vmatmul.f32.gmra.mxu0 %v91
  %v672 = vpop.f32.mrf.mxu0
  %v673 = vadd.f32 %v608, %v672
  %674 = vmatmul.f32.gmra.mxu0 %v100
  %v675 = vpop.f32.mrf.mxu0
  %v676 = vadd.f32 %v611, %v675
  %677 = vmatmul.f32.gmra.mxu0 %v109
  %v678 = vpop.f32.mrf.mxu0
  %v679 = vadd.f32 %v614, %v678
  %680 = vmatmul.f32.gmra.mxu0 %v118
  %v681 = vpop.f32.mrf.mxu0
  %v682 = vadd.f32 %v617, %v681
  %683 = vmatmul.f32.gmra.mxu0 %v127
  %v684 = vpop.f32.mrf.mxu0
  %v685 = vadd.f32 %v620, %v684
  %686 = vmatmul.f32.gmra.mxu0 %v136
  %v687 = vpop.f32.mrf.mxu0
  %v688 = vadd.f32 %v623, %v687
  %689 = vmatmul.f32.gmra.mxu0 %v145
  %v690 = vpop.f32.mrf.mxu0
  %v691 = vadd.f32 %v626, %v690
  %692 = vmatmul.f32.gmra.mxu0 %v154
  %v693 = vpop.f32.mrf.mxu0
  %v694 = vadd.f32 %v629, %v693
  %695 = vdwg.mxu0
  %696 = vmatpush.msra.mxu0 %v269
  %697 = vmatpush.msra.mxu0 %v268
  %698 = vmatpush.msra.mxu0 %v267
  %699 = vmatpush.msra.mxu0 %v266
  %700 = vmatpush.msra.mxu0 %v265
  %701 = vmatpush.msra.mxu0 %v264
  %702 = vmatpush.msra.mxu0 %v263
  %703 = vmatpush.msra.mxu0 %v262
  %704 = vmatpush.msra.mxu0 %v261
  %705 = vmatpush.msra.mxu0 %v260
  %706 = vmatpush.msra.mxu0 %v259
  %707 = vmatpush.msra.mxu0 %v258
  %708 = vmatpush.msra.mxu0 %v257
  %709 = vmatpush.msra.mxu0 %v256
  %710 = vmatpush.msra.mxu0 %v255
  %711 = vmatpush.msra.mxu0 %v254
  %712 = vmatmul.f32.gmra.mxu0 %v20
  %v713 = vpop.f32.mrf.mxu0
  %v714 = vadd.f32 %v649, %v713
  %715 = vmatmul.f32.gmra.mxu0 %v29
  %v716 = vpop.f32.mrf.mxu0
  %v717 = vadd.f32 %v652, %v716
  %718 = vmatmul.f32.gmra.mxu0 %v38
  %v719 = vpop.f32.mrf.mxu0
  %v720 = vadd.f32 %v655, %v719
  %721 = vmatmul.f32.gmra.mxu0 %v47
  %v722 = vpop.f32.mrf.mxu0
  %v723 = vadd.f32 %v658, %v722
  %724 = vmatmul.f32.gmra.mxu0 %v56
  %v725 = vpop.f32.mrf.mxu0
  %v726 = vadd.f32 %v661, %v725
  %727 = vmatmul.f32.gmra.mxu0 %v65
  %v728 = vpop.f32.mrf.mxu0
  %v729 = vadd.f32 %v664, %v728
  %730 = vmatmul.f32.gmra.mxu0 %v74
  %v731 = vpop.f32.mrf.mxu0
  %v732 = vadd.f32 %v667, %v731
  %733 = vmatmul.f32.gmra.mxu0 %v83
  %v734 = vpop.f32.mrf.mxu0
  %v735 = vadd.f32 %v670, %v734
  %736 = vmatmul.f32.gmra.mxu0 %v92
  %v737 = vpop.f32.mrf.mxu0
  %v738 = vadd.f32 %v673, %v737
  %739 = vmatmul.f32.gmra.mxu0 %v101
  %v740 = vpop.f32.mrf.mxu0
  %v741 = vadd.f32 %v676, %v740
  %742 = vmatmul.f32.gmra.mxu0 %v110
  %v743 = vpop.f32.mrf.mxu0
  %v744 = vadd.f32 %v679, %v743
  %745 = vmatmul.f32.gmra.mxu0 %v119
  %v746 = vpop.f32.mrf.mxu0
  %v747 = vadd.f32 %v682, %v746
  %748 = vmatmul.f32.gmra.mxu0 %v128
  %v749 = vpop.f32.mrf.mxu0
  %v750 = vadd.f32 %v685, %v749
  %751 = vmatmul.f32.gmra.mxu0 %v137
  %v752 = vpop.f32.mrf.mxu0
  %v753 = vadd.f32 %v688, %v752
  %754 = vmatmul.f32.gmra.mxu0 %v146
  %v755 = vpop.f32.mrf.mxu0
  %v756 = vadd.f32 %v691, %v755
  %757 = vmatmul.f32.gmra.mxu0 %v155
  %v758 = vpop.f32.mrf.mxu0
  %v759 = vadd.f32 %v694, %v758
  %760 = vdwg.mxu0
  %761 = vmatpush.msra.mxu0 %v285
  %762 = vmatpush.msra.mxu0 %v284
  %763 = vmatpush.msra.mxu0 %v283
  %764 = vmatpush.msra.mxu0 %v282
  %765 = vmatpush.msra.mxu0 %v281
  %766 = vmatpush.msra.mxu0 %v280
  %767 = vmatpush.msra.mxu0 %v279
  %768 = vmatpush.msra.mxu0 %v278
  %769 = vmatpush.msra.mxu0 %v277
  %770 = vmatpush.msra.mxu0 %v276
  %771 = vmatpush.msra.mxu0 %v275
  %772 = vmatpush.msra.mxu0 %v274
  %773 = vmatpush.msra.mxu0 %v273
  %774 = vmatpush.msra.mxu0 %v272
  %775 = vmatpush.msra.mxu0 %v271
  %776 = vmatpush.msra.mxu0 %v270
  %777 = vmatmul.f32.gmra.mxu0 %v21
  %v778 = vpop.f32.mrf.mxu0
  %v779 = vadd.f32 %v714, %v778
  %780 = vmatmul.f32.gmra.mxu0 %v30
  %v781 = vpop.f32.mrf.mxu0
  %v782 = vadd.f32 %v717, %v781
  %783 = vmatmul.f32.gmra.mxu0 %v39
  %v784 = vpop.f32.mrf.mxu0
  %v785 = vadd.f32 %v720, %v784
  %786 = vmatmul.f32.gmra.mxu0 %v48
  %v787 = vpop.f32.mrf.mxu0
  %v788 = vadd.f32 %v723, %v787
  %789 = vmatmul.f32.gmra.mxu0 %v57
  %v790 = vpop.f32.mrf.mxu0
  %v791 = vadd.f32 %v726, %v790
  %792 = vmatmul.f32.gmra.mxu0 %v66
  %v793 = vpop.f32.mrf.mxu0
  %v794 = vadd.f32 %v729, %v793
  %795 = vmatmul.f32.gmra.mxu0 %v75
  %v796 = vpop.f32.mrf.mxu0
  %v797 = vadd.f32 %v732, %v796
  %798 = vmatmul.f32.gmra.mxu0 %v84
  %v799 = vpop.f32.mrf.mxu0
  %v800 = vadd.f32 %v735, %v799
  %801 = vmatmul.f32.gmra.mxu0 %v93
  %v802 = vpop.f32.mrf.mxu0
  %v803 = vadd.f32 %v738, %v802
  %804 = vmatmul.f32.gmra.mxu0 %v102
  %v805 = vpop.f32.mrf.mxu0
  %v806 = vadd.f32 %v741, %v805
  %807 = vmatmul.f32.gmra.mxu0 %v111
  %v808 = vpop.f32.mrf.mxu0
  %v809 = vadd.f32 %v744, %v808
  %810 = vmatmul.f32.gmra.mxu0 %v120
  %v811 = vpop.f32.mrf.mxu0
  %v812 = vadd.f32 %v747, %v811
  %813 = vmatmul.f32.gmra.mxu0 %v129
  %v814 = vpop.f32.mrf.mxu0
  %v815 = vadd.f32 %v750, %v814
  %816 = vmatmul.f32.gmra.mxu0 %v138
  %v817 = vpop.f32.mrf.mxu0
  %v818 = vadd.f32 %v753, %v817
  %819 = vmatmul.f32.gmra.mxu0 %v147
  %v820 = vpop.f32.mrf.mxu0
  %v821 = vadd.f32 %v756, %v820
  %822 = vmatmul.f32.gmra.mxu0 %v156
  %v823 = vpop.f32.mrf.mxu0
  %v824 = vadd.f32 %v759, %v823
  %825 = vdwg.mxu0
  %826 = vmatpush.msra.mxu0 %v301
  %827 = vmatpush.msra.mxu0 %v300
  %828 = vmatpush.msra.mxu0 %v299
  %829 = vmatpush.msra.mxu0 %v298
  %830 = vmatpush.msra.mxu0 %v297
  %831 = vmatpush.msra.mxu0 %v296
  %832 = vmatpush.msra.mxu0 %v295
  %833 = vmatpush.msra.mxu0 %v294
  %834 = vmatpush.msra.mxu0 %v293
  %835 = vmatpush.msra.mxu0 %v292
  %836 = vmatpush.msra.mxu0 %v291
  %837 = vmatpush.msra.mxu0 %v290
  %838 = vmatpush.msra.mxu0 %v289
  %839 = vmatpush.msra.mxu0 %v288
  %840 = vmatpush.msra.mxu0 %v287
  %841 = vmatpush.msra.mxu0 %v286
  %842 = vmatmul.f32.gmra.mxu0 %v22
  %v843 = vpop.f32.mrf.mxu0
  %v844 = vadd.f32 %v779, %v843
  %845 = vmatmul.f32.gmra.mxu0 %v31
  %v846 = vpop.f32.mrf.mxu0
  %v847 = vadd.f32 %v782, %v846
  %848 = vmatmul.f32.gmra.mxu0 %v40
  %v849 = vpop.f32.mrf.mxu0
  %v850 = vadd.f32 %v785, %v849
  %851 = vmatmul.f32.gmra.mxu0 %v49
  %v852 = vpop.f32.mrf.mxu0
  %v853 = vadd.f32 %v788, %v852
  %854 = vmatmul.f32.gmra.mxu0 %v58
  %v855 = vpop.f32.mrf.mxu0
  %v856 = vadd.f32 %v791, %v855
  %857 = vmatmul.f32.gmra.mxu0 %v67
  %v858 = vpop.f32.mrf.mxu0
  %v859 = vadd.f32 %v794, %v858
  %860 = vmatmul.f32.gmra.mxu0 %v76
  %v861 = vpop.f32.mrf.mxu0
  %v862 = vadd.f32 %v797, %v861
  %863 = vmatmul.f32.gmra.mxu0 %v85
  %v864 = vpop.f32.mrf.mxu0
  %v865 = vadd.f32 %v800, %v864
  %866 = vmatmul.f32.gmra.mxu0 %v94
  %v867 = vpop.f32.mrf.mxu0
  %v868 = vadd.f32 %v803, %v867
  %869 = vmatmul.f32.gmra.mxu0 %v103
  %v870 = vpop.f32.mrf.mxu0
  %v871 = vadd.f32 %v806, %v870
  %872 = vmatmul.f32.gmra.mxu0 %v112
  %v873 = vpop.f32.mrf.mxu0
  %v874 = vadd.f32 %v809, %v873
  %875 = vmatmul.f32.gmra.mxu0 %v121
  %v876 = vpop.f32.mrf.mxu0
  %v877 = vadd.f32 %v812, %v876
  %878 = vmatmul.f32.gmra.mxu0 %v130
  %v879 = vpop.f32.mrf.mxu0
  %v880 = vadd.f32 %v815, %v879
  %881 = vmatmul.f32.gmra.mxu0 %v139
  %v882 = vpop.f32.mrf.mxu0
  %v883 = vadd.f32 %v818, %v882
  %884 = vmatmul.f32.gmra.mxu0 %v148
  %v885 = vpop.f32.mrf.mxu0
  %v886 = vadd.f32 %v821, %v885
  %887 = vmatmul.f32.gmra.mxu0 %v157
  %v888 = vpop.f32.mrf.mxu0
  %v889 = vadd.f32 %v824, %v888
  %890 = vdwg.mxu0
  %v891 = vmax.f32 %v844, 0.0
  %v892 = vmax.f32 %v847, 0.0
  %v893 = vmax.f32 %v850, 0.0
  %v894 = vmax.f32 %v853, 0.0
  %v895 = vmax.f32 %v856, 0.0
  %v896 = vmax.f32 %v859, 0.0
  %v897 = vmax.f32 %v862, 0.0
  %v898 = vmax.f32 %v865, 0.0
  %v899 = vmax.f32 %v868, 0.0
  %v900 = vmax.f32 %v871, 0.0
  %v901 = vmax.f32 %v874, 0.0
  %v902 = vmax.f32 %v877, 0.0
  %v903 = vmax.f32 %v880, 0.0
  %v904 = vmax.f32 %v883, 0.0
  %v905 = vmax.f32 %v886, 0.0
  %v906 = vmax.f32 %v889, 0.0
  %907 = vst [vmem:[%s3] sm:$0xff] %v891
  %908 = vst [vmem:[%s3 + $0x8] sm:$0xff] %v892
  %909 = vst [vmem:[%s3 + $0x10] sm:$0xff] %v893
  %910 = vst [vmem:[%s3 + $0x18] sm:$0xff] %v894
  %911 = vst [vmem:[%s3 + $0x20] sm:$0xff] %v895
  %912 = vst [vmem:[%s3 + $0x28] sm:$0xff] %v896
  %913 = vst [vmem:[%s3 + $0x30] sm:$0xff] %v897
  %914 = vst [vmem:[%s3 + $0x38] sm:$0xff] %v898
  %915 = vst [vmem:[%s3 + $0x40] sm:$0xff] %v899
  %916 = vst [vmem:[%s3 + $0x48] sm:$0xff] %v900
  %917 = vst [vmem:[%s3 + $0x50] sm:$0xff] %v901
  %918 = vst [vmem:[%s3 + $0x58] sm:$0xff] %v902
  %919 = vst [vmem:[%s3 + $0x60] sm:$0xff] %v903
  %920 = vst [vmem:[%s3 + $0x68] sm:$0xff] %v904
  %921 = vst [vmem:[%s3 + $0x70] sm:$0xff] %v905
  %922 = vst [vmem:[%s3 + $0x78] sm:$0xff] %v906
  // Predicated region
  $region14: #{_lambda_.18} parent=0 // pred_check
    _
  $region15: #{_lambda_.18} parent=0 // pred_check_branch
    %924 = sbr.rel (0) target = $region17
  $region16: #{_lambda_.18} parent=0 // pred_region
    _
  $region17: #{_lambda_.18} parent=0 // pred_fallthru
    _
  // Predicated region
  $region18: #{_lambda_.18} parent=0 // pred_check
    _
  $region19: #{_lambda_.18} parent=0 // pred_check_branch
    %926 = sbr.rel (0) target = $region21
  $region20: #{_lambda_.18} parent=0 // pred_region
    _
  $region21: #{_lambda_.18} parent=0 // pred_fallthru
    _

// kernel: _lambda_.19
$region0: #{_lambda_.19}
  #allocation0 [shape = 'u32[]', space=smem, size = 0x4, offset = 0x4, fixed_abs, tag = 'smem constant byte address 0x4 - core index']
  #allocation1 [shape = 'u32[72,128]{1,0:T(1,128)}', space=vmem, size = 0x9000, scoped, tag = 'internal scratch']
  %s0 = inlined_call_operand.vmem [shape: f32[32,128], index: 0, kind: input, shape index: {}]
  %s1 = inlined_call_operand.vmem [shape: f32[32,128], index: 1, kind: input, shape index: {}]
  %s2 = inlined_call_operand.vmem [shape: f32[32,128], index: 2, kind: input, shape index: {}]
  %s3 = inlined_call_operand.vmem [shape: f32[32,128], index: 3, kind: input, shape index: {}]
  %s4 = inlined_call_operand.vmem [shape: s32[32,1], index: 4, kind: input, shape index: {}]
  %s5 = inlined_call_operand.vmem [shape: f32[32,128], index: 5, kind: output, shape index: {0}]
  %s6 = inlined_call_operand.hbm [shape: s32[32,128], index: 6, kind: output, shape index: {1}]
  %7 = xla_tuple %s5, %s6
  %s8 = sld [smem:[#allocation0]]
  $region38: #{_lambda_.19} parent=0
    _
  %s10 = ssub.s32 1, %s8
  %s11 = scalar_select 0, %s10, %s8
  $region1: #{_lambda_.19} parent=0
    #allocation2 [shape = 'u8[16384]{0}', space=vmem, size = 0x4000, scoped, tag = 'output window, operand 1, single buffered']
    #allocation3 [shape = 's32[1]{0}', space=sflag, size = 0x4, scoped, tag = 'scoped memory for _lambda_.19']
    %12 = vsyncpa [#allocation3], 0
    // Predicated region
    $region2: #{_lambda_.19} parent=1 // pred_check
      _
    $region3: #{_lambda_.19} parent=1 // pred_check_branch
      %14 = sbr.rel (0) target = $region5
    $region4: #{_lambda_.19} parent=1 // pred_region
      _
    $region5: #{_lambda_.19} parent=1 // pred_fallthru
      _
    // Predicated region
    $region6: #{_lambda_.19} parent=1 // pred_check
      _
    $region7: #{_lambda_.19} parent=1 // pred_check_branch
      %16 = sbr.rel (0) target = $region9
    $region8: #{_lambda_.19} parent=1 // pred_region
      _
    $region9: #{_lambda_.19} parent=1 // pred_fallthru
      _
    // Predicated region
    $region10: #{_lambda_.19} parent=1 // pred_check
      _
    $region11: #{_lambda_.19} parent=1 // pred_check_branch
      %18 = sbr.rel (0) target = $region13
    $region12: #{_lambda_.19} parent=1 // pred_region
      _
    $region13: #{_lambda_.19} parent=1 // pred_fallthru
      _
    // Predicated region
    $region14: #{_lambda_.19} parent=1 // pred_check
      _
    $region15: #{_lambda_.19} parent=1 // pred_check_branch
      %20 = sbr.rel (0) target = $region17
    $region16: #{_lambda_.19} parent=1 // pred_region
      _
    $region17: #{_lambda_.19} parent=1 // pred_fallthru
      _
    // Predicated region
    $region18: #{_lambda_.19} parent=1 // pred_check
      _
    $region19: #{_lambda_.19} parent=1 // pred_check_branch
      %22 = sbr.rel (0) target = $region21
    $region20: #{_lambda_.19} parent=1 // pred_region
      _
    $region21: #{_lambda_.19} parent=1 // pred_fallthru
      _
    %v23 = vld [vmem:[%s0] sm:$0xff]
    %v24 = vld [vmem:[%s0 + $0x8] sm:$0xff]
    %v25 = vld [vmem:[%s0 + $0x10] sm:$0xff]
    %v26 = vld [vmem:[%s0 + $0x18] sm:$0xff]
    %v27 = vld [vmem:[%s1] sm:$0xff]
    %v28 = vld [vmem:[%s1 + $0x8] sm:$0xff]
    %v29 = vld [vmem:[%s1 + $0x10] sm:$0xff]
    %v30 = vld [vmem:[%s1 + $0x18] sm:$0xff]
    %vm31 = vcmp.gt.f32.partialorder %v27, %v23
    %vm32 = vcmp.gt.f32.partialorder %v28, %v24
    %vm33 = vcmp.gt.f32.partialorder %v29, %v25
    %vm34 = vcmp.gt.f32.partialorder %v30, %v26
    %v35 = vsel %vm31, %v27, %v23
    %v36 = vsel %vm32, %v28, %v24
    %v37 = vsel %vm33, %v29, %v25
    %v38 = vsel %vm34, %v30, %v26
    %v39 = vsel %vm31, 1, 0
    %v40 = vsel %vm32, 1, 0
    %v41 = vsel %vm33, 1, 0
    %v42 = vsel %vm34, 1, 0
    %v43 = vld [vmem:[%s2] sm:$0xff]
    %v44 = vld [vmem:[%s2 + $0x8] sm:$0xff]
    %v45 = vld [vmem:[%s2 + $0x10] sm:$0xff]
    %v46 = vld [vmem:[%s2 + $0x18] sm:$0xff]
    %vm47 = vcmp.gt.f32.partialorder %v43, %v35
    %vm48 = vcmp.gt.f32.partialorder %v44, %v36
    %vm49 = vcmp.gt.f32.partialorder %v45, %v37
    %vm50 = vcmp.gt.f32.partialorder %v46, %v38
    %v51 = vsel %vm47, %v43, %v35
    %v52 = vsel %vm48, %v44, %v36
    %v53 = vsel %vm49, %v45, %v37
    %v54 = vsel %vm50, %v46, %v38
    %v55 = vsel %vm47, 8, %v39
    %v56 = vsel %vm48, 8, %v40
    %v57 = vsel %vm49, 8, %v41
    %v58 = vsel %vm50, 8, %v42
    %v59 = vld [vmem:[%s3] sm:$0xff]
    %v60 = vld [vmem:[%s3 + $0x8] sm:$0xff]
    %v61 = vld [vmem:[%s3 + $0x10] sm:$0xff]
    %v62 = vld [vmem:[%s3 + $0x18] sm:$0xff]
    %vm63 = vcmp.gt.f32.partialorder %v59, %v51
    %vm64 = vcmp.gt.f32.partialorder %v60, %v52
    %vm65 = vcmp.gt.f32.partialorder %v61, %v53
    %vm66 = vcmp.gt.f32.partialorder %v62, %v54
    %v67 = vsel %vm63, %v59, %v51
    %v68 = vsel %vm64, %v60, %v52
    %v69 = vsel %vm65, %v61, %v53
    %v70 = vsel %vm66, %v62, %v54
    %v71 = vsel %vm63, 9, %v55
    %v72 = vsel %vm64, 9, %v56
    %v73 = vsel %vm65, 9, %v57
    %v74 = vsel %vm66, 9, %v58
    %75 = vst [vmem:[%s5] sm:$0xff] %v67
    %76 = vst [vmem:[%s5 + $0x8] sm:$0xff] %v68
    %77 = vst [vmem:[%s5 + $0x10] sm:$0xff] %v69
    %78 = vst [vmem:[%s5 + $0x18] sm:$0xff] %v70
    %v79 = vld [vmem:[%s4] sm:$0xff]
    %v80 = vld [vmem:[%s4 + $0x8] sm:$0xff]
    %v81 = vld [vmem:[%s4 + $0x10] sm:$0xff]
    %v82 = vld [vmem:[%s4 + $0x18] sm:$0xff]
    %83 = vset.pattern.permute.xlu0 0
    %84 = vperm.xlu0 %83, %v79
    %v85 = vpop.permute.xlu0 %84
    %86 = vset.pattern.permute.xlu0 0
    %87 = vperm.xlu0 %86, %v80
    %v88 = vpop.permute.xlu0 %87
    %89 = vset.pattern.permute.xlu0 0
    %90 = vperm.xlu0 %89, %v81
    %v91 = vpop.permute.xlu0 %90
    %92 = vset.pattern.permute.xlu0 0
    %93 = vperm.xlu0 %92, %v82
    %v94 = vpop.permute.xlu0 %93
    %v95 = vadd.s32 %v85, %v71
    %v96 = vadd.s32 %v88, %v72
    %v97 = vadd.s32 %v91, %v73
    %v98 = vadd.s32 %v94, %v74
    %99 = vst [vmem:[#allocation2] sm:$0xff] %v95
    %100 = vst [vmem:[#allocation2 + $0x8] sm:$0xff] %v96
    %101 = vst [vmem:[#allocation2 + $0x10] sm:$0xff] %v97
    %102 = vst [vmem:[#allocation2 + $0x18] sm:$0xff] %v98
    // Predicated region
    $region22: #{_lambda_.19} parent=1 // pred_check
      _
    $region23: #{_lambda_.19} parent=1 // pred_check_branch
      %104 = sbr.rel (0) target = $region25
    $region24: #{_lambda_.19} parent=1 // pred_region
      _
    $region25: #{_lambda_.19} parent=1 // pred_fallthru
      _
    // Predicated region
    $region26: #{_lambda_.19} parent=1 // pred_check
      _
    $region27: #{_lambda_.19} parent=1 // pred_check_branch
      %106 = sbr.rel (0) target = $region29
    $region28: #{_lambda_.19} parent=1 // pred_region
      %108 = vsyncadd [#allocation3], 0
      %s109 = sshll.u32 [#allocation2], 4
      %s110 = int_to_ptr.vmem [resolvable:$true] %s109
      %s111 = sshll.u32 %s6, 4
      %s112 = int_to_ptr.hbm [resolvable:$true] %s111
      %117 = dma.vmem_to_hbm [thread:$0]  %s110, 512, %s112, [#allocation3], 128, 128, 8
    $region29: #{_lambda_.19} parent=1 // pred_fallthru
      _
    // Predicated region
    $region30: #{_lambda_.19} parent=1 // pred_check
      _
    $region31: #{_lambda_.19} parent=1 // pred_check_branch
      %119 = sbr.rel (0) target = $region33
    $region32: #{_lambda_.19} parent=1 // pred_region
      _
    $region33: #{_lambda_.19} parent=1 // pred_fallthru
      _
    // Predicated region
    $region34: #{_lambda_.19} parent=1 // pred_check
      _
    $region35: #{_lambda_.19} parent=1 // pred_check_branch
      %121 = sbr.rel (0) target = $region37
    $region36: #{_lambda_.19} parent=1 // pred_region
      %123 = dma.done [#allocation3], 512
    $region37: #{_lambda_.19} parent=1 // pred_fallthru
      _
    %124 = vsyncpa [#allocation3], 1

// kernel: _lambda_.20
$region0: #{_lambda_.20}
  #allocation0 [shape = 'u32[]', space=smem, size = 0x4, offset = 0x4, fixed_abs, tag = 'smem constant byte address 0x4 - core index']
  #allocation1 [shape = 'u32[72,128]{1,0:T(1,128)}', space=vmem, size = 0x9000, scoped, tag = 'internal scratch']
  %s0 = inlined_call_operand.vmem [shape: f32[32,1152], index: 0, kind: input, shape index: {}]
  %s1 = inlined_call_operand.vmem [shape: f32[1152,256], index: 1, kind: input, shape index: {}]
  %s2 = inlined_call_operand.vmem [shape: f32[1,256], index: 2, kind: input, shape index: {}]
  %s3 = inlined_call_operand.vmem [shape: f32[32,256], index: 3, kind: output, shape index: {}]
  %s4 = sld [smem:[#allocation0]]
  $region22: #{_lambda_.20} parent=0
    _
  %s6 = ssub.s32 1, %s4
  %s7 = scalar_select 0, %s6, %s4
  // Predicated region
  $region2: #{_lambda_.20} parent=0 // pred_check
    _
  $region3: #{_lambda_.20} parent=0 // pred_check_branch
    %9 = sbr.rel (0) target = $region5
  $region4: #{_lambda_.20} parent=0 // pred_region
    _
  $region5: #{_lambda_.20} parent=0 // pred_fallthru
    _
  // Predicated region
  $region6: #{_lambda_.20} parent=0 // pred_check
    _
  $region7: #{_lambda_.20} parent=0 // pred_check_branch
    %11 = sbr.rel (0) target = $region9
  $region8: #{_lambda_.20} parent=0 // pred_region
    _
  $region9: #{_lambda_.20} parent=0 // pred_fallthru
    _
  // Predicated region
  $region10: #{_lambda_.20} parent=0 // pred_check
    _
  $region11: #{_lambda_.20} parent=0 // pred_check_branch
    %13 = sbr.rel (0) target = $region13
  $region12: #{_lambda_.20} parent=0 // pred_region
    _
  $region13: #{_lambda_.20} parent=0 // pred_fallthru
    _
  %v14 = vld [vmem:[%s0] sm:$0xff]
  %v15 = vld [vmem:[%s0 + $0x8] sm:$0xff]
  %v16 = vld [vmem:[%s0 + $0x10] sm:$0xff]
  %v17 = vld [vmem:[%s0 + $0x18] sm:$0xff]
  %v18 = vld [vmem:[%s0 + $0x20] sm:$0xff]
  %v19 = vld [vmem:[%s0 + $0x28] sm:$0xff]
  %v20 = vld [vmem:[%s0 + $0x30] sm:$0xff]
  %v21 = vld [vmem:[%s0 + $0x38] sm:$0xff]
  %v22 = vld [vmem:[%s0 + $0x40] sm:$0xff]
  %v23 = vld [vmem:[%s0 + $0x48] sm:$0xff]
  %v24 = vld [vmem:[%s0 + $0x50] sm:$0xff]
  %v25 = vld [vmem:[%s0 + $0x58] sm:$0xff]
  %v26 = vld [vmem:[%s0 + $0x60] sm:$0xff]
  %v27 = vld [vmem:[%s0 + $0x68] sm:$0xff]
  %v28 = vld [vmem:[%s0 + $0x70] sm:$0xff]
  %v29 = vld [vmem:[%s0 + $0x78] sm:$0xff]
  %v30 = vld [vmem:[%s0 + $0x80] sm:$0xff]
  %v31 = vld [vmem:[%s0 + $0x88] sm:$0xff]
  %v32 = vld [vmem:[%s0 + $0x90] sm:$0xff]
  %v33 = vld [vmem:[%s0 + $0x98] sm:$0xff]
  %v34 = vld [vmem:[%s0 + $0xa0] sm:$0xff]
  %v35 = vld [vmem:[%s0 + $0xa8] sm:$0xff]
  %v36 = vld [vmem:[%s0 + $0xb0] sm:$0xff]
  %v37 = vld [vmem:[%s0 + $0xb8] sm:$0xff]
  %v38 = vld [vmem:[%s0 + $0xc0] sm:$0xff]
  %v39 = vld [vmem:[%s0 + $0xc8] sm:$0xff]
  %v40 = vld [vmem:[%s0 + $0xd0] sm:$0xff]
  %v41 = vld [vmem:[%s0 + $0xd8] sm:$0xff]
  %v42 = vld [vmem:[%s0 + $0xe0] sm:$0xff]
  %v43 = vld [vmem:[%s0 + $0xe8] sm:$0xff]
  %v44 = vld [vmem:[%s0 + $0xf0] sm:$0xff]
  %v45 = vld [vmem:[%s0 + $0xf8] sm:$0xff]
  %v46 = vld [vmem:[%s0 + $0x100] sm:$0xff]
  %v47 = vld [vmem:[%s0 + $0x108] sm:$0xff]
  %v48 = vld [vmem:[%s0 + $0x110] sm:$0xff]
  %v49 = vld [vmem:[%s0 + $0x118] sm:$0xff]
  %v50 = vld [vmem:[%s1] sm:$0xff]
  %v51 = vld [vmem:[%s1 + $0x8] sm:$0xff]
  %v52 = vld [vmem:[%s1 + $0x10] sm:$0xff]
  %v53 = vld [vmem:[%s1 + $0x18] sm:$0xff]
  %v54 = vld [vmem:[%s1 + $0x20] sm:$0xff]
  %v55 = vld [vmem:[%s1 + $0x28] sm:$0xff]
  %v56 = vld [vmem:[%s1 + $0x30] sm:$0xff]
  %v57 = vld [vmem:[%s1 + $0x38] sm:$0xff]
  %v58 = vld [vmem:[%s1 + $0x40] sm:$0xff]
  %v59 = vld [vmem:[%s1 + $0x48] sm:$0xff]
  %v60 = vld [vmem:[%s1 + $0x50] sm:$0xff]
  %v61 = vld [vmem:[%s1 + $0x58] sm:$0xff]
  %v62 = vld [vmem:[%s1 + $0x60] sm:$0xff]
  %v63 = vld [vmem:[%s1 + $0x68] sm:$0xff]
  %v64 = vld [vmem:[%s1 + $0x70] sm:$0xff]
  %v65 = vld [vmem:[%s1 + $0x78] sm:$0xff]
  %v66 = vld [vmem:[%s1 + $0x80] sm:$0xff]
  %v67 = vld [vmem:[%s1 + $0x88] sm:$0xff]
  %v68 = vld [vmem:[%s1 + $0x90] sm:$0xff]
  %v69 = vld [vmem:[%s1 + $0x98] sm:$0xff]
  %v70 = vld [vmem:[%s1 + $0xa0] sm:$0xff]
  %v71 = vld [vmem:[%s1 + $0xa8] sm:$0xff]
  %v72 = vld [vmem:[%s1 + $0xb0] sm:$0xff]
  %v73 = vld [vmem:[%s1 + $0xb8] sm:$0xff]
  %v74 = vld [vmem:[%s1 + $0xc0] sm:$0xff]
  %v75 = vld [vmem:[%s1 + $0xc8] sm:$0xff]
  %v76 = vld [vmem:[%s1 + $0xd0] sm:$0xff]
  %v77 = vld [vmem:[%s1 + $0xd8] sm:$0xff]
  %v78 = vld [vmem:[%s1 + $0xe0] sm:$0xff]
  %v79 = vld [vmem:[%s1 + $0xe8] sm:$0xff]
  %v80 = vld [vmem:[%s1 + $0xf0] sm:$0xff]
  %v81 = vld [vmem:[%s1 + $0xf8] sm:$0xff]
  %v82 = vld [vmem:[%s1 + $0x100] sm:$0xff]
  %v83 = vld [vmem:[%s1 + $0x108] sm:$0xff]
  %v84 = vld [vmem:[%s1 + $0x110] sm:$0xff]
  %v85 = vld [vmem:[%s1 + $0x118] sm:$0xff]
  %v86 = vld [vmem:[%s1 + $0x120] sm:$0xff]
  %v87 = vld [vmem:[%s1 + $0x128] sm:$0xff]
  %v88 = vld [vmem:[%s1 + $0x130] sm:$0xff]
  %v89 = vld [vmem:[%s1 + $0x138] sm:$0xff]
  %v90 = vld [vmem:[%s1 + $0x140] sm:$0xff]
  %v91 = vld [vmem:[%s1 + $0x148] sm:$0xff]
  %v92 = vld [vmem:[%s1 + $0x150] sm:$0xff]
  %v93 = vld [vmem:[%s1 + $0x158] sm:$0xff]
  %v94 = vld [vmem:[%s1 + $0x160] sm:$0xff]
  %v95 = vld [vmem:[%s1 + $0x168] sm:$0xff]
  %v96 = vld [vmem:[%s1 + $0x170] sm:$0xff]
  %v97 = vld [vmem:[%s1 + $0x178] sm:$0xff]
  %v98 = vld [vmem:[%s1 + $0x180] sm:$0xff]
  %v99 = vld [vmem:[%s1 + $0x188] sm:$0xff]
  %v100 = vld [vmem:[%s1 + $0x190] sm:$0xff]
  %v101 = vld [vmem:[%s1 + $0x198] sm:$0xff]
  %v102 = vld [vmem:[%s1 + $0x1a0] sm:$0xff]
  %v103 = vld [vmem:[%s1 + $0x1a8] sm:$0xff]
  %v104 = vld [vmem:[%s1 + $0x1b0] sm:$0xff]
  %v105 = vld [vmem:[%s1 + $0x1b8] sm:$0xff]
  %v106 = vld [vmem:[%s1 + $0x1c0] sm:$0xff]
  %v107 = vld [vmem:[%s1 + $0x1c8] sm:$0xff]
  %v108 = vld [vmem:[%s1 + $0x1d0] sm:$0xff]
  %v109 = vld [vmem:[%s1 + $0x1d8] sm:$0xff]
  %v110 = vld [vmem:[%s1 + $0x1e0] sm:$0xff]
  %v111 = vld [vmem:[%s1 + $0x1e8] sm:$0xff]
  %v112 = vld [vmem:[%s1 + $0x1f0] sm:$0xff]
  %v113 = vld [vmem:[%s1 + $0x1f8] sm:$0xff]
  %v114 = vld [vmem:[%s1 + $0x200] sm:$0xff]
  %v115 = vld [vmem:[%s1 + $0x208] sm:$0xff]
  %v116 = vld [vmem:[%s1 + $0x210] sm:$0xff]
  %v117 = vld [vmem:[%s1 + $0x218] sm:$0xff]
  %v118 = vld [vmem:[%s1 + $0x220] sm:$0xff]
  %v119 = vld [vmem:[%s1 + $0x228] sm:$0xff]
  %v120 = vld [vmem:[%s1 + $0x230] sm:$0xff]
  %v121 = vld [vmem:[%s1 + $0x238] sm:$0xff]
  %v122 = vld [vmem:[%s1 + $0x240] sm:$0xff]
  %v123 = vld [vmem:[%s1 + $0x248] sm:$0xff]
  %v124 = vld [vmem:[%s1 + $0x250] sm:$0xff]
  %v125 = vld [vmem:[%s1 + $0x258] sm:$0xff]
  %v126 = vld [vmem:[%s1 + $0x260] sm:$0xff]
  %v127 = vld [vmem:[%s1 + $0x268] sm:$0xff]
  %v128 = vld [vmem:[%s1 + $0x270] sm:$0xff]
  %v129 = vld [vmem:[%s1 + $0x278] sm:$0xff]
  %v130 = vld [vmem:[%s1 + $0x280] sm:$0xff]
  %v131 = vld [vmem:[%s1 + $0x288] sm:$0xff]
  %v132 = vld [vmem:[%s1 + $0x290] sm:$0xff]
  %v133 = vld [vmem:[%s1 + $0x298] sm:$0xff]
  %v134 = vld [vmem:[%s1 + $0x2a0] sm:$0xff]
  %v135 = vld [vmem:[%s1 + $0x2a8] sm:$0xff]
  %v136 = vld [vmem:[%s1 + $0x2b0] sm:$0xff]
  %v137 = vld [vmem:[%s1 + $0x2b8] sm:$0xff]
  %v138 = vld [vmem:[%s1 + $0x2c0] sm:$0xff]
  %v139 = vld [vmem:[%s1 + $0x2c8] sm:$0xff]
  %v140 = vld [vmem:[%s1 + $0x2d0] sm:$0xff]
  %v141 = vld [vmem:[%s1 + $0x2d8] sm:$0xff]
  %v142 = vld [vmem:[%s1 + $0x2e0] sm:$0xff]
  %v143 = vld [vmem:[%s1 + $0x2e8] sm:$0xff]
  %v144 = vld [vmem:[%s1 + $0x2f0] sm:$0xff]
  %v145 = vld [vmem:[%s1 + $0x2f8] sm:$0xff]
  %v146 = vld [vmem:[%s1 + $0x300] sm:$0xff]
  %v147 = vld [vmem:[%s1 + $0x308] sm:$0xff]
  %v148 = vld [vmem:[%s1 + $0x310] sm:$0xff]
  %v149 = vld [vmem:[%s1 + $0x318] sm:$0xff]
  %v150 = vld [vmem:[%s1 + $0x320] sm:$0xff]
  %v151 = vld [vmem:[%s1 + $0x328] sm:$0xff]
  %v152 = vld [vmem:[%s1 + $0x330] sm:$0xff]
  %v153 = vld [vmem:[%s1 + $0x338] sm:$0xff]
  %v154 = vld [vmem:[%s1 + $0x340] sm:$0xff]
  %v155 = vld [vmem:[%s1 + $0x348] sm:$0xff]
  %v156 = vld [vmem:[%s1 + $0x350] sm:$0xff]
  %v157 = vld [vmem:[%s1 + $0x358] sm:$0xff]
  %v158 = vld [vmem:[%s1 + $0x360] sm:$0xff]
  %v159 = vld [vmem:[%s1 + $0x368] sm:$0xff]
  %v160 = vld [vmem:[%s1 + $0x370] sm:$0xff]
  %v161 = vld [vmem:[%s1 + $0x378] sm:$0xff]
  %v162 = vld [vmem:[%s1 + $0x380] sm:$0xff]
  %v163 = vld [vmem:[%s1 + $0x388] sm:$0xff]
  %v164 = vld [vmem:[%s1 + $0x390] sm:$0xff]
  %v165 = vld [vmem:[%s1 + $0x398] sm:$0xff]
  %v166 = vld [vmem:[%s1 + $0x3a0] sm:$0xff]
  %v167 = vld [vmem:[%s1 + $0x3a8] sm:$0xff]
  %v168 = vld [vmem:[%s1 + $0x3b0] sm:$0xff]
  %v169 = vld [vmem:[%s1 + $0x3b8] sm:$0xff]
  %v170 = vld [vmem:[%s1 + $0x3c0] sm:$0xff]
  %v171 = vld [vmem:[%s1 + $0x3c8] sm:$0xff]
  %v172 = vld [vmem:[%s1 + $0x3d0] sm:$0xff]
  %v173 = vld [vmem:[%s1 + $0x3d8] sm:$0xff]
  %v174 = vld [vmem:[%s1 + $0x3e0] sm:$0xff]
  %v175 = vld [vmem:[%s1 + $0x3e8] sm:$0xff]
  %v176 = vld [vmem:[%s1 + $0x3f0] sm:$0xff]
  %v177 = vld [vmem:[%s1 + $0x3f8] sm:$0xff]
  %v178 = vld [vmem:[%s1 + $0x400] sm:$0xff]
  %v179 = vld [vmem:[%s1 + $0x408] sm:$0xff]
  %v180 = vld [vmem:[%s1 + $0x410] sm:$0xff]
  %v181 = vld [vmem:[%s1 + $0x418] sm:$0xff]
  %v182 = vld [vmem:[%s1 + $0x420] sm:$0xff]
  %v183 = vld [vmem:[%s1 + $0x428] sm:$0xff]
  %v184 = vld [vmem:[%s1 + $0x430] sm:$0xff]
  %v185 = vld [vmem:[%s1 + $0x438] sm:$0xff]
  %v186 = vld [vmem:[%s1 + $0x440] sm:$0xff]
  %v187 = vld [vmem:[%s1 + $0x448] sm:$0xff]
  %v188 = vld [vmem:[%s1 + $0x450] sm:$0xff]
  %v189 = vld [vmem:[%s1 + $0x458] sm:$0xff]
  %v190 = vld [vmem:[%s1 + $0x460] sm:$0xff]
  %v191 = vld [vmem:[%s1 + $0x468] sm:$0xff]
  %v192 = vld [vmem:[%s1 + $0x470] sm:$0xff]
  %v193 = vld [vmem:[%s1 + $0x478] sm:$0xff]
  %v194 = vld [vmem:[%s1 + $0x480] sm:$0xff]
  %v195 = vld [vmem:[%s1 + $0x488] sm:$0xff]
  %v196 = vld [vmem:[%s1 + $0x490] sm:$0xff]
  %v197 = vld [vmem:[%s1 + $0x498] sm:$0xff]
  %v198 = vld [vmem:[%s1 + $0x4a0] sm:$0xff]
  %v199 = vld [vmem:[%s1 + $0x4a8] sm:$0xff]
  %v200 = vld [vmem:[%s1 + $0x4b0] sm:$0xff]
  %v201 = vld [vmem:[%s1 + $0x4b8] sm:$0xff]
  %v202 = vld [vmem:[%s1 + $0x4c0] sm:$0xff]
  %v203 = vld [vmem:[%s1 + $0x4c8] sm:$0xff]
  %v204 = vld [vmem:[%s1 + $0x4d0] sm:$0xff]
  %v205 = vld [vmem:[%s1 + $0x4d8] sm:$0xff]
  %v206 = vld [vmem:[%s1 + $0x4e0] sm:$0xff]
  %v207 = vld [vmem:[%s1 + $0x4e8] sm:$0xff]
  %v208 = vld [vmem:[%s1 + $0x4f0] sm:$0xff]
  %v209 = vld [vmem:[%s1 + $0x4f8] sm:$0xff]
  %v210 = vld [vmem:[%s1 + $0x500] sm:$0xff]
  %v211 = vld [vmem:[%s1 + $0x508] sm:$0xff]
  %v212 = vld [vmem:[%s1 + $0x510] sm:$0xff]
  %v213 = vld [vmem:[%s1 + $0x518] sm:$0xff]
  %v214 = vld [vmem:[%s1 + $0x520] sm:$0xff]
  %v215 = vld [vmem:[%s1 + $0x528] sm:$0xff]
  %v216 = vld [vmem:[%s1 + $0x530] sm:$0xff]
  %v217 = vld [vmem:[%s1 + $0x538] sm:$0xff]
  %v218 = vld [vmem:[%s1 + $0x540] sm:$0xff]
  %v219 = vld [vmem:[%s1 + $0x548] sm:$0xff]
  %v220 = vld [vmem:[%s1 + $0x550] sm:$0xff]
  %v221 = vld [vmem:[%s1 + $0x558] sm:$0xff]
  %v222 = vld [vmem:[%s1 + $0x560] sm:$0xff]
  %v223 = vld [vmem:[%s1 + $0x568] sm:$0xff]
  %v224 = vld [vmem:[%s1 + $0x570] sm:$0xff]
  %v225 = vld [vmem:[%s1 + $0x578] sm:$0xff]
  %v226 = vld [vmem:[%s1 + $0x580] sm:$0xff]
  %v227 = vld [vmem:[%s1 + $0x588] sm:$0xff]
  %v228 = vld [vmem:[%s1 + $0x590] sm:$0xff]
  %v229 = vld [vmem:[%s1 + $0x598] sm:$0xff]
  %v230 = vld [vmem:[%s1 + $0x5a0] sm:$0xff]
  %v231 = vld [vmem:[%s1 + $0x5a8] sm:$0xff]
  %v232 = vld [vmem:[%s1 + $0x5b0] sm:$0xff]
  %v233 = vld [vmem:[%s1 + $0x5b8] sm:$0xff]
  %v234 = vld [vmem:[%s1 + $0x5c0] sm:$0xff]
  %v235 = vld [vmem:[%s1 + $0x5c8] sm:$0xff]
  %v236 = vld [vmem:[%s1 + $0x5d0] sm:$0xff]
  %v237 = vld [vmem:[%s1 + $0x5d8] sm:$0xff]
  %v238 = vld [vmem:[%s1 + $0x5e0] sm:$0xff]
  %v239 = vld [vmem:[%s1 + $0x5e8] sm:$0xff]
  %v240 = vld [vmem:[%s1 + $0x5f0] sm:$0xff]
  %v241 = vld [vmem:[%s1 + $0x5f8] sm:$0xff]
  %v242 = vld [vmem:[%s1 + $0x600] sm:$0xff]
  %v243 = vld [vmem:[%s1 + $0x608] sm:$0xff]
  %v244 = vld [vmem:[%s1 + $0x610] sm:$0xff]
  %v245 = vld [vmem:[%s1 + $0x618] sm:$0xff]
  %v246 = vld [vmem:[%s1 + $0x620] sm:$0xff]
  %v247 = vld [vmem:[%s1 + $0x628] sm:$0xff]
  %v248 = vld [vmem:[%s1 + $0x630] sm:$0xff]
  %v249 = vld [vmem:[%s1 + $0x638] sm:$0xff]
  %v250 = vld [vmem:[%s1 + $0x640] sm:$0xff]
  %v251 = vld [vmem:[%s1 + $0x648] sm:$0xff]
  %v252 = vld [vmem:[%s1 + $0x650] sm:$0xff]
  %v253 = vld [vmem:[%s1 + $0x658] sm:$0xff]
  %v254 = vld [vmem:[%s1 + $0x660] sm:$0xff]
  %v255 = vld [vmem:[%s1 + $0x668] sm:$0xff]
  %v256 = vld [vmem:[%s1 + $0x670] sm:$0xff]
  %v257 = vld [vmem:[%s1 + $0x678] sm:$0xff]
  %v258 = vld [vmem:[%s1 + $0x680] sm:$0xff]
  %v259 = vld [vmem:[%s1 + $0x688] sm:$0xff]
  %v260 = vld [vmem:[%s1 + $0x690] sm:$0xff]
  %v261 = vld [vmem:[%s1 + $0x698] sm:$0xff]
  %v262 = vld [vmem:[%s1 + $0x6a0] sm:$0xff]
  %v263 = vld [vmem:[%s1 + $0x6a8] sm:$0xff]
  %v264 = vld [vmem:[%s1 + $0x6b0] sm:$0xff]
  %v265 = vld [vmem:[%s1 + $0x6b8] sm:$0xff]
  %v266 = vld [vmem:[%s1 + $0x6c0] sm:$0xff]
  %v267 = vld [vmem:[%s1 + $0x6c8] sm:$0xff]
  %v268 = vld [vmem:[%s1 + $0x6d0] sm:$0xff]
  %v269 = vld [vmem:[%s1 + $0x6d8] sm:$0xff]
  %v270 = vld [vmem:[%s1 + $0x6e0] sm:$0xff]
  %v271 = vld [vmem:[%s1 + $0x6e8] sm:$0xff]
  %v272 = vld [vmem:[%s1 + $0x6f0] sm:$0xff]
  %v273 = vld [vmem:[%s1 + $0x6f8] sm:$0xff]
  %v274 = vld [vmem:[%s1 + $0x700] sm:$0xff]
  %v275 = vld [vmem:[%s1 + $0x708] sm:$0xff]
  %v276 = vld [vmem:[%s1 + $0x710] sm:$0xff]
  %v277 = vld [vmem:[%s1 + $0x718] sm:$0xff]
  %v278 = vld [vmem:[%s1 + $0x720] sm:$0xff]
  %v279 = vld [vmem:[%s1 + $0x728] sm:$0xff]
  %v280 = vld [vmem:[%s1 + $0x730] sm:$0xff]
  %v281 = vld [vmem:[%s1 + $0x738] sm:$0xff]
  %v282 = vld [vmem:[%s1 + $0x740] sm:$0xff]
  %v283 = vld [vmem:[%s1 + $0x748] sm:$0xff]
  %v284 = vld [vmem:[%s1 + $0x750] sm:$0xff]
  %v285 = vld [vmem:[%s1 + $0x758] sm:$0xff]
  %v286 = vld [vmem:[%s1 + $0x760] sm:$0xff]
  %v287 = vld [vmem:[%s1 + $0x768] sm:$0xff]
  %v288 = vld [vmem:[%s1 + $0x770] sm:$0xff]
  %v289 = vld [vmem:[%s1 + $0x778] sm:$0xff]
  %v290 = vld [vmem:[%s1 + $0x780] sm:$0xff]
  %v291 = vld [vmem:[%s1 + $0x788] sm:$0xff]
  %v292 = vld [vmem:[%s1 + $0x790] sm:$0xff]
  %v293 = vld [vmem:[%s1 + $0x798] sm:$0xff]
  %v294 = vld [vmem:[%s1 + $0x7a0] sm:$0xff]
  %v295 = vld [vmem:[%s1 + $0x7a8] sm:$0xff]
  %v296 = vld [vmem:[%s1 + $0x7b0] sm:$0xff]
  %v297 = vld [vmem:[%s1 + $0x7b8] sm:$0xff]
  %v298 = vld [vmem:[%s1 + $0x7c0] sm:$0xff]
  %v299 = vld [vmem:[%s1 + $0x7c8] sm:$0xff]
  %v300 = vld [vmem:[%s1 + $0x7d0] sm:$0xff]
  %v301 = vld [vmem:[%s1 + $0x7d8] sm:$0xff]
  %v302 = vld [vmem:[%s1 + $0x7e0] sm:$0xff]
  %v303 = vld [vmem:[%s1 + $0x7e8] sm:$0xff]
  %v304 = vld [vmem:[%s1 + $0x7f0] sm:$0xff]
  %v305 = vld [vmem:[%s1 + $0x7f8] sm:$0xff]
  %v306 = vld [vmem:[%s1 + $0x800] sm:$0xff]
  %v307 = vld [vmem:[%s1 + $0x808] sm:$0xff]
  %v308 = vld [vmem:[%s1 + $0x810] sm:$0xff]
  %v309 = vld [vmem:[%s1 + $0x818] sm:$0xff]
  %v310 = vld [vmem:[%s1 + $0x820] sm:$0xff]
  %v311 = vld [vmem:[%s1 + $0x828] sm:$0xff]
  %v312 = vld [vmem:[%s1 + $0x830] sm:$0xff]
  %v313 = vld [vmem:[%s1 + $0x838] sm:$0xff]
  %v314 = vld [vmem:[%s1 + $0x840] sm:$0xff]
  %v315 = vld [vmem:[%s1 + $0x848] sm:$0xff]
  %v316 = vld [vmem:[%s1 + $0x850] sm:$0xff]
  %v317 = vld [vmem:[%s1 + $0x858] sm:$0xff]
  %v318 = vld [vmem:[%s1 + $0x860] sm:$0xff]
  %v319 = vld [vmem:[%s1 + $0x868] sm:$0xff]
  %v320 = vld [vmem:[%s1 + $0x870] sm:$0xff]
  %v321 = vld [vmem:[%s1 + $0x878] sm:$0xff]
  %v322 = vld [vmem:[%s1 + $0x880] sm:$0xff]
  %v323 = vld [vmem:[%s1 + $0x888] sm:$0xff]
  %v324 = vld [vmem:[%s1 + $0x890] sm:$0xff]
  %v325 = vld [vmem:[%s1 + $0x898] sm:$0xff]
  %v326 = vld [vmem:[%s1 + $0x8a0] sm:$0xff]
  %v327 = vld [vmem:[%s1 + $0x8a8] sm:$0xff]
  %v328 = vld [vmem:[%s1 + $0x8b0] sm:$0xff]
  %v329 = vld [vmem:[%s1 + $0x8b8] sm:$0xff]
  %v330 = vld [vmem:[%s1 + $0x8c0] sm:$0xff]
  %v331 = vld [vmem:[%s1 + $0x8c8] sm:$0xff]
  %v332 = vld [vmem:[%s1 + $0x8d0] sm:$0xff]
  %v333 = vld [vmem:[%s1 + $0x8d8] sm:$0xff]
  %v334 = vld [vmem:[%s1 + $0x8e0] sm:$0xff]
  %v335 = vld [vmem:[%s1 + $0x8e8] sm:$0xff]
  %v336 = vld [vmem:[%s1 + $0x8f0] sm:$0xff]
  %v337 = vld [vmem:[%s1 + $0x8f8] sm:$0xff]
  %v338 = vld [vmem:[%s2] sm:$0x3]
  %v340 = vperm.slane %v338, 0
  %v341 = vperm.slane %v338, 1
  %344 = vmatpush.msra.mxu0 %v80
  %345 = vmatpush.msra.mxu0 %v78
  %346 = vmatpush.msra.mxu0 %v76
  %347 = vmatpush.msra.mxu0 %v74
  %348 = vmatpush.msra.mxu0 %v72
  %349 = vmatpush.msra.mxu0 %v70
  %350 = vmatpush.msra.mxu0 %v68
  %351 = vmatpush.msra.mxu0 %v66
  %352 = vmatpush.msra.mxu0 %v64
  %353 = vmatpush.msra.mxu0 %v62
  %354 = vmatpush.msra.mxu0 %v60
  %355 = vmatpush.msra.mxu0 %v58
  %356 = vmatpush.msra.mxu0 %v56
  %357 = vmatpush.msra.mxu0 %v54
  %358 = vmatpush.msra.mxu0 %v52
  %359 = vmatpush.msra.mxu0 %v50
  %360 = vmatmul.f32.gmra.mxu0 %v14
  %v361 = vpop.f32.mrf.mxu0
  %v362 = vadd.f32 %v340, %v361
  %363 = vmatmul.f32.gmra.mxu0 %v23
  %v364 = vpop.f32.mrf.mxu0
  %v365 = vadd.f32 %v340, %v364
  %366 = vmatmul.f32.gmra.mxu0 %v32
  %v367 = vpop.f32.mrf.mxu0
  %v368 = vadd.f32 %v340, %v367
  %369 = vmatmul.f32.gmra.mxu0 %v41
  %v370 = vpop.f32.mrf.mxu0
  %v371 = vadd.f32 %v340, %v370
  %372 = vdwg.mxu0
  %373 = vmatpush.msra.mxu0 %v112
  %374 = vmatpush.msra.mxu0 %v110
  %375 = vmatpush.msra.mxu0 %v108
  %376 = vmatpush.msra.mxu0 %v106
  %377 = vmatpush.msra.mxu0 %v104
  %378 = vmatpush.msra.mxu0 %v102
  %379 = vmatpush.msra.mxu0 %v100
  %380 = vmatpush.msra.mxu0 %v98
  %381 = vmatpush.msra.mxu0 %v96
  %382 = vmatpush.msra.mxu0 %v94
  %383 = vmatpush.msra.mxu0 %v92
  %384 = vmatpush.msra.mxu0 %v90
  %385 = vmatpush.msra.mxu0 %v88
  %386 = vmatpush.msra.mxu0 %v86
  %387 = vmatpush.msra.mxu0 %v84
  %388 = vmatpush.msra.mxu0 %v82
  %389 = vmatmul.f32.gmra.mxu0 %v15
  %v390 = vpop.f32.mrf.mxu0
  %v391 = vadd.f32 %v362, %v390
  %392 = vmatmul.f32.gmra.mxu0 %v24
  %v393 = vpop.f32.mrf.mxu0
  %v394 = vadd.f32 %v365, %v393
  %395 = vmatmul.f32.gmra.mxu0 %v33
  %v396 = vpop.f32.mrf.mxu0
  %v397 = vadd.f32 %v368, %v396
  %398 = vmatmul.f32.gmra.mxu0 %v42
  %v399 = vpop.f32.mrf.mxu0
  %v400 = vadd.f32 %v371, %v399
  %401 = vdwg.mxu0
  %402 = vmatpush.msra.mxu0 %v144
  %403 = vmatpush.msra.mxu0 %v142
  %404 = vmatpush.msra.mxu0 %v140
  %405 = vmatpush.msra.mxu0 %v138
  %406 = vmatpush.msra.mxu0 %v136
  %407 = vmatpush.msra.mxu0 %v134
  %408 = vmatpush.msra.mxu0 %v132
  %409 = vmatpush.msra.mxu0 %v130
  %410 = vmatpush.msra.mxu0 %v128
  %411 = vmatpush.msra.mxu0 %v126
  %412 = vmatpush.msra.mxu0 %v124
  %413 = vmatpush.msra.mxu0 %v122
  %414 = vmatpush.msra.mxu0 %v120
  %415 = vmatpush.msra.mxu0 %v118
  %416 = vmatpush.msra.mxu0 %v116
  %417 = vmatpush.msra.mxu0 %v114
  %418 = vmatmul.f32.gmra.mxu0 %v16
  %v419 = vpop.f32.mrf.mxu0
  %v420 = vadd.f32 %v391, %v419
  %421 = vmatmul.f32.gmra.mxu0 %v25
  %v422 = vpop.f32.mrf.mxu0
  %v423 = vadd.f32 %v394, %v422
  %424 = vmatmul.f32.gmra.mxu0 %v34
  %v425 = vpop.f32.mrf.mxu0
  %v426 = vadd.f32 %v397, %v425
  %427 = vmatmul.f32.gmra.mxu0 %v43
  %v428 = vpop.f32.mrf.mxu0
  %v429 = vadd.f32 %v400, %v428
  %430 = vdwg.mxu0
  %431 = vmatpush.msra.mxu0 %v176
  %432 = vmatpush.msra.mxu0 %v174
  %433 = vmatpush.msra.mxu0 %v172
  %434 = vmatpush.msra.mxu0 %v170
  %435 = vmatpush.msra.mxu0 %v168
  %436 = vmatpush.msra.mxu0 %v166
  %437 = vmatpush.msra.mxu0 %v164
  %438 = vmatpush.msra.mxu0 %v162
  %439 = vmatpush.msra.mxu0 %v160
  %440 = vmatpush.msra.mxu0 %v158
  %441 = vmatpush.msra.mxu0 %v156
  %442 = vmatpush.msra.mxu0 %v154
  %443 = vmatpush.msra.mxu0 %v152
  %444 = vmatpush.msra.mxu0 %v150
  %445 = vmatpush.msra.mxu0 %v148
  %446 = vmatpush.msra.mxu0 %v146
  %447 = vmatmul.f32.gmra.mxu0 %v17
  %v448 = vpop.f32.mrf.mxu0
  %v449 = vadd.f32 %v420, %v448
  %450 = vmatmul.f32.gmra.mxu0 %v26
  %v451 = vpop.f32.mrf.mxu0
  %v452 = vadd.f32 %v423, %v451
  %453 = vmatmul.f32.gmra.mxu0 %v35
  %v454 = vpop.f32.mrf.mxu0
  %v455 = vadd.f32 %v426, %v454
  %456 = vmatmul.f32.gmra.mxu0 %v44
  %v457 = vpop.f32.mrf.mxu0
  %v458 = vadd.f32 %v429, %v457
  %459 = vdwg.mxu0
  %460 = vmatpush.msra.mxu0 %v208
  %461 = vmatpush.msra.mxu0 %v206
  %462 = vmatpush.msra.mxu0 %v204
  %463 = vmatpush.msra.mxu0 %v202
  %464 = vmatpush.msra.mxu0 %v200
  %465 = vmatpush.msra.mxu0 %v198
  %466 = vmatpush.msra.mxu0 %v196
  %467 = vmatpush.msra.mxu0 %v194
  %468 = vmatpush.msra.mxu0 %v192
  %469 = vmatpush.msra.mxu0 %v190
  %470 = vmatpush.msra.mxu0 %v188
  %471 = vmatpush.msra.mxu0 %v186
  %472 = vmatpush.msra.mxu0 %v184
  %473 = vmatpush.msra.mxu0 %v182
  %474 = vmatpush.msra.mxu0 %v180
  %475 = vmatpush.msra.mxu0 %v178
  %476 = vmatmul.f32.gmra.mxu0 %v18
  %v477 = vpop.f32.mrf.mxu0
  %v478 = vadd.f32 %v449, %v477
  %479 = vmatmul.f32.gmra.mxu0 %v27
  %v480 = vpop.f32.mrf.mxu0
  %v481 = vadd.f32 %v452, %v480
  %482 = vmatmul.f32.gmra.mxu0 %v36
  %v483 = vpop.f32.mrf.mxu0
  %v484 = vadd.f32 %v455, %v483
  %485 = vmatmul.f32.gmra.mxu0 %v45
  %v486 = vpop.f32.mrf.mxu0
  %v487 = vadd.f32 %v458, %v486
  %488 = vdwg.mxu0
  %489 = vmatpush.msra.mxu0 %v240
  %490 = vmatpush.msra.mxu0 %v238
  %491 = vmatpush.msra.mxu0 %v236
  %492 = vmatpush.msra.mxu0 %v234
  %493 = vmatpush.msra.mxu0 %v232
  %494 = vmatpush.msra.mxu0 %v230
  %495 = vmatpush.msra.mxu0 %v228
  %496 = vmatpush.msra.mxu0 %v226
  %497 = vmatpush.msra.mxu0 %v224
  %498 = vmatpush.msra.mxu0 %v222
  %499 = vmatpush.msra.mxu0 %v220
  %500 = vmatpush.msra.mxu0 %v218
  %501 = vmatpush.msra.mxu0 %v216
  %502 = vmatpush.msra.mxu0 %v214
  %503 = vmatpush.msra.mxu0 %v212
  %504 = vmatpush.msra.mxu0 %v210
  %505 = vmatmul.f32.gmra.mxu0 %v19
  %v506 = vpop.f32.mrf.mxu0
  %v507 = vadd.f32 %v478, %v506
  %508 = vmatmul.f32.gmra.mxu0 %v28
  %v509 = vpop.f32.mrf.mxu0
  %v510 = vadd.f32 %v481, %v509
  %511 = vmatmul.f32.gmra.mxu0 %v37
  %v512 = vpop.f32.mrf.mxu0
  %v513 = vadd.f32 %v484, %v512
  %514 = vmatmul.f32.gmra.mxu0 %v46
  %v515 = vpop.f32.mrf.mxu0
  %v516 = vadd.f32 %v487, %v515
  %517 = vdwg.mxu0
  %518 = vmatpush.msra.mxu0 %v272
  %519 = vmatpush.msra.mxu0 %v270
  %520 = vmatpush.msra.mxu0 %v268
  %521 = vmatpush.msra.mxu0 %v266
  %522 = vmatpush.msra.mxu0 %v264
  %523 = vmatpush.msra.mxu0 %v262
  %524 = vmatpush.msra.mxu0 %v260
  %525 = vmatpush.msra.mxu0 %v258
  %526 = vmatpush.msra.mxu0 %v256
  %527 = vmatpush.msra.mxu0 %v254
  %528 = vmatpush.msra.mxu0 %v252
  %529 = vmatpush.msra.mxu0 %v250
  %530 = vmatpush.msra.mxu0 %v248
  %531 = vmatpush.msra.mxu0 %v246
  %532 = vmatpush.msra.mxu0 %v244
  %533 = vmatpush.msra.mxu0 %v242
  %534 = vmatmul.f32.gmra.mxu0 %v20
  %v535 = vpop.f32.mrf.mxu0
  %v536 = vadd.f32 %v507, %v535
  %537 = vmatmul.f32.gmra.mxu0 %v29
  %v538 = vpop.f32.mrf.mxu0
  %v539 = vadd.f32 %v510, %v538
  %540 = vmatmul.f32.gmra.mxu0 %v38
  %v541 = vpop.f32.mrf.mxu0
  %v542 = vadd.f32 %v513, %v541
  %543 = vmatmul.f32.gmra.mxu0 %v47
  %v544 = vpop.f32.mrf.mxu0
  %v545 = vadd.f32 %v516, %v544
  %546 = vdwg.mxu0
  %547 = vmatpush.msra.mxu0 %v304
  %548 = vmatpush.msra.mxu0 %v302
  %549 = vmatpush.msra.mxu0 %v300
  %550 = vmatpush.msra.mxu0 %v298
  %551 = vmatpush.msra.mxu0 %v296
  %552 = vmatpush.msra.mxu0 %v294
  %553 = vmatpush.msra.mxu0 %v292
  %554 = vmatpush.msra.mxu0 %v290
  %555 = vmatpush.msra.mxu0 %v288
  %556 = vmatpush.msra.mxu0 %v286
  %557 = vmatpush.msra.mxu0 %v284
  %558 = vmatpush.msra.mxu0 %v282
  %559 = vmatpush.msra.mxu0 %v280
  %560 = vmatpush.msra.mxu0 %v278
  %561 = vmatpush.msra.mxu0 %v276
  %562 = vmatpush.msra.mxu0 %v274
  %563 = vmatmul.f32.gmra.mxu0 %v21
  %v564 = vpop.f32.mrf.mxu0
  %v565 = vadd.f32 %v536, %v564
  %566 = vmatmul.f32.gmra.mxu0 %v30
  %v567 = vpop.f32.mrf.mxu0
  %v568 = vadd.f32 %v539, %v567
  %569 = vmatmul.f32.gmra.mxu0 %v39
  %v570 = vpop.f32.mrf.mxu0
  %v571 = vadd.f32 %v542, %v570
  %572 = vmatmul.f32.gmra.mxu0 %v48
  %v573 = vpop.f32.mrf.mxu0
  %v574 = vadd.f32 %v545, %v573
  %575 = vdwg.mxu0
  %576 = vmatpush.msra.mxu0 %v336
  %577 = vmatpush.msra.mxu0 %v334
  %578 = vmatpush.msra.mxu0 %v332
  %579 = vmatpush.msra.mxu0 %v330
  %580 = vmatpush.msra.mxu0 %v328
  %581 = vmatpush.msra.mxu0 %v326
  %582 = vmatpush.msra.mxu0 %v324
  %583 = vmatpush.msra.mxu0 %v322
  %584 = vmatpush.msra.mxu0 %v320
  %585 = vmatpush.msra.mxu0 %v318
  %586 = vmatpush.msra.mxu0 %v316
  %587 = vmatpush.msra.mxu0 %v314
  %588 = vmatpush.msra.mxu0 %v312
  %589 = vmatpush.msra.mxu0 %v310
  %590 = vmatpush.msra.mxu0 %v308
  %591 = vmatpush.msra.mxu0 %v306
  %592 = vmatmul.f32.gmra.mxu0 %v22
  %v593 = vpop.f32.mrf.mxu0
  %v594 = vadd.f32 %v565, %v593
  %595 = vmatmul.f32.gmra.mxu0 %v31
  %v596 = vpop.f32.mrf.mxu0
  %v597 = vadd.f32 %v568, %v596
  %598 = vmatmul.f32.gmra.mxu0 %v40
  %v599 = vpop.f32.mrf.mxu0
  %v600 = vadd.f32 %v571, %v599
  %601 = vmatmul.f32.gmra.mxu0 %v49
  %v602 = vpop.f32.mrf.mxu0
  %v603 = vadd.f32 %v574, %v602
  %604 = vdwg.mxu0
  %605 = vmatpush.msra.mxu0 %v81
  %606 = vmatpush.msra.mxu0 %v79
  %607 = vmatpush.msra.mxu0 %v77
  %608 = vmatpush.msra.mxu0 %v75
  %609 = vmatpush.msra.mxu0 %v73
  %610 = vmatpush.msra.mxu0 %v71
  %611 = vmatpush.msra.mxu0 %v69
  %612 = vmatpush.msra.mxu0 %v67
  %613 = vmatpush.msra.mxu0 %v65
  %614 = vmatpush.msra.mxu0 %v63
  %615 = vmatpush.msra.mxu0 %v61
  %616 = vmatpush.msra.mxu0 %v59
  %617 = vmatpush.msra.mxu0 %v57
  %618 = vmatpush.msra.mxu0 %v55
  %619 = vmatpush.msra.mxu0 %v53
  %620 = vmatpush.msra.mxu0 %v51
  %621 = vmatmul.f32.gmra.mxu0 %v14
  %v622 = vpop.f32.mrf.mxu0
  %v623 = vadd.f32 %v341, %v622
  %624 = vmatmul.f32.gmra.mxu0 %v23
  %v625 = vpop.f32.mrf.mxu0
  %v626 = vadd.f32 %v341, %v625
  %627 = vmatmul.f32.gmra.mxu0 %v32
  %v628 = vpop.f32.mrf.mxu0
  %v629 = vadd.f32 %v341, %v628
  %630 = vmatmul.f32.gmra.mxu0 %v41
  %v631 = vpop.f32.mrf.mxu0
  %v632 = vadd.f32 %v341, %v631
  %633 = vdwg.mxu0
  %634 = vmatpush.msra.mxu0 %v113
  %635 = vmatpush.msra.mxu0 %v111
  %636 = vmatpush.msra.mxu0 %v109
  %637 = vmatpush.msra.mxu0 %v107
  %638 = vmatpush.msra.mxu0 %v105
  %639 = vmatpush.msra.mxu0 %v103
  %640 = vmatpush.msra.mxu0 %v101
  %641 = vmatpush.msra.mxu0 %v99
  %642 = vmatpush.msra.mxu0 %v97
  %643 = vmatpush.msra.mxu0 %v95
  %644 = vmatpush.msra.mxu0 %v93
  %645 = vmatpush.msra.mxu0 %v91
  %646 = vmatpush.msra.mxu0 %v89
  %647 = vmatpush.msra.mxu0 %v87
  %648 = vmatpush.msra.mxu0 %v85
  %649 = vmatpush.msra.mxu0 %v83
  %650 = vmatmul.f32.gmra.mxu0 %v15
  %v651 = vpop.f32.mrf.mxu0
  %v652 = vadd.f32 %v623, %v651
  %653 = vmatmul.f32.gmra.mxu0 %v24
  %v654 = vpop.f32.mrf.mxu0
  %v655 = vadd.f32 %v626, %v654
  %656 = vmatmul.f32.gmra.mxu0 %v33
  %v657 = vpop.f32.mrf.mxu0
  %v658 = vadd.f32 %v629, %v657
  %659 = vmatmul.f32.gmra.mxu0 %v42
  %v660 = vpop.f32.mrf.mxu0
  %v661 = vadd.f32 %v632, %v660
  %662 = vdwg.mxu0
  %663 = vmatpush.msra.mxu0 %v145
  %664 = vmatpush.msra.mxu0 %v143
  %665 = vmatpush.msra.mxu0 %v141
  %666 = vmatpush.msra.mxu0 %v139
  %667 = vmatpush.msra.mxu0 %v137
  %668 = vmatpush.msra.mxu0 %v135
  %669 = vmatpush.msra.mxu0 %v133
  %670 = vmatpush.msra.mxu0 %v131
  %671 = vmatpush.msra.mxu0 %v129
  %672 = vmatpush.msra.mxu0 %v127
  %673 = vmatpush.msra.mxu0 %v125
  %674 = vmatpush.msra.mxu0 %v123
  %675 = vmatpush.msra.mxu0 %v121
  %676 = vmatpush.msra.mxu0 %v119
  %677 = vmatpush.msra.mxu0 %v117
  %678 = vmatpush.msra.mxu0 %v115
  %679 = vmatmul.f32.gmra.mxu0 %v16
  %v680 = vpop.f32.mrf.mxu0
  %v681 = vadd.f32 %v652, %v680
  %682 = vmatmul.f32.gmra.mxu0 %v25
  %v683 = vpop.f32.mrf.mxu0
  %v684 = vadd.f32 %v655, %v683
  %685 = vmatmul.f32.gmra.mxu0 %v34
  %v686 = vpop.f32.mrf.mxu0
  %v687 = vadd.f32 %v658, %v686
  %688 = vmatmul.f32.gmra.mxu0 %v43
  %v689 = vpop.f32.mrf.mxu0
  %v690 = vadd.f32 %v661, %v689
  %691 = vdwg.mxu0
  %692 = vmatpush.msra.mxu0 %v177
  %693 = vmatpush.msra.mxu0 %v175
  %694 = vmatpush.msra.mxu0 %v173
  %695 = vmatpush.msra.mxu0 %v171
  %696 = vmatpush.msra.mxu0 %v169
  %697 = vmatpush.msra.mxu0 %v167
  %698 = vmatpush.msra.mxu0 %v165
  %699 = vmatpush.msra.mxu0 %v163
  %700 = vmatpush.msra.mxu0 %v161
  %701 = vmatpush.msra.mxu0 %v159
  %702 = vmatpush.msra.mxu0 %v157
  %703 = vmatpush.msra.mxu0 %v155
  %704 = vmatpush.msra.mxu0 %v153
  %705 = vmatpush.msra.mxu0 %v151
  %706 = vmatpush.msra.mxu0 %v149
  %707 = vmatpush.msra.mxu0 %v147
  %708 = vmatmul.f32.gmra.mxu0 %v17
  %v709 = vpop.f32.mrf.mxu0
  %v710 = vadd.f32 %v681, %v709
  %711 = vmatmul.f32.gmra.mxu0 %v26
  %v712 = vpop.f32.mrf.mxu0
  %v713 = vadd.f32 %v684, %v712
  %714 = vmatmul.f32.gmra.mxu0 %v35
  %v715 = vpop.f32.mrf.mxu0
  %v716 = vadd.f32 %v687, %v715
  %717 = vmatmul.f32.gmra.mxu0 %v44
  %v718 = vpop.f32.mrf.mxu0
  %v719 = vadd.f32 %v690, %v718
  %720 = vdwg.mxu0
  %721 = vmatpush.msra.mxu0 %v209
  %722 = vmatpush.msra.mxu0 %v207
  %723 = vmatpush.msra.mxu0 %v205
  %724 = vmatpush.msra.mxu0 %v203
  %725 = vmatpush.msra.mxu0 %v201
  %726 = vmatpush.msra.mxu0 %v199
  %727 = vmatpush.msra.mxu0 %v197
  %728 = vmatpush.msra.mxu0 %v195
  %729 = vmatpush.msra.mxu0 %v193
  %730 = vmatpush.msra.mxu0 %v191
  %731 = vmatpush.msra.mxu0 %v189
  %732 = vmatpush.msra.mxu0 %v187
  %733 = vmatpush.msra.mxu0 %v185
  %734 = vmatpush.msra.mxu0 %v183
  %735 = vmatpush.msra.mxu0 %v181
  %736 = vmatpush.msra.mxu0 %v179
  %737 = vmatmul.f32.gmra.mxu0 %v18
  %v738 = vpop.f32.mrf.mxu0
  %v739 = vadd.f32 %v710, %v738
  %740 = vmatmul.f32.gmra.mxu0 %v27
  %v741 = vpop.f32.mrf.mxu0
  %v742 = vadd.f32 %v713, %v741
  %743 = vmatmul.f32.gmra.mxu0 %v36
  %v744 = vpop.f32.mrf.mxu0
  %v745 = vadd.f32 %v716, %v744
  %746 = vmatmul.f32.gmra.mxu0 %v45
  %v747 = vpop.f32.mrf.mxu0
  %v748 = vadd.f32 %v719, %v747
  %749 = vdwg.mxu0
  %750 = vmatpush.msra.mxu0 %v241
  %751 = vmatpush.msra.mxu0 %v239
  %752 = vmatpush.msra.mxu0 %v237
  %753 = vmatpush.msra.mxu0 %v235
  %754 = vmatpush.msra.mxu0 %v233
  %755 = vmatpush.msra.mxu0 %v231
  %756 = vmatpush.msra.mxu0 %v229
  %757 = vmatpush.msra.mxu0 %v227
  %758 = vmatpush.msra.mxu0 %v225
  %759 = vmatpush.msra.mxu0 %v223
  %760 = vmatpush.msra.mxu0 %v221
  %761 = vmatpush.msra.mxu0 %v219
  %762 = vmatpush.msra.mxu0 %v217
  %763 = vmatpush.msra.mxu0 %v215
  %764 = vmatpush.msra.mxu0 %v213
  %765 = vmatpush.msra.mxu0 %v211
  %766 = vmatmul.f32.gmra.mxu0 %v19
  %v767 = vpop.f32.mrf.mxu0
  %v768 = vadd.f32 %v739, %v767
  %769 = vmatmul.f32.gmra.mxu0 %v28
  %v770 = vpop.f32.mrf.mxu0
  %v771 = vadd.f32 %v742, %v770
  %772 = vmatmul.f32.gmra.mxu0 %v37
  %v773 = vpop.f32.mrf.mxu0
  %v774 = vadd.f32 %v745, %v773
  %775 = vmatmul.f32.gmra.mxu0 %v46
  %v776 = vpop.f32.mrf.mxu0
  %v777 = vadd.f32 %v748, %v776
  %778 = vdwg.mxu0
  %779 = vmatpush.msra.mxu0 %v273
  %780 = vmatpush.msra.mxu0 %v271
  %781 = vmatpush.msra.mxu0 %v269
  %782 = vmatpush.msra.mxu0 %v267
  %783 = vmatpush.msra.mxu0 %v265
  %784 = vmatpush.msra.mxu0 %v263
  %785 = vmatpush.msra.mxu0 %v261
  %786 = vmatpush.msra.mxu0 %v259
  %787 = vmatpush.msra.mxu0 %v257
  %788 = vmatpush.msra.mxu0 %v255
  %789 = vmatpush.msra.mxu0 %v253
  %790 = vmatpush.msra.mxu0 %v251
  %791 = vmatpush.msra.mxu0 %v249
  %792 = vmatpush.msra.mxu0 %v247
  %793 = vmatpush.msra.mxu0 %v245
  %794 = vmatpush.msra.mxu0 %v243
  %795 = vmatmul.f32.gmra.mxu0 %v20
  %v796 = vpop.f32.mrf.mxu0
  %v797 = vadd.f32 %v768, %v796
  %798 = vmatmul.f32.gmra.mxu0 %v29
  %v799 = vpop.f32.mrf.mxu0
  %v800 = vadd.f32 %v771, %v799
  %801 = vmatmul.f32.gmra.mxu0 %v38
  %v802 = vpop.f32.mrf.mxu0
  %v803 = vadd.f32 %v774, %v802
  %804 = vmatmul.f32.gmra.mxu0 %v47
  %v805 = vpop.f32.mrf.mxu0
  %v806 = vadd.f32 %v777, %v805
  %807 = vdwg.mxu0
  %808 = vmatpush.msra.mxu0 %v305
  %809 = vmatpush.msra.mxu0 %v303
  %810 = vmatpush.msra.mxu0 %v301
  %811 = vmatpush.msra.mxu0 %v299
  %812 = vmatpush.msra.mxu0 %v297
  %813 = vmatpush.msra.mxu0 %v295
  %814 = vmatpush.msra.mxu0 %v293
  %815 = vmatpush.msra.mxu0 %v291
  %816 = vmatpush.msra.mxu0 %v289
  %817 = vmatpush.msra.mxu0 %v287
  %818 = vmatpush.msra.mxu0 %v285
  %819 = vmatpush.msra.mxu0 %v283
  %820 = vmatpush.msra.mxu0 %v281
  %821 = vmatpush.msra.mxu0 %v279
  %822 = vmatpush.msra.mxu0 %v277
  %823 = vmatpush.msra.mxu0 %v275
  %824 = vmatmul.f32.gmra.mxu0 %v21
  %v825 = vpop.f32.mrf.mxu0
  %v826 = vadd.f32 %v797, %v825
  %827 = vmatmul.f32.gmra.mxu0 %v30
  %v828 = vpop.f32.mrf.mxu0
  %v829 = vadd.f32 %v800, %v828
  %830 = vmatmul.f32.gmra.mxu0 %v39
  %v831 = vpop.f32.mrf.mxu0
  %v832 = vadd.f32 %v803, %v831
  %833 = vmatmul.f32.gmra.mxu0 %v48
  %v834 = vpop.f32.mrf.mxu0
  %v835 = vadd.f32 %v806, %v834
  %836 = vdwg.mxu0
  %837 = vmatpush.msra.mxu0 %v337
  %838 = vmatpush.msra.mxu0 %v335
  %839 = vmatpush.msra.mxu0 %v333
  %840 = vmatpush.msra.mxu0 %v331
  %841 = vmatpush.msra.mxu0 %v329
  %842 = vmatpush.msra.mxu0 %v327
  %843 = vmatpush.msra.mxu0 %v325
  %844 = vmatpush.msra.mxu0 %v323
  %845 = vmatpush.msra.mxu0 %v321
  %846 = vmatpush.msra.mxu0 %v319
  %847 = vmatpush.msra.mxu0 %v317
  %848 = vmatpush.msra.mxu0 %v315
  %849 = vmatpush.msra.mxu0 %v313
  %850 = vmatpush.msra.mxu0 %v311
  %851 = vmatpush.msra.mxu0 %v309
  %852 = vmatpush.msra.mxu0 %v307
  %853 = vmatmul.f32.gmra.mxu0 %v22
  %v854 = vpop.f32.mrf.mxu0
  %v855 = vadd.f32 %v826, %v854
  %856 = vmatmul.f32.gmra.mxu0 %v31
  %v857 = vpop.f32.mrf.mxu0
  %v858 = vadd.f32 %v829, %v857
  %859 = vmatmul.f32.gmra.mxu0 %v40
  %v860 = vpop.f32.mrf.mxu0
  %v861 = vadd.f32 %v832, %v860
  %862 = vmatmul.f32.gmra.mxu0 %v49
  %v863 = vpop.f32.mrf.mxu0
  %v864 = vadd.f32 %v835, %v863
  %865 = vdwg.mxu0
  %v866 = vmax.f32 %v594, 0.0
  %v867 = vmax.f32 %v855, 0.0
  %v868 = vmax.f32 %v597, 0.0
  %v869 = vmax.f32 %v858, 0.0
  %v870 = vmax.f32 %v600, 0.0
  %v871 = vmax.f32 %v861, 0.0
  %v872 = vmax.f32 %v603, 0.0
  %v873 = vmax.f32 %v864, 0.0
  %874 = vst [vmem:[%s3] sm:$0xff] %v866
  %875 = vst [vmem:[%s3 + $0x8] sm:$0xff] %v867
  %876 = vst [vmem:[%s3 + $0x10] sm:$0xff] %v868
  %877 = vst [vmem:[%s3 + $0x18] sm:$0xff] %v869
  %878 = vst [vmem:[%s3 + $0x20] sm:$0xff] %v870
  %879 = vst [vmem:[%s3 + $0x28] sm:$0xff] %v871
  %880 = vst [vmem:[%s3 + $0x30] sm:$0xff] %v872
  %881 = vst [vmem:[%s3 + $0x38] sm:$0xff] %v873
  // Predicated region
  $region14: #{_lambda_.20} parent=0 // pred_check
    _
  $region15: #{_lambda_.20} parent=0 // pred_check_branch
    %883 = sbr.rel (0) target = $region17
  $region16: #{_lambda_.20} parent=0 // pred_region
    _
  $region17: #{_lambda_.20} parent=0 // pred_fallthru
    _
  // Predicated region
  $region18: #{_lambda_.20} parent=0 // pred_check
    _
  $region19: #{_lambda_.20} parent=0 // pred_check_branch
    %885 = sbr.rel (0) target = $region21
  $region20: #{_lambda_.20} parent=0 // pred_region
    _
  $region21: #{_lambda_.20} parent=0 // pred_fallthru
    _

// kernel: _lambda_.24
$region0: #{_lambda_.24}
  #allocation0 [shape = 'u32[]', space=smem, size = 0x4, offset = 0x4, fixed_abs, tag = 'smem constant byte address 0x4 - core index']
  #allocation1 [shape = 'u32[72,128]{1,0:T(1,128)}', space=vmem, size = 0x9000, scoped, tag = 'internal scratch']
  %s0 = inlined_call_operand.vmem [shape: f32[8,256], index: 0, kind: input, shape index: {}]
  %s1 = inlined_call_operand.vmem [shape: f32[8,256], index: 1, kind: input, shape index: {}]
  %s2 = inlined_call_operand.vmem [shape: f32[8,256], index: 2, kind: input, shape index: {}]
  %s3 = inlined_call_operand.vmem [shape: f32[8,256], index: 3, kind: input, shape index: {}]
  %s4 = inlined_call_operand.vmem [shape: s32[8,1], index: 4, kind: input, shape index: {}]
  %s5 = inlined_call_operand.vmem [shape: f32[8,256], index: 5, kind: output, shape index: {0}]
  %s6 = inlined_call_operand.vmem [shape: s32[8,256], index: 6, kind: output, shape index: {1}]
  %7 = xla_tuple %s5, %s6
  %s8 = sld [smem:[#allocation0]]
  $region38: #{_lambda_.24} parent=0
    _
  %s10 = ssub.s32 1, %s8
  %s11 = scalar_select 0, %s10, %s8
  // Predicated region
  $region2: #{_lambda_.24} parent=0 // pred_check
    _
  $region3: #{_lambda_.24} parent=0 // pred_check_branch
    %13 = sbr.rel (0) target = $region5
  $region4: #{_lambda_.24} parent=0 // pred_region
    _
  $region5: #{_lambda_.24} parent=0 // pred_fallthru
    _
  // Predicated region
  $region6: #{_lambda_.24} parent=0 // pred_check
    _
  $region7: #{_lambda_.24} parent=0 // pred_check_branch
    %15 = sbr.rel (0) target = $region9
  $region8: #{_lambda_.24} parent=0 // pred_region
    _
  $region9: #{_lambda_.24} parent=0 // pred_fallthru
    _
  // Predicated region
  $region10: #{_lambda_.24} parent=0 // pred_check
    _
  $region11: #{_lambda_.24} parent=0 // pred_check_branch
    %17 = sbr.rel (0) target = $region13
  $region12: #{_lambda_.24} parent=0 // pred_region
    _
  $region13: #{_lambda_.24} parent=0 // pred_fallthru
    _
  // Predicated region
  $region14: #{_lambda_.24} parent=0 // pred_check
    _
  $region15: #{_lambda_.24} parent=0 // pred_check_branch
    %19 = sbr.rel (0) target = $region17
  $region16: #{_lambda_.24} parent=0 // pred_region
    _
  $region17: #{_lambda_.24} parent=0 // pred_fallthru
    _
  // Predicated region
  $region18: #{_lambda_.24} parent=0 // pred_check
    _
  $region19: #{_lambda_.24} parent=0 // pred_check_branch
    %21 = sbr.rel (0) target = $region21
  $region20: #{_lambda_.24} parent=0 // pred_region
    _
  $region21: #{_lambda_.24} parent=0 // pred_fallthru
    _
  %v22 = vld [vmem:[%s0] sm:$0xff]
  %v23 = vld [vmem:[%s0 + $0x8] sm:$0xff]
  %v24 = vld [vmem:[%s1] sm:$0xff]
  %v25 = vld [vmem:[%s1 + $0x8] sm:$0xff]
  %vm26 = vcmp.gt.f32.partialorder %v24, %v22
  %vm27 = vcmp.gt.f32.partialorder %v25, %v23
  %v28 = vsel %vm26, %v24, %v22
  %v29 = vsel %vm27, %v25, %v23
  %v30 = vsel %vm26, 1, 0
  %v31 = vsel %vm27, 1, 0
  %v32 = vld [vmem:[%s2] sm:$0xff]
  %v33 = vld [vmem:[%s2 + $0x8] sm:$0xff]
  %vm34 = vcmp.gt.f32.partialorder %v32, %v28
  %vm35 = vcmp.gt.f32.partialorder %v33, %v29
  %v36 = vsel %vm34, %v32, %v28
  %v37 = vsel %vm35, %v33, %v29
  %v38 = vsel %vm34, 4, %v30
  %v39 = vsel %vm35, 4, %v31
  %v40 = vld [vmem:[%s3] sm:$0xff]
  %v41 = vld [vmem:[%s3 + $0x8] sm:$0xff]
  %vm42 = vcmp.gt.f32.partialorder %v40, %v36
  %vm43 = vcmp.gt.f32.partialorder %v41, %v37
  %v44 = vsel %vm42, %v40, %v36
  %v45 = vsel %vm43, %v41, %v37
  %v46 = vsel %vm42, 5, %v38
  %v47 = vsel %vm43, 5, %v39
  %48 = vst [vmem:[%s5] sm:$0xff] %v44
  %49 = vst [vmem:[%s5 + $0x8] sm:$0xff] %v45
  %v50 = vld [vmem:[%s4] sm:$0xff]
  %51 = vset.pattern.permute.xlu0 0
  %52 = vperm.xlu0 %51, %v50
  %v53 = vpop.permute.xlu0 %52
  %v54 = vadd.s32 %v53, %v46
  %v55 = vadd.s32 %v53, %v47
  %56 = vst [vmem:[%s6] sm:$0xff] %v54
  %57 = vst [vmem:[%s6 + $0x8] sm:$0xff] %v55
  // Predicated region
  $region22: #{_lambda_.24} parent=0 // pred_check
    _
  $region23: #{_lambda_.24} parent=0 // pred_check_branch
    %59 = sbr.rel (0) target = $region25
  $region24: #{_lambda_.24} parent=0 // pred_region
    _
  $region25: #{_lambda_.24} parent=0 // pred_fallthru
    _
  // Predicated region
  $region26: #{_lambda_.24} parent=0 // pred_check
    _
  $region27: #{_lambda_.24} parent=0 // pred_check_branch
    %61 = sbr.rel (0) target = $region29
  $region28: #{_lambda_.24} parent=0 // pred_region
    _
  $region29: #{_lambda_.24} parent=0 // pred_fallthru
    _
  // Predicated region
  $region30: #{_lambda_.24} parent=0 // pred_check
    _
  $region31: #{_lambda_.24} parent=0 // pred_check_branch
    %63 = sbr.rel (0) target = $region33
  $region32: #{_lambda_.24} parent=0 // pred_region
    _
  $region33: #{_lambda_.24} parent=0 // pred_fallthru
    _
  // Predicated region
  $region34: #{_lambda_.24} parent=0 // pred_check
    _
  $region35: #{_lambda_.24} parent=0 // pred_check_branch
    %65 = sbr.rel (0) target = $region37
  $region36: #{_lambda_.24} parent=0 // pred_region
    _
  $region37: #{_lambda_.24} parent=0 // pred_fallthru
    _

// kernel: _lambda_.21
$region0: #{_lambda_.21}
  #allocation0 [shape = 'u32[]', space=smem, size = 0x4, offset = 0x4, fixed_abs, tag = 'smem constant byte address 0x4 - core index']
  #allocation1 [shape = 'u32[72,128]{1,0:T(1,128)}', space=vmem, size = 0x9000, scoped, tag = 'internal scratch']
  %s0 = inlined_call_operand.vmem [shape: f32[32,2304], index: 0, kind: input, shape index: {}]
  %s1 = inlined_call_operand.vmem [shape: f32[2304,256], index: 1, kind: input, shape index: {}]
  %s2 = inlined_call_operand.vmem [shape: f32[1,256], index: 2, kind: input, shape index: {}]
  %s3 = inlined_call_operand.vmem [shape: f32[32,256], index: 3, kind: output, shape index: {}]
  %s4 = sld [smem:[#allocation0]]
  $region22: #{_lambda_.21} parent=0
    _
  %s6 = ssub.s32 1, %s4
  %s7 = scalar_select 0, %s6, %s4
  // Predicated region
  $region2: #{_lambda_.21} parent=0 // pred_check
    _
  $region3: #{_lambda_.21} parent=0 // pred_check_branch
    %9 = sbr.rel (0) target = $region5
  $region4: #{_lambda_.21} parent=0 // pred_region
    _
  $region5: #{_lambda_.21} parent=0 // pred_fallthru
    _
  // Predicated region
  $region6: #{_lambda_.21} parent=0 // pred_check
    _
  $region7: #{_lambda_.21} parent=0 // pred_check_branch
    %11 = sbr.rel (0) target = $region9
  $region8: #{_lambda_.21} parent=0 // pred_region
    _
  $region9: #{_lambda_.21} parent=0 // pred_fallthru
    _
  // Predicated region
  $region10: #{_lambda_.21} parent=0 // pred_check
    _
  $region11: #{_lambda_.21} parent=0 // pred_check_branch
    %13 = sbr.rel (0) target = $region13
  $region12: #{_lambda_.21} parent=0 // pred_region
    _
  $region13: #{_lambda_.21} parent=0 // pred_fallthru
    _
  %v14 = vld [vmem:[%s0] sm:$0xff]
  %v15 = vld [vmem:[%s0 + $0x8] sm:$0xff]
  %v16 = vld [vmem:[%s0 + $0x10] sm:$0xff]
  %v17 = vld [vmem:[%s0 + $0x18] sm:$0xff]
  %v18 = vld [vmem:[%s0 + $0x20] sm:$0xff]
  %v19 = vld [vmem:[%s0 + $0x28] sm:$0xff]
  %v20 = vld [vmem:[%s0 + $0x30] sm:$0xff]
  %v21 = vld [vmem:[%s0 + $0x38] sm:$0xff]
  %v22 = vld [vmem:[%s0 + $0x40] sm:$0xff]
  %v23 = vld [vmem:[%s0 + $0x48] sm:$0xff]
  %v24 = vld [vmem:[%s0 + $0x50] sm:$0xff]
  %v25 = vld [vmem:[%s0 + $0x58] sm:$0xff]
  %v26 = vld [vmem:[%s0 + $0x60] sm:$0xff]
  %v27 = vld [vmem:[%s0 + $0x68] sm:$0xff]
  %v28 = vld [vmem:[%s0 + $0x70] sm:$0xff]
  %v29 = vld [vmem:[%s0 + $0x78] sm:$0xff]
  %v30 = vld [vmem:[%s0 + $0x80] sm:$0xff]
  %v31 = vld [vmem:[%s0 + $0x88] sm:$0xff]
  %v32 = vld [vmem:[%s0 + $0x90] sm:$0xff]
  %v33 = vld [vmem:[%s0 + $0x98] sm:$0xff]
  %v34 = vld [vmem:[%s0 + $0xa0] sm:$0xff]
  %v35 = vld [vmem:[%s0 + $0xa8] sm:$0xff]
  %v36 = vld [vmem:[%s0 + $0xb0] sm:$0xff]
  %v37 = vld [vmem:[%s0 + $0xb8] sm:$0xff]
  %v38 = vld [vmem:[%s0 + $0xc0] sm:$0xff]
  %v39 = vld [vmem:[%s0 + $0xc8] sm:$0xff]
  %v40 = vld [vmem:[%s0 + $0xd0] sm:$0xff]
  %v41 = vld [vmem:[%s0 + $0xd8] sm:$0xff]
  %v42 = vld [vmem:[%s0 + $0xe0] sm:$0xff]
  %v43 = vld [vmem:[%s0 + $0xe8] sm:$0xff]
  %v44 = vld [vmem:[%s0 + $0xf0] sm:$0xff]
  %v45 = vld [vmem:[%s0 + $0xf8] sm:$0xff]
  %v46 = vld [vmem:[%s0 + $0x100] sm:$0xff]
  %v47 = vld [vmem:[%s0 + $0x108] sm:$0xff]
  %v48 = vld [vmem:[%s0 + $0x110] sm:$0xff]
  %v49 = vld [vmem:[%s0 + $0x118] sm:$0xff]
  %v50 = vld [vmem:[%s0 + $0x120] sm:$0xff]
  %v51 = vld [vmem:[%s0 + $0x128] sm:$0xff]
  %v52 = vld [vmem:[%s0 + $0x130] sm:$0xff]
  %v53 = vld [vmem:[%s0 + $0x138] sm:$0xff]
  %v54 = vld [vmem:[%s0 + $0x140] sm:$0xff]
  %v55 = vld [vmem:[%s0 + $0x148] sm:$0xff]
  %v56 = vld [vmem:[%s0 + $0x150] sm:$0xff]
  %v57 = vld [vmem:[%s0 + $0x158] sm:$0xff]
  %v58 = vld [vmem:[%s0 + $0x160] sm:$0xff]
  %v59 = vld [vmem:[%s0 + $0x168] sm:$0xff]
  %v60 = vld [vmem:[%s0 + $0x170] sm:$0xff]
  %v61 = vld [vmem:[%s0 + $0x178] sm:$0xff]
  %v62 = vld [vmem:[%s0 + $0x180] sm:$0xff]
  %v63 = vld [vmem:[%s0 + $0x188] sm:$0xff]
  %v64 = vld [vmem:[%s0 + $0x190] sm:$0xff]
  %v65 = vld [vmem:[%s0 + $0x198] sm:$0xff]
  %v66 = vld [vmem:[%s0 + $0x1a0] sm:$0xff]
  %v67 = vld [vmem:[%s0 + $0x1a8] sm:$0xff]
  %v68 = vld [vmem:[%s0 + $0x1b0] sm:$0xff]
  %v69 = vld [vmem:[%s0 + $0x1b8] sm:$0xff]
  %v70 = vld [vmem:[%s0 + $0x1c0] sm:$0xff]
  %v71 = vld [vmem:[%s0 + $0x1c8] sm:$0xff]
  %v72 = vld [vmem:[%s0 + $0x1d0] sm:$0xff]
  %v73 = vld [vmem:[%s0 + $0x1d8] sm:$0xff]
  %v74 = vld [vmem:[%s0 + $0x1e0] sm:$0xff]
  %v75 = vld [vmem:[%s0 + $0x1e8] sm:$0xff]
  %v76 = vld [vmem:[%s0 + $0x1f0] sm:$0xff]
  %v77 = vld [vmem:[%s0 + $0x1f8] sm:$0xff]
  %v78 = vld [vmem:[%s0 + $0x200] sm:$0xff]
  %v79 = vld [vmem:[%s0 + $0x208] sm:$0xff]
  %v80 = vld [vmem:[%s0 + $0x210] sm:$0xff]
  %v81 = vld [vmem:[%s0 + $0x218] sm:$0xff]
  %v82 = vld [vmem:[%s0 + $0x220] sm:$0xff]
  %v83 = vld [vmem:[%s0 + $0x228] sm:$0xff]
  %v84 = vld [vmem:[%s0 + $0x230] sm:$0xff]
  %v85 = vld [vmem:[%s0 + $0x238] sm:$0xff]
  %v86 = vld [vmem:[%s1] sm:$0xff]
  %v87 = vld [vmem:[%s1 + $0x8] sm:$0xff]
  %v88 = vld [vmem:[%s1 + $0x10] sm:$0xff]
  %v89 = vld [vmem:[%s1 + $0x18] sm:$0xff]
  %v90 = vld [vmem:[%s1 + $0x20] sm:$0xff]
  %v91 = vld [vmem:[%s1 + $0x28] sm:$0xff]
  %v92 = vld [vmem:[%s1 + $0x30] sm:$0xff]
  %v93 = vld [vmem:[%s1 + $0x38] sm:$0xff]
  %v94 = vld [vmem:[%s1 + $0x40] sm:$0xff]
  %v95 = vld [vmem:[%s1 + $0x48] sm:$0xff]
  %v96 = vld [vmem:[%s1 + $0x50] sm:$0xff]
  %v97 = vld [vmem:[%s1 + $0x58] sm:$0xff]
  %v98 = vld [vmem:[%s1 + $0x60] sm:$0xff]
  %v99 = vld [vmem:[%s1 + $0x68] sm:$0xff]
  %v100 = vld [vmem:[%s1 + $0x70] sm:$0xff]
  %v101 = vld [vmem:[%s1 + $0x78] sm:$0xff]
  %v102 = vld [vmem:[%s1 + $0x80] sm:$0xff]
  %v103 = vld [vmem:[%s1 + $0x88] sm:$0xff]
  %v104 = vld [vmem:[%s1 + $0x90] sm:$0xff]
  %v105 = vld [vmem:[%s1 + $0x98] sm:$0xff]
  %v106 = vld [vmem:[%s1 + $0xa0] sm:$0xff]
  %v107 = vld [vmem:[%s1 + $0xa8] sm:$0xff]
  %v108 = vld [vmem:[%s1 + $0xb0] sm:$0xff]
  %v109 = vld [vmem:[%s1 + $0xb8] sm:$0xff]
  %v110 = vld [vmem:[%s1 + $0xc0] sm:$0xff]
  %v111 = vld [vmem:[%s1 + $0xc8] sm:$0xff]
  %v112 = vld [vmem:[%s1 + $0xd0] sm:$0xff]
  %v113 = vld [vmem:[%s1 + $0xd8] sm:$0xff]
  %v114 = vld [vmem:[%s1 + $0xe0] sm:$0xff]
  %v115 = vld [vmem:[%s1 + $0xe8] sm:$0xff]
  %v116 = vld [vmem:[%s1 + $0xf0] sm:$0xff]
  %v117 = vld [vmem:[%s1 + $0xf8] sm:$0xff]
  %v118 = vld [vmem:[%s1 + $0x100] sm:$0xff]
  %v119 = vld [vmem:[%s1 + $0x108] sm:$0xff]
  %v120 = vld [vmem:[%s1 + $0x110] sm:$0xff]
  %v121 = vld [vmem:[%s1 + $0x118] sm:$0xff]
  %v122 = vld [vmem:[%s1 + $0x120] sm:$0xff]
  %v123 = vld [vmem:[%s1 + $0x128] sm:$0xff]
  %v124 = vld [vmem:[%s1 + $0x130] sm:$0xff]
  %v125 = vld [vmem:[%s1 + $0x138] sm:$0xff]
  %v126 = vld [vmem:[%s1 + $0x140] sm:$0xff]
  %v127 = vld [vmem:[%s1 + $0x148] sm:$0xff]
  %v128 = vld [vmem:[%s1 + $0x150] sm:$0xff]
  %v129 = vld [vmem:[%s1 + $0x158] sm:$0xff]
  %v130 = vld [vmem:[%s1 + $0x160] sm:$0xff]
  %v131 = vld [vmem:[%s1 + $0x168] sm:$0xff]
  %v132 = vld [vmem:[%s1 + $0x170] sm:$0xff]
  %v133 = vld [vmem:[%s1 + $0x178] sm:$0xff]
  %v134 = vld [vmem:[%s1 + $0x180] sm:$0xff]
  %v135 = vld [vmem:[%s1 + $0x188] sm:$0xff]
  %v136 = vld [vmem:[%s1 + $0x190] sm:$0xff]
  %v137 = vld [vmem:[%s1 + $0x198] sm:$0xff]
  %v138 = vld [vmem:[%s1 + $0x1a0] sm:$0xff]
  %v139 = vld [vmem:[%s1 + $0x1a8] sm:$0xff]
  %v140 = vld [vmem:[%s1 + $0x1b0] sm:$0xff]
  %v141 = vld [vmem:[%s1 + $0x1b8] sm:$0xff]
  %v142 = vld [vmem:[%s1 + $0x1c0] sm:$0xff]
  %v143 = vld [vmem:[%s1 + $0x1c8] sm:$0xff]
  %v144 = vld [vmem:[%s1 + $0x1d0] sm:$0xff]
  %v145 = vld [vmem:[%s1 + $0x1d8] sm:$0xff]
  %v146 = vld [vmem:[%s1 + $0x1e0] sm:$0xff]
  %v147 = vld [vmem:[%s1 + $0x1e8] sm:$0xff]
  %v148 = vld [vmem:[%s1 + $0x1f0] sm:$0xff]
  %v149 = vld [vmem:[%s1 + $0x1f8] sm:$0xff]
  %v150 = vld [vmem:[%s1 + $0x200] sm:$0xff]
  %v151 = vld [vmem:[%s1 + $0x208] sm:$0xff]
  %v152 = vld [vmem:[%s1 + $0x210] sm:$0xff]
  %v153 = vld [vmem:[%s1 + $0x218] sm:$0xff]
  %v154 = vld [vmem:[%s1 + $0x220] sm:$0xff]
  %v155 = vld [vmem:[%s1 + $0x228] sm:$0xff]
  %v156 = vld [vmem:[%s1 + $0x230] sm:$0xff]
  %v157 = vld [vmem:[%s1 + $0x238] sm:$0xff]
  %v158 = vld [vmem:[%s1 + $0x240] sm:$0xff]
  %v159 = vld [vmem:[%s1 + $0x248] sm:$0xff]
  %v160 = vld [vmem:[%s1 + $0x250] sm:$0xff]
  %v161 = vld [vmem:[%s1 + $0x258] sm:$0xff]
  %v162 = vld [vmem:[%s1 + $0x260] sm:$0xff]
  %v163 = vld [vmem:[%s1 + $0x268] sm:$0xff]
  %v164 = vld [vmem:[%s1 + $0x270] sm:$0xff]
  %v165 = vld [vmem:[%s1 + $0x278] sm:$0xff]
  %v166 = vld [vmem:[%s1 + $0x280] sm:$0xff]
  %v167 = vld [vmem:[%s1 + $0x288] sm:$0xff]
  %v168 = vld [vmem:[%s1 + $0x290] sm:$0xff]
  %v169 = vld [vmem:[%s1 + $0x298] sm:$0xff]
  %v170 = vld [vmem:[%s1 + $0x2a0] sm:$0xff]
  %v171 = vld [vmem:[%s1 + $0x2a8] sm:$0xff]
  %v172 = vld [vmem:[%s1 + $0x2b0] sm:$0xff]
  %v173 = vld [vmem:[%s1 + $0x2b8] sm:$0xff]
  %v174 = vld [vmem:[%s1 + $0x2c0] sm:$0xff]
  %v175 = vld [vmem:[%s1 + $0x2c8] sm:$0xff]
  %v176 = vld [vmem:[%s1 + $0x2d0] sm:$0xff]
  %v177 = vld [vmem:[%s1 + $0x2d8] sm:$0xff]
  %v178 = vld [vmem:[%s1 + $0x2e0] sm:$0xff]
  %v179 = vld [vmem:[%s1 + $0x2e8] sm:$0xff]
  %v180 = vld [vmem:[%s1 + $0x2f0] sm:$0xff]
  %v181 = vld [vmem:[%s1 + $0x2f8] sm:$0xff]
  %v182 = vld [vmem:[%s1 + $0x300] sm:$0xff]
  %v183 = vld [vmem:[%s1 + $0x308] sm:$0xff]
  %v184 = vld [vmem:[%s1 + $0x310] sm:$0xff]
  %v185 = vld [vmem:[%s1 + $0x318] sm:$0xff]
  %v186 = vld [vmem:[%s1 + $0x320] sm:$0xff]
  %v187 = vld [vmem:[%s1 + $0x328] sm:$0xff]
  %v188 = vld [vmem:[%s1 + $0x330] sm:$0xff]
  %v189 = vld [vmem:[%s1 + $0x338] sm:$0xff]
  %v190 = vld [vmem:[%s1 + $0x340] sm:$0xff]
  %v191 = vld [vmem:[%s1 + $0x348] sm:$0xff]
  %v192 = vld [vmem:[%s1 + $0x350] sm:$0xff]
  %v193 = vld [vmem:[%s1 + $0x358] sm:$0xff]
  %v194 = vld [vmem:[%s1 + $0x360] sm:$0xff]
  %v195 = vld [vmem:[%s1 + $0x368] sm:$0xff]
  %v196 = vld [vmem:[%s1 + $0x370] sm:$0xff]
  %v197 = vld [vmem:[%s1 + $0x378] sm:$0xff]
  %v198 = vld [vmem:[%s1 + $0x380] sm:$0xff]
  %v199 = vld [vmem:[%s1 + $0x388] sm:$0xff]
  %v200 = vld [vmem:[%s1 + $0x390] sm:$0xff]
  %v201 = vld [vmem:[%s1 + $0x398] sm:$0xff]
  %v202 = vld [vmem:[%s1 + $0x3a0] sm:$0xff]
  %v203 = vld [vmem:[%s1 + $0x3a8] sm:$0xff]
  %v204 = vld [vmem:[%s1 + $0x3b0] sm:$0xff]
  %v205 = vld [vmem:[%s1 + $0x3b8] sm:$0xff]
  %v206 = vld [vmem:[%s1 + $0x3c0] sm:$0xff]
  %v207 = vld [vmem:[%s1 + $0x3c8] sm:$0xff]
  %v208 = vld [vmem:[%s1 + $0x3d0] sm:$0xff]
  %v209 = vld [vmem:[%s1 + $0x3d8] sm:$0xff]
  %v210 = vld [vmem:[%s1 + $0x3e0] sm:$0xff]
  %v211 = vld [vmem:[%s1 + $0x3e8] sm:$0xff]
  %v212 = vld [vmem:[%s1 + $0x3f0] sm:$0xff]
  %v213 = vld [vmem:[%s1 + $0x3f8] sm:$0xff]
  %v214 = vld [vmem:[%s1 + $0x400] sm:$0xff]
  %v215 = vld [vmem:[%s1 + $0x408] sm:$0xff]
  %v216 = vld [vmem:[%s1 + $0x410] sm:$0xff]
  %v217 = vld [vmem:[%s1 + $0x418] sm:$0xff]
  %v218 = vld [vmem:[%s1 + $0x420] sm:$0xff]
  %v219 = vld [vmem:[%s1 + $0x428] sm:$0xff]
  %v220 = vld [vmem:[%s1 + $0x430] sm:$0xff]
  %v221 = vld [vmem:[%s1 + $0x438] sm:$0xff]
  %v222 = vld [vmem:[%s1 + $0x440] sm:$0xff]
  %v223 = vld [vmem:[%s1 + $0x448] sm:$0xff]
  %v224 = vld [vmem:[%s1 + $0x450] sm:$0xff]
  %v225 = vld [vmem:[%s1 + $0x458] sm:$0xff]
  %v226 = vld [vmem:[%s1 + $0x460] sm:$0xff]
  %v227 = vld [vmem:[%s1 + $0x468] sm:$0xff]
  %v228 = vld [vmem:[%s1 + $0x470] sm:$0xff]
  %v229 = vld [vmem:[%s1 + $0x478] sm:$0xff]
  %v230 = vld [vmem:[%s1 + $0x480] sm:$0xff]
  %v231 = vld [vmem:[%s1 + $0x488] sm:$0xff]
  %v232 = vld [vmem:[%s1 + $0x490] sm:$0xff]
  %v233 = vld [vmem:[%s1 + $0x498] sm:$0xff]
  %v234 = vld [vmem:[%s1 + $0x4a0] sm:$0xff]
  %v235 = vld [vmem:[%s1 + $0x4a8] sm:$0xff]
  %v236 = vld [vmem:[%s1 + $0x4b0] sm:$0xff]
  %v237 = vld [vmem:[%s1 + $0x4b8] sm:$0xff]
  %v238 = vld [vmem:[%s1 + $0x4c0] sm:$0xff]
  %v239 = vld [vmem:[%s1 + $0x4c8] sm:$0xff]
  %v240 = vld [vmem:[%s1 + $0x4d0] sm:$0xff]
  %v241 = vld [vmem:[%s1 + $0x4d8] sm:$0xff]
  %v242 = vld [vmem:[%s1 + $0x4e0] sm:$0xff]
  %v243 = vld [vmem:[%s1 + $0x4e8] sm:$0xff]
  %v244 = vld [vmem:[%s1 + $0x4f0] sm:$0xff]
  %v245 = vld [vmem:[%s1 + $0x4f8] sm:$0xff]
  %v246 = vld [vmem:[%s1 + $0x500] sm:$0xff]
  %v247 = vld [vmem:[%s1 + $0x508] sm:$0xff]
  %v248 = vld [vmem:[%s1 + $0x510] sm:$0xff]
  %v249 = vld [vmem:[%s1 + $0x518] sm:$0xff]
  %v250 = vld [vmem:[%s1 + $0x520] sm:$0xff]
  %v251 = vld [vmem:[%s1 + $0x528] sm:$0xff]
  %v252 = vld [vmem:[%s1 + $0x530] sm:$0xff]
  %v253 = vld [vmem:[%s1 + $0x538] sm:$0xff]
  %v254 = vld [vmem:[%s1 + $0x540] sm:$0xff]
  %v255 = vld [vmem:[%s1 + $0x548] sm:$0xff]
  %v256 = vld [vmem:[%s1 + $0x550] sm:$0xff]
  %v257 = vld [vmem:[%s1 + $0x558] sm:$0xff]
  %v258 = vld [vmem:[%s1 + $0x560] sm:$0xff]
  %v259 = vld [vmem:[%s1 + $0x568] sm:$0xff]
  %v260 = vld [vmem:[%s1 + $0x570] sm:$0xff]
  %v261 = vld [vmem:[%s1 + $0x578] sm:$0xff]
  %v262 = vld [vmem:[%s1 + $0x580] sm:$0xff]
  %v263 = vld [vmem:[%s1 + $0x588] sm:$0xff]
  %v264 = vld [vmem:[%s1 + $0x590] sm:$0xff]
  %v265 = vld [vmem:[%s1 + $0x598] sm:$0xff]
  %v266 = vld [vmem:[%s1 + $0x5a0] sm:$0xff]
  %v267 = vld [vmem:[%s1 + $0x5a8] sm:$0xff]
  %v268 = vld [vmem:[%s1 + $0x5b0] sm:$0xff]
  %v269 = vld [vmem:[%s1 + $0x5b8] sm:$0xff]
  %v270 = vld [vmem:[%s1 + $0x5c0] sm:$0xff]
  %v271 = vld [vmem:[%s1 + $0x5c8] sm:$0xff]
  %v272 = vld [vmem:[%s1 + $0x5d0] sm:$0xff]
  %v273 = vld [vmem:[%s1 + $0x5d8] sm:$0xff]
  %v274 = vld [vmem:[%s1 + $0x5e0] sm:$0xff]
  %v275 = vld [vmem:[%s1 + $0x5e8] sm:$0xff]
  %v276 = vld [vmem:[%s1 + $0x5f0] sm:$0xff]
  %v277 = vld [vmem:[%s1 + $0x5f8] sm:$0xff]
  %v278 = vld [vmem:[%s1 + $0x600] sm:$0xff]
  %v279 = vld [vmem:[%s1 + $0x608] sm:$0xff]
  %v280 = vld [vmem:[%s1 + $0x610] sm:$0xff]
  %v281 = vld [vmem:[%s1 + $0x618] sm:$0xff]
  %v282 = vld [vmem:[%s1 + $0x620] sm:$0xff]
  %v283 = vld [vmem:[%s1 + $0x628] sm:$0xff]
  %v284 = vld [vmem:[%s1 + $0x630] sm:$0xff]
  %v285 = vld [vmem:[%s1 + $0x638] sm:$0xff]
  %v286 = vld [vmem:[%s1 + $0x640] sm:$0xff]
  %v287 = vld [vmem:[%s1 + $0x648] sm:$0xff]
  %v288 = vld [vmem:[%s1 + $0x650] sm:$0xff]
  %v289 = vld [vmem:[%s1 + $0x658] sm:$0xff]
  %v290 = vld [vmem:[%s1 + $0x660] sm:$0xff]
  %v291 = vld [vmem:[%s1 + $0x668] sm:$0xff]
  %v292 = vld [vmem:[%s1 + $0x670] sm:$0xff]
  %v293 = vld [vmem:[%s1 + $0x678] sm:$0xff]
  %v294 = vld [vmem:[%s1 + $0x680] sm:$0xff]
  %v295 = vld [vmem:[%s1 + $0x688] sm:$0xff]
  %v296 = vld [vmem:[%s1 + $0x690] sm:$0xff]
  %v297 = vld [vmem:[%s1 + $0x698] sm:$0xff]
  %v298 = vld [vmem:[%s1 + $0x6a0] sm:$0xff]
  %v299 = vld [vmem:[%s1 + $0x6a8] sm:$0xff]
  %v300 = vld [vmem:[%s1 + $0x6b0] sm:$0xff]
  %v301 = vld [vmem:[%s1 + $0x6b8] sm:$0xff]
  %v302 = vld [vmem:[%s1 + $0x6c0] sm:$0xff]
  %v303 = vld [vmem:[%s1 + $0x6c8] sm:$0xff]
  %v304 = vld [vmem:[%s1 + $0x6d0] sm:$0xff]
  %v305 = vld [vmem:[%s1 + $0x6d8] sm:$0xff]
  %v306 = vld [vmem:[%s1 + $0x6e0] sm:$0xff]
  %v307 = vld [vmem:[%s1 + $0x6e8] sm:$0xff]
  %v308 = vld [vmem:[%s1 + $0x6f0] sm:$0xff]
  %v309 = vld [vmem:[%s1 + $0x6f8] sm:$0xff]
  %v310 = vld [vmem:[%s1 + $0x700] sm:$0xff]
  %v311 = vld [vmem:[%s1 + $0x708] sm:$0xff]
  %v312 = vld [vmem:[%s1 + $0x710] sm:$0xff]
  %v313 = vld [vmem:[%s1 + $0x718] sm:$0xff]
  %v314 = vld [vmem:[%s1 + $0x720] sm:$0xff]
  %v315 = vld [vmem:[%s1 + $0x728] sm:$0xff]
  %v316 = vld [vmem:[%s1 + $0x730] sm:$0xff]
  %v317 = vld [vmem:[%s1 + $0x738] sm:$0xff]
  %v318 = vld [vmem:[%s1 + $0x740] sm:$0xff]
  %v319 = vld [vmem:[%s1 + $0x748] sm:$0xff]
  %v320 = vld [vmem:[%s1 + $0x750] sm:$0xff]
  %v321 = vld [vmem:[%s1 + $0x758] sm:$0xff]
  %v322 = vld [vmem:[%s1 + $0x760] sm:$0xff]
  %v323 = vld [vmem:[%s1 + $0x768] sm:$0xff]
  %v324 = vld [vmem:[%s1 + $0x770] sm:$0xff]
  %v325 = vld [vmem:[%s1 + $0x778] sm:$0xff]
  %v326 = vld [vmem:[%s1 + $0x780] sm:$0xff]
  %v327 = vld [vmem:[%s1 + $0x788] sm:$0xff]
  %v328 = vld [vmem:[%s1 + $0x790] sm:$0xff]
  %v329 = vld [vmem:[%s1 + $0x798] sm:$0xff]
  %v330 = vld [vmem:[%s1 + $0x7a0] sm:$0xff]
  %v331 = vld [vmem:[%s1 + $0x7a8] sm:$0xff]
  %v332 = vld [vmem:[%s1 + $0x7b0] sm:$0xff]
  %v333 = vld [vmem:[%s1 + $0x7b8] sm:$0xff]
  %v334 = vld [vmem:[%s1 + $0x7c0] sm:$0xff]
  %v335 = vld [vmem:[%s1 + $0x7c8] sm:$0xff]
  %v336 = vld [vmem:[%s1 + $0x7d0] sm:$0xff]
  %v337 = vld [vmem:[%s1 + $0x7d8] sm:$0xff]
  %v338 = vld [vmem:[%s1 + $0x7e0] sm:$0xff]
  %v339 = vld [vmem:[%s1 + $0x7e8] sm:$0xff]
  %v340 = vld [vmem:[%s1 + $0x7f0] sm:$0xff]
  %v341 = vld [vmem:[%s1 + $0x7f8] sm:$0xff]
  %v342 = vld [vmem:[%s1 + $0x800] sm:$0xff]
  %v343 = vld [vmem:[%s1 + $0x808] sm:$0xff]
  %v344 = vld [vmem:[%s1 + $0x810] sm:$0xff]
  %v345 = vld [vmem:[%s1 + $0x818] sm:$0xff]
  %v346 = vld [vmem:[%s1 + $0x820] sm:$0xff]
  %v347 = vld [vmem:[%s1 + $0x828] sm:$0xff]
  %v348 = vld [vmem:[%s1 + $0x830] sm:$0xff]
  %v349 = vld [vmem:[%s1 + $0x838] sm:$0xff]
  %v350 = vld [vmem:[%s1 + $0x840] sm:$0xff]
  %v351 = vld [vmem:[%s1 + $0x848] sm:$0xff]
  %v352 = vld [vmem:[%s1 + $0x850] sm:$0xff]
  %v353 = vld [vmem:[%s1 + $0x858] sm:$0xff]
  %v354 = vld [vmem:[%s1 + $0x860] sm:$0xff]
  %v355 = vld [vmem:[%s1 + $0x868] sm:$0xff]
  %v356 = vld [vmem:[%s1 + $0x870] sm:$0xff]
  %v357 = vld [vmem:[%s1 + $0x878] sm:$0xff]
  %v358 = vld [vmem:[%s1 + $0x880] sm:$0xff]
  %v359 = vld [vmem:[%s1 + $0x888] sm:$0xff]
  %v360 = vld [vmem:[%s1 + $0x890] sm:$0xff]
  %v361 = vld [vmem:[%s1 + $0x898] sm:$0xff]
  %v362 = vld [vmem:[%s1 + $0x8a0] sm:$0xff]
  %v363 = vld [vmem:[%s1 + $0x8a8] sm:$0xff]
  %v364 = vld [vmem:[%s1 + $0x8b0] sm:$0xff]
  %v365 = vld [vmem:[%s1 + $0x8b8] sm:$0xff]
  %v366 = vld [vmem:[%s1 + $0x8c0] sm:$0xff]
  %v367 = vld [vmem:[%s1 + $0x8c8] sm:$0xff]
  %v368 = vld [vmem:[%s1 + $0x8d0] sm:$0xff]
  %v369 = vld [vmem:[%s1 + $0x8d8] sm:$0xff]
  %v370 = vld [vmem:[%s1 + $0x8e0] sm:$0xff]
  %v371 = vld [vmem:[%s1 + $0x8e8] sm:$0xff]
  %v372 = vld [vmem:[%s1 + $0x8f0] sm:$0xff]
  %v373 = vld [vmem:[%s1 + $0x8f8] sm:$0xff]
  %v374 = vld [vmem:[%s1 + $0x900] sm:$0xff]
  %v375 = vld [vmem:[%s1 + $0x908] sm:$0xff]
  %v376 = vld [vmem:[%s1 + $0x910] sm:$0xff]
  %v377 = vld [vmem:[%s1 + $0x918] sm:$0xff]
  %v378 = vld [vmem:[%s1 + $0x920] sm:$0xff]
  %v379 = vld [vmem:[%s1 + $0x928] sm:$0xff]
  %v380 = vld [vmem:[%s1 + $0x930] sm:$0xff]
  %v381 = vld [vmem:[%s1 + $0x938] sm:$0xff]
  %v382 = vld [vmem:[%s1 + $0x940] sm:$0xff]
  %v383 = vld [vmem:[%s1 + $0x948] sm:$0xff]
  %v384 = vld [vmem:[%s1 + $0x950] sm:$0xff]
  %v385 = vld [vmem:[%s1 + $0x958] sm:$0xff]
  %v386 = vld [vmem:[%s1 + $0x960] sm:$0xff]
  %v387 = vld [vmem:[%s1 + $0x968] sm:$0xff]
  %v388 = vld [vmem:[%s1 + $0x970] sm:$0xff]
  %v389 = vld [vmem:[%s1 + $0x978] sm:$0xff]
  %v390 = vld [vmem:[%s1 + $0x980] sm:$0xff]
  %v391 = vld [vmem:[%s1 + $0x988] sm:$0xff]
  %v392 = vld [vmem:[%s1 + $0x990] sm:$0xff]
  %v393 = vld [vmem:[%s1 + $0x998] sm:$0xff]
  %v394 = vld [vmem:[%s1 + $0x9a0] sm:$0xff]
  %v395 = vld [vmem:[%s1 + $0x9a8] sm:$0xff]
  %v396 = vld [vmem:[%s1 + $0x9b0] sm:$0xff]
  %v397 = vld [vmem:[%s1 + $0x9b8] sm:$0xff]
  %v398 = vld [vmem:[%s1 + $0x9c0] sm:$0xff]
  %v399 = vld [vmem:[%s1 + $0x9c8] sm:$0xff]
  %v400 = vld [vmem:[%s1 + $0x9d0] sm:$0xff]
  %v401 = vld [vmem:[%s1 + $0x9d8] sm:$0xff]
  %v402 = vld [vmem:[%s1 + $0x9e0] sm:$0xff]
  %v403 = vld [vmem:[%s1 + $0x9e8] sm:$0xff]
  %v404 = vld [vmem:[%s1 + $0x9f0] sm:$0xff]
  %v405 = vld [vmem:[%s1 + $0x9f8] sm:$0xff]
  %v406 = vld [vmem:[%s1 + $0xa00] sm:$0xff]
  %v407 = vld [vmem:[%s1 + $0xa08] sm:$0xff]
  %v408 = vld [vmem:[%s1 + $0xa10] sm:$0xff]
  %v409 = vld [vmem:[%s1 + $0xa18] sm:$0xff]
  %v410 = vld [vmem:[%s1 + $0xa20] sm:$0xff]
  %v411 = vld [vmem:[%s1 + $0xa28] sm:$0xff]
  %v412 = vld [vmem:[%s1 + $0xa30] sm:$0xff]
  %v413 = vld [vmem:[%s1 + $0xa38] sm:$0xff]
  %v414 = vld [vmem:[%s1 + $0xa40] sm:$0xff]
  %v415 = vld [vmem:[%s1 + $0xa48] sm:$0xff]
  %v416 = vld [vmem:[%s1 + $0xa50] sm:$0xff]
  %v417 = vld [vmem:[%s1 + $0xa58] sm:$0xff]
  %v418 = vld [vmem:[%s1 + $0xa60] sm:$0xff]
  %v419 = vld [vmem:[%s1 + $0xa68] sm:$0xff]
  %v420 = vld [vmem:[%s1 + $0xa70] sm:$0xff]
  %v421 = vld [vmem:[%s1 + $0xa78] sm:$0xff]
  %v422 = vld [vmem:[%s1 + $0xa80] sm:$0xff]
  %v423 = vld [vmem:[%s1 + $0xa88] sm:$0xff]
  %v424 = vld [vmem:[%s1 + $0xa90] sm:$0xff]
  %v425 = vld [vmem:[%s1 + $0xa98] sm:$0xff]
  %v426 = vld [vmem:[%s1 + $0xaa0] sm:$0xff]
  %v427 = vld [vmem:[%s1 + $0xaa8] sm:$0xff]
  %v428 = vld [vmem:[%s1 + $0xab0] sm:$0xff]
  %v429 = vld [vmem:[%s1 + $0xab8] sm:$0xff]
  %v430 = vld [vmem:[%s1 + $0xac0] sm:$0xff]
  %v431 = vld [vmem:[%s1 + $0xac8] sm:$0xff]
  %v432 = vld [vmem:[%s1 + $0xad0] sm:$0xff]
  %v433 = vld [vmem:[%s1 + $0xad8] sm:$0xff]
  %v434 = vld [vmem:[%s1 + $0xae0] sm:$0xff]
  %v435 = vld [vmem:[%s1 + $0xae8] sm:$0xff]
  %v436 = vld [vmem:[%s1 + $0xaf0] sm:$0xff]
  %v437 = vld [vmem:[%s1 + $0xaf8] sm:$0xff]
  %v438 = vld [vmem:[%s1 + $0xb00] sm:$0xff]
  %v439 = vld [vmem:[%s1 + $0xb08] sm:$0xff]
  %v440 = vld [vmem:[%s1 + $0xb10] sm:$0xff]
  %v441 = vld [vmem:[%s1 + $0xb18] sm:$0xff]
  %v442 = vld [vmem:[%s1 + $0xb20] sm:$0xff]
  %v443 = vld [vmem:[%s1 + $0xb28] sm:$0xff]
  %v444 = vld [vmem:[%s1 + $0xb30] sm:$0xff]
  %v445 = vld [vmem:[%s1 + $0xb38] sm:$0xff]
  %v446 = vld [vmem:[%s1 + $0xb40] sm:$0xff]
  %v447 = vld [vmem:[%s1 + $0xb48] sm:$0xff]
  %v448 = vld [vmem:[%s1 + $0xb50] sm:$0xff]
  %v449 = vld [vmem:[%s1 + $0xb58] sm:$0xff]
  %v450 = vld [vmem:[%s1 + $0xb60] sm:$0xff]
  %v451 = vld [vmem:[%s1 + $0xb68] sm:$0xff]
  %v452 = vld [vmem:[%s1 + $0xb70] sm:$0xff]
  %v453 = vld [vmem:[%s1 + $0xb78] sm:$0xff]
  %v454 = vld [vmem:[%s1 + $0xb80] sm:$0xff]
  %v455 = vld [vmem:[%s1 + $0xb88] sm:$0xff]
  %v456 = vld [vmem:[%s1 + $0xb90] sm:$0xff]
  %v457 = vld [vmem:[%s1 + $0xb98] sm:$0xff]
  %v458 = vld [vmem:[%s1 + $0xba0] sm:$0xff]
  %v459 = vld [vmem:[%s1 + $0xba8] sm:$0xff]
  %v460 = vld [vmem:[%s1 + $0xbb0] sm:$0xff]
  %v461 = vld [vmem:[%s1 + $0xbb8] sm:$0xff]
  %v462 = vld [vmem:[%s1 + $0xbc0] sm:$0xff]
  %v463 = vld [vmem:[%s1 + $0xbc8] sm:$0xff]
  %v464 = vld [vmem:[%s1 + $0xbd0] sm:$0xff]
  %v465 = vld [vmem:[%s1 + $0xbd8] sm:$0xff]
  %v466 = vld [vmem:[%s1 + $0xbe0] sm:$0xff]
  %v467 = vld [vmem:[%s1 + $0xbe8] sm:$0xff]
  %v468 = vld [vmem:[%s1 + $0xbf0] sm:$0xff]
  %v469 = vld [vmem:[%s1 + $0xbf8] sm:$0xff]
  %v470 = vld [vmem:[%s1 + $0xc00] sm:$0xff]
  %v471 = vld [vmem:[%s1 + $0xc08] sm:$0xff]
  %v472 = vld [vmem:[%s1 + $0xc10] sm:$0xff]
  %v473 = vld [vmem:[%s1 + $0xc18] sm:$0xff]
  %v474 = vld [vmem:[%s1 + $0xc20] sm:$0xff]
  %v475 = vld [vmem:[%s1 + $0xc28] sm:$0xff]
  %v476 = vld [vmem:[%s1 + $0xc30] sm:$0xff]
  %v477 = vld [vmem:[%s1 + $0xc38] sm:$0xff]
  %v478 = vld [vmem:[%s1 + $0xc40] sm:$0xff]
  %v479 = vld [vmem:[%s1 + $0xc48] sm:$0xff]
  %v480 = vld [vmem:[%s1 + $0xc50] sm:$0xff]
  %v481 = vld [vmem:[%s1 + $0xc58] sm:$0xff]
  %v482 = vld [vmem:[%s1 + $0xc60] sm:$0xff]
  %v483 = vld [vmem:[%s1 + $0xc68] sm:$0xff]
  %v484 = vld [vmem:[%s1 + $0xc70] sm:$0xff]
  %v485 = vld [vmem:[%s1 + $0xc78] sm:$0xff]
  %v486 = vld [vmem:[%s1 + $0xc80] sm:$0xff]
  %v487 = vld [vmem:[%s1 + $0xc88] sm:$0xff]
  %v488 = vld [vmem:[%s1 + $0xc90] sm:$0xff]
  %v489 = vld [vmem:[%s1 + $0xc98] sm:$0xff]
  %v490 = vld [vmem:[%s1 + $0xca0] sm:$0xff]
  %v491 = vld [vmem:[%s1 + $0xca8] sm:$0xff]
  %v492 = vld [vmem:[%s1 + $0xcb0] sm:$0xff]
  %v493 = vld [vmem:[%s1 + $0xcb8] sm:$0xff]
  %v494 = vld [vmem:[%s1 + $0xcc0] sm:$0xff]
  %v495 = vld [vmem:[%s1 + $0xcc8] sm:$0xff]
  %v496 = vld [vmem:[%s1 + $0xcd0] sm:$0xff]
  %v497 = vld [vmem:[%s1 + $0xcd8] sm:$0xff]
  %v498 = vld [vmem:[%s1 + $0xce0] sm:$0xff]
  %v499 = vld [vmem:[%s1 + $0xce8] sm:$0xff]
  %v500 = vld [vmem:[%s1 + $0xcf0] sm:$0xff]
  %v501 = vld [vmem:[%s1 + $0xcf8] sm:$0xff]
  %v502 = vld [vmem:[%s1 + $0xd00] sm:$0xff]
  %v503 = vld [vmem:[%s1 + $0xd08] sm:$0xff]
  %v504 = vld [vmem:[%s1 + $0xd10] sm:$0xff]
  %v505 = vld [vmem:[%s1 + $0xd18] sm:$0xff]
  %v506 = vld [vmem:[%s1 + $0xd20] sm:$0xff]
  %v507 = vld [vmem:[%s1 + $0xd28] sm:$0xff]
  %v508 = vld [vmem:[%s1 + $0xd30] sm:$0xff]
  %v509 = vld [vmem:[%s1 + $0xd38] sm:$0xff]
  %v510 = vld [vmem:[%s1 + $0xd40] sm:$0xff]
  %v511 = vld [vmem:[%s1 + $0xd48] sm:$0xff]
  %v512 = vld [vmem:[%s1 + $0xd50] sm:$0xff]
  %v513 = vld [vmem:[%s1 + $0xd58] sm:$0xff]
  %v514 = vld [vmem:[%s1 + $0xd60] sm:$0xff]
  %v515 = vld [vmem:[%s1 + $0xd68] sm:$0xff]
  %v516 = vld [vmem:[%s1 + $0xd70] sm:$0xff]
  %v517 = vld [vmem:[%s1 + $0xd78] sm:$0xff]
  %v518 = vld [vmem:[%s1 + $0xd80] sm:$0xff]
  %v519 = vld [vmem:[%s1 + $0xd88] sm:$0xff]
  %v520 = vld [vmem:[%s1 + $0xd90] sm:$0xff]
  %v521 = vld [vmem:[%s1 + $0xd98] sm:$0xff]
  %v522 = vld [vmem:[%s1 + $0xda0] sm:$0xff]
  %v523 = vld [vmem:[%s1 + $0xda8] sm:$0xff]
  %v524 = vld [vmem:[%s1 + $0xdb0] sm:$0xff]
  %v525 = vld [vmem:[%s1 + $0xdb8] sm:$0xff]
  %v526 = vld [vmem:[%s1 + $0xdc0] sm:$0xff]
  %v527 = vld [vmem:[%s1 + $0xdc8] sm:$0xff]
  %v528 = vld [vmem:[%s1 + $0xdd0] sm:$0xff]
  %v529 = vld [vmem:[%s1 + $0xdd8] sm:$0xff]
  %v530 = vld [vmem:[%s1 + $0xde0] sm:$0xff]
  %v531 = vld [vmem:[%s1 + $0xde8] sm:$0xff]
  %v532 = vld [vmem:[%s1 + $0xdf0] sm:$0xff]
  %v533 = vld [vmem:[%s1 + $0xdf8] sm:$0xff]
  %v534 = vld [vmem:[%s1 + $0xe00] sm:$0xff]
  %v535 = vld [vmem:[%s1 + $0xe08] sm:$0xff]
  %v536 = vld [vmem:[%s1 + $0xe10] sm:$0xff]
  %v537 = vld [vmem:[%s1 + $0xe18] sm:$0xff]
  %v538 = vld [vmem:[%s1 + $0xe20] sm:$0xff]
  %v539 = vld [vmem:[%s1 + $0xe28] sm:$0xff]
  %v540 = vld [vmem:[%s1 + $0xe30] sm:$0xff]
  %v541 = vld [vmem:[%s1 + $0xe38] sm:$0xff]
  %v542 = vld [vmem:[%s1 + $0xe40] sm:$0xff]
  %v543 = vld [vmem:[%s1 + $0xe48] sm:$0xff]
  %v544 = vld [vmem:[%s1 + $0xe50] sm:$0xff]
  %v545 = vld [vmem:[%s1 + $0xe58] sm:$0xff]
  %v546 = vld [vmem:[%s1 + $0xe60] sm:$0xff]
  %v547 = vld [vmem:[%s1 + $0xe68] sm:$0xff]
  %v548 = vld [vmem:[%s1 + $0xe70] sm:$0xff]
  %v549 = vld [vmem:[%s1 + $0xe78] sm:$0xff]
  %v550 = vld [vmem:[%s1 + $0xe80] sm:$0xff]
  %v551 = vld [vmem:[%s1 + $0xe88] sm:$0xff]
  %v552 = vld [vmem:[%s1 + $0xe90] sm:$0xff]
  %v553 = vld [vmem:[%s1 + $0xe98] sm:$0xff]
  %v554 = vld [vmem:[%s1 + $0xea0] sm:$0xff]
  %v555 = vld [vmem:[%s1 + $0xea8] sm:$0xff]
  %v556 = vld [vmem:[%s1 + $0xeb0] sm:$0xff]
  %v557 = vld [vmem:[%s1 + $0xeb8] sm:$0xff]
  %v558 = vld [vmem:[%s1 + $0xec0] sm:$0xff]
  %v559 = vld [vmem:[%s1 + $0xec8] sm:$0xff]
  %v560 = vld [vmem:[%s1 + $0xed0] sm:$0xff]
  %v561 = vld [vmem:[%s1 + $0xed8] sm:$0xff]
  %v562 = vld [vmem:[%s1 + $0xee0] sm:$0xff]
  %v563 = vld [vmem:[%s1 + $0xee8] sm:$0xff]
  %v564 = vld [vmem:[%s1 + $0xef0] sm:$0xff]
  %v565 = vld [vmem:[%s1 + $0xef8] sm:$0xff]
  %v566 = vld [vmem:[%s1 + $0xf00] sm:$0xff]
  %v567 = vld [vmem:[%s1 + $0xf08] sm:$0xff]
  %v568 = vld [vmem:[%s1 + $0xf10] sm:$0xff]
  %v569 = vld [vmem:[%s1 + $0xf18] sm:$0xff]
  %v570 = vld [vmem:[%s1 + $0xf20] sm:$0xff]
  %v571 = vld [vmem:[%s1 + $0xf28] sm:$0xff]
  %v572 = vld [vmem:[%s1 + $0xf30] sm:$0xff]
  %v573 = vld [vmem:[%s1 + $0xf38] sm:$0xff]
  %v574 = vld [vmem:[%s1 + $0xf40] sm:$0xff]
  %v575 = vld [vmem:[%s1 + $0xf48] sm:$0xff]
  %v576 = vld [vmem:[%s1 + $0xf50] sm:$0xff]
  %v577 = vld [vmem:[%s1 + $0xf58] sm:$0xff]
  %v578 = vld [vmem:[%s1 + $0xf60] sm:$0xff]
  %v579 = vld [vmem:[%s1 + $0xf68] sm:$0xff]
  %v580 = vld [vmem:[%s1 + $0xf70] sm:$0xff]
  %v581 = vld [vmem:[%s1 + $0xf78] sm:$0xff]
  %v582 = vld [vmem:[%s1 + $0xf80] sm:$0xff]
  %v583 = vld [vmem:[%s1 + $0xf88] sm:$0xff]
  %v584 = vld [vmem:[%s1 + $0xf90] sm:$0xff]
  %v585 = vld [vmem:[%s1 + $0xf98] sm:$0xff]
  %v586 = vld [vmem:[%s1 + $0xfa0] sm:$0xff]
  %v587 = vld [vmem:[%s1 + $0xfa8] sm:$0xff]
  %v588 = vld [vmem:[%s1 + $0xfb0] sm:$0xff]
  %v589 = vld [vmem:[%s1 + $0xfb8] sm:$0xff]
  %v590 = vld [vmem:[%s1 + $0xfc0] sm:$0xff]
  %v591 = vld [vmem:[%s1 + $0xfc8] sm:$0xff]
  %v592 = vld [vmem:[%s1 + $0xfd0] sm:$0xff]
  %v593 = vld [vmem:[%s1 + $0xfd8] sm:$0xff]
  %v594 = vld [vmem:[%s1 + $0xfe0] sm:$0xff]
  %v595 = vld [vmem:[%s1 + $0xfe8] sm:$0xff]
  %v596 = vld [vmem:[%s1 + $0xff0] sm:$0xff]
  %v597 = vld [vmem:[%s1 + $0xff8] sm:$0xff]
  %v598 = vld [vmem:[%s1 + $0x1000] sm:$0xff]
  %v599 = vld [vmem:[%s1 + $0x1008] sm:$0xff]
  %v600 = vld [vmem:[%s1 + $0x1010] sm:$0xff]
  %v601 = vld [vmem:[%s1 + $0x1018] sm:$0xff]
  %v602 = vld [vmem:[%s1 + $0x1020] sm:$0xff]
  %v603 = vld [vmem:[%s1 + $0x1028] sm:$0xff]
  %v604 = vld [vmem:[%s1 + $0x1030] sm:$0xff]
  %v605 = vld [vmem:[%s1 + $0x1038] sm:$0xff]
  %v606 = vld [vmem:[%s1 + $0x1040] sm:$0xff]
  %v607 = vld [vmem:[%s1 + $0x1048] sm:$0xff]
  %v608 = vld [vmem:[%s1 + $0x1050] sm:$0xff]
  %v609 = vld [vmem:[%s1 + $0x1058] sm:$0xff]
  %v610 = vld [vmem:[%s1 + $0x1060] sm:$0xff]
  %v611 = vld [vmem:[%s1 + $0x1068] sm:$0xff]
  %v612 = vld [vmem:[%s1 + $0x1070] sm:$0xff]
  %v613 = vld [vmem:[%s1 + $0x1078] sm:$0xff]
  %v614 = vld [vmem:[%s1 + $0x1080] sm:$0xff]
  %v615 = vld [vmem:[%s1 + $0x1088] sm:$0xff]
  %v616 = vld [vmem:[%s1 + $0x1090] sm:$0xff]
  %v617 = vld [vmem:[%s1 + $0x1098] sm:$0xff]
  %v618 = vld [vmem:[%s1 + $0x10a0] sm:$0xff]
  %v619 = vld [vmem:[%s1 + $0x10a8] sm:$0xff]
  %v620 = vld [vmem:[%s1 + $0x10b0] sm:$0xff]
  %v621 = vld [vmem:[%s1 + $0x10b8] sm:$0xff]
  %v622 = vld [vmem:[%s1 + $0x10c0] sm:$0xff]
  %v623 = vld [vmem:[%s1 + $0x10c8] sm:$0xff]
  %v624 = vld [vmem:[%s1 + $0x10d0] sm:$0xff]
  %v625 = vld [vmem:[%s1 + $0x10d8] sm:$0xff]
  %v626 = vld [vmem:[%s1 + $0x10e0] sm:$0xff]
  %v627 = vld [vmem:[%s1 + $0x10e8] sm:$0xff]
  %v628 = vld [vmem:[%s1 + $0x10f0] sm:$0xff]
  %v629 = vld [vmem:[%s1 + $0x10f8] sm:$0xff]
  %v630 = vld [vmem:[%s1 + $0x1100] sm:$0xff]
  %v631 = vld [vmem:[%s1 + $0x1108] sm:$0xff]
  %v632 = vld [vmem:[%s1 + $0x1110] sm:$0xff]
  %v633 = vld [vmem:[%s1 + $0x1118] sm:$0xff]
  %v634 = vld [vmem:[%s1 + $0x1120] sm:$0xff]
  %v635 = vld [vmem:[%s1 + $0x1128] sm:$0xff]
  %v636 = vld [vmem:[%s1 + $0x1130] sm:$0xff]
  %v637 = vld [vmem:[%s1 + $0x1138] sm:$0xff]
  %v638 = vld [vmem:[%s1 + $0x1140] sm:$0xff]
  %v639 = vld [vmem:[%s1 + $0x1148] sm:$0xff]
  %v640 = vld [vmem:[%s1 + $0x1150] sm:$0xff]
  %v641 = vld [vmem:[%s1 + $0x1158] sm:$0xff]
  %v642 = vld [vmem:[%s1 + $0x1160] sm:$0xff]
  %v643 = vld [vmem:[%s1 + $0x1168] sm:$0xff]
  %v644 = vld [vmem:[%s1 + $0x1170] sm:$0xff]
  %v645 = vld [vmem:[%s1 + $0x1178] sm:$0xff]
  %v646 = vld [vmem:[%s1 + $0x1180] sm:$0xff]
  %v647 = vld [vmem:[%s1 + $0x1188] sm:$0xff]
  %v648 = vld [vmem:[%s1 + $0x1190] sm:$0xff]
  %v649 = vld [vmem:[%s1 + $0x1198] sm:$0xff]
  %v650 = vld [vmem:[%s1 + $0x11a0] sm:$0xff]
  %v651 = vld [vmem:[%s1 + $0x11a8] sm:$0xff]
  %v652 = vld [vmem:[%s1 + $0x11b0] sm:$0xff]
  %v653 = vld [vmem:[%s1 + $0x11b8] sm:$0xff]
  %v654 = vld [vmem:[%s1 + $0x11c0] sm:$0xff]
  %v655 = vld [vmem:[%s1 + $0x11c8] sm:$0xff]
  %v656 = vld [vmem:[%s1 + $0x11d0] sm:$0xff]
  %v657 = vld [vmem:[%s1 + $0x11d8] sm:$0xff]
  %v658 = vld [vmem:[%s1 + $0x11e0] sm:$0xff]
  %v659 = vld [vmem:[%s1 + $0x11e8] sm:$0xff]
  %v660 = vld [vmem:[%s1 + $0x11f0] sm:$0xff]
  %v661 = vld [vmem:[%s1 + $0x11f8] sm:$0xff]
  %v662 = vld [vmem:[%s2] sm:$0x3]
  %v664 = vperm.slane %v662, 0
  %v665 = vperm.slane %v662, 1
  %668 = vmatpush.msra.mxu0 %v116
  %669 = vmatpush.msra.mxu0 %v114
  %670 = vmatpush.msra.mxu0 %v112
  %671 = vmatpush.msra.mxu0 %v110
  %672 = vmatpush.msra.mxu0 %v108
  %673 = vmatpush.msra.mxu0 %v106
  %674 = vmatpush.msra.mxu0 %v104
  %675 = vmatpush.msra.mxu0 %v102
  %676 = vmatpush.msra.mxu0 %v100
  %677 = vmatpush.msra.mxu0 %v98
  %678 = vmatpush.msra.mxu0 %v96
  %679 = vmatpush.msra.mxu0 %v94
  %680 = vmatpush.msra.mxu0 %v92
  %681 = vmatpush.msra.mxu0 %v90
  %682 = vmatpush.msra.mxu0 %v88
  %683 = vmatpush.msra.mxu0 %v86
  %684 = vmatmul.f32.gmra.mxu0 %v14
  %v685 = vpop.f32.mrf.mxu0
  %v686 = vadd.f32 %v664, %v685
  %687 = vmatmul.f32.gmra.mxu0 %v32
  %v688 = vpop.f32.mrf.mxu0
  %v689 = vadd.f32 %v664, %v688
  %690 = vmatmul.f32.gmra.mxu0 %v50
  %v691 = vpop.f32.mrf.mxu0
  %v692 = vadd.f32 %v664, %v691
  %693 = vmatmul.f32.gmra.mxu0 %v68
  %v694 = vpop.f32.mrf.mxu0
  %v695 = vadd.f32 %v664, %v694
  %696 = vdwg.mxu0
  %697 = vmatpush.msra.mxu0 %v148
  %698 = vmatpush.msra.mxu0 %v146
  %699 = vmatpush.msra.mxu0 %v144
  %700 = vmatpush.msra.mxu0 %v142
  %701 = vmatpush.msra.mxu0 %v140
  %702 = vmatpush.msra.mxu0 %v138
  %703 = vmatpush.msra.mxu0 %v136
  %704 = vmatpush.msra.mxu0 %v134
  %705 = vmatpush.msra.mxu0 %v132
  %706 = vmatpush.msra.mxu0 %v130
  %707 = vmatpush.msra.mxu0 %v128
  %708 = vmatpush.msra.mxu0 %v126
  %709 = vmatpush.msra.mxu0 %v124
  %710 = vmatpush.msra.mxu0 %v122
  %711 = vmatpush.msra.mxu0 %v120
  %712 = vmatpush.msra.mxu0 %v118
  %713 = vmatmul.f32.gmra.mxu0 %v15
  %v714 = vpop.f32.mrf.mxu0
  %v715 = vadd.f32 %v686, %v714
  %716 = vmatmul.f32.gmra.mxu0 %v33
  %v717 = vpop.f32.mrf.mxu0
  %v718 = vadd.f32 %v689, %v717
  %719 = vmatmul.f32.gmra.mxu0 %v51
  %v720 = vpop.f32.mrf.mxu0
  %v721 = vadd.f32 %v692, %v720
  %722 = vmatmul.f32.gmra.mxu0 %v69
  %v723 = vpop.f32.mrf.mxu0
  %v724 = vadd.f32 %v695, %v723
  %725 = vdwg.mxu0
  %726 = vmatpush.msra.mxu0 %v180
  %727 = vmatpush.msra.mxu0 %v178
  %728 = vmatpush.msra.mxu0 %v176
  %729 = vmatpush.msra.mxu0 %v174
  %730 = vmatpush.msra.mxu0 %v172
  %731 = vmatpush.msra.mxu0 %v170
  %732 = vmatpush.msra.mxu0 %v168
  %733 = vmatpush.msra.mxu0 %v166
  %734 = vmatpush.msra.mxu0 %v164
  %735 = vmatpush.msra.mxu0 %v162
  %736 = vmatpush.msra.mxu0 %v160
  %737 = vmatpush.msra.mxu0 %v158
  %738 = vmatpush.msra.mxu0 %v156
  %739 = vmatpush.msra.mxu0 %v154
  %740 = vmatpush.msra.mxu0 %v152
  %741 = vmatpush.msra.mxu0 %v150
  %742 = vmatmul.f32.gmra.mxu0 %v16
  %v743 = vpop.f32.mrf.mxu0
  %v744 = vadd.f32 %v715, %v743
  %745 = vmatmul.f32.gmra.mxu0 %v34
  %v746 = vpop.f32.mrf.mxu0
  %v747 = vadd.f32 %v718, %v746
  %748 = vmatmul.f32.gmra.mxu0 %v52
  %v749 = vpop.f32.mrf.mxu0
  %v750 = vadd.f32 %v721, %v749
  %751 = vmatmul.f32.gmra.mxu0 %v70
  %v752 = vpop.f32.mrf.mxu0
  %v753 = vadd.f32 %v724, %v752
  %754 = vdwg.mxu0
  %755 = vmatpush.msra.mxu0 %v212
  %756 = vmatpush.msra.mxu0 %v210
  %757 = vmatpush.msra.mxu0 %v208
  %758 = vmatpush.msra.mxu0 %v206
  %759 = vmatpush.msra.mxu0 %v204
  %760 = vmatpush.msra.mxu0 %v202
  %761 = vmatpush.msra.mxu0 %v200
  %762 = vmatpush.msra.mxu0 %v198
  %763 = vmatpush.msra.mxu0 %v196
  %764 = vmatpush.msra.mxu0 %v194
  %765 = vmatpush.msra.mxu0 %v192
  %766 = vmatpush.msra.mxu0 %v190
  %767 = vmatpush.msra.mxu0 %v188
  %768 = vmatpush.msra.mxu0 %v186
  %769 = vmatpush.msra.mxu0 %v184
  %770 = vmatpush.msra.mxu0 %v182
  %771 = vmatmul.f32.gmra.mxu0 %v17
  %v772 = vpop.f32.mrf.mxu0
  %v773 = vadd.f32 %v744, %v772
  %774 = vmatmul.f32.gmra.mxu0 %v35
  %v775 = vpop.f32.mrf.mxu0
  %v776 = vadd.f32 %v747, %v775
  %777 = vmatmul.f32.gmra.mxu0 %v53
  %v778 = vpop.f32.mrf.mxu0
  %v779 = vadd.f32 %v750, %v778
  %780 = vmatmul.f32.gmra.mxu0 %v71
  %v781 = vpop.f32.mrf.mxu0
  %v782 = vadd.f32 %v753, %v781
  %783 = vdwg.mxu0
  %784 = vmatpush.msra.mxu0 %v244
  %785 = vmatpush.msra.mxu0 %v242
  %786 = vmatpush.msra.mxu0 %v240
  %787 = vmatpush.msra.mxu0 %v238
  %788 = vmatpush.msra.mxu0 %v236
  %789 = vmatpush.msra.mxu0 %v234
  %790 = vmatpush.msra.mxu0 %v232
  %791 = vmatpush.msra.mxu0 %v230
  %792 = vmatpush.msra.mxu0 %v228
  %793 = vmatpush.msra.mxu0 %v226
  %794 = vmatpush.msra.mxu0 %v224
  %795 = vmatpush.msra.mxu0 %v222
  %796 = vmatpush.msra.mxu0 %v220
  %797 = vmatpush.msra.mxu0 %v218
  %798 = vmatpush.msra.mxu0 %v216
  %799 = vmatpush.msra.mxu0 %v214
  %800 = vmatmul.f32.gmra.mxu0 %v18
  %v801 = vpop.f32.mrf.mxu0
  %v802 = vadd.f32 %v773, %v801
  %803 = vmatmul.f32.gmra.mxu0 %v36
  %v804 = vpop.f32.mrf.mxu0
  %v805 = vadd.f32 %v776, %v804
  %806 = vmatmul.f32.gmra.mxu0 %v54
  %v807 = vpop.f32.mrf.mxu0
  %v808 = vadd.f32 %v779, %v807
  %809 = vmatmul.f32.gmra.mxu0 %v72
  %v810 = vpop.f32.mrf.mxu0
  %v811 = vadd.f32 %v782, %v810
  %812 = vdwg.mxu0
  %813 = vmatpush.msra.mxu0 %v276
  %814 = vmatpush.msra.mxu0 %v274
  %815 = vmatpush.msra.mxu0 %v272
  %816 = vmatpush.msra.mxu0 %v270
  %817 = vmatpush.msra.mxu0 %v268
  %818 = vmatpush.msra.mxu0 %v266
  %819 = vmatpush.msra.mxu0 %v264
  %820 = vmatpush.msra.mxu0 %v262
  %821 = vmatpush.msra.mxu0 %v260
  %822 = vmatpush.msra.mxu0 %v258
  %823 = vmatpush.msra.mxu0 %v256
  %824 = vmatpush.msra.mxu0 %v254
  %825 = vmatpush.msra.mxu0 %v252
  %826 = vmatpush.msra.mxu0 %v250
  %827 = vmatpush.msra.mxu0 %v248
  %828 = vmatpush.msra.mxu0 %v246
  %829 = vmatmul.f32.gmra.mxu0 %v19
  %v830 = vpop.f32.mrf.mxu0
  %v831 = vadd.f32 %v802, %v830
  %832 = vmatmul.f32.gmra.mxu0 %v37
  %v833 = vpop.f32.mrf.mxu0
  %v834 = vadd.f32 %v805, %v833
  %835 = vmatmul.f32.gmra.mxu0 %v55
  %v836 = vpop.f32.mrf.mxu0
  %v837 = vadd.f32 %v808, %v836
  %838 = vmatmul.f32.gmra.mxu0 %v73
  %v839 = vpop.f32.mrf.mxu0
  %v840 = vadd.f32 %v811, %v839
  %841 = vdwg.mxu0
  %842 = vmatpush.msra.mxu0 %v308
  %843 = vmatpush.msra.mxu0 %v306
  %844 = vmatpush.msra.mxu0 %v304
  %845 = vmatpush.msra.mxu0 %v302
  %846 = vmatpush.msra.mxu0 %v300
  %847 = vmatpush.msra.mxu0 %v298
  %848 = vmatpush.msra.mxu0 %v296
  %849 = vmatpush.msra.mxu0 %v294
  %850 = vmatpush.msra.mxu0 %v292
  %851 = vmatpush.msra.mxu0 %v290
  %852 = vmatpush.msra.mxu0 %v288
  %853 = vmatpush.msra.mxu0 %v286
  %854 = vmatpush.msra.mxu0 %v284
  %855 = vmatpush.msra.mxu0 %v282
  %856 = vmatpush.msra.mxu0 %v280
  %857 = vmatpush.msra.mxu0 %v278
  %858 = vmatmul.f32.gmra.mxu0 %v20
  %v859 = vpop.f32.mrf.mxu0
  %v860 = vadd.f32 %v831, %v859
  %861 = vmatmul.f32.gmra.mxu0 %v38
  %v862 = vpop.f32.mrf.mxu0
  %v863 = vadd.f32 %v834, %v862
  %864 = vmatmul.f32.gmra.mxu0 %v56
  %v865 = vpop.f32.mrf.mxu0
  %v866 = vadd.f32 %v837, %v865
  %867 = vmatmul.f32.gmra.mxu0 %v74
  %v868 = vpop.f32.mrf.mxu0
  %v869 = vadd.f32 %v840, %v868
  %870 = vdwg.mxu0
  %871 = vmatpush.msra.mxu0 %v340
  %872 = vmatpush.msra.mxu0 %v338
  %873 = vmatpush.msra.mxu0 %v336
  %874 = vmatpush.msra.mxu0 %v334
  %875 = vmatpush.msra.mxu0 %v332
  %876 = vmatpush.msra.mxu0 %v330
  %877 = vmatpush.msra.mxu0 %v328
  %878 = vmatpush.msra.mxu0 %v326
  %879 = vmatpush.msra.mxu0 %v324
  %880 = vmatpush.msra.mxu0 %v322
  %881 = vmatpush.msra.mxu0 %v320
  %882 = vmatpush.msra.mxu0 %v318
  %883 = vmatpush.msra.mxu0 %v316
  %884 = vmatpush.msra.mxu0 %v314
  %885 = vmatpush.msra.mxu0 %v312
  %886 = vmatpush.msra.mxu0 %v310
  %887 = vmatmul.f32.gmra.mxu0 %v21
  %v888 = vpop.f32.mrf.mxu0
  %v889 = vadd.f32 %v860, %v888
  %890 = vmatmul.f32.gmra.mxu0 %v39
  %v891 = vpop.f32.mrf.mxu0
  %v892 = vadd.f32 %v863, %v891
  %893 = vmatmul.f32.gmra.mxu0 %v57
  %v894 = vpop.f32.mrf.mxu0
  %v895 = vadd.f32 %v866, %v894
  %896 = vmatmul.f32.gmra.mxu0 %v75
  %v897 = vpop.f32.mrf.mxu0
  %v898 = vadd.f32 %v869, %v897
  %899 = vdwg.mxu0
  %900 = vmatpush.msra.mxu0 %v372
  %901 = vmatpush.msra.mxu0 %v370
  %902 = vmatpush.msra.mxu0 %v368
  %903 = vmatpush.msra.mxu0 %v366
  %904 = vmatpush.msra.mxu0 %v364
  %905 = vmatpush.msra.mxu0 %v362
  %906 = vmatpush.msra.mxu0 %v360
  %907 = vmatpush.msra.mxu0 %v358
  %908 = vmatpush.msra.mxu0 %v356
  %909 = vmatpush.msra.mxu0 %v354
  %910 = vmatpush.msra.mxu0 %v352
  %911 = vmatpush.msra.mxu0 %v350
  %912 = vmatpush.msra.mxu0 %v348
  %913 = vmatpush.msra.mxu0 %v346
  %914 = vmatpush.msra.mxu0 %v344
  %915 = vmatpush.msra.mxu0 %v342
  %916 = vmatmul.f32.gmra.mxu0 %v22
  %v917 = vpop.f32.mrf.mxu0
  %v918 = vadd.f32 %v889, %v917
  %919 = vmatmul.f32.gmra.mxu0 %v40
  %v920 = vpop.f32.mrf.mxu0
  %v921 = vadd.f32 %v892, %v920
  %922 = vmatmul.f32.gmra.mxu0 %v58
  %v923 = vpop.f32.mrf.mxu0
  %v924 = vadd.f32 %v895, %v923
  %925 = vmatmul.f32.gmra.mxu0 %v76
  %v926 = vpop.f32.mrf.mxu0
  %v927 = vadd.f32 %v898, %v926
  %928 = vdwg.mxu0
  %929 = vmatpush.msra.mxu0 %v404
  %930 = vmatpush.msra.mxu0 %v402
  %931 = vmatpush.msra.mxu0 %v400
  %932 = vmatpush.msra.mxu0 %v398
  %933 = vmatpush.msra.mxu0 %v396
  %934 = vmatpush.msra.mxu0 %v394
  %935 = vmatpush.msra.mxu0 %v392
  %936 = vmatpush.msra.mxu0 %v390
  %937 = vmatpush.msra.mxu0 %v388
  %938 = vmatpush.msra.mxu0 %v386
  %939 = vmatpush.msra.mxu0 %v384
  %940 = vmatpush.msra.mxu0 %v382
  %941 = vmatpush.msra.mxu0 %v380
  %942 = vmatpush.msra.mxu0 %v378
  %943 = vmatpush.msra.mxu0 %v376
  %944 = vmatpush.msra.mxu0 %v374
  %945 = vmatmul.f32.gmra.mxu0 %v23
  %v946 = vpop.f32.mrf.mxu0
  %v947 = vadd.f32 %v918, %v946
  %948 = vmatmul.f32.gmra.mxu0 %v41
  %v949 = vpop.f32.mrf.mxu0
  %v950 = vadd.f32 %v921, %v949
  %951 = vmatmul.f32.gmra.mxu0 %v59
  %v952 = vpop.f32.mrf.mxu0
  %v953 = vadd.f32 %v924, %v952
  %954 = vmatmul.f32.gmra.mxu0 %v77
  %v955 = vpop.f32.mrf.mxu0
  %v956 = vadd.f32 %v927, %v955
  %957 = vdwg.mxu0
  %958 = vmatpush.msra.mxu0 %v436
  %959 = vmatpush.msra.mxu0 %v434
  %960 = vmatpush.msra.mxu0 %v432
  %961 = vmatpush.msra.mxu0 %v430
  %962 = vmatpush.msra.mxu0 %v428
  %963 = vmatpush.msra.mxu0 %v426
  %964 = vmatpush.msra.mxu0 %v424
  %965 = vmatpush.msra.mxu0 %v422
  %966 = vmatpush.msra.mxu0 %v420
  %967 = vmatpush.msra.mxu0 %v418
  %968 = vmatpush.msra.mxu0 %v416
  %969 = vmatpush.msra.mxu0 %v414
  %970 = vmatpush.msra.mxu0 %v412
  %971 = vmatpush.msra.mxu0 %v410
  %972 = vmatpush.msra.mxu0 %v408
  %973 = vmatpush.msra.mxu0 %v406
  %974 = vmatmul.f32.gmra.mxu0 %v24
  %v975 = vpop.f32.mrf.mxu0
  %v976 = vadd.f32 %v947, %v975
  %977 = vmatmul.f32.gmra.mxu0 %v42
  %v978 = vpop.f32.mrf.mxu0
  %v979 = vadd.f32 %v950, %v978
  %980 = vmatmul.f32.gmra.mxu0 %v60
  %v981 = vpop.f32.mrf.mxu0
  %v982 = vadd.f32 %v953, %v981
  %983 = vmatmul.f32.gmra.mxu0 %v78
  %v984 = vpop.f32.mrf.mxu0
  %v985 = vadd.f32 %v956, %v984
  %986 = vdwg.mxu0
  %987 = vmatpush.msra.mxu0 %v468
  %988 = vmatpush.msra.mxu0 %v466
  %989 = vmatpush.msra.mxu0 %v464
  %990 = vmatpush.msra.mxu0 %v462
  %991 = vmatpush.msra.mxu0 %v460
  %992 = vmatpush.msra.mxu0 %v458
  %993 = vmatpush.msra.mxu0 %v456
  %994 = vmatpush.msra.mxu0 %v454
  %995 = vmatpush.msra.mxu0 %v452
  %996 = vmatpush.msra.mxu0 %v450
  %997 = vmatpush.msra.mxu0 %v448
  %998 = vmatpush.msra.mxu0 %v446
  %999 = vmatpush.msra.mxu0 %v444
  %1000 = vmatpush.msra.mxu0 %v442
  %1001 = vmatpush.msra.mxu0 %v440
  %1002 = vmatpush.msra.mxu0 %v438
  %1003 = vmatmul.f32.gmra.mxu0 %v25
  %v1004 = vpop.f32.mrf.mxu0
  %v1005 = vadd.f32 %v976, %v1004
  %1006 = vmatmul.f32.gmra.mxu0 %v43
  %v1007 = vpop.f32.mrf.mxu0
  %v1008 = vadd.f32 %v979, %v1007
  %1009 = vmatmul.f32.gmra.mxu0 %v61
  %v1010 = vpop.f32.mrf.mxu0
  %v1011 = vadd.f32 %v982, %v1010
  %1012 = vmatmul.f32.gmra.mxu0 %v79
  %v1013 = vpop.f32.mrf.mxu0
  %v1014 = vadd.f32 %v985, %v1013
  %1015 = vdwg.mxu0
  %1016 = vmatpush.msra.mxu0 %v500
  %1017 = vmatpush.msra.mxu0 %v498
  %1018 = vmatpush.msra.mxu0 %v496
  %1019 = vmatpush.msra.mxu0 %v494
  %1020 = vmatpush.msra.mxu0 %v492
  %1021 = vmatpush.msra.mxu0 %v490
  %1022 = vmatpush.msra.mxu0 %v488
  %1023 = vmatpush.msra.mxu0 %v486
  %1024 = vmatpush.msra.mxu0 %v484
  %1025 = vmatpush.msra.mxu0 %v482
  %1026 = vmatpush.msra.mxu0 %v480
  %1027 = vmatpush.msra.mxu0 %v478
  %1028 = vmatpush.msra.mxu0 %v476
  %1029 = vmatpush.msra.mxu0 %v474
  %1030 = vmatpush.msra.mxu0 %v472
  %1031 = vmatpush.msra.mxu0 %v470
  %1032 = vmatmul.f32.gmra.mxu0 %v26
  %v1033 = vpop.f32.mrf.mxu0
  %v1034 = vadd.f32 %v1005, %v1033
  %1035 = vmatmul.f32.gmra.mxu0 %v44
  %v1036 = vpop.f32.mrf.mxu0
  %v1037 = vadd.f32 %v1008, %v1036
  %1038 = vmatmul.f32.gmra.mxu0 %v62
  %v1039 = vpop.f32.mrf.mxu0
  %v1040 = vadd.f32 %v1011, %v1039
  %1041 = vmatmul.f32.gmra.mxu0 %v80
  %v1042 = vpop.f32.mrf.mxu0
  %v1043 = vadd.f32 %v1014, %v1042
  %1044 = vdwg.mxu0
  %1045 = vmatpush.msra.mxu0 %v532
  %1046 = vmatpush.msra.mxu0 %v530
  %1047 = vmatpush.msra.mxu0 %v528
  %1048 = vmatpush.msra.mxu0 %v526
  %1049 = vmatpush.msra.mxu0 %v524
  %1050 = vmatpush.msra.mxu0 %v522
  %1051 = vmatpush.msra.mxu0 %v520
  %1052 = vmatpush.msra.mxu0 %v518
  %1053 = vmatpush.msra.mxu0 %v516
  %1054 = vmatpush.msra.mxu0 %v514
  %1055 = vmatpush.msra.mxu0 %v512
  %1056 = vmatpush.msra.mxu0 %v510
  %1057 = vmatpush.msra.mxu0 %v508
  %1058 = vmatpush.msra.mxu0 %v506
  %1059 = vmatpush.msra.mxu0 %v504
  %1060 = vmatpush.msra.mxu0 %v502
  %1061 = vmatmul.f32.gmra.mxu0 %v27
  %v1062 = vpop.f32.mrf.mxu0
  %v1063 = vadd.f32 %v1034, %v1062
  %1064 = vmatmul.f32.gmra.mxu0 %v45
  %v1065 = vpop.f32.mrf.mxu0
  %v1066 = vadd.f32 %v1037, %v1065
  %1067 = vmatmul.f32.gmra.mxu0 %v63
  %v1068 = vpop.f32.mrf.mxu0
  %v1069 = vadd.f32 %v1040, %v1068
  %1070 = vmatmul.f32.gmra.mxu0 %v81
  %v1071 = vpop.f32.mrf.mxu0
  %v1072 = vadd.f32 %v1043, %v1071
  %1073 = vdwg.mxu0
  %1074 = vmatpush.msra.mxu0 %v564
  %1075 = vmatpush.msra.mxu0 %v562
  %1076 = vmatpush.msra.mxu0 %v560
  %1077 = vmatpush.msra.mxu0 %v558
  %1078 = vmatpush.msra.mxu0 %v556
  %1079 = vmatpush.msra.mxu0 %v554
  %1080 = vmatpush.msra.mxu0 %v552
  %1081 = vmatpush.msra.mxu0 %v550
  %1082 = vmatpush.msra.mxu0 %v548
  %1083 = vmatpush.msra.mxu0 %v546
  %1084 = vmatpush.msra.mxu0 %v544
  %1085 = vmatpush.msra.mxu0 %v542
  %1086 = vmatpush.msra.mxu0 %v540
  %1087 = vmatpush.msra.mxu0 %v538
  %1088 = vmatpush.msra.mxu0 %v536
  %1089 = vmatpush.msra.mxu0 %v534
  %1090 = vmatmul.f32.gmra.mxu0 %v28
  %v1091 = vpop.f32.mrf.mxu0
  %v1092 = vadd.f32 %v1063, %v1091
  %1093 = vmatmul.f32.gmra.mxu0 %v46
  %v1094 = vpop.f32.mrf.mxu0
  %v1095 = vadd.f32 %v1066, %v1094
  %1096 = vmatmul.f32.gmra.mxu0 %v64
  %v1097 = vpop.f32.mrf.mxu0
  %v1098 = vadd.f32 %v1069, %v1097
  %1099 = vmatmul.f32.gmra.mxu0 %v82
  %v1100 = vpop.f32.mrf.mxu0
  %v1101 = vadd.f32 %v1072, %v1100
  %1102 = vdwg.mxu0
  %1103 = vmatpush.msra.mxu0 %v596
  %1104 = vmatpush.msra.mxu0 %v594
  %1105 = vmatpush.msra.mxu0 %v592
  %1106 = vmatpush.msra.mxu0 %v590
  %1107 = vmatpush.msra.mxu0 %v588
  %1108 = vmatpush.msra.mxu0 %v586
  %1109 = vmatpush.msra.mxu0 %v584
  %1110 = vmatpush.msra.mxu0 %v582
  %1111 = vmatpush.msra.mxu0 %v580
  %1112 = vmatpush.msra.mxu0 %v578
  %1113 = vmatpush.msra.mxu0 %v576
  %1114 = vmatpush.msra.mxu0 %v574
  %1115 = vmatpush.msra.mxu0 %v572
  %1116 = vmatpush.msra.mxu0 %v570
  %1117 = vmatpush.msra.mxu0 %v568
  %1118 = vmatpush.msra.mxu0 %v566
  %1119 = vmatmul.f32.gmra.mxu0 %v29
  %v1120 = vpop.f32.mrf.mxu0
  %v1121 = vadd.f32 %v1092, %v1120
  %1122 = vmatmul.f32.gmra.mxu0 %v47
  %v1123 = vpop.f32.mrf.mxu0
  %v1124 = vadd.f32 %v1095, %v1123
  %1125 = vmatmul.f32.gmra.mxu0 %v65
  %v1126 = vpop.f32.mrf.mxu0
  %v1127 = vadd.f32 %v1098, %v1126
  %1128 = vmatmul.f32.gmra.mxu0 %v83
  %v1129 = vpop.f32.mrf.mxu0
  %v1130 = vadd.f32 %v1101, %v1129
  %1131 = vdwg.mxu0
  %1132 = vmatpush.msra.mxu0 %v628
  %1133 = vmatpush.msra.mxu0 %v626
  %1134 = vmatpush.msra.mxu0 %v624
  %1135 = vmatpush.msra.mxu0 %v622
  %1136 = vmatpush.msra.mxu0 %v620
  %1137 = vmatpush.msra.mxu0 %v618
  %1138 = vmatpush.msra.mxu0 %v616
  %1139 = vmatpush.msra.mxu0 %v614
  %1140 = vmatpush.msra.mxu0 %v612
  %1141 = vmatpush.msra.mxu0 %v610
  %1142 = vmatpush.msra.mxu0 %v608
  %1143 = vmatpush.msra.mxu0 %v606
  %1144 = vmatpush.msra.mxu0 %v604
  %1145 = vmatpush.msra.mxu0 %v602
  %1146 = vmatpush.msra.mxu0 %v600
  %1147 = vmatpush.msra.mxu0 %v598
  %1148 = vmatmul.f32.gmra.mxu0 %v30
  %v1149 = vpop.f32.mrf.mxu0
  %v1150 = vadd.f32 %v1121, %v1149
  %1151 = vmatmul.f32.gmra.mxu0 %v48
  %v1152 = vpop.f32.mrf.mxu0
  %v1153 = vadd.f32 %v1124, %v1152
  %1154 = vmatmul.f32.gmra.mxu0 %v66
  %v1155 = vpop.f32.mrf.mxu0
  %v1156 = vadd.f32 %v1127, %v1155
  %1157 = vmatmul.f32.gmra.mxu0 %v84
  %v1158 = vpop.f32.mrf.mxu0
  %v1159 = vadd.f32 %v1130, %v1158
  %1160 = vdwg.mxu0
  %1161 = vmatpush.msra.mxu0 %v660
  %1162 = vmatpush.msra.mxu0 %v658
  %1163 = vmatpush.msra.mxu0 %v656
  %1164 = vmatpush.msra.mxu0 %v654
  %1165 = vmatpush.msra.mxu0 %v652
  %1166 = vmatpush.msra.mxu0 %v650
  %1167 = vmatpush.msra.mxu0 %v648
  %1168 = vmatpush.msra.mxu0 %v646
  %1169 = vmatpush.msra.mxu0 %v644
  %1170 = vmatpush.msra.mxu0 %v642
  %1171 = vmatpush.msra.mxu0 %v640
  %1172 = vmatpush.msra.mxu0 %v638
  %1173 = vmatpush.msra.mxu0 %v636
  %1174 = vmatpush.msra.mxu0 %v634
  %1175 = vmatpush.msra.mxu0 %v632
  %1176 = vmatpush.msra.mxu0 %v630
  %1177 = vmatmul.f32.gmra.mxu0 %v31
  %v1178 = vpop.f32.mrf.mxu0
  %v1179 = vadd.f32 %v1150, %v1178
  %1180 = vmatmul.f32.gmra.mxu0 %v49
  %v1181 = vpop.f32.mrf.mxu0
  %v1182 = vadd.f32 %v1153, %v1181
  %1183 = vmatmul.f32.gmra.mxu0 %v67
  %v1184 = vpop.f32.mrf.mxu0
  %v1185 = vadd.f32 %v1156, %v1184
  %1186 = vmatmul.f32.gmra.mxu0 %v85
  %v1187 = vpop.f32.mrf.mxu0
  %v1188 = vadd.f32 %v1159, %v1187
  %1189 = vdwg.mxu0
  %1190 = vmatpush.msra.mxu0 %v117
  %1191 = vmatpush.msra.mxu0 %v115
  %1192 = vmatpush.msra.mxu0 %v113
  %1193 = vmatpush.msra.mxu0 %v111
  %1194 = vmatpush.msra.mxu0 %v109
  %1195 = vmatpush.msra.mxu0 %v107
  %1196 = vmatpush.msra.mxu0 %v105
  %1197 = vmatpush.msra.mxu0 %v103
  %1198 = vmatpush.msra.mxu0 %v101
  %1199 = vmatpush.msra.mxu0 %v99
  %1200 = vmatpush.msra.mxu0 %v97
  %1201 = vmatpush.msra.mxu0 %v95
  %1202 = vmatpush.msra.mxu0 %v93
  %1203 = vmatpush.msra.mxu0 %v91
  %1204 = vmatpush.msra.mxu0 %v89
  %1205 = vmatpush.msra.mxu0 %v87
  %1206 = vmatmul.f32.gmra.mxu0 %v14
  %v1207 = vpop.f32.mrf.mxu0
  %v1208 = vadd.f32 %v665, %v1207
  %1209 = vmatmul.f32.gmra.mxu0 %v32
  %v1210 = vpop.f32.mrf.mxu0
  %v1211 = vadd.f32 %v665, %v1210
  %1212 = vmatmul.f32.gmra.mxu0 %v50
  %v1213 = vpop.f32.mrf.mxu0
  %v1214 = vadd.f32 %v665, %v1213
  %1215 = vmatmul.f32.gmra.mxu0 %v68
  %v1216 = vpop.f32.mrf.mxu0
  %v1217 = vadd.f32 %v665, %v1216
  %1218 = vdwg.mxu0
  %1219 = vmatpush.msra.mxu0 %v149
  %1220 = vmatpush.msra.mxu0 %v147
  %1221 = vmatpush.msra.mxu0 %v145
  %1222 = vmatpush.msra.mxu0 %v143
  %1223 = vmatpush.msra.mxu0 %v141
  %1224 = vmatpush.msra.mxu0 %v139
  %1225 = vmatpush.msra.mxu0 %v137
  %1226 = vmatpush.msra.mxu0 %v135
  %1227 = vmatpush.msra.mxu0 %v133
  %1228 = vmatpush.msra.mxu0 %v131
  %1229 = vmatpush.msra.mxu0 %v129
  %1230 = vmatpush.msra.mxu0 %v127
  %1231 = vmatpush.msra.mxu0 %v125
  %1232 = vmatpush.msra.mxu0 %v123
  %1233 = vmatpush.msra.mxu0 %v121
  %1234 = vmatpush.msra.mxu0 %v119
  %1235 = vmatmul.f32.gmra.mxu0 %v15
  %v1236 = vpop.f32.mrf.mxu0
  %v1237 = vadd.f32 %v1208, %v1236
  %1238 = vmatmul.f32.gmra.mxu0 %v33
  %v1239 = vpop.f32.mrf.mxu0
  %v1240 = vadd.f32 %v1211, %v1239
  %1241 = vmatmul.f32.gmra.mxu0 %v51
  %v1242 = vpop.f32.mrf.mxu0
  %v1243 = vadd.f32 %v1214, %v1242
  %1244 = vmatmul.f32.gmra.mxu0 %v69
  %v1245 = vpop.f32.mrf.mxu0
  %v1246 = vadd.f32 %v1217, %v1245
  %1247 = vdwg.mxu0
  %1248 = vmatpush.msra.mxu0 %v181
  %1249 = vmatpush.msra.mxu0 %v179
  %1250 = vmatpush.msra.mxu0 %v177
  %1251 = vmatpush.msra.mxu0 %v175
  %1252 = vmatpush.msra.mxu0 %v173
  %1253 = vmatpush.msra.mxu0 %v171
  %1254 = vmatpush.msra.mxu0 %v169
  %1255 = vmatpush.msra.mxu0 %v167
  %1256 = vmatpush.msra.mxu0 %v165
  %1257 = vmatpush.msra.mxu0 %v163
  %1258 = vmatpush.msra.mxu0 %v161
  %1259 = vmatpush.msra.mxu0 %v159
  %1260 = vmatpush.msra.mxu0 %v157
  %1261 = vmatpush.msra.mxu0 %v155
  %1262 = vmatpush.msra.mxu0 %v153
  %1263 = vmatpush.msra.mxu0 %v151
  %1264 = vmatmul.f32.gmra.mxu0 %v16
  %v1265 = vpop.f32.mrf.mxu0
  %v1266 = vadd.f32 %v1237, %v1265
  %1267 = vmatmul.f32.gmra.mxu0 %v34
  %v1268 = vpop.f32.mrf.mxu0
  %v1269 = vadd.f32 %v1240, %v1268
  %1270 = vmatmul.f32.gmra.mxu0 %v52
  %v1271 = vpop.f32.mrf.mxu0
  %v1272 = vadd.f32 %v1243, %v1271
  %1273 = vmatmul.f32.gmra.mxu0 %v70
  %v1274 = vpop.f32.mrf.mxu0
  %v1275 = vadd.f32 %v1246, %v1274
  %1276 = vdwg.mxu0
  %1277 = vmatpush.msra.mxu0 %v213
  %1278 = vmatpush.msra.mxu0 %v211
  %1279 = vmatpush.msra.mxu0 %v209
  %1280 = vmatpush.msra.mxu0 %v207
  %1281 = vmatpush.msra.mxu0 %v205
  %1282 = vmatpush.msra.mxu0 %v203
  %1283 = vmatpush.msra.mxu0 %v201
  %1284 = vmatpush.msra.mxu0 %v199
  %1285 = vmatpush.msra.mxu0 %v197
  %1286 = vmatpush.msra.mxu0 %v195
  %1287 = vmatpush.msra.mxu0 %v193
  %1288 = vmatpush.msra.mxu0 %v191
  %1289 = vmatpush.msra.mxu0 %v189
  %1290 = vmatpush.msra.mxu0 %v187
  %1291 = vmatpush.msra.mxu0 %v185
  %1292 = vmatpush.msra.mxu0 %v183
  %1293 = vmatmul.f32.gmra.mxu0 %v17
  %v1294 = vpop.f32.mrf.mxu0
  %v1295 = vadd.f32 %v1266, %v1294
  %1296 = vmatmul.f32.gmra.mxu0 %v35
  %v1297 = vpop.f32.mrf.mxu0
  %v1298 = vadd.f32 %v1269, %v1297
  %1299 = vmatmul.f32.gmra.mxu0 %v53
  %v1300 = vpop.f32.mrf.mxu0
  %v1301 = vadd.f32 %v1272, %v1300
  %1302 = vmatmul.f32.gmra.mxu0 %v71
  %v1303 = vpop.f32.mrf.mxu0
  %v1304 = vadd.f32 %v1275, %v1303
  %1305 = vdwg.mxu0
  %1306 = vmatpush.msra.mxu0 %v245
  %1307 = vmatpush.msra.mxu0 %v243
  %1308 = vmatpush.msra.mxu0 %v241
  %1309 = vmatpush.msra.mxu0 %v239
  %1310 = vmatpush.msra.mxu0 %v237
  %1311 = vmatpush.msra.mxu0 %v235
  %1312 = vmatpush.msra.mxu0 %v233
  %1313 = vmatpush.msra.mxu0 %v231
  %1314 = vmatpush.msra.mxu0 %v229
  %1315 = vmatpush.msra.mxu0 %v227
  %1316 = vmatpush.msra.mxu0 %v225
  %1317 = vmatpush.msra.mxu0 %v223
  %1318 = vmatpush.msra.mxu0 %v221
  %1319 = vmatpush.msra.mxu0 %v219
  %1320 = vmatpush.msra.mxu0 %v217
  %1321 = vmatpush.msra.mxu0 %v215
  %1322 = vmatmul.f32.gmra.mxu0 %v18
  %v1323 = vpop.f32.mrf.mxu0
  %v1324 = vadd.f32 %v1295, %v1323
  %1325 = vmatmul.f32.gmra.mxu0 %v36
  %v1326 = vpop.f32.mrf.mxu0
  %v1327 = vadd.f32 %v1298, %v1326
  %1328 = vmatmul.f32.gmra.mxu0 %v54
  %v1329 = vpop.f32.mrf.mxu0
  %v1330 = vadd.f32 %v1301, %v1329
  %1331 = vmatmul.f32.gmra.mxu0 %v72
  %v1332 = vpop.f32.mrf.mxu0
  %v1333 = vadd.f32 %v1304, %v1332
  %1334 = vdwg.mxu0
  %1335 = vmatpush.msra.mxu0 %v277
  %1336 = vmatpush.msra.mxu0 %v275
  %1337 = vmatpush.msra.mxu0 %v273
  %1338 = vmatpush.msra.mxu0 %v271
  %1339 = vmatpush.msra.mxu0 %v269
  %1340 = vmatpush.msra.mxu0 %v267
  %1341 = vmatpush.msra.mxu0 %v265
  %1342 = vmatpush.msra.mxu0 %v263
  %1343 = vmatpush.msra.mxu0 %v261
  %1344 = vmatpush.msra.mxu0 %v259
  %1345 = vmatpush.msra.mxu0 %v257
  %1346 = vmatpush.msra.mxu0 %v255
  %1347 = vmatpush.msra.mxu0 %v253
  %1348 = vmatpush.msra.mxu0 %v251
  %1349 = vmatpush.msra.mxu0 %v249
  %1350 = vmatpush.msra.mxu0 %v247
  %1351 = vmatmul.f32.gmra.mxu0 %v19
  %v1352 = vpop.f32.mrf.mxu0
  %v1353 = vadd.f32 %v1324, %v1352
  %1354 = vmatmul.f32.gmra.mxu0 %v37
  %v1355 = vpop.f32.mrf.mxu0
  %v1356 = vadd.f32 %v1327, %v1355
  %1357 = vmatmul.f32.gmra.mxu0 %v55
  %v1358 = vpop.f32.mrf.mxu0
  %v1359 = vadd.f32 %v1330, %v1358
  %1360 = vmatmul.f32.gmra.mxu0 %v73
  %v1361 = vpop.f32.mrf.mxu0
  %v1362 = vadd.f32 %v1333, %v1361
  %1363 = vdwg.mxu0
  %1364 = vmatpush.msra.mxu0 %v309
  %1365 = vmatpush.msra.mxu0 %v307
  %1366 = vmatpush.msra.mxu0 %v305
  %1367 = vmatpush.msra.mxu0 %v303
  %1368 = vmatpush.msra.mxu0 %v301
  %1369 = vmatpush.msra.mxu0 %v299
  %1370 = vmatpush.msra.mxu0 %v297
  %1371 = vmatpush.msra.mxu0 %v295
  %1372 = vmatpush.msra.mxu0 %v293
  %1373 = vmatpush.msra.mxu0 %v291
  %1374 = vmatpush.msra.mxu0 %v289
  %1375 = vmatpush.msra.mxu0 %v287
  %1376 = vmatpush.msra.mxu0 %v285
  %1377 = vmatpush.msra.mxu0 %v283
  %1378 = vmatpush.msra.mxu0 %v281
  %1379 = vmatpush.msra.mxu0 %v279
  %1380 = vmatmul.f32.gmra.mxu0 %v20
  %v1381 = vpop.f32.mrf.mxu0
  %v1382 = vadd.f32 %v1353, %v1381
  %1383 = vmatmul.f32.gmra.mxu0 %v38
  %v1384 = vpop.f32.mrf.mxu0
  %v1385 = vadd.f32 %v1356, %v1384
  %1386 = vmatmul.f32.gmra.mxu0 %v56
  %v1387 = vpop.f32.mrf.mxu0
  %v1388 = vadd.f32 %v1359, %v1387
  %1389 = vmatmul.f32.gmra.mxu0 %v74
  %v1390 = vpop.f32.mrf.mxu0
  %v1391 = vadd.f32 %v1362, %v1390
  %1392 = vdwg.mxu0
  %1393 = vmatpush.msra.mxu0 %v341
  %1394 = vmatpush.msra.mxu0 %v339
  %1395 = vmatpush.msra.mxu0 %v337
  %1396 = vmatpush.msra.mxu0 %v335
  %1397 = vmatpush.msra.mxu0 %v333
  %1398 = vmatpush.msra.mxu0 %v331
  %1399 = vmatpush.msra.mxu0 %v329
  %1400 = vmatpush.msra.mxu0 %v327
  %1401 = vmatpush.msra.mxu0 %v325
  %1402 = vmatpush.msra.mxu0 %v323
  %1403 = vmatpush.msra.mxu0 %v321
  %1404 = vmatpush.msra.mxu0 %v319
  %1405 = vmatpush.msra.mxu0 %v317
  %1406 = vmatpush.msra.mxu0 %v315
  %1407 = vmatpush.msra.mxu0 %v313
  %1408 = vmatpush.msra.mxu0 %v311
  %1409 = vmatmul.f32.gmra.mxu0 %v21
  %v1410 = vpop.f32.mrf.mxu0
  %v1411 = vadd.f32 %v1382, %v1410
  %1412 = vmatmul.f32.gmra.mxu0 %v39
  %v1413 = vpop.f32.mrf.mxu0
  %v1414 = vadd.f32 %v1385, %v1413
  %1415 = vmatmul.f32.gmra.mxu0 %v57
  %v1416 = vpop.f32.mrf.mxu0
  %v1417 = vadd.f32 %v1388, %v1416
  %1418 = vmatmul.f32.gmra.mxu0 %v75
  %v1419 = vpop.f32.mrf.mxu0
  %v1420 = vadd.f32 %v1391, %v1419
  %1421 = vdwg.mxu0
  %1422 = vmatpush.msra.mxu0 %v373
  %1423 = vmatpush.msra.mxu0 %v371
  %1424 = vmatpush.msra.mxu0 %v369
  %1425 = vmatpush.msra.mxu0 %v367
  %1426 = vmatpush.msra.mxu0 %v365
  %1427 = vmatpush.msra.mxu0 %v363
  %1428 = vmatpush.msra.mxu0 %v361
  %1429 = vmatpush.msra.mxu0 %v359
  %1430 = vmatpush.msra.mxu0 %v357
  %1431 = vmatpush.msra.mxu0 %v355
  %1432 = vmatpush.msra.mxu0 %v353
  %1433 = vmatpush.msra.mxu0 %v351
  %1434 = vmatpush.msra.mxu0 %v349
  %1435 = vmatpush.msra.mxu0 %v347
  %1436 = vmatpush.msra.mxu0 %v345
  %1437 = vmatpush.msra.mxu0 %v343
  %1438 = vmatmul.f32.gmra.mxu0 %v22
  %v1439 = vpop.f32.mrf.mxu0
  %v1440 = vadd.f32 %v1411, %v1439
  %1441 = vmatmul.f32.gmra.mxu0 %v40
  %v1442 = vpop.f32.mrf.mxu0
  %v1443 = vadd.f32 %v1414, %v1442
  %1444 = vmatmul.f32.gmra.mxu0 %v58
  %v1445 = vpop.f32.mrf.mxu0
  %v1446 = vadd.f32 %v1417, %v1445
  %1447 = vmatmul.f32.gmra.mxu0 %v76
  %v1448 = vpop.f32.mrf.mxu0
  %v1449 = vadd.f32 %v1420, %v1448
  %1450 = vdwg.mxu0
  %1451 = vmatpush.msra.mxu0 %v405
  %1452 = vmatpush.msra.mxu0 %v403
  %1453 = vmatpush.msra.mxu0 %v401
  %1454 = vmatpush.msra.mxu0 %v399
  %1455 = vmatpush.msra.mxu0 %v397
  %1456 = vmatpush.msra.mxu0 %v395
  %1457 = vmatpush.msra.mxu0 %v393
  %1458 = vmatpush.msra.mxu0 %v391
  %1459 = vmatpush.msra.mxu0 %v389
  %1460 = vmatpush.msra.mxu0 %v387
  %1461 = vmatpush.msra.mxu0 %v385
  %1462 = vmatpush.msra.mxu0 %v383
  %1463 = vmatpush.msra.mxu0 %v381
  %1464 = vmatpush.msra.mxu0 %v379
  %1465 = vmatpush.msra.mxu0 %v377
  %1466 = vmatpush.msra.mxu0 %v375
  %1467 = vmatmul.f32.gmra.mxu0 %v23
  %v1468 = vpop.f32.mrf.mxu0
  %v1469 = vadd.f32 %v1440, %v1468
  %1470 = vmatmul.f32.gmra.mxu0 %v41
  %v1471 = vpop.f32.mrf.mxu0
  %v1472 = vadd.f32 %v1443, %v1471
  %1473 = vmatmul.f32.gmra.mxu0 %v59
  %v1474 = vpop.f32.mrf.mxu0
  %v1475 = vadd.f32 %v1446, %v1474
  %1476 = vmatmul.f32.gmra.mxu0 %v77
  %v1477 = vpop.f32.mrf.mxu0
  %v1478 = vadd.f32 %v1449, %v1477
  %1479 = vdwg.mxu0
  %1480 = vmatpush.msra.mxu0 %v437
  %1481 = vmatpush.msra.mxu0 %v435
  %1482 = vmatpush.msra.mxu0 %v433
  %1483 = vmatpush.msra.mxu0 %v431
  %1484 = vmatpush.msra.mxu0 %v429
  %1485 = vmatpush.msra.mxu0 %v427
  %1486 = vmatpush.msra.mxu0 %v425
  %1487 = vmatpush.msra.mxu0 %v423
  %1488 = vmatpush.msra.mxu0 %v421
  %1489 = vmatpush.msra.mxu0 %v419
  %1490 = vmatpush.msra.mxu0 %v417
  %1491 = vmatpush.msra.mxu0 %v415
  %1492 = vmatpush.msra.mxu0 %v413
  %1493 = vmatpush.msra.mxu0 %v411
  %1494 = vmatpush.msra.mxu0 %v409
  %1495 = vmatpush.msra.mxu0 %v407
  %1496 = vmatmul.f32.gmra.mxu0 %v24
  %v1497 = vpop.f32.mrf.mxu0
  %v1498 = vadd.f32 %v1469, %v1497
  %1499 = vmatmul.f32.gmra.mxu0 %v42
  %v1500 = vpop.f32.mrf.mxu0
  %v1501 = vadd.f32 %v1472, %v1500
  %1502 = vmatmul.f32.gmra.mxu0 %v60
  %v1503 = vpop.f32.mrf.mxu0
  %v1504 = vadd.f32 %v1475, %v1503
  %1505 = vmatmul.f32.gmra.mxu0 %v78
  %v1506 = vpop.f32.mrf.mxu0
  %v1507 = vadd.f32 %v1478, %v1506
  %1508 = vdwg.mxu0
  %1509 = vmatpush.msra.mxu0 %v469
  %1510 = vmatpush.msra.mxu0 %v467
  %1511 = vmatpush.msra.mxu0 %v465
  %1512 = vmatpush.msra.mxu0 %v463
  %1513 = vmatpush.msra.mxu0 %v461
  %1514 = vmatpush.msra.mxu0 %v459
  %1515 = vmatpush.msra.mxu0 %v457
  %1516 = vmatpush.msra.mxu0 %v455
  %1517 = vmatpush.msra.mxu0 %v453
  %1518 = vmatpush.msra.mxu0 %v451
  %1519 = vmatpush.msra.mxu0 %v449
  %1520 = vmatpush.msra.mxu0 %v447
  %1521 = vmatpush.msra.mxu0 %v445
  %1522 = vmatpush.msra.mxu0 %v443
  %1523 = vmatpush.msra.mxu0 %v441
  %1524 = vmatpush.msra.mxu0 %v439
  %1525 = vmatmul.f32.gmra.mxu0 %v25
  %v1526 = vpop.f32.mrf.mxu0
  %v1527 = vadd.f32 %v1498, %v1526
  %1528 = vmatmul.f32.gmra.mxu0 %v43
  %v1529 = vpop.f32.mrf.mxu0
  %v1530 = vadd.f32 %v1501, %v1529
  %1531 = vmatmul.f32.gmra.mxu0 %v61
  %v1532 = vpop.f32.mrf.mxu0
  %v1533 = vadd.f32 %v1504, %v1532
  %1534 = vmatmul.f32.gmra.mxu0 %v79
  %v1535 = vpop.f32.mrf.mxu0
  %v1536 = vadd.f32 %v1507, %v1535
  %1537 = vdwg.mxu0
  %1538 = vmatpush.msra.mxu0 %v501
  %1539 = vmatpush.msra.mxu0 %v499
  %1540 = vmatpush.msra.mxu0 %v497
  %1541 = vmatpush.msra.mxu0 %v495
  %1542 = vmatpush.msra.mxu0 %v493
  %1543 = vmatpush.msra.mxu0 %v491
  %1544 = vmatpush.msra.mxu0 %v489
  %1545 = vmatpush.msra.mxu0 %v487
  %1546 = vmatpush.msra.mxu0 %v485
  %1547 = vmatpush.msra.mxu0 %v483
  %1548 = vmatpush.msra.mxu0 %v481
  %1549 = vmatpush.msra.mxu0 %v479
  %1550 = vmatpush.msra.mxu0 %v477
  %1551 = vmatpush.msra.mxu0 %v475
  %1552 = vmatpush.msra.mxu0 %v473
  %1553 = vmatpush.msra.mxu0 %v471
  %1554 = vmatmul.f32.gmra.mxu0 %v26
  %v1555 = vpop.f32.mrf.mxu0
  %v1556 = vadd.f32 %v1527, %v1555
  %1557 = vmatmul.f32.gmra.mxu0 %v44
  %v1558 = vpop.f32.mrf.mxu0
  %v1559 = vadd.f32 %v1530, %v1558
  %1560 = vmatmul.f32.gmra.mxu0 %v62
  %v1561 = vpop.f32.mrf.mxu0
  %v1562 = vadd.f32 %v1533, %v1561
  %1563 = vmatmul.f32.gmra.mxu0 %v80
  %v1564 = vpop.f32.mrf.mxu0
  %v1565 = vadd.f32 %v1536, %v1564
  %1566 = vdwg.mxu0
  %1567 = vmatpush.msra.mxu0 %v533
  %1568 = vmatpush.msra.mxu0 %v531
  %1569 = vmatpush.msra.mxu0 %v529
  %1570 = vmatpush.msra.mxu0 %v527
  %1571 = vmatpush.msra.mxu0 %v525
  %1572 = vmatpush.msra.mxu0 %v523
  %1573 = vmatpush.msra.mxu0 %v521
  %1574 = vmatpush.msra.mxu0 %v519
  %1575 = vmatpush.msra.mxu0 %v517
  %1576 = vmatpush.msra.mxu0 %v515
  %1577 = vmatpush.msra.mxu0 %v513
  %1578 = vmatpush.msra.mxu0 %v511
  %1579 = vmatpush.msra.mxu0 %v509
  %1580 = vmatpush.msra.mxu0 %v507
  %1581 = vmatpush.msra.mxu0 %v505
  %1582 = vmatpush.msra.mxu0 %v503
  %1583 = vmatmul.f32.gmra.mxu0 %v27
  %v1584 = vpop.f32.mrf.mxu0
  %v1585 = vadd.f32 %v1556, %v1584
  %1586 = vmatmul.f32.gmra.mxu0 %v45
  %v1587 = vpop.f32.mrf.mxu0
  %v1588 = vadd.f32 %v1559, %v1587
  %1589 = vmatmul.f32.gmra.mxu0 %v63
  %v1590 = vpop.f32.mrf.mxu0
  %v1591 = vadd.f32 %v1562, %v1590
  %1592 = vmatmul.f32.gmra.mxu0 %v81
  %v1593 = vpop.f32.mrf.mxu0
  %v1594 = vadd.f32 %v1565, %v1593
  %1595 = vdwg.mxu0
  %1596 = vmatpush.msra.mxu0 %v565
  %1597 = vmatpush.msra.mxu0 %v563
  %1598 = vmatpush.msra.mxu0 %v561
  %1599 = vmatpush.msra.mxu0 %v559
  %1600 = vmatpush.msra.mxu0 %v557
  %1601 = vmatpush.msra.mxu0 %v555
  %1602 = vmatpush.msra.mxu0 %v553
  %1603 = vmatpush.msra.mxu0 %v551
  %1604 = vmatpush.msra.mxu0 %v549
  %1605 = vmatpush.msra.mxu0 %v547
  %1606 = vmatpush.msra.mxu0 %v545
  %1607 = vmatpush.msra.mxu0 %v543
  %1608 = vmatpush.msra.mxu0 %v541
  %1609 = vmatpush.msra.mxu0 %v539
  %1610 = vmatpush.msra.mxu0 %v537
  %1611 = vmatpush.msra.mxu0 %v535
  %1612 = vmatmul.f32.gmra.mxu0 %v28
  %v1613 = vpop.f32.mrf.mxu0
  %v1614 = vadd.f32 %v1585, %v1613
  %1615 = vmatmul.f32.gmra.mxu0 %v46
  %v1616 = vpop.f32.mrf.mxu0
  %v1617 = vadd.f32 %v1588, %v1616
  %1618 = vmatmul.f32.gmra.mxu0 %v64
  %v1619 = vpop.f32.mrf.mxu0
  %v1620 = vadd.f32 %v1591, %v1619
  %1621 = vmatmul.f32.gmra.mxu0 %v82
  %v1622 = vpop.f32.mrf.mxu0
  %v1623 = vadd.f32 %v1594, %v1622
  %1624 = vdwg.mxu0
  %1625 = vmatpush.msra.mxu0 %v597
  %1626 = vmatpush.msra.mxu0 %v595
  %1627 = vmatpush.msra.mxu0 %v593
  %1628 = vmatpush.msra.mxu0 %v591
  %1629 = vmatpush.msra.mxu0 %v589
  %1630 = vmatpush.msra.mxu0 %v587
  %1631 = vmatpush.msra.mxu0 %v585
  %1632 = vmatpush.msra.mxu0 %v583
  %1633 = vmatpush.msra.mxu0 %v581
  %1634 = vmatpush.msra.mxu0 %v579
  %1635 = vmatpush.msra.mxu0 %v577
  %1636 = vmatpush.msra.mxu0 %v575
  %1637 = vmatpush.msra.mxu0 %v573
  %1638 = vmatpush.msra.mxu0 %v571
  %1639 = vmatpush.msra.mxu0 %v569
  %1640 = vmatpush.msra.mxu0 %v567
  %1641 = vmatmul.f32.gmra.mxu0 %v29
  %v1642 = vpop.f32.mrf.mxu0
  %v1643 = vadd.f32 %v1614, %v1642
  %1644 = vmatmul.f32.gmra.mxu0 %v47
  %v1645 = vpop.f32.mrf.mxu0
  %v1646 = vadd.f32 %v1617, %v1645
  %1647 = vmatmul.f32.gmra.mxu0 %v65
  %v1648 = vpop.f32.mrf.mxu0
  %v1649 = vadd.f32 %v1620, %v1648
  %1650 = vmatmul.f32.gmra.mxu0 %v83
  %v1651 = vpop.f32.mrf.mxu0
  %v1652 = vadd.f32 %v1623, %v1651
  %1653 = vdwg.mxu0
  %1654 = vmatpush.msra.mxu0 %v629
  %1655 = vmatpush.msra.mxu0 %v627
  %1656 = vmatpush.msra.mxu0 %v625
  %1657 = vmatpush.msra.mxu0 %v623
  %1658 = vmatpush.msra.mxu0 %v621
  %1659 = vmatpush.msra.mxu0 %v619
  %1660 = vmatpush.msra.mxu0 %v617
  %1661 = vmatpush.msra.mxu0 %v615
  %1662 = vmatpush.msra.mxu0 %v613
  %1663 = vmatpush.msra.mxu0 %v611
  %1664 = vmatpush.msra.mxu0 %v609
  %1665 = vmatpush.msra.mxu0 %v607
  %1666 = vmatpush.msra.mxu0 %v605
  %1667 = vmatpush.msra.mxu0 %v603
  %1668 = vmatpush.msra.mxu0 %v601
  %1669 = vmatpush.msra.mxu0 %v599
  %1670 = vmatmul.f32.gmra.mxu0 %v30
  %v1671 = vpop.f32.mrf.mxu0
  %v1672 = vadd.f32 %v1643, %v1671
  %1673 = vmatmul.f32.gmra.mxu0 %v48
  %v1674 = vpop.f32.mrf.mxu0
  %v1675 = vadd.f32 %v1646, %v1674
  %1676 = vmatmul.f32.gmra.mxu0 %v66
  %v1677 = vpop.f32.mrf.mxu0
  %v1678 = vadd.f32 %v1649, %v1677
  %1679 = vmatmul.f32.gmra.mxu0 %v84
  %v1680 = vpop.f32.mrf.mxu0
  %v1681 = vadd.f32 %v1652, %v1680
  %1682 = vdwg.mxu0
  %1683 = vmatpush.msra.mxu0 %v661
  %1684 = vmatpush.msra.mxu0 %v659
  %1685 = vmatpush.msra.mxu0 %v657
  %1686 = vmatpush.msra.mxu0 %v655
  %1687 = vmatpush.msra.mxu0 %v653
  %1688 = vmatpush.msra.mxu0 %v651
  %1689 = vmatpush.msra.mxu0 %v649
  %1690 = vmatpush.msra.mxu0 %v647
  %1691 = vmatpush.msra.mxu0 %v645
  %1692 = vmatpush.msra.mxu0 %v643
  %1693 = vmatpush.msra.mxu0 %v641
  %1694 = vmatpush.msra.mxu0 %v639
  %1695 = vmatpush.msra.mxu0 %v637
  %1696 = vmatpush.msra.mxu0 %v635
  %1697 = vmatpush.msra.mxu0 %v633
  %1698 = vmatpush.msra.mxu0 %v631
  %1699 = vmatmul.f32.gmra.mxu0 %v31
  %v1700 = vpop.f32.mrf.mxu0
  %v1701 = vadd.f32 %v1672, %v1700
  %1702 = vmatmul.f32.gmra.mxu0 %v49
  %v1703 = vpop.f32.mrf.mxu0
  %v1704 = vadd.f32 %v1675, %v1703
  %1705 = vmatmul.f32.gmra.mxu0 %v67
  %v1706 = vpop.f32.mrf.mxu0
  %v1707 = vadd.f32 %v1678, %v1706
  %1708 = vmatmul.f32.gmra.mxu0 %v85
  %v1709 = vpop.f32.mrf.mxu0
  %v1710 = vadd.f32 %v1681, %v1709
  %1711 = vdwg.mxu0
  %v1712 = vmax.f32 %v1179, 0.0
  %v1713 = vmax.f32 %v1701, 0.0
  %v1714 = vmax.f32 %v1182, 0.0
  %v1715 = vmax.f32 %v1704, 0.0
  %v1716 = vmax.f32 %v1185, 0.0
  %v1717 = vmax.f32 %v1707, 0.0
  %v1718 = vmax.f32 %v1188, 0.0
  %v1719 = vmax.f32 %v1710, 0.0
  %1720 = vst [vmem:[%s3] sm:$0xff] %v1712
  %1721 = vst [vmem:[%s3 + $0x8] sm:$0xff] %v1713
  %1722 = vst [vmem:[%s3 + $0x10] sm:$0xff] %v1714
  %1723 = vst [vmem:[%s3 + $0x18] sm:$0xff] %v1715
  %1724 = vst [vmem:[%s3 + $0x20] sm:$0xff] %v1716
  %1725 = vst [vmem:[%s3 + $0x28] sm:$0xff] %v1717
  %1726 = vst [vmem:[%s3 + $0x30] sm:$0xff] %v1718
  %1727 = vst [vmem:[%s3 + $0x38] sm:$0xff] %v1719
  // Predicated region
  $region14: #{_lambda_.21} parent=0 // pred_check
    _
  $region15: #{_lambda_.21} parent=0 // pred_check_branch
    %1729 = sbr.rel (0) target = $region17
  $region16: #{_lambda_.21} parent=0 // pred_region
    _
  $region17: #{_lambda_.21} parent=0 // pred_fallthru
    _
  // Predicated region
  $region18: #{_lambda_.21} parent=0 // pred_check
    _
  $region19: #{_lambda_.21} parent=0 // pred_check_branch
    %1731 = sbr.rel (0) target = $region21
  $region20: #{_lambda_.21} parent=0 // pred_region
    _
  $region21: #{_lambda_.21} parent=0 // pred_fallthru
    _

// kernel: _lambda_.25
$region0: #{_lambda_.25}
  #allocation0 [shape = 'u32[]', space=smem, size = 0x4, offset = 0x4, fixed_abs, tag = 'smem constant byte address 0x4 - core index']
  #allocation1 [shape = 'u32[72,128]{1,0:T(1,128)}', space=vmem, size = 0x9000, scoped, tag = 'internal scratch']
  %s0 = inlined_call_operand.vmem [shape: f32[8,2304], index: 0, kind: input, shape index: {}]
  %s1 = inlined_call_operand.vmem [shape: f32[2304,512], index: 1, kind: input, shape index: {}]
  %s2 = inlined_call_operand.vmem [shape: f32[1,512], index: 2, kind: input, shape index: {}]
  %s3 = inlined_call_operand.vmem [shape: f32[8,512], index: 3, kind: output, shape index: {}]
  %s4 = sld [smem:[#allocation0]]
  $region22: #{_lambda_.25} parent=0
    _
  %s6 = ssub.s32 1, %s4
  %s7 = scalar_select 0, %s6, %s4
  // Predicated region
  $region2: #{_lambda_.25} parent=0 // pred_check
    _
  $region3: #{_lambda_.25} parent=0 // pred_check_branch
    %9 = sbr.rel (0) target = $region5
  $region4: #{_lambda_.25} parent=0 // pred_region
    _
  $region5: #{_lambda_.25} parent=0 // pred_fallthru
    _
  // Predicated region
  $region6: #{_lambda_.25} parent=0 // pred_check
    _
  $region7: #{_lambda_.25} parent=0 // pred_check_branch
    %11 = sbr.rel (0) target = $region9
  $region8: #{_lambda_.25} parent=0 // pred_region
    _
  $region9: #{_lambda_.25} parent=0 // pred_fallthru
    _
  // Predicated region
  $region10: #{_lambda_.25} parent=0 // pred_check
    _
  $region11: #{_lambda_.25} parent=0 // pred_check_branch
    %13 = sbr.rel (0) target = $region13
  $region12: #{_lambda_.25} parent=0 // pred_region
    _
  $region13: #{_lambda_.25} parent=0 // pred_fallthru
    _
  %v14 = vld [vmem:[%s0] sm:$0xff]
  %v15 = vld [vmem:[%s0 + $0x8] sm:$0xff]
  %v16 = vld [vmem:[%s0 + $0x10] sm:$0xff]
  %v17 = vld [vmem:[%s0 + $0x18] sm:$0xff]
  %v18 = vld [vmem:[%s0 + $0x20] sm:$0xff]
  %v19 = vld [vmem:[%s0 + $0x28] sm:$0xff]
  %v20 = vld [vmem:[%s0 + $0x30] sm:$0xff]
  %v21 = vld [vmem:[%s0 + $0x38] sm:$0xff]
  %v22 = vld [vmem:[%s0 + $0x40] sm:$0xff]
  %v23 = vld [vmem:[%s0 + $0x48] sm:$0xff]
  %v24 = vld [vmem:[%s0 + $0x50] sm:$0xff]
  %v25 = vld [vmem:[%s0 + $0x58] sm:$0xff]
  %v26 = vld [vmem:[%s0 + $0x60] sm:$0xff]
  %v27 = vld [vmem:[%s0 + $0x68] sm:$0xff]
  %v28 = vld [vmem:[%s0 + $0x70] sm:$0xff]
  %v29 = vld [vmem:[%s0 + $0x78] sm:$0xff]
  %v30 = vld [vmem:[%s0 + $0x80] sm:$0xff]
  %v31 = vld [vmem:[%s0 + $0x88] sm:$0xff]
  %v32 = vld [vmem:[%s1] sm:$0xff]
  %v33 = vld [vmem:[%s1 + $0x8] sm:$0xff]
  %v34 = vld [vmem:[%s1 + $0x10] sm:$0xff]
  %v35 = vld [vmem:[%s1 + $0x18] sm:$0xff]
  %v36 = vld [vmem:[%s1 + $0x20] sm:$0xff]
  %v37 = vld [vmem:[%s1 + $0x28] sm:$0xff]
  %v38 = vld [vmem:[%s1 + $0x30] sm:$0xff]
  %v39 = vld [vmem:[%s1 + $0x38] sm:$0xff]
  %v40 = vld [vmem:[%s1 + $0x40] sm:$0xff]
  %v41 = vld [vmem:[%s1 + $0x48] sm:$0xff]
  %v42 = vld [vmem:[%s1 + $0x50] sm:$0xff]
  %v43 = vld [vmem:[%s1 + $0x58] sm:$0xff]
  %v44 = vld [vmem:[%s1 + $0x60] sm:$0xff]
  %v45 = vld [vmem:[%s1 + $0x68] sm:$0xff]
  %v46 = vld [vmem:[%s1 + $0x70] sm:$0xff]
  %v47 = vld [vmem:[%s1 + $0x78] sm:$0xff]
  %v48 = vld [vmem:[%s1 + $0x80] sm:$0xff]
  %v49 = vld [vmem:[%s1 + $0x88] sm:$0xff]
  %v50 = vld [vmem:[%s1 + $0x90] sm:$0xff]
  %v51 = vld [vmem:[%s1 + $0x98] sm:$0xff]
  %v52 = vld [vmem:[%s1 + $0xa0] sm:$0xff]
  %v53 = vld [vmem:[%s1 + $0xa8] sm:$0xff]
  %v54 = vld [vmem:[%s1 + $0xb0] sm:$0xff]
  %v55 = vld [vmem:[%s1 + $0xb8] sm:$0xff]
  %v56 = vld [vmem:[%s1 + $0xc0] sm:$0xff]
  %v57 = vld [vmem:[%s1 + $0xc8] sm:$0xff]
  %v58 = vld [vmem:[%s1 + $0xd0] sm:$0xff]
  %v59 = vld [vmem:[%s1 + $0xd8] sm:$0xff]
  %v60 = vld [vmem:[%s1 + $0xe0] sm:$0xff]
  %v61 = vld [vmem:[%s1 + $0xe8] sm:$0xff]
  %v62 = vld [vmem:[%s1 + $0xf0] sm:$0xff]
  %v63 = vld [vmem:[%s1 + $0xf8] sm:$0xff]
  %v64 = vld [vmem:[%s1 + $0x100] sm:$0xff]
  %v65 = vld [vmem:[%s1 + $0x108] sm:$0xff]
  %v66 = vld [vmem:[%s1 + $0x110] sm:$0xff]
  %v67 = vld [vmem:[%s1 + $0x118] sm:$0xff]
  %v68 = vld [vmem:[%s1 + $0x120] sm:$0xff]
  %v69 = vld [vmem:[%s1 + $0x128] sm:$0xff]
  %v70 = vld [vmem:[%s1 + $0x130] sm:$0xff]
  %v71 = vld [vmem:[%s1 + $0x138] sm:$0xff]
  %v72 = vld [vmem:[%s1 + $0x140] sm:$0xff]
  %v73 = vld [vmem:[%s1 + $0x148] sm:$0xff]
  %v74 = vld [vmem:[%s1 + $0x150] sm:$0xff]
  %v75 = vld [vmem:[%s1 + $0x158] sm:$0xff]
  %v76 = vld [vmem:[%s1 + $0x160] sm:$0xff]
  %v77 = vld [vmem:[%s1 + $0x168] sm:$0xff]
  %v78 = vld [vmem:[%s1 + $0x170] sm:$0xff]
  %v79 = vld [vmem:[%s1 + $0x178] sm:$0xff]
  %v80 = vld [vmem:[%s1 + $0x180] sm:$0xff]
  %v81 = vld [vmem:[%s1 + $0x188] sm:$0xff]
  %v82 = vld [vmem:[%s1 + $0x190] sm:$0xff]
  %v83 = vld [vmem:[%s1 + $0x198] sm:$0xff]
  %v84 = vld [vmem:[%s1 + $0x1a0] sm:$0xff]
  %v85 = vld [vmem:[%s1 + $0x1a8] sm:$0xff]
  %v86 = vld [vmem:[%s1 + $0x1b0] sm:$0xff]
  %v87 = vld [vmem:[%s1 + $0x1b8] sm:$0xff]
  %v88 = vld [vmem:[%s1 + $0x1c0] sm:$0xff]
  %v89 = vld [vmem:[%s1 + $0x1c8] sm:$0xff]
  %v90 = vld [vmem:[%s1 + $0x1d0] sm:$0xff]
  %v91 = vld [vmem:[%s1 + $0x1d8] sm:$0xff]
  %v92 = vld [vmem:[%s1 + $0x1e0] sm:$0xff]
  %v93 = vld [vmem:[%s1 + $0x1e8] sm:$0xff]
  %v94 = vld [vmem:[%s1 + $0x1f0] sm:$0xff]
  %v95 = vld [vmem:[%s1 + $0x1f8] sm:$0xff]
  %v96 = vld [vmem:[%s1 + $0x200] sm:$0xff]
  %v97 = vld [vmem:[%s1 + $0x208] sm:$0xff]
  %v98 = vld [vmem:[%s1 + $0x210] sm:$0xff]
  %v99 = vld [vmem:[%s1 + $0x218] sm:$0xff]
  %v100 = vld [vmem:[%s1 + $0x220] sm:$0xff]
  %v101 = vld [vmem:[%s1 + $0x228] sm:$0xff]
  %v102 = vld [vmem:[%s1 + $0x230] sm:$0xff]
  %v103 = vld [vmem:[%s1 + $0x238] sm:$0xff]
  %v104 = vld [vmem:[%s1 + $0x240] sm:$0xff]
  %v105 = vld [vmem:[%s1 + $0x248] sm:$0xff]
  %v106 = vld [vmem:[%s1 + $0x250] sm:$0xff]
  %v107 = vld [vmem:[%s1 + $0x258] sm:$0xff]
  %v108 = vld [vmem:[%s1 + $0x260] sm:$0xff]
  %v109 = vld [vmem:[%s1 + $0x268] sm:$0xff]
  %v110 = vld [vmem:[%s1 + $0x270] sm:$0xff]
  %v111 = vld [vmem:[%s1 + $0x278] sm:$0xff]
  %v112 = vld [vmem:[%s1 + $0x280] sm:$0xff]
  %v113 = vld [vmem:[%s1 + $0x288] sm:$0xff]
  %v114 = vld [vmem:[%s1 + $0x290] sm:$0xff]
  %v115 = vld [vmem:[%s1 + $0x298] sm:$0xff]
  %v116 = vld [vmem:[%s1 + $0x2a0] sm:$0xff]
  %v117 = vld [vmem:[%s1 + $0x2a8] sm:$0xff]
  %v118 = vld [vmem:[%s1 + $0x2b0] sm:$0xff]
  %v119 = vld [vmem:[%s1 + $0x2b8] sm:$0xff]
  %v120 = vld [vmem:[%s1 + $0x2c0] sm:$0xff]
  %v121 = vld [vmem:[%s1 + $0x2c8] sm:$0xff]
  %v122 = vld [vmem:[%s1 + $0x2d0] sm:$0xff]
  %v123 = vld [vmem:[%s1 + $0x2d8] sm:$0xff]
  %v124 = vld [vmem:[%s1 + $0x2e0] sm:$0xff]
  %v125 = vld [vmem:[%s1 + $0x2e8] sm:$0xff]
  %v126 = vld [vmem:[%s1 + $0x2f0] sm:$0xff]
  %v127 = vld [vmem:[%s1 + $0x2f8] sm:$0xff]
  %v128 = vld [vmem:[%s1 + $0x300] sm:$0xff]
  %v129 = vld [vmem:[%s1 + $0x308] sm:$0xff]
  %v130 = vld [vmem:[%s1 + $0x310] sm:$0xff]
  %v131 = vld [vmem:[%s1 + $0x318] sm:$0xff]
  %v132 = vld [vmem:[%s1 + $0x320] sm:$0xff]
  %v133 = vld [vmem:[%s1 + $0x328] sm:$0xff]
  %v134 = vld [vmem:[%s1 + $0x330] sm:$0xff]
  %v135 = vld [vmem:[%s1 + $0x338] sm:$0xff]
  %v136 = vld [vmem:[%s1 + $0x340] sm:$0xff]
  %v137 = vld [vmem:[%s1 + $0x348] sm:$0xff]
  %v138 = vld [vmem:[%s1 + $0x350] sm:$0xff]
  %v139 = vld [vmem:[%s1 + $0x358] sm:$0xff]
  %v140 = vld [vmem:[%s1 + $0x360] sm:$0xff]
  %v141 = vld [vmem:[%s1 + $0x368] sm:$0xff]
  %v142 = vld [vmem:[%s1 + $0x370] sm:$0xff]
  %v143 = vld [vmem:[%s1 + $0x378] sm:$0xff]
  %v144 = vld [vmem:[%s1 + $0x380] sm:$0xff]
  %v145 = vld [vmem:[%s1 + $0x388] sm:$0xff]
  %v146 = vld [vmem:[%s1 + $0x390] sm:$0xff]
  %v147 = vld [vmem:[%s1 + $0x398] sm:$0xff]
  %v148 = vld [vmem:[%s1 + $0x3a0] sm:$0xff]
  %v149 = vld [vmem:[%s1 + $0x3a8] sm:$0xff]
  %v150 = vld [vmem:[%s1 + $0x3b0] sm:$0xff]
  %v151 = vld [vmem:[%s1 + $0x3b8] sm:$0xff]
  %v152 = vld [vmem:[%s1 + $0x3c0] sm:$0xff]
  %v153 = vld [vmem:[%s1 + $0x3c8] sm:$0xff]
  %v154 = vld [vmem:[%s1 + $0x3d0] sm:$0xff]
  %v155 = vld [vmem:[%s1 + $0x3d8] sm:$0xff]
  %v156 = vld [vmem:[%s1 + $0x3e0] sm:$0xff]
  %v157 = vld [vmem:[%s1 + $0x3e8] sm:$0xff]
  %v158 = vld [vmem:[%s1 + $0x3f0] sm:$0xff]
  %v159 = vld [vmem:[%s1 + $0x3f8] sm:$0xff]
  %v160 = vld [vmem:[%s1 + $0x400] sm:$0xff]
  %v161 = vld [vmem:[%s1 + $0x408] sm:$0xff]
  %v162 = vld [vmem:[%s1 + $0x410] sm:$0xff]
  %v163 = vld [vmem:[%s1 + $0x418] sm:$0xff]
  %v164 = vld [vmem:[%s1 + $0x420] sm:$0xff]
  %v165 = vld [vmem:[%s1 + $0x428] sm:$0xff]
  %v166 = vld [vmem:[%s1 + $0x430] sm:$0xff]
  %v167 = vld [vmem:[%s1 + $0x438] sm:$0xff]
  %v168 = vld [vmem:[%s1 + $0x440] sm:$0xff]
  %v169 = vld [vmem:[%s1 + $0x448] sm:$0xff]
  %v170 = vld [vmem:[%s1 + $0x450] sm:$0xff]
  %v171 = vld [vmem:[%s1 + $0x458] sm:$0xff]
  %v172 = vld [vmem:[%s1 + $0x460] sm:$0xff]
  %v173 = vld [vmem:[%s1 + $0x468] sm:$0xff]
  %v174 = vld [vmem:[%s1 + $0x470] sm:$0xff]
  %v175 = vld [vmem:[%s1 + $0x478] sm:$0xff]
  %v176 = vld [vmem:[%s1 + $0x480] sm:$0xff]
  %v177 = vld [vmem:[%s1 + $0x488] sm:$0xff]
  %v178 = vld [vmem:[%s1 + $0x490] sm:$0xff]
  %v179 = vld [vmem:[%s1 + $0x498] sm:$0xff]
  %v180 = vld [vmem:[%s1 + $0x4a0] sm:$0xff]
  %v181 = vld [vmem:[%s1 + $0x4a8] sm:$0xff]
  %v182 = vld [vmem:[%s1 + $0x4b0] sm:$0xff]
  %v183 = vld [vmem:[%s1 + $0x4b8] sm:$0xff]
  %v184 = vld [vmem:[%s1 + $0x4c0] sm:$0xff]
  %v185 = vld [vmem:[%s1 + $0x4c8] sm:$0xff]
  %v186 = vld [vmem:[%s1 + $0x4d0] sm:$0xff]
  %v187 = vld [vmem:[%s1 + $0x4d8] sm:$0xff]
  %v188 = vld [vmem:[%s1 + $0x4e0] sm:$0xff]
  %v189 = vld [vmem:[%s1 + $0x4e8] sm:$0xff]
  %v190 = vld [vmem:[%s1 + $0x4f0] sm:$0xff]
  %v191 = vld [vmem:[%s1 + $0x4f8] sm:$0xff]
  %v192 = vld [vmem:[%s1 + $0x500] sm:$0xff]
  %v193 = vld [vmem:[%s1 + $0x508] sm:$0xff]
  %v194 = vld [vmem:[%s1 + $0x510] sm:$0xff]
  %v195 = vld [vmem:[%s1 + $0x518] sm:$0xff]
  %v196 = vld [vmem:[%s1 + $0x520] sm:$0xff]
  %v197 = vld [vmem:[%s1 + $0x528] sm:$0xff]
  %v198 = vld [vmem:[%s1 + $0x530] sm:$0xff]
  %v199 = vld [vmem:[%s1 + $0x538] sm:$0xff]
  %v200 = vld [vmem:[%s1 + $0x540] sm:$0xff]
  %v201 = vld [vmem:[%s1 + $0x548] sm:$0xff]
  %v202 = vld [vmem:[%s1 + $0x550] sm:$0xff]
  %v203 = vld [vmem:[%s1 + $0x558] sm:$0xff]
  %v204 = vld [vmem:[%s1 + $0x560] sm:$0xff]
  %v205 = vld [vmem:[%s1 + $0x568] sm:$0xff]
  %v206 = vld [vmem:[%s1 + $0x570] sm:$0xff]
  %v207 = vld [vmem:[%s1 + $0x578] sm:$0xff]
  %v208 = vld [vmem:[%s1 + $0x580] sm:$0xff]
  %v209 = vld [vmem:[%s1 + $0x588] sm:$0xff]
  %v210 = vld [vmem:[%s1 + $0x590] sm:$0xff]
  %v211 = vld [vmem:[%s1 + $0x598] sm:$0xff]
  %v212 = vld [vmem:[%s1 + $0x5a0] sm:$0xff]
  %v213 = vld [vmem:[%s1 + $0x5a8] sm:$0xff]
  %v214 = vld [vmem:[%s1 + $0x5b0] sm:$0xff]
  %v215 = vld [vmem:[%s1 + $0x5b8] sm:$0xff]
  %v216 = vld [vmem:[%s1 + $0x5c0] sm:$0xff]
  %v217 = vld [vmem:[%s1 + $0x5c8] sm:$0xff]
  %v218 = vld [vmem:[%s1 + $0x5d0] sm:$0xff]
  %v219 = vld [vmem:[%s1 + $0x5d8] sm:$0xff]
  %v220 = vld [vmem:[%s1 + $0x5e0] sm:$0xff]
  %v221 = vld [vmem:[%s1 + $0x5e8] sm:$0xff]
  %v222 = vld [vmem:[%s1 + $0x5f0] sm:$0xff]
  %v223 = vld [vmem:[%s1 + $0x5f8] sm:$0xff]
  %v224 = vld [vmem:[%s1 + $0x600] sm:$0xff]
  %v225 = vld [vmem:[%s1 + $0x608] sm:$0xff]
  %v226 = vld [vmem:[%s1 + $0x610] sm:$0xff]
  %v227 = vld [vmem:[%s1 + $0x618] sm:$0xff]
  %v228 = vld [vmem:[%s1 + $0x620] sm:$0xff]
  %v229 = vld [vmem:[%s1 + $0x628] sm:$0xff]
  %v230 = vld [vmem:[%s1 + $0x630] sm:$0xff]
  %v231 = vld [vmem:[%s1 + $0x638] sm:$0xff]
  %v232 = vld [vmem:[%s1 + $0x640] sm:$0xff]
  %v233 = vld [vmem:[%s1 + $0x648] sm:$0xff]
  %v234 = vld [vmem:[%s1 + $0x650] sm:$0xff]
  %v235 = vld [vmem:[%s1 + $0x658] sm:$0xff]
  %v236 = vld [vmem:[%s1 + $0x660] sm:$0xff]
  %v237 = vld [vmem:[%s1 + $0x668] sm:$0xff]
  %v238 = vld [vmem:[%s1 + $0x670] sm:$0xff]
  %v239 = vld [vmem:[%s1 + $0x678] sm:$0xff]
  %v240 = vld [vmem:[%s1 + $0x680] sm:$0xff]
  %v241 = vld [vmem:[%s1 + $0x688] sm:$0xff]
  %v242 = vld [vmem:[%s1 + $0x690] sm:$0xff]
  %v243 = vld [vmem:[%s1 + $0x698] sm:$0xff]
  %v244 = vld [vmem:[%s1 + $0x6a0] sm:$0xff]
  %v245 = vld [vmem:[%s1 + $0x6a8] sm:$0xff]
  %v246 = vld [vmem:[%s1 + $0x6b0] sm:$0xff]
  %v247 = vld [vmem:[%s1 + $0x6b8] sm:$0xff]
  %v248 = vld [vmem:[%s1 + $0x6c0] sm:$0xff]
  %v249 = vld [vmem:[%s1 + $0x6c8] sm:$0xff]
  %v250 = vld [vmem:[%s1 + $0x6d0] sm:$0xff]
  %v251 = vld [vmem:[%s1 + $0x6d8] sm:$0xff]
  %v252 = vld [vmem:[%s1 + $0x6e0] sm:$0xff]
  %v253 = vld [vmem:[%s1 + $0x6e8] sm:$0xff]
  %v254 = vld [vmem:[%s1 + $0x6f0] sm:$0xff]
  %v255 = vld [vmem:[%s1 + $0x6f8] sm:$0xff]
  %v256 = vld [vmem:[%s1 + $0x700] sm:$0xff]
  %v257 = vld [vmem:[%s1 + $0x708] sm:$0xff]
  %v258 = vld [vmem:[%s1 + $0x710] sm:$0xff]
  %v259 = vld [vmem:[%s1 + $0x718] sm:$0xff]
  %v260 = vld [vmem:[%s1 + $0x720] sm:$0xff]
  %v261 = vld [vmem:[%s1 + $0x728] sm:$0xff]
  %v262 = vld [vmem:[%s1 + $0x730] sm:$0xff]
  %v263 = vld [vmem:[%s1 + $0x738] sm:$0xff]
  %v264 = vld [vmem:[%s1 + $0x740] sm:$0xff]
  %v265 = vld [vmem:[%s1 + $0x748] sm:$0xff]
  %v266 = vld [vmem:[%s1 + $0x750] sm:$0xff]
  %v267 = vld [vmem:[%s1 + $0x758] sm:$0xff]
  %v268 = vld [vmem:[%s1 + $0x760] sm:$0xff]
  %v269 = vld [vmem:[%s1 + $0x768] sm:$0xff]
  %v270 = vld [vmem:[%s1 + $0x770] sm:$0xff]
  %v271 = vld [vmem:[%s1 + $0x778] sm:$0xff]
  %v272 = vld [vmem:[%s1 + $0x780] sm:$0xff]
  %v273 = vld [vmem:[%s1 + $0x788] sm:$0xff]
  %v274 = vld [vmem:[%s1 + $0x790] sm:$0xff]
  %v275 = vld [vmem:[%s1 + $0x798] sm:$0xff]
  %v276 = vld [vmem:[%s1 + $0x7a0] sm:$0xff]
  %v277 = vld [vmem:[%s1 + $0x7a8] sm:$0xff]
  %v278 = vld [vmem:[%s1 + $0x7b0] sm:$0xff]
  %v279 = vld [vmem:[%s1 + $0x7b8] sm:$0xff]
  %v280 = vld [vmem:[%s1 + $0x7c0] sm:$0xff]
  %v281 = vld [vmem:[%s1 + $0x7c8] sm:$0xff]
  %v282 = vld [vmem:[%s1 + $0x7d0] sm:$0xff]
  %v283 = vld [vmem:[%s1 + $0x7d8] sm:$0xff]
  %v284 = vld [vmem:[%s1 + $0x7e0] sm:$0xff]
  %v285 = vld [vmem:[%s1 + $0x7e8] sm:$0xff]
  %v286 = vld [vmem:[%s1 + $0x7f0] sm:$0xff]
  %v287 = vld [vmem:[%s1 + $0x7f8] sm:$0xff]
  %v288 = vld [vmem:[%s1 + $0x800] sm:$0xff]
  %v289 = vld [vmem:[%s1 + $0x808] sm:$0xff]
  %v290 = vld [vmem:[%s1 + $0x810] sm:$0xff]
  %v291 = vld [vmem:[%s1 + $0x818] sm:$0xff]
  %v292 = vld [vmem:[%s1 + $0x820] sm:$0xff]
  %v293 = vld [vmem:[%s1 + $0x828] sm:$0xff]
  %v294 = vld [vmem:[%s1 + $0x830] sm:$0xff]
  %v295 = vld [vmem:[%s1 + $0x838] sm:$0xff]
  %v296 = vld [vmem:[%s1 + $0x840] sm:$0xff]
  %v297 = vld [vmem:[%s1 + $0x848] sm:$0xff]
  %v298 = vld [vmem:[%s1 + $0x850] sm:$0xff]
  %v299 = vld [vmem:[%s1 + $0x858] sm:$0xff]
  %v300 = vld [vmem:[%s1 + $0x860] sm:$0xff]
  %v301 = vld [vmem:[%s1 + $0x868] sm:$0xff]
  %v302 = vld [vmem:[%s1 + $0x870] sm:$0xff]
  %v303 = vld [vmem:[%s1 + $0x878] sm:$0xff]
  %v304 = vld [vmem:[%s1 + $0x880] sm:$0xff]
  %v305 = vld [vmem:[%s1 + $0x888] sm:$0xff]
  %v306 = vld [vmem:[%s1 + $0x890] sm:$0xff]
  %v307 = vld [vmem:[%s1 + $0x898] sm:$0xff]
  %v308 = vld [vmem:[%s1 + $0x8a0] sm:$0xff]
  %v309 = vld [vmem:[%s1 + $0x8a8] sm:$0xff]
  %v310 = vld [vmem:[%s1 + $0x8b0] sm:$0xff]
  %v311 = vld [vmem:[%s1 + $0x8b8] sm:$0xff]
  %v312 = vld [vmem:[%s1 + $0x8c0] sm:$0xff]
  %v313 = vld [vmem:[%s1 + $0x8c8] sm:$0xff]
  %v314 = vld [vmem:[%s1 + $0x8d0] sm:$0xff]
  %v315 = vld [vmem:[%s1 + $0x8d8] sm:$0xff]
  %v316 = vld [vmem:[%s1 + $0x8e0] sm:$0xff]
  %v317 = vld [vmem:[%s1 + $0x8e8] sm:$0xff]
  %v318 = vld [vmem:[%s1 + $0x8f0] sm:$0xff]
  %v319 = vld [vmem:[%s1 + $0x8f8] sm:$0xff]
  %v320 = vld [vmem:[%s1 + $0x900] sm:$0xff]
  %v321 = vld [vmem:[%s1 + $0x908] sm:$0xff]
  %v322 = vld [vmem:[%s1 + $0x910] sm:$0xff]
  %v323 = vld [vmem:[%s1 + $0x918] sm:$0xff]
  %v324 = vld [vmem:[%s1 + $0x920] sm:$0xff]
  %v325 = vld [vmem:[%s1 + $0x928] sm:$0xff]
  %v326 = vld [vmem:[%s1 + $0x930] sm:$0xff]
  %v327 = vld [vmem:[%s1 + $0x938] sm:$0xff]
  %v328 = vld [vmem:[%s1 + $0x940] sm:$0xff]
  %v329 = vld [vmem:[%s1 + $0x948] sm:$0xff]
  %v330 = vld [vmem:[%s1 + $0x950] sm:$0xff]
  %v331 = vld [vmem:[%s1 + $0x958] sm:$0xff]
  %v332 = vld [vmem:[%s1 + $0x960] sm:$0xff]
  %v333 = vld [vmem:[%s1 + $0x968] sm:$0xff]
  %v334 = vld [vmem:[%s1 + $0x970] sm:$0xff]
  %v335 = vld [vmem:[%s1 + $0x978] sm:$0xff]
  %v336 = vld [vmem:[%s1 + $0x980] sm:$0xff]
  %v337 = vld [vmem:[%s1 + $0x988] sm:$0xff]
  %v338 = vld [vmem:[%s1 + $0x990] sm:$0xff]
  %v339 = vld [vmem:[%s1 + $0x998] sm:$0xff]
  %v340 = vld [vmem:[%s1 + $0x9a0] sm:$0xff]
  %v341 = vld [vmem:[%s1 + $0x9a8] sm:$0xff]
  %v342 = vld [vmem:[%s1 + $0x9b0] sm:$0xff]
  %v343 = vld [vmem:[%s1 + $0x9b8] sm:$0xff]
  %v344 = vld [vmem:[%s1 + $0x9c0] sm:$0xff]
  %v345 = vld [vmem:[%s1 + $0x9c8] sm:$0xff]
  %v346 = vld [vmem:[%s1 + $0x9d0] sm:$0xff]
  %v347 = vld [vmem:[%s1 + $0x9d8] sm:$0xff]
  %v348 = vld [vmem:[%s1 + $0x9e0] sm:$0xff]
  %v349 = vld [vmem:[%s1 + $0x9e8] sm:$0xff]
  %v350 = vld [vmem:[%s1 + $0x9f0] sm:$0xff]
  %v351 = vld [vmem:[%s1 + $0x9f8] sm:$0xff]
  %v352 = vld [vmem:[%s1 + $0xa00] sm:$0xff]
  %v353 = vld [vmem:[%s1 + $0xa08] sm:$0xff]
  %v354 = vld [vmem:[%s1 + $0xa10] sm:$0xff]
  %v355 = vld [vmem:[%s1 + $0xa18] sm:$0xff]
  %v356 = vld [vmem:[%s1 + $0xa20] sm:$0xff]
  %v357 = vld [vmem:[%s1 + $0xa28] sm:$0xff]
  %v358 = vld [vmem:[%s1 + $0xa30] sm:$0xff]
  %v359 = vld [vmem:[%s1 + $0xa38] sm:$0xff]
  %v360 = vld [vmem:[%s1 + $0xa40] sm:$0xff]
  %v361 = vld [vmem:[%s1 + $0xa48] sm:$0xff]
  %v362 = vld [vmem:[%s1 + $0xa50] sm:$0xff]
  %v363 = vld [vmem:[%s1 + $0xa58] sm:$0xff]
  %v364 = vld [vmem:[%s1 + $0xa60] sm:$0xff]
  %v365 = vld [vmem:[%s1 + $0xa68] sm:$0xff]
  %v366 = vld [vmem:[%s1 + $0xa70] sm:$0xff]
  %v367 = vld [vmem:[%s1 + $0xa78] sm:$0xff]
  %v368 = vld [vmem:[%s1 + $0xa80] sm:$0xff]
  %v369 = vld [vmem:[%s1 + $0xa88] sm:$0xff]
  %v370 = vld [vmem:[%s1 + $0xa90] sm:$0xff]
  %v371 = vld [vmem:[%s1 + $0xa98] sm:$0xff]
  %v372 = vld [vmem:[%s1 + $0xaa0] sm:$0xff]
  %v373 = vld [vmem:[%s1 + $0xaa8] sm:$0xff]
  %v374 = vld [vmem:[%s1 + $0xab0] sm:$0xff]
  %v375 = vld [vmem:[%s1 + $0xab8] sm:$0xff]
  %v376 = vld [vmem:[%s1 + $0xac0] sm:$0xff]
  %v377 = vld [vmem:[%s1 + $0xac8] sm:$0xff]
  %v378 = vld [vmem:[%s1 + $0xad0] sm:$0xff]
  %v379 = vld [vmem:[%s1 + $0xad8] sm:$0xff]
  %v380 = vld [vmem:[%s1 + $0xae0] sm:$0xff]
  %v381 = vld [vmem:[%s1 + $0xae8] sm:$0xff]
  %v382 = vld [vmem:[%s1 + $0xaf0] sm:$0xff]
  %v383 = vld [vmem:[%s1 + $0xaf8] sm:$0xff]
  %v384 = vld [vmem:[%s1 + $0xb00] sm:$0xff]
  %v385 = vld [vmem:[%s1 + $0xb08] sm:$0xff]
  %v386 = vld [vmem:[%s1 + $0xb10] sm:$0xff]
  %v387 = vld [vmem:[%s1 + $0xb18] sm:$0xff]
  %v388 = vld [vmem:[%s1 + $0xb20] sm:$0xff]
  %v389 = vld [vmem:[%s1 + $0xb28] sm:$0xff]
  %v390 = vld [vmem:[%s1 + $0xb30] sm:$0xff]
  %v391 = vld [vmem:[%s1 + $0xb38] sm:$0xff]
  %v392 = vld [vmem:[%s1 + $0xb40] sm:$0xff]
  %v393 = vld [vmem:[%s1 + $0xb48] sm:$0xff]
  %v394 = vld [vmem:[%s1 + $0xb50] sm:$0xff]
  %v395 = vld [vmem:[%s1 + $0xb58] sm:$0xff]
  %v396 = vld [vmem:[%s1 + $0xb60] sm:$0xff]
  %v397 = vld [vmem:[%s1 + $0xb68] sm:$0xff]
  %v398 = vld [vmem:[%s1 + $0xb70] sm:$0xff]
  %v399 = vld [vmem:[%s1 + $0xb78] sm:$0xff]
  %v400 = vld [vmem:[%s1 + $0xb80] sm:$0xff]
  %v401 = vld [vmem:[%s1 + $0xb88] sm:$0xff]
  %v402 = vld [vmem:[%s1 + $0xb90] sm:$0xff]
  %v403 = vld [vmem:[%s1 + $0xb98] sm:$0xff]
  %v404 = vld [vmem:[%s1 + $0xba0] sm:$0xff]
  %v405 = vld [vmem:[%s1 + $0xba8] sm:$0xff]
  %v406 = vld [vmem:[%s1 + $0xbb0] sm:$0xff]
  %v407 = vld [vmem:[%s1 + $0xbb8] sm:$0xff]
  %v408 = vld [vmem:[%s1 + $0xbc0] sm:$0xff]
  %v409 = vld [vmem:[%s1 + $0xbc8] sm:$0xff]
  %v410 = vld [vmem:[%s1 + $0xbd0] sm:$0xff]
  %v411 = vld [vmem:[%s1 + $0xbd8] sm:$0xff]
  %v412 = vld [vmem:[%s1 + $0xbe0] sm:$0xff]
  %v413 = vld [vmem:[%s1 + $0xbe8] sm:$0xff]
  %v414 = vld [vmem:[%s1 + $0xbf0] sm:$0xff]
  %v415 = vld [vmem:[%s1 + $0xbf8] sm:$0xff]
  %v416 = vld [vmem:[%s1 + $0xc00] sm:$0xff]
  %v417 = vld [vmem:[%s1 + $0xc08] sm:$0xff]
  %v418 = vld [vmem:[%s1 + $0xc10] sm:$0xff]
  %v419 = vld [vmem:[%s1 + $0xc18] sm:$0xff]
  %v420 = vld [vmem:[%s1 + $0xc20] sm:$0xff]
  %v421 = vld [vmem:[%s1 + $0xc28] sm:$0xff]
  %v422 = vld [vmem:[%s1 + $0xc30] sm:$0xff]
  %v423 = vld [vmem:[%s1 + $0xc38] sm:$0xff]
  %v424 = vld [vmem:[%s1 + $0xc40] sm:$0xff]
  %v425 = vld [vmem:[%s1 + $0xc48] sm:$0xff]
  %v426 = vld [vmem:[%s1 + $0xc50] sm:$0xff]
  %v427 = vld [vmem:[%s1 + $0xc58] sm:$0xff]
  %v428 = vld [vmem:[%s1 + $0xc60] sm:$0xff]
  %v429 = vld [vmem:[%s1 + $0xc68] sm:$0xff]
  %v430 = vld [vmem:[%s1 + $0xc70] sm:$0xff]
  %v431 = vld [vmem:[%s1 + $0xc78] sm:$0xff]
  %v432 = vld [vmem:[%s1 + $0xc80] sm:$0xff]
  %v433 = vld [vmem:[%s1 + $0xc88] sm:$0xff]
  %v434 = vld [vmem:[%s1 + $0xc90] sm:$0xff]
  %v435 = vld [vmem:[%s1 + $0xc98] sm:$0xff]
  %v436 = vld [vmem:[%s1 + $0xca0] sm:$0xff]
  %v437 = vld [vmem:[%s1 + $0xca8] sm:$0xff]
  %v438 = vld [vmem:[%s1 + $0xcb0] sm:$0xff]
  %v439 = vld [vmem:[%s1 + $0xcb8] sm:$0xff]
  %v440 = vld [vmem:[%s1 + $0xcc0] sm:$0xff]
  %v441 = vld [vmem:[%s1 + $0xcc8] sm:$0xff]
  %v442 = vld [vmem:[%s1 + $0xcd0] sm:$0xff]
  %v443 = vld [vmem:[%s1 + $0xcd8] sm:$0xff]
  %v444 = vld [vmem:[%s1 + $0xce0] sm:$0xff]
  %v445 = vld [vmem:[%s1 + $0xce8] sm:$0xff]
  %v446 = vld [vmem:[%s1 + $0xcf0] sm:$0xff]
  %v447 = vld [vmem:[%s1 + $0xcf8] sm:$0xff]
  %v448 = vld [vmem:[%s1 + $0xd00] sm:$0xff]
  %v449 = vld [vmem:[%s1 + $0xd08] sm:$0xff]
  %v450 = vld [vmem:[%s1 + $0xd10] sm:$0xff]
  %v451 = vld [vmem:[%s1 + $0xd18] sm:$0xff]
  %v452 = vld [vmem:[%s1 + $0xd20] sm:$0xff]
  %v453 = vld [vmem:[%s1 + $0xd28] sm:$0xff]
  %v454 = vld [vmem:[%s1 + $0xd30] sm:$0xff]
  %v455 = vld [vmem:[%s1 + $0xd38] sm:$0xff]
  %v456 = vld [vmem:[%s1 + $0xd40] sm:$0xff]
  %v457 = vld [vmem:[%s1 + $0xd48] sm:$0xff]
  %v458 = vld [vmem:[%s1 + $0xd50] sm:$0xff]
  %v459 = vld [vmem:[%s1 + $0xd58] sm:$0xff]
  %v460 = vld [vmem:[%s1 + $0xd60] sm:$0xff]
  %v461 = vld [vmem:[%s1 + $0xd68] sm:$0xff]
  %v462 = vld [vmem:[%s1 + $0xd70] sm:$0xff]
  %v463 = vld [vmem:[%s1 + $0xd78] sm:$0xff]
  %v464 = vld [vmem:[%s1 + $0xd80] sm:$0xff]
  %v465 = vld [vmem:[%s1 + $0xd88] sm:$0xff]
  %v466 = vld [vmem:[%s1 + $0xd90] sm:$0xff]
  %v467 = vld [vmem:[%s1 + $0xd98] sm:$0xff]
  %v468 = vld [vmem:[%s1 + $0xda0] sm:$0xff]
  %v469 = vld [vmem:[%s1 + $0xda8] sm:$0xff]
  %v470 = vld [vmem:[%s1 + $0xdb0] sm:$0xff]
  %v471 = vld [vmem:[%s1 + $0xdb8] sm:$0xff]
  %v472 = vld [vmem:[%s1 + $0xdc0] sm:$0xff]
  %v473 = vld [vmem:[%s1 + $0xdc8] sm:$0xff]
  %v474 = vld [vmem:[%s1 + $0xdd0] sm:$0xff]
  %v475 = vld [vmem:[%s1 + $0xdd8] sm:$0xff]
  %v476 = vld [vmem:[%s1 + $0xde0] sm:$0xff]
  %v477 = vld [vmem:[%s1 + $0xde8] sm:$0xff]
  %v478 = vld [vmem:[%s1 + $0xdf0] sm:$0xff]
  %v479 = vld [vmem:[%s1 + $0xdf8] sm:$0xff]
  %v480 = vld [vmem:[%s1 + $0xe00] sm:$0xff]
  %v481 = vld [vmem:[%s1 + $0xe08] sm:$0xff]
  %v482 = vld [vmem:[%s1 + $0xe10] sm:$0xff]
  %v483 = vld [vmem:[%s1 + $0xe18] sm:$0xff]
  %v484 = vld [vmem:[%s1 + $0xe20] sm:$0xff]
  %v485 = vld [vmem:[%s1 + $0xe28] sm:$0xff]
  %v486 = vld [vmem:[%s1 + $0xe30] sm:$0xff]
  %v487 = vld [vmem:[%s1 + $0xe38] sm:$0xff]
  %v488 = vld [vmem:[%s1 + $0xe40] sm:$0xff]
  %v489 = vld [vmem:[%s1 + $0xe48] sm:$0xff]
  %v490 = vld [vmem:[%s1 + $0xe50] sm:$0xff]
  %v491 = vld [vmem:[%s1 + $0xe58] sm:$0xff]
  %v492 = vld [vmem:[%s1 + $0xe60] sm:$0xff]
  %v493 = vld [vmem:[%s1 + $0xe68] sm:$0xff]
  %v494 = vld [vmem:[%s1 + $0xe70] sm:$0xff]
  %v495 = vld [vmem:[%s1 + $0xe78] sm:$0xff]
  %v496 = vld [vmem:[%s1 + $0xe80] sm:$0xff]
  %v497 = vld [vmem:[%s1 + $0xe88] sm:$0xff]
  %v498 = vld [vmem:[%s1 + $0xe90] sm:$0xff]
  %v499 = vld [vmem:[%s1 + $0xe98] sm:$0xff]
  %v500 = vld [vmem:[%s1 + $0xea0] sm:$0xff]
  %v501 = vld [vmem:[%s1 + $0xea8] sm:$0xff]
  %v502 = vld [vmem:[%s1 + $0xeb0] sm:$0xff]
  %v503 = vld [vmem:[%s1 + $0xeb8] sm:$0xff]
  %v504 = vld [vmem:[%s1 + $0xec0] sm:$0xff]
  %v505 = vld [vmem:[%s1 + $0xec8] sm:$0xff]
  %v506 = vld [vmem:[%s1 + $0xed0] sm:$0xff]
  %v507 = vld [vmem:[%s1 + $0xed8] sm:$0xff]
  %v508 = vld [vmem:[%s1 + $0xee0] sm:$0xff]
  %v509 = vld [vmem:[%s1 + $0xee8] sm:$0xff]
  %v510 = vld [vmem:[%s1 + $0xef0] sm:$0xff]
  %v511 = vld [vmem:[%s1 + $0xef8] sm:$0xff]
  %v512 = vld [vmem:[%s1 + $0xf00] sm:$0xff]
  %v513 = vld [vmem:[%s1 + $0xf08] sm:$0xff]
  %v514 = vld [vmem:[%s1 + $0xf10] sm:$0xff]
  %v515 = vld [vmem:[%s1 + $0xf18] sm:$0xff]
  %v516 = vld [vmem:[%s1 + $0xf20] sm:$0xff]
  %v517 = vld [vmem:[%s1 + $0xf28] sm:$0xff]
  %v518 = vld [vmem:[%s1 + $0xf30] sm:$0xff]
  %v519 = vld [vmem:[%s1 + $0xf38] sm:$0xff]
  %v520 = vld [vmem:[%s1 + $0xf40] sm:$0xff]
  %v521 = vld [vmem:[%s1 + $0xf48] sm:$0xff]
  %v522 = vld [vmem:[%s1 + $0xf50] sm:$0xff]
  %v523 = vld [vmem:[%s1 + $0xf58] sm:$0xff]
  %v524 = vld [vmem:[%s1 + $0xf60] sm:$0xff]
  %v525 = vld [vmem:[%s1 + $0xf68] sm:$0xff]
  %v526 = vld [vmem:[%s1 + $0xf70] sm:$0xff]
  %v527 = vld [vmem:[%s1 + $0xf78] sm:$0xff]
  %v528 = vld [vmem:[%s1 + $0xf80] sm:$0xff]
  %v529 = vld [vmem:[%s1 + $0xf88] sm:$0xff]
  %v530 = vld [vmem:[%s1 + $0xf90] sm:$0xff]
  %v531 = vld [vmem:[%s1 + $0xf98] sm:$0xff]
  %v532 = vld [vmem:[%s1 + $0xfa0] sm:$0xff]
  %v533 = vld [vmem:[%s1 + $0xfa8] sm:$0xff]
  %v534 = vld [vmem:[%s1 + $0xfb0] sm:$0xff]
  %v535 = vld [vmem:[%s1 + $0xfb8] sm:$0xff]
  %v536 = vld [vmem:[%s1 + $0xfc0] sm:$0xff]
  %v537 = vld [vmem:[%s1 + $0xfc8] sm:$0xff]
  %v538 = vld [vmem:[%s1 + $0xfd0] sm:$0xff]
  %v539 = vld [vmem:[%s1 + $0xfd8] sm:$0xff]
  %v540 = vld [vmem:[%s1 + $0xfe0] sm:$0xff]
  %v541 = vld [vmem:[%s1 + $0xfe8] sm:$0xff]
  %v542 = vld [vmem:[%s1 + $0xff0] sm:$0xff]
  %v543 = vld [vmem:[%s1 + $0xff8] sm:$0xff]
  %v544 = vld [vmem:[%s1 + $0x1000] sm:$0xff]
  %v545 = vld [vmem:[%s1 + $0x1008] sm:$0xff]
  %v546 = vld [vmem:[%s1 + $0x1010] sm:$0xff]
  %v547 = vld [vmem:[%s1 + $0x1018] sm:$0xff]
  %v548 = vld [vmem:[%s1 + $0x1020] sm:$0xff]
  %v549 = vld [vmem:[%s1 + $0x1028] sm:$0xff]
  %v550 = vld [vmem:[%s1 + $0x1030] sm:$0xff]
  %v551 = vld [vmem:[%s1 + $0x1038] sm:$0xff]
  %v552 = vld [vmem:[%s1 + $0x1040] sm:$0xff]
  %v553 = vld [vmem:[%s1 + $0x1048] sm:$0xff]
  %v554 = vld [vmem:[%s1 + $0x1050] sm:$0xff]
  %v555 = vld [vmem:[%s1 + $0x1058] sm:$0xff]
  %v556 = vld [vmem:[%s1 + $0x1060] sm:$0xff]
  %v557 = vld [vmem:[%s1 + $0x1068] sm:$0xff]
  %v558 = vld [vmem:[%s1 + $0x1070] sm:$0xff]
  %v559 = vld [vmem:[%s1 + $0x1078] sm:$0xff]
  %v560 = vld [vmem:[%s1 + $0x1080] sm:$0xff]
  %v561 = vld [vmem:[%s1 + $0x1088] sm:$0xff]
  %v562 = vld [vmem:[%s1 + $0x1090] sm:$0xff]
  %v563 = vld [vmem:[%s1 + $0x1098] sm:$0xff]
  %v564 = vld [vmem:[%s1 + $0x10a0] sm:$0xff]
  %v565 = vld [vmem:[%s1 + $0x10a8] sm:$0xff]
  %v566 = vld [vmem:[%s1 + $0x10b0] sm:$0xff]
  %v567 = vld [vmem:[%s1 + $0x10b8] sm:$0xff]
  %v568 = vld [vmem:[%s1 + $0x10c0] sm:$0xff]
  %v569 = vld [vmem:[%s1 + $0x10c8] sm:$0xff]
  %v570 = vld [vmem:[%s1 + $0x10d0] sm:$0xff]
  %v571 = vld [vmem:[%s1 + $0x10d8] sm:$0xff]
  %v572 = vld [vmem:[%s1 + $0x10e0] sm:$0xff]
  %v573 = vld [vmem:[%s1 + $0x10e8] sm:$0xff]
  %v574 = vld [vmem:[%s1 + $0x10f0] sm:$0xff]
  %v575 = vld [vmem:[%s1 + $0x10f8] sm:$0xff]
  %v576 = vld [vmem:[%s1 + $0x1100] sm:$0xff]
  %v577 = vld [vmem:[%s1 + $0x1108] sm:$0xff]
  %v578 = vld [vmem:[%s1 + $0x1110] sm:$0xff]
  %v579 = vld [vmem:[%s1 + $0x1118] sm:$0xff]
  %v580 = vld [vmem:[%s1 + $0x1120] sm:$0xff]
  %v581 = vld [vmem:[%s1 + $0x1128] sm:$0xff]
  %v582 = vld [vmem:[%s1 + $0x1130] sm:$0xff]
  %v583 = vld [vmem:[%s1 + $0x1138] sm:$0xff]
  %v584 = vld [vmem:[%s1 + $0x1140] sm:$0xff]
  %v585 = vld [vmem:[%s1 + $0x1148] sm:$0xff]
  %v586 = vld [vmem:[%s1 + $0x1150] sm:$0xff]
  %v587 = vld [vmem:[%s1 + $0x1158] sm:$0xff]
  %v588 = vld [vmem:[%s1 + $0x1160] sm:$0xff]
  %v589 = vld [vmem:[%s1 + $0x1168] sm:$0xff]
  %v590 = vld [vmem:[%s1 + $0x1170] sm:$0xff]
  %v591 = vld [vmem:[%s1 + $0x1178] sm:$0xff]
  %v592 = vld [vmem:[%s1 + $0x1180] sm:$0xff]
  %v593 = vld [vmem:[%s1 + $0x1188] sm:$0xff]
  %v594 = vld [vmem:[%s1 + $0x1190] sm:$0xff]
  %v595 = vld [vmem:[%s1 + $0x1198] sm:$0xff]
  %v596 = vld [vmem:[%s1 + $0x11a0] sm:$0xff]
  %v597 = vld [vmem:[%s1 + $0x11a8] sm:$0xff]
  %v598 = vld [vmem:[%s1 + $0x11b0] sm:$0xff]
  %v599 = vld [vmem:[%s1 + $0x11b8] sm:$0xff]
  %v600 = vld [vmem:[%s1 + $0x11c0] sm:$0xff]
  %v601 = vld [vmem:[%s1 + $0x11c8] sm:$0xff]
  %v602 = vld [vmem:[%s1 + $0x11d0] sm:$0xff]
  %v603 = vld [vmem:[%s1 + $0x11d8] sm:$0xff]
  %v604 = vld [vmem:[%s1 + $0x11e0] sm:$0xff]
  %v605 = vld [vmem:[%s1 + $0x11e8] sm:$0xff]
  %v606 = vld [vmem:[%s1 + $0x11f0] sm:$0xff]
  %v607 = vld [vmem:[%s1 + $0x11f8] sm:$0xff]
  %v608 = vld [vmem:[%s1 + $0x1200] sm:$0xff]
  %v609 = vld [vmem:[%s1 + $0x1208] sm:$0xff]
  %v610 = vld [vmem:[%s1 + $0x1210] sm:$0xff]
  %v611 = vld [vmem:[%s1 + $0x1218] sm:$0xff]
  %v612 = vld [vmem:[%s1 + $0x1220] sm:$0xff]
  %v613 = vld [vmem:[%s1 + $0x1228] sm:$0xff]
  %v614 = vld [vmem:[%s1 + $0x1230] sm:$0xff]
  %v615 = vld [vmem:[%s1 + $0x1238] sm:$0xff]
  %v616 = vld [vmem:[%s1 + $0x1240] sm:$0xff]
  %v617 = vld [vmem:[%s1 + $0x1248] sm:$0xff]
  %v618 = vld [vmem:[%s1 + $0x1250] sm:$0xff]
  %v619 = vld [vmem:[%s1 + $0x1258] sm:$0xff]
  %v620 = vld [vmem:[%s1 + $0x1260] sm:$0xff]
  %v621 = vld [vmem:[%s1 + $0x1268] sm:$0xff]
  %v622 = vld [vmem:[%s1 + $0x1270] sm:$0xff]
  %v623 = vld [vmem:[%s1 + $0x1278] sm:$0xff]
  %v624 = vld [vmem:[%s1 + $0x1280] sm:$0xff]
  %v625 = vld [vmem:[%s1 + $0x1288] sm:$0xff]
  %v626 = vld [vmem:[%s1 + $0x1290] sm:$0xff]
  %v627 = vld [vmem:[%s1 + $0x1298] sm:$0xff]
  %v628 = vld [vmem:[%s1 + $0x12a0] sm:$0xff]
  %v629 = vld [vmem:[%s1 + $0x12a8] sm:$0xff]
  %v630 = vld [vmem:[%s1 + $0x12b0] sm:$0xff]
  %v631 = vld [vmem:[%s1 + $0x12b8] sm:$0xff]
  %v632 = vld [vmem:[%s1 + $0x12c0] sm:$0xff]
  %v633 = vld [vmem:[%s1 + $0x12c8] sm:$0xff]
  %v634 = vld [vmem:[%s1 + $0x12d0] sm:$0xff]
  %v635 = vld [vmem:[%s1 + $0x12d8] sm:$0xff]
  %v636 = vld [vmem:[%s1 + $0x12e0] sm:$0xff]
  %v637 = vld [vmem:[%s1 + $0x12e8] sm:$0xff]
  %v638 = vld [vmem:[%s1 + $0x12f0] sm:$0xff]
  %v639 = vld [vmem:[%s1 + $0x12f8] sm:$0xff]
  %v640 = vld [vmem:[%s1 + $0x1300] sm:$0xff]
  %v641 = vld [vmem:[%s1 + $0x1308] sm:$0xff]
  %v642 = vld [vmem:[%s1 + $0x1310] sm:$0xff]
  %v643 = vld [vmem:[%s1 + $0x1318] sm:$0xff]
  %v644 = vld [vmem:[%s1 + $0x1320] sm:$0xff]
  %v645 = vld [vmem:[%s1 + $0x1328] sm:$0xff]
  %v646 = vld [vmem:[%s1 + $0x1330] sm:$0xff]
  %v647 = vld [vmem:[%s1 + $0x1338] sm:$0xff]
  %v648 = vld [vmem:[%s1 + $0x1340] sm:$0xff]
  %v649 = vld [vmem:[%s1 + $0x1348] sm:$0xff]
  %v650 = vld [vmem:[%s1 + $0x1350] sm:$0xff]
  %v651 = vld [vmem:[%s1 + $0x1358] sm:$0xff]
  %v652 = vld [vmem:[%s1 + $0x1360] sm:$0xff]
  %v653 = vld [vmem:[%s1 + $0x1368] sm:$0xff]
  %v654 = vld [vmem:[%s1 + $0x1370] sm:$0xff]
  %v655 = vld [vmem:[%s1 + $0x1378] sm:$0xff]
  %v656 = vld [vmem:[%s1 + $0x1380] sm:$0xff]
  %v657 = vld [vmem:[%s1 + $0x1388] sm:$0xff]
  %v658 = vld [vmem:[%s1 + $0x1390] sm:$0xff]
  %v659 = vld [vmem:[%s1 + $0x1398] sm:$0xff]
  %v660 = vld [vmem:[%s1 + $0x13a0] sm:$0xff]
  %v661 = vld [vmem:[%s1 + $0x13a8] sm:$0xff]
  %v662 = vld [vmem:[%s1 + $0x13b0] sm:$0xff]
  %v663 = vld [vmem:[%s1 + $0x13b8] sm:$0xff]
  %v664 = vld [vmem:[%s1 + $0x13c0] sm:$0xff]
  %v665 = vld [vmem:[%s1 + $0x13c8] sm:$0xff]
  %v666 = vld [vmem:[%s1 + $0x13d0] sm:$0xff]
  %v667 = vld [vmem:[%s1 + $0x13d8] sm:$0xff]
  %v668 = vld [vmem:[%s1 + $0x13e0] sm:$0xff]
  %v669 = vld [vmem:[%s1 + $0x13e8] sm:$0xff]
  %v670 = vld [vmem:[%s1 + $0x13f0] sm:$0xff]
  %v671 = vld [vmem:[%s1 + $0x13f8] sm:$0xff]
  %v672 = vld [vmem:[%s1 + $0x1400] sm:$0xff]
  %v673 = vld [vmem:[%s1 + $0x1408] sm:$0xff]
  %v674 = vld [vmem:[%s1 + $0x1410] sm:$0xff]
  %v675 = vld [vmem:[%s1 + $0x1418] sm:$0xff]
  %v676 = vld [vmem:[%s1 + $0x1420] sm:$0xff]
  %v677 = vld [vmem:[%s1 + $0x1428] sm:$0xff]
  %v678 = vld [vmem:[%s1 + $0x1430] sm:$0xff]
  %v679 = vld [vmem:[%s1 + $0x1438] sm:$0xff]
  %v680 = vld [vmem:[%s1 + $0x1440] sm:$0xff]
  %v681 = vld [vmem:[%s1 + $0x1448] sm:$0xff]
  %v682 = vld [vmem:[%s1 + $0x1450] sm:$0xff]
  %v683 = vld [vmem:[%s1 + $0x1458] sm:$0xff]
  %v684 = vld [vmem:[%s1 + $0x1460] sm:$0xff]
  %v685 = vld [vmem:[%s1 + $0x1468] sm:$0xff]
  %v686 = vld [vmem:[%s1 + $0x1470] sm:$0xff]
  %v687 = vld [vmem:[%s1 + $0x1478] sm:$0xff]
  %v688 = vld [vmem:[%s1 + $0x1480] sm:$0xff]
  %v689 = vld [vmem:[%s1 + $0x1488] sm:$0xff]
  %v690 = vld [vmem:[%s1 + $0x1490] sm:$0xff]
  %v691 = vld [vmem:[%s1 + $0x1498] sm:$0xff]
  %v692 = vld [vmem:[%s1 + $0x14a0] sm:$0xff]
  %v693 = vld [vmem:[%s1 + $0x14a8] sm:$0xff]
  %v694 = vld [vmem:[%s1 + $0x14b0] sm:$0xff]
  %v695 = vld [vmem:[%s1 + $0x14b8] sm:$0xff]
  %v696 = vld [vmem:[%s1 + $0x14c0] sm:$0xff]
  %v697 = vld [vmem:[%s1 + $0x14c8] sm:$0xff]
  %v698 = vld [vmem:[%s1 + $0x14d0] sm:$0xff]
  %v699 = vld [vmem:[%s1 + $0x14d8] sm:$0xff]
  %v700 = vld [vmem:[%s1 + $0x14e0] sm:$0xff]
  %v701 = vld [vmem:[%s1 + $0x14e8] sm:$0xff]
  %v702 = vld [vmem:[%s1 + $0x14f0] sm:$0xff]
  %v703 = vld [vmem:[%s1 + $0x14f8] sm:$0xff]
  %v704 = vld [vmem:[%s1 + $0x1500] sm:$0xff]
  %v705 = vld [vmem:[%s1 + $0x1508] sm:$0xff]
  %v706 = vld [vmem:[%s1 + $0x1510] sm:$0xff]
  %v707 = vld [vmem:[%s1 + $0x1518] sm:$0xff]
  %v708 = vld [vmem:[%s1 + $0x1520] sm:$0xff]
  %v709 = vld [vmem:[%s1 + $0x1528] sm:$0xff]
  %v710 = vld [vmem:[%s1 + $0x1530] sm:$0xff]
  %v711 = vld [vmem:[%s1 + $0x1538] sm:$0xff]
  %v712 = vld [vmem:[%s1 + $0x1540] sm:$0xff]
  %v713 = vld [vmem:[%s1 + $0x1548] sm:$0xff]
  %v714 = vld [vmem:[%s1 + $0x1550] sm:$0xff]
  %v715 = vld [vmem:[%s1 + $0x1558] sm:$0xff]
  %v716 = vld [vmem:[%s1 + $0x1560] sm:$0xff]
  %v717 = vld [vmem:[%s1 + $0x1568] sm:$0xff]
  %v718 = vld [vmem:[%s1 + $0x1570] sm:$0xff]
  %v719 = vld [vmem:[%s1 + $0x1578] sm:$0xff]
  %v720 = vld [vmem:[%s1 + $0x1580] sm:$0xff]
  %v721 = vld [vmem:[%s1 + $0x1588] sm:$0xff]
  %v722 = vld [vmem:[%s1 + $0x1590] sm:$0xff]
  %v723 = vld [vmem:[%s1 + $0x1598] sm:$0xff]
  %v724 = vld [vmem:[%s1 + $0x15a0] sm:$0xff]
  %v725 = vld [vmem:[%s1 + $0x15a8] sm:$0xff]
  %v726 = vld [vmem:[%s1 + $0x15b0] sm:$0xff]
  %v727 = vld [vmem:[%s1 + $0x15b8] sm:$0xff]
  %v728 = vld [vmem:[%s1 + $0x15c0] sm:$0xff]
  %v729 = vld [vmem:[%s1 + $0x15c8] sm:$0xff]
  %v730 = vld [vmem:[%s1 + $0x15d0] sm:$0xff]
  %v731 = vld [vmem:[%s1 + $0x15d8] sm:$0xff]
  %v732 = vld [vmem:[%s1 + $0x15e0] sm:$0xff]
  %v733 = vld [vmem:[%s1 + $0x15e8] sm:$0xff]
  %v734 = vld [vmem:[%s1 + $0x15f0] sm:$0xff]
  %v735 = vld [vmem:[%s1 + $0x15f8] sm:$0xff]
  %v736 = vld [vmem:[%s1 + $0x1600] sm:$0xff]
  %v737 = vld [vmem:[%s1 + $0x1608] sm:$0xff]
  %v738 = vld [vmem:[%s1 + $0x1610] sm:$0xff]
  %v739 = vld [vmem:[%s1 + $0x1618] sm:$0xff]
  %v740 = vld [vmem:[%s1 + $0x1620] sm:$0xff]
  %v741 = vld [vmem:[%s1 + $0x1628] sm:$0xff]
  %v742 = vld [vmem:[%s1 + $0x1630] sm:$0xff]
  %v743 = vld [vmem:[%s1 + $0x1638] sm:$0xff]
  %v744 = vld [vmem:[%s1 + $0x1640] sm:$0xff]
  %v745 = vld [vmem:[%s1 + $0x1648] sm:$0xff]
  %v746 = vld [vmem:[%s1 + $0x1650] sm:$0xff]
  %v747 = vld [vmem:[%s1 + $0x1658] sm:$0xff]
  %v748 = vld [vmem:[%s1 + $0x1660] sm:$0xff]
  %v749 = vld [vmem:[%s1 + $0x1668] sm:$0xff]
  %v750 = vld [vmem:[%s1 + $0x1670] sm:$0xff]
  %v751 = vld [vmem:[%s1 + $0x1678] sm:$0xff]
  %v752 = vld [vmem:[%s1 + $0x1680] sm:$0xff]
  %v753 = vld [vmem:[%s1 + $0x1688] sm:$0xff]
  %v754 = vld [vmem:[%s1 + $0x1690] sm:$0xff]
  %v755 = vld [vmem:[%s1 + $0x1698] sm:$0xff]
  %v756 = vld [vmem:[%s1 + $0x16a0] sm:$0xff]
  %v757 = vld [vmem:[%s1 + $0x16a8] sm:$0xff]
  %v758 = vld [vmem:[%s1 + $0x16b0] sm:$0xff]
  %v759 = vld [vmem:[%s1 + $0x16b8] sm:$0xff]
  %v760 = vld [vmem:[%s1 + $0x16c0] sm:$0xff]
  %v761 = vld [vmem:[%s1 + $0x16c8] sm:$0xff]
  %v762 = vld [vmem:[%s1 + $0x16d0] sm:$0xff]
  %v763 = vld [vmem:[%s1 + $0x16d8] sm:$0xff]
  %v764 = vld [vmem:[%s1 + $0x16e0] sm:$0xff]
  %v765 = vld [vmem:[%s1 + $0x16e8] sm:$0xff]
  %v766 = vld [vmem:[%s1 + $0x16f0] sm:$0xff]
  %v767 = vld [vmem:[%s1 + $0x16f8] sm:$0xff]
  %v768 = vld [vmem:[%s1 + $0x1700] sm:$0xff]
  %v769 = vld [vmem:[%s1 + $0x1708] sm:$0xff]
  %v770 = vld [vmem:[%s1 + $0x1710] sm:$0xff]
  %v771 = vld [vmem:[%s1 + $0x1718] sm:$0xff]
  %v772 = vld [vmem:[%s1 + $0x1720] sm:$0xff]
  %v773 = vld [vmem:[%s1 + $0x1728] sm:$0xff]
  %v774 = vld [vmem:[%s1 + $0x1730] sm:$0xff]
  %v775 = vld [vmem:[%s1 + $0x1738] sm:$0xff]
  %v776 = vld [vmem:[%s1 + $0x1740] sm:$0xff]
  %v777 = vld [vmem:[%s1 + $0x1748] sm:$0xff]
  %v778 = vld [vmem:[%s1 + $0x1750] sm:$0xff]
  %v779 = vld [vmem:[%s1 + $0x1758] sm:$0xff]
  %v780 = vld [vmem:[%s1 + $0x1760] sm:$0xff]
  %v781 = vld [vmem:[%s1 + $0x1768] sm:$0xff]
  %v782 = vld [vmem:[%s1 + $0x1770] sm:$0xff]
  %v783 = vld [vmem:[%s1 + $0x1778] sm:$0xff]
  %v784 = vld [vmem:[%s1 + $0x1780] sm:$0xff]
  %v785 = vld [vmem:[%s1 + $0x1788] sm:$0xff]
  %v786 = vld [vmem:[%s1 + $0x1790] sm:$0xff]
  %v787 = vld [vmem:[%s1 + $0x1798] sm:$0xff]
  %v788 = vld [vmem:[%s1 + $0x17a0] sm:$0xff]
  %v789 = vld [vmem:[%s1 + $0x17a8] sm:$0xff]
  %v790 = vld [vmem:[%s1 + $0x17b0] sm:$0xff]
  %v791 = vld [vmem:[%s1 + $0x17b8] sm:$0xff]
  %v792 = vld [vmem:[%s1 + $0x17c0] sm:$0xff]
  %v793 = vld [vmem:[%s1 + $0x17c8] sm:$0xff]
  %v794 = vld [vmem:[%s1 + $0x17d0] sm:$0xff]
  %v795 = vld [vmem:[%s1 + $0x17d8] sm:$0xff]
  %v796 = vld [vmem:[%s1 + $0x17e0] sm:$0xff]
  %v797 = vld [vmem:[%s1 + $0x17e8] sm:$0xff]
  %v798 = vld [vmem:[%s1 + $0x17f0] sm:$0xff]
  %v799 = vld [vmem:[%s1 + $0x17f8] sm:$0xff]
  %v800 = vld [vmem:[%s1 + $0x1800] sm:$0xff]
  %v801 = vld [vmem:[%s1 + $0x1808] sm:$0xff]
  %v802 = vld [vmem:[%s1 + $0x1810] sm:$0xff]
  %v803 = vld [vmem:[%s1 + $0x1818] sm:$0xff]
  %v804 = vld [vmem:[%s1 + $0x1820] sm:$0xff]
  %v805 = vld [vmem:[%s1 + $0x1828] sm:$0xff]
  %v806 = vld [vmem:[%s1 + $0x1830] sm:$0xff]
  %v807 = vld [vmem:[%s1 + $0x1838] sm:$0xff]
  %v808 = vld [vmem:[%s1 + $0x1840] sm:$0xff]
  %v809 = vld [vmem:[%s1 + $0x1848] sm:$0xff]
  %v810 = vld [vmem:[%s1 + $0x1850] sm:$0xff]
  %v811 = vld [vmem:[%s1 + $0x1858] sm:$0xff]
  %v812 = vld [vmem:[%s1 + $0x1860] sm:$0xff]
  %v813 = vld [vmem:[%s1 + $0x1868] sm:$0xff]
  %v814 = vld [vmem:[%s1 + $0x1870] sm:$0xff]
  %v815 = vld [vmem:[%s1 + $0x1878] sm:$0xff]
  %v816 = vld [vmem:[%s1 + $0x1880] sm:$0xff]
  %v817 = vld [vmem:[%s1 + $0x1888] sm:$0xff]
  %v818 = vld [vmem:[%s1 + $0x1890] sm:$0xff]
  %v819 = vld [vmem:[%s1 + $0x1898] sm:$0xff]
  %v820 = vld [vmem:[%s1 + $0x18a0] sm:$0xff]
  %v821 = vld [vmem:[%s1 + $0x18a8] sm:$0xff]
  %v822 = vld [vmem:[%s1 + $0x18b0] sm:$0xff]
  %v823 = vld [vmem:[%s1 + $0x18b8] sm:$0xff]
  %v824 = vld [vmem:[%s1 + $0x18c0] sm:$0xff]
  %v825 = vld [vmem:[%s1 + $0x18c8] sm:$0xff]
  %v826 = vld [vmem:[%s1 + $0x18d0] sm:$0xff]
  %v827 = vld [vmem:[%s1 + $0x18d8] sm:$0xff]
  %v828 = vld [vmem:[%s1 + $0x18e0] sm:$0xff]
  %v829 = vld [vmem:[%s1 + $0x18e8] sm:$0xff]
  %v830 = vld [vmem:[%s1 + $0x18f0] sm:$0xff]
  %v831 = vld [vmem:[%s1 + $0x18f8] sm:$0xff]
  %v832 = vld [vmem:[%s1 + $0x1900] sm:$0xff]
  %v833 = vld [vmem:[%s1 + $0x1908] sm:$0xff]
  %v834 = vld [vmem:[%s1 + $0x1910] sm:$0xff]
  %v835 = vld [vmem:[%s1 + $0x1918] sm:$0xff]
  %v836 = vld [vmem:[%s1 + $0x1920] sm:$0xff]
  %v837 = vld [vmem:[%s1 + $0x1928] sm:$0xff]
  %v838 = vld [vmem:[%s1 + $0x1930] sm:$0xff]
  %v839 = vld [vmem:[%s1 + $0x1938] sm:$0xff]
  %v840 = vld [vmem:[%s1 + $0x1940] sm:$0xff]
  %v841 = vld [vmem:[%s1 + $0x1948] sm:$0xff]
  %v842 = vld [vmem:[%s1 + $0x1950] sm:$0xff]
  %v843 = vld [vmem:[%s1 + $0x1958] sm:$0xff]
  %v844 = vld [vmem:[%s1 + $0x1960] sm:$0xff]
  %v845 = vld [vmem:[%s1 + $0x1968] sm:$0xff]
  %v846 = vld [vmem:[%s1 + $0x1970] sm:$0xff]
  %v847 = vld [vmem:[%s1 + $0x1978] sm:$0xff]
  %v848 = vld [vmem:[%s1 + $0x1980] sm:$0xff]
  %v849 = vld [vmem:[%s1 + $0x1988] sm:$0xff]
  %v850 = vld [vmem:[%s1 + $0x1990] sm:$0xff]
  %v851 = vld [vmem:[%s1 + $0x1998] sm:$0xff]
  %v852 = vld [vmem:[%s1 + $0x19a0] sm:$0xff]
  %v853 = vld [vmem:[%s1 + $0x19a8] sm:$0xff]
  %v854 = vld [vmem:[%s1 + $0x19b0] sm:$0xff]
  %v855 = vld [vmem:[%s1 + $0x19b8] sm:$0xff]
  %v856 = vld [vmem:[%s1 + $0x19c0] sm:$0xff]
  %v857 = vld [vmem:[%s1 + $0x19c8] sm:$0xff]
  %v858 = vld [vmem:[%s1 + $0x19d0] sm:$0xff]
  %v859 = vld [vmem:[%s1 + $0x19d8] sm:$0xff]
  %v860 = vld [vmem:[%s1 + $0x19e0] sm:$0xff]
  %v861 = vld [vmem:[%s1 + $0x19e8] sm:$0xff]
  %v862 = vld [vmem:[%s1 + $0x19f0] sm:$0xff]
  %v863 = vld [vmem:[%s1 + $0x19f8] sm:$0xff]
  %v864 = vld [vmem:[%s1 + $0x1a00] sm:$0xff]
  %v865 = vld [vmem:[%s1 + $0x1a08] sm:$0xff]
  %v866 = vld [vmem:[%s1 + $0x1a10] sm:$0xff]
  %v867 = vld [vmem:[%s1 + $0x1a18] sm:$0xff]
  %v868 = vld [vmem:[%s1 + $0x1a20] sm:$0xff]
  %v869 = vld [vmem:[%s1 + $0x1a28] sm:$0xff]
  %v870 = vld [vmem:[%s1 + $0x1a30] sm:$0xff]
  %v871 = vld [vmem:[%s1 + $0x1a38] sm:$0xff]
  %v872 = vld [vmem:[%s1 + $0x1a40] sm:$0xff]
  %v873 = vld [vmem:[%s1 + $0x1a48] sm:$0xff]
  %v874 = vld [vmem:[%s1 + $0x1a50] sm:$0xff]
  %v875 = vld [vmem:[%s1 + $0x1a58] sm:$0xff]
  %v876 = vld [vmem:[%s1 + $0x1a60] sm:$0xff]
  %v877 = vld [vmem:[%s1 + $0x1a68] sm:$0xff]
  %v878 = vld [vmem:[%s1 + $0x1a70] sm:$0xff]
  %v879 = vld [vmem:[%s1 + $0x1a78] sm:$0xff]
  %v880 = vld [vmem:[%s1 + $0x1a80] sm:$0xff]
  %v881 = vld [vmem:[%s1 + $0x1a88] sm:$0xff]
  %v882 = vld [vmem:[%s1 + $0x1a90] sm:$0xff]
  %v883 = vld [vmem:[%s1 + $0x1a98] sm:$0xff]
  %v884 = vld [vmem:[%s1 + $0x1aa0] sm:$0xff]
  %v885 = vld [vmem:[%s1 + $0x1aa8] sm:$0xff]
  %v886 = vld [vmem:[%s1 + $0x1ab0] sm:$0xff]
  %v887 = vld [vmem:[%s1 + $0x1ab8] sm:$0xff]
  %v888 = vld [vmem:[%s1 + $0x1ac0] sm:$0xff]
  %v889 = vld [vmem:[%s1 + $0x1ac8] sm:$0xff]
  %v890 = vld [vmem:[%s1 + $0x1ad0] sm:$0xff]
  %v891 = vld [vmem:[%s1 + $0x1ad8] sm:$0xff]
  %v892 = vld [vmem:[%s1 + $0x1ae0] sm:$0xff]
  %v893 = vld [vmem:[%s1 + $0x1ae8] sm:$0xff]
  %v894 = vld [vmem:[%s1 + $0x1af0] sm:$0xff]
  %v895 = vld [vmem:[%s1 + $0x1af8] sm:$0xff]
  %v896 = vld [vmem:[%s1 + $0x1b00] sm:$0xff]
  %v897 = vld [vmem:[%s1 + $0x1b08] sm:$0xff]
  %v898 = vld [vmem:[%s1 + $0x1b10] sm:$0xff]
  %v899 = vld [vmem:[%s1 + $0x1b18] sm:$0xff]
  %v900 = vld [vmem:[%s1 + $0x1b20] sm:$0xff]
  %v901 = vld [vmem:[%s1 + $0x1b28] sm:$0xff]
  %v902 = vld [vmem:[%s1 + $0x1b30] sm:$0xff]
  %v903 = vld [vmem:[%s1 + $0x1b38] sm:$0xff]
  %v904 = vld [vmem:[%s1 + $0x1b40] sm:$0xff]
  %v905 = vld [vmem:[%s1 + $0x1b48] sm:$0xff]
  %v906 = vld [vmem:[%s1 + $0x1b50] sm:$0xff]
  %v907 = vld [vmem:[%s1 + $0x1b58] sm:$0xff]
  %v908 = vld [vmem:[%s1 + $0x1b60] sm:$0xff]
  %v909 = vld [vmem:[%s1 + $0x1b68] sm:$0xff]
  %v910 = vld [vmem:[%s1 + $0x1b70] sm:$0xff]
  %v911 = vld [vmem:[%s1 + $0x1b78] sm:$0xff]
  %v912 = vld [vmem:[%s1 + $0x1b80] sm:$0xff]
  %v913 = vld [vmem:[%s1 + $0x1b88] sm:$0xff]
  %v914 = vld [vmem:[%s1 + $0x1b90] sm:$0xff]
  %v915 = vld [vmem:[%s1 + $0x1b98] sm:$0xff]
  %v916 = vld [vmem:[%s1 + $0x1ba0] sm:$0xff]
  %v917 = vld [vmem:[%s1 + $0x1ba8] sm:$0xff]
  %v918 = vld [vmem:[%s1 + $0x1bb0] sm:$0xff]
  %v919 = vld [vmem:[%s1 + $0x1bb8] sm:$0xff]
  %v920 = vld [vmem:[%s1 + $0x1bc0] sm:$0xff]
  %v921 = vld [vmem:[%s1 + $0x1bc8] sm:$0xff]
  %v922 = vld [vmem:[%s1 + $0x1bd0] sm:$0xff]
  %v923 = vld [vmem:[%s1 + $0x1bd8] sm:$0xff]
  %v924 = vld [vmem:[%s1 + $0x1be0] sm:$0xff]
  %v925 = vld [vmem:[%s1 + $0x1be8] sm:$0xff]
  %v926 = vld [vmem:[%s1 + $0x1bf0] sm:$0xff]
  %v927 = vld [vmem:[%s1 + $0x1bf8] sm:$0xff]
  %v928 = vld [vmem:[%s1 + $0x1c00] sm:$0xff]
  %v929 = vld [vmem:[%s1 + $0x1c08] sm:$0xff]
  %v930 = vld [vmem:[%s1 + $0x1c10] sm:$0xff]
  %v931 = vld [vmem:[%s1 + $0x1c18] sm:$0xff]
  %v932 = vld [vmem:[%s1 + $0x1c20] sm:$0xff]
  %v933 = vld [vmem:[%s1 + $0x1c28] sm:$0xff]
  %v934 = vld [vmem:[%s1 + $0x1c30] sm:$0xff]
  %v935 = vld [vmem:[%s1 + $0x1c38] sm:$0xff]
  %v936 = vld [vmem:[%s1 + $0x1c40] sm:$0xff]
  %v937 = vld [vmem:[%s1 + $0x1c48] sm:$0xff]
  %v938 = vld [vmem:[%s1 + $0x1c50] sm:$0xff]
  %v939 = vld [vmem:[%s1 + $0x1c58] sm:$0xff]
  %v940 = vld [vmem:[%s1 + $0x1c60] sm:$0xff]
  %v941 = vld [vmem:[%s1 + $0x1c68] sm:$0xff]
  %v942 = vld [vmem:[%s1 + $0x1c70] sm:$0xff]
  %v943 = vld [vmem:[%s1 + $0x1c78] sm:$0xff]
  %v944 = vld [vmem:[%s1 + $0x1c80] sm:$0xff]
  %v945 = vld [vmem:[%s1 + $0x1c88] sm:$0xff]
  %v946 = vld [vmem:[%s1 + $0x1c90] sm:$0xff]
  %v947 = vld [vmem:[%s1 + $0x1c98] sm:$0xff]
  %v948 = vld [vmem:[%s1 + $0x1ca0] sm:$0xff]
  %v949 = vld [vmem:[%s1 + $0x1ca8] sm:$0xff]
  %v950 = vld [vmem:[%s1 + $0x1cb0] sm:$0xff]
  %v951 = vld [vmem:[%s1 + $0x1cb8] sm:$0xff]
  %v952 = vld [vmem:[%s1 + $0x1cc0] sm:$0xff]
  %v953 = vld [vmem:[%s1 + $0x1cc8] sm:$0xff]
  %v954 = vld [vmem:[%s1 + $0x1cd0] sm:$0xff]
  %v955 = vld [vmem:[%s1 + $0x1cd8] sm:$0xff]
  %v956 = vld [vmem:[%s1 + $0x1ce0] sm:$0xff]
  %v957 = vld [vmem:[%s1 + $0x1ce8] sm:$0xff]
  %v958 = vld [vmem:[%s1 + $0x1cf0] sm:$0xff]
  %v959 = vld [vmem:[%s1 + $0x1cf8] sm:$0xff]
  %v960 = vld [vmem:[%s1 + $0x1d00] sm:$0xff]
  %v961 = vld [vmem:[%s1 + $0x1d08] sm:$0xff]
  %v962 = vld [vmem:[%s1 + $0x1d10] sm:$0xff]
  %v963 = vld [vmem:[%s1 + $0x1d18] sm:$0xff]
  %v964 = vld [vmem:[%s1 + $0x1d20] sm:$0xff]
  %v965 = vld [vmem:[%s1 + $0x1d28] sm:$0xff]
  %v966 = vld [vmem:[%s1 + $0x1d30] sm:$0xff]
  %v967 = vld [vmem:[%s1 + $0x1d38] sm:$0xff]
  %v968 = vld [vmem:[%s1 + $0x1d40] sm:$0xff]
  %v969 = vld [vmem:[%s1 + $0x1d48] sm:$0xff]
  %v970 = vld [vmem:[%s1 + $0x1d50] sm:$0xff]
  %v971 = vld [vmem:[%s1 + $0x1d58] sm:$0xff]
  %v972 = vld [vmem:[%s1 + $0x1d60] sm:$0xff]
  %v973 = vld [vmem:[%s1 + $0x1d68] sm:$0xff]
  %v974 = vld [vmem:[%s1 + $0x1d70] sm:$0xff]
  %v975 = vld [vmem:[%s1 + $0x1d78] sm:$0xff]
  %v976 = vld [vmem:[%s1 + $0x1d80] sm:$0xff]
  %v977 = vld [vmem:[%s1 + $0x1d88] sm:$0xff]
  %v978 = vld [vmem:[%s1 + $0x1d90] sm:$0xff]
  %v979 = vld [vmem:[%s1 + $0x1d98] sm:$0xff]
  %v980 = vld [vmem:[%s1 + $0x1da0] sm:$0xff]
  %v981 = vld [vmem:[%s1 + $0x1da8] sm:$0xff]
  %v982 = vld [vmem:[%s1 + $0x1db0] sm:$0xff]
  %v983 = vld [vmem:[%s1 + $0x1db8] sm:$0xff]
  %v984 = vld [vmem:[%s1 + $0x1dc0] sm:$0xff]
  %v985 = vld [vmem:[%s1 + $0x1dc8] sm:$0xff]
  %v986 = vld [vmem:[%s1 + $0x1dd0] sm:$0xff]
  %v987 = vld [vmem:[%s1 + $0x1dd8] sm:$0xff]
  %v988 = vld [vmem:[%s1 + $0x1de0] sm:$0xff]
  %v989 = vld [vmem:[%s1 + $0x1de8] sm:$0xff]
  %v990 = vld [vmem:[%s1 + $0x1df0] sm:$0xff]
  %v991 = vld [vmem:[%s1 + $0x1df8] sm:$0xff]
  %v992 = vld [vmem:[%s1 + $0x1e00] sm:$0xff]
  %v993 = vld [vmem:[%s1 + $0x1e08] sm:$0xff]
  %v994 = vld [vmem:[%s1 + $0x1e10] sm:$0xff]
  %v995 = vld [vmem:[%s1 + $0x1e18] sm:$0xff]
  %v996 = vld [vmem:[%s1 + $0x1e20] sm:$0xff]
  %v997 = vld [vmem:[%s1 + $0x1e28] sm:$0xff]
  %v998 = vld [vmem:[%s1 + $0x1e30] sm:$0xff]
  %v999 = vld [vmem:[%s1 + $0x1e38] sm:$0xff]
  %v1000 = vld [vmem:[%s1 + $0x1e40] sm:$0xff]
  %v1001 = vld [vmem:[%s1 + $0x1e48] sm:$0xff]
  %v1002 = vld [vmem:[%s1 + $0x1e50] sm:$0xff]
  %v1003 = vld [vmem:[%s1 + $0x1e58] sm:$0xff]
  %v1004 = vld [vmem:[%s1 + $0x1e60] sm:$0xff]
  %v1005 = vld [vmem:[%s1 + $0x1e68] sm:$0xff]
  %v1006 = vld [vmem:[%s1 + $0x1e70] sm:$0xff]
  %v1007 = vld [vmem:[%s1 + $0x1e78] sm:$0xff]
  %v1008 = vld [vmem:[%s1 + $0x1e80] sm:$0xff]
  %v1009 = vld [vmem:[%s1 + $0x1e88] sm:$0xff]
  %v1010 = vld [vmem:[%s1 + $0x1e90] sm:$0xff]
  %v1011 = vld [vmem:[%s1 + $0x1e98] sm:$0xff]
  %v1012 = vld [vmem:[%s1 + $0x1ea0] sm:$0xff]
  %v1013 = vld [vmem:[%s1 + $0x1ea8] sm:$0xff]
  %v1014 = vld [vmem:[%s1 + $0x1eb0] sm:$0xff]
  %v1015 = vld [vmem:[%s1 + $0x1eb8] sm:$0xff]
  %v1016 = vld [vmem:[%s1 + $0x1ec0] sm:$0xff]
  %v1017 = vld [vmem:[%s1 + $0x1ec8] sm:$0xff]
  %v1018 = vld [vmem:[%s1 + $0x1ed0] sm:$0xff]
  %v1019 = vld [vmem:[%s1 + $0x1ed8] sm:$0xff]
  %v1020 = vld [vmem:[%s1 + $0x1ee0] sm:$0xff]
  %v1021 = vld [vmem:[%s1 + $0x1ee8] sm:$0xff]
  %v1022 = vld [vmem:[%s1 + $0x1ef0] sm:$0xff]
  %v1023 = vld [vmem:[%s1 + $0x1ef8] sm:$0xff]
  %v1024 = vld [vmem:[%s1 + $0x1f00] sm:$0xff]
  %v1025 = vld [vmem:[%s1 + $0x1f08] sm:$0xff]
  %v1026 = vld [vmem:[%s1 + $0x1f10] sm:$0xff]
  %v1027 = vld [vmem:[%s1 + $0x1f18] sm:$0xff]
  %v1028 = vld [vmem:[%s1 + $0x1f20] sm:$0xff]
  %v1029 = vld [vmem:[%s1 + $0x1f28] sm:$0xff]
  %v1030 = vld [vmem:[%s1 + $0x1f30] sm:$0xff]
  %v1031 = vld [vmem:[%s1 + $0x1f38] sm:$0xff]
  %v1032 = vld [vmem:[%s1 + $0x1f40] sm:$0xff]
  %v1033 = vld [vmem:[%s1 + $0x1f48] sm:$0xff]
  %v1034 = vld [vmem:[%s1 + $0x1f50] sm:$0xff]
  %v1035 = vld [vmem:[%s1 + $0x1f58] sm:$0xff]
  %v1036 = vld [vmem:[%s1 + $0x1f60] sm:$0xff]
  %v1037 = vld [vmem:[%s1 + $0x1f68] sm:$0xff]
  %v1038 = vld [vmem:[%s1 + $0x1f70] sm:$0xff]
  %v1039 = vld [vmem:[%s1 + $0x1f78] sm:$0xff]
  %v1040 = vld [vmem:[%s1 + $0x1f80] sm:$0xff]
  %v1041 = vld [vmem:[%s1 + $0x1f88] sm:$0xff]
  %v1042 = vld [vmem:[%s1 + $0x1f90] sm:$0xff]
  %v1043 = vld [vmem:[%s1 + $0x1f98] sm:$0xff]
  %v1044 = vld [vmem:[%s1 + $0x1fa0] sm:$0xff]
  %v1045 = vld [vmem:[%s1 + $0x1fa8] sm:$0xff]
  %v1046 = vld [vmem:[%s1 + $0x1fb0] sm:$0xff]
  %v1047 = vld [vmem:[%s1 + $0x1fb8] sm:$0xff]
  %v1048 = vld [vmem:[%s1 + $0x1fc0] sm:$0xff]
  %v1049 = vld [vmem:[%s1 + $0x1fc8] sm:$0xff]
  %v1050 = vld [vmem:[%s1 + $0x1fd0] sm:$0xff]
  %v1051 = vld [vmem:[%s1 + $0x1fd8] sm:$0xff]
  %v1052 = vld [vmem:[%s1 + $0x1fe0] sm:$0xff]
  %v1053 = vld [vmem:[%s1 + $0x1fe8] sm:$0xff]
  %v1054 = vld [vmem:[%s1 + $0x1ff0] sm:$0xff]
  %v1055 = vld [vmem:[%s1 + $0x1ff8] sm:$0xff]
  %v1056 = vld [vmem:[%s1 + $0x2000] sm:$0xff]
  %v1057 = vld [vmem:[%s1 + $0x2008] sm:$0xff]
  %v1058 = vld [vmem:[%s1 + $0x2010] sm:$0xff]
  %v1059 = vld [vmem:[%s1 + $0x2018] sm:$0xff]
  %v1060 = vld [vmem:[%s1 + $0x2020] sm:$0xff]
  %v1061 = vld [vmem:[%s1 + $0x2028] sm:$0xff]
  %v1062 = vld [vmem:[%s1 + $0x2030] sm:$0xff]
  %v1063 = vld [vmem:[%s1 + $0x2038] sm:$0xff]
  %v1064 = vld [vmem:[%s1 + $0x2040] sm:$0xff]
  %v1065 = vld [vmem:[%s1 + $0x2048] sm:$0xff]
  %v1066 = vld [vmem:[%s1 + $0x2050] sm:$0xff]
  %v1067 = vld [vmem:[%s1 + $0x2058] sm:$0xff]
  %v1068 = vld [vmem:[%s1 + $0x2060] sm:$0xff]
  %v1069 = vld [vmem:[%s1 + $0x2068] sm:$0xff]
  %v1070 = vld [vmem:[%s1 + $0x2070] sm:$0xff]
  %v1071 = vld [vmem:[%s1 + $0x2078] sm:$0xff]
  %v1072 = vld [vmem:[%s1 + $0x2080] sm:$0xff]
  %v1073 = vld [vmem:[%s1 + $0x2088] sm:$0xff]
  %v1074 = vld [vmem:[%s1 + $0x2090] sm:$0xff]
  %v1075 = vld [vmem:[%s1 + $0x2098] sm:$0xff]
  %v1076 = vld [vmem:[%s1 + $0x20a0] sm:$0xff]
  %v1077 = vld [vmem:[%s1 + $0x20a8] sm:$0xff]
  %v1078 = vld [vmem:[%s1 + $0x20b0] sm:$0xff]
  %v1079 = vld [vmem:[%s1 + $0x20b8] sm:$0xff]
  %v1080 = vld [vmem:[%s1 + $0x20c0] sm:$0xff]
  %v1081 = vld [vmem:[%s1 + $0x20c8] sm:$0xff]
  %v1082 = vld [vmem:[%s1 + $0x20d0] sm:$0xff]
  %v1083 = vld [vmem:[%s1 + $0x20d8] sm:$0xff]
  %v1084 = vld [vmem:[%s1 + $0x20e0] sm:$0xff]
  %v1085 = vld [vmem:[%s1 + $0x20e8] sm:$0xff]
  %v1086 = vld [vmem:[%s1 + $0x20f0] sm:$0xff]
  %v1087 = vld [vmem:[%s1 + $0x20f8] sm:$0xff]
  %v1088 = vld [vmem:[%s1 + $0x2100] sm:$0xff]
  %v1089 = vld [vmem:[%s1 + $0x2108] sm:$0xff]
  %v1090 = vld [vmem:[%s1 + $0x2110] sm:$0xff]
  %v1091 = vld [vmem:[%s1 + $0x2118] sm:$0xff]
  %v1092 = vld [vmem:[%s1 + $0x2120] sm:$0xff]
  %v1093 = vld [vmem:[%s1 + $0x2128] sm:$0xff]
  %v1094 = vld [vmem:[%s1 + $0x2130] sm:$0xff]
  %v1095 = vld [vmem:[%s1 + $0x2138] sm:$0xff]
  %v1096 = vld [vmem:[%s1 + $0x2140] sm:$0xff]
  %v1097 = vld [vmem:[%s1 + $0x2148] sm:$0xff]
  %v1098 = vld [vmem:[%s1 + $0x2150] sm:$0xff]
  %v1099 = vld [vmem:[%s1 + $0x2158] sm:$0xff]
  %v1100 = vld [vmem:[%s1 + $0x2160] sm:$0xff]
  %v1101 = vld [vmem:[%s1 + $0x2168] sm:$0xff]
  %v1102 = vld [vmem:[%s1 + $0x2170] sm:$0xff]
  %v1103 = vld [vmem:[%s1 + $0x2178] sm:$0xff]
  %v1104 = vld [vmem:[%s1 + $0x2180] sm:$0xff]
  %v1105 = vld [vmem:[%s1 + $0x2188] sm:$0xff]
  %v1106 = vld [vmem:[%s1 + $0x2190] sm:$0xff]
  %v1107 = vld [vmem:[%s1 + $0x2198] sm:$0xff]
  %v1108 = vld [vmem:[%s1 + $0x21a0] sm:$0xff]
  %v1109 = vld [vmem:[%s1 + $0x21a8] sm:$0xff]
  %v1110 = vld [vmem:[%s1 + $0x21b0] sm:$0xff]
  %v1111 = vld [vmem:[%s1 + $0x21b8] sm:$0xff]
  %v1112 = vld [vmem:[%s1 + $0x21c0] sm:$0xff]
  %v1113 = vld [vmem:[%s1 + $0x21c8] sm:$0xff]
  %v1114 = vld [vmem:[%s1 + $0x21d0] sm:$0xff]
  %v1115 = vld [vmem:[%s1 + $0x21d8] sm:$0xff]
  %v1116 = vld [vmem:[%s1 + $0x21e0] sm:$0xff]
  %v1117 = vld [vmem:[%s1 + $0x21e8] sm:$0xff]
  %v1118 = vld [vmem:[%s1 + $0x21f0] sm:$0xff]
  %v1119 = vld [vmem:[%s1 + $0x21f8] sm:$0xff]
  %v1120 = vld [vmem:[%s1 + $0x2200] sm:$0xff]
  %v1121 = vld [vmem:[%s1 + $0x2208] sm:$0xff]
  %v1122 = vld [vmem:[%s1 + $0x2210] sm:$0xff]
  %v1123 = vld [vmem:[%s1 + $0x2218] sm:$0xff]
  %v1124 = vld [vmem:[%s1 + $0x2220] sm:$0xff]
  %v1125 = vld [vmem:[%s1 + $0x2228] sm:$0xff]
  %v1126 = vld [vmem:[%s1 + $0x2230] sm:$0xff]
  %v1127 = vld [vmem:[%s1 + $0x2238] sm:$0xff]
  %v1128 = vld [vmem:[%s1 + $0x2240] sm:$0xff]
  %v1129 = vld [vmem:[%s1 + $0x2248] sm:$0xff]
  %v1130 = vld [vmem:[%s1 + $0x2250] sm:$0xff]
  %v1131 = vld [vmem:[%s1 + $0x2258] sm:$0xff]
  %v1132 = vld [vmem:[%s1 + $0x2260] sm:$0xff]
  %v1133 = vld [vmem:[%s1 + $0x2268] sm:$0xff]
  %v1134 = vld [vmem:[%s1 + $0x2270] sm:$0xff]
  %v1135 = vld [vmem:[%s1 + $0x2278] sm:$0xff]
  %v1136 = vld [vmem:[%s1 + $0x2280] sm:$0xff]
  %v1137 = vld [vmem:[%s1 + $0x2288] sm:$0xff]
  %v1138 = vld [vmem:[%s1 + $0x2290] sm:$0xff]
  %v1139 = vld [vmem:[%s1 + $0x2298] sm:$0xff]
  %v1140 = vld [vmem:[%s1 + $0x22a0] sm:$0xff]
  %v1141 = vld [vmem:[%s1 + $0x22a8] sm:$0xff]
  %v1142 = vld [vmem:[%s1 + $0x22b0] sm:$0xff]
  %v1143 = vld [vmem:[%s1 + $0x22b8] sm:$0xff]
  %v1144 = vld [vmem:[%s1 + $0x22c0] sm:$0xff]
  %v1145 = vld [vmem:[%s1 + $0x22c8] sm:$0xff]
  %v1146 = vld [vmem:[%s1 + $0x22d0] sm:$0xff]
  %v1147 = vld [vmem:[%s1 + $0x22d8] sm:$0xff]
  %v1148 = vld [vmem:[%s1 + $0x22e0] sm:$0xff]
  %v1149 = vld [vmem:[%s1 + $0x22e8] sm:$0xff]
  %v1150 = vld [vmem:[%s1 + $0x22f0] sm:$0xff]
  %v1151 = vld [vmem:[%s1 + $0x22f8] sm:$0xff]
  %v1152 = vld [vmem:[%s1 + $0x2300] sm:$0xff]
  %v1153 = vld [vmem:[%s1 + $0x2308] sm:$0xff]
  %v1154 = vld [vmem:[%s1 + $0x2310] sm:$0xff]
  %v1155 = vld [vmem:[%s1 + $0x2318] sm:$0xff]
  %v1156 = vld [vmem:[%s1 + $0x2320] sm:$0xff]
  %v1157 = vld [vmem:[%s1 + $0x2328] sm:$0xff]
  %v1158 = vld [vmem:[%s1 + $0x2330] sm:$0xff]
  %v1159 = vld [vmem:[%s1 + $0x2338] sm:$0xff]
  %v1160 = vld [vmem:[%s1 + $0x2340] sm:$0xff]
  %v1161 = vld [vmem:[%s1 + $0x2348] sm:$0xff]
  %v1162 = vld [vmem:[%s1 + $0x2350] sm:$0xff]
  %v1163 = vld [vmem:[%s1 + $0x2358] sm:$0xff]
  %v1164 = vld [vmem:[%s1 + $0x2360] sm:$0xff]
  %v1165 = vld [vmem:[%s1 + $0x2368] sm:$0xff]
  %v1166 = vld [vmem:[%s1 + $0x2370] sm:$0xff]
  %v1167 = vld [vmem:[%s1 + $0x2378] sm:$0xff]
  %v1168 = vld [vmem:[%s1 + $0x2380] sm:$0xff]
  %v1169 = vld [vmem:[%s1 + $0x2388] sm:$0xff]
  %v1170 = vld [vmem:[%s1 + $0x2390] sm:$0xff]
  %v1171 = vld [vmem:[%s1 + $0x2398] sm:$0xff]
  %v1172 = vld [vmem:[%s1 + $0x23a0] sm:$0xff]
  %v1173 = vld [vmem:[%s1 + $0x23a8] sm:$0xff]
  %v1174 = vld [vmem:[%s1 + $0x23b0] sm:$0xff]
  %v1175 = vld [vmem:[%s1 + $0x23b8] sm:$0xff]
  %v1176 = vld [vmem:[%s1 + $0x23c0] sm:$0xff]
  %v1177 = vld [vmem:[%s1 + $0x23c8] sm:$0xff]
  %v1178 = vld [vmem:[%s1 + $0x23d0] sm:$0xff]
  %v1179 = vld [vmem:[%s1 + $0x23d8] sm:$0xff]
  %v1180 = vld [vmem:[%s1 + $0x23e0] sm:$0xff]
  %v1181 = vld [vmem:[%s1 + $0x23e8] sm:$0xff]
  %v1182 = vld [vmem:[%s1 + $0x23f0] sm:$0xff]
  %v1183 = vld [vmem:[%s1 + $0x23f8] sm:$0xff]
  %v1184 = vld [vmem:[%s2] sm:$0xf]
  %v1186 = vperm.slane %v1184, 0
  %v1187 = vperm.slane %v1184, 1
  %v1188 = vperm.slane %v1184, 2
  %v1189 = vperm.slane %v1184, 3
  %1194 = vmatpush.msra.mxu0 %v92
  %1195 = vmatpush.msra.mxu0 %v88
  %1196 = vmatpush.msra.mxu0 %v84
  %1197 = vmatpush.msra.mxu0 %v80
  %1198 = vmatpush.msra.mxu0 %v76
  %1199 = vmatpush.msra.mxu0 %v72
  %1200 = vmatpush.msra.mxu0 %v68
  %1201 = vmatpush.msra.mxu0 %v64
  %1202 = vmatpush.msra.mxu0 %v60
  %1203 = vmatpush.msra.mxu0 %v56
  %1204 = vmatpush.msra.mxu0 %v52
  %1205 = vmatpush.msra.mxu0 %v48
  %1206 = vmatpush.msra.mxu0 %v44
  %1207 = vmatpush.msra.mxu0 %v40
  %1208 = vmatpush.msra.mxu0 %v36
  %1209 = vmatpush.msra.mxu0 %v32
  %1210 = vmatmul.f32.gmra.mxu0 %v14
  %v1211 = vpop.f32.mrf.mxu0
  %v1212 = vadd.f32 %v1186, %v1211
  %1213 = vdwg.mxu0
  %1214 = vmatpush.msra.mxu0 %v156
  %1215 = vmatpush.msra.mxu0 %v152
  %1216 = vmatpush.msra.mxu0 %v148
  %1217 = vmatpush.msra.mxu0 %v144
  %1218 = vmatpush.msra.mxu0 %v140
  %1219 = vmatpush.msra.mxu0 %v136
  %1220 = vmatpush.msra.mxu0 %v132
  %1221 = vmatpush.msra.mxu0 %v128
  %1222 = vmatpush.msra.mxu0 %v124
  %1223 = vmatpush.msra.mxu0 %v120
  %1224 = vmatpush.msra.mxu0 %v116
  %1225 = vmatpush.msra.mxu0 %v112
  %1226 = vmatpush.msra.mxu0 %v108
  %1227 = vmatpush.msra.mxu0 %v104
  %1228 = vmatpush.msra.mxu0 %v100
  %1229 = vmatpush.msra.mxu0 %v96
  %1230 = vmatmul.f32.gmra.mxu0 %v15
  %v1231 = vpop.f32.mrf.mxu0
  %v1232 = vadd.f32 %v1212, %v1231
  %1233 = vdwg.mxu0
  %1234 = vmatpush.msra.mxu0 %v220
  %1235 = vmatpush.msra.mxu0 %v216
  %1236 = vmatpush.msra.mxu0 %v212
  %1237 = vmatpush.msra.mxu0 %v208
  %1238 = vmatpush.msra.mxu0 %v204
  %1239 = vmatpush.msra.mxu0 %v200
  %1240 = vmatpush.msra.mxu0 %v196
  %1241 = vmatpush.msra.mxu0 %v192
  %1242 = vmatpush.msra.mxu0 %v188
  %1243 = vmatpush.msra.mxu0 %v184
  %1244 = vmatpush.msra.mxu0 %v180
  %1245 = vmatpush.msra.mxu0 %v176
  %1246 = vmatpush.msra.mxu0 %v172
  %1247 = vmatpush.msra.mxu0 %v168
  %1248 = vmatpush.msra.mxu0 %v164
  %1249 = vmatpush.msra.mxu0 %v160
  %1250 = vmatmul.f32.gmra.mxu0 %v16
  %v1251 = vpop.f32.mrf.mxu0
  %v1252 = vadd.f32 %v1232, %v1251
  %1253 = vdwg.mxu0
  %1254 = vmatpush.msra.mxu0 %v284
  %1255 = vmatpush.msra.mxu0 %v280
  %1256 = vmatpush.msra.mxu0 %v276
  %1257 = vmatpush.msra.mxu0 %v272
  %1258 = vmatpush.msra.mxu0 %v268
  %1259 = vmatpush.msra.mxu0 %v264
  %1260 = vmatpush.msra.mxu0 %v260
  %1261 = vmatpush.msra.mxu0 %v256
  %1262 = vmatpush.msra.mxu0 %v252
  %1263 = vmatpush.msra.mxu0 %v248
  %1264 = vmatpush.msra.mxu0 %v244
  %1265 = vmatpush.msra.mxu0 %v240
  %1266 = vmatpush.msra.mxu0 %v236
  %1267 = vmatpush.msra.mxu0 %v232
  %1268 = vmatpush.msra.mxu0 %v228
  %1269 = vmatpush.msra.mxu0 %v224
  %1270 = vmatmul.f32.gmra.mxu0 %v17
  %v1271 = vpop.f32.mrf.mxu0
  %v1272 = vadd.f32 %v1252, %v1271
  %1273 = vdwg.mxu0
  %1274 = vmatpush.msra.mxu0 %v348
  %1275 = vmatpush.msra.mxu0 %v344
  %1276 = vmatpush.msra.mxu0 %v340
  %1277 = vmatpush.msra.mxu0 %v336
  %1278 = vmatpush.msra.mxu0 %v332
  %1279 = vmatpush.msra.mxu0 %v328
  %1280 = vmatpush.msra.mxu0 %v324
  %1281 = vmatpush.msra.mxu0 %v320
  %1282 = vmatpush.msra.mxu0 %v316
  %1283 = vmatpush.msra.mxu0 %v312
  %1284 = vmatpush.msra.mxu0 %v308
  %1285 = vmatpush.msra.mxu0 %v304
  %1286 = vmatpush.msra.mxu0 %v300
  %1287 = vmatpush.msra.mxu0 %v296
  %1288 = vmatpush.msra.mxu0 %v292
  %1289 = vmatpush.msra.mxu0 %v288
  %1290 = vmatmul.f32.gmra.mxu0 %v18
  %v1291 = vpop.f32.mrf.mxu0
  %v1292 = vadd.f32 %v1272, %v1291
  %1293 = vdwg.mxu0
  %1294 = vmatpush.msra.mxu0 %v412
  %1295 = vmatpush.msra.mxu0 %v408
  %1296 = vmatpush.msra.mxu0 %v404
  %1297 = vmatpush.msra.mxu0 %v400
  %1298 = vmatpush.msra.mxu0 %v396
  %1299 = vmatpush.msra.mxu0 %v392
  %1300 = vmatpush.msra.mxu0 %v388
  %1301 = vmatpush.msra.mxu0 %v384
  %1302 = vmatpush.msra.mxu0 %v380
  %1303 = vmatpush.msra.mxu0 %v376
  %1304 = vmatpush.msra.mxu0 %v372
  %1305 = vmatpush.msra.mxu0 %v368
  %1306 = vmatpush.msra.mxu0 %v364
  %1307 = vmatpush.msra.mxu0 %v360
  %1308 = vmatpush.msra.mxu0 %v356
  %1309 = vmatpush.msra.mxu0 %v352
  %1310 = vmatmul.f32.gmra.mxu0 %v19
  %v1311 = vpop.f32.mrf.mxu0
  %v1312 = vadd.f32 %v1292, %v1311
  %1313 = vdwg.mxu0
  %1314 = vmatpush.msra.mxu0 %v476
  %1315 = vmatpush.msra.mxu0 %v472
  %1316 = vmatpush.msra.mxu0 %v468
  %1317 = vmatpush.msra.mxu0 %v464
  %1318 = vmatpush.msra.mxu0 %v460
  %1319 = vmatpush.msra.mxu0 %v456
  %1320 = vmatpush.msra.mxu0 %v452
  %1321 = vmatpush.msra.mxu0 %v448
  %1322 = vmatpush.msra.mxu0 %v444
  %1323 = vmatpush.msra.mxu0 %v440
  %1324 = vmatpush.msra.mxu0 %v436
  %1325 = vmatpush.msra.mxu0 %v432
  %1326 = vmatpush.msra.mxu0 %v428
  %1327 = vmatpush.msra.mxu0 %v424
  %1328 = vmatpush.msra.mxu0 %v420
  %1329 = vmatpush.msra.mxu0 %v416
  %1330 = vmatmul.f32.gmra.mxu0 %v20
  %v1331 = vpop.f32.mrf.mxu0
  %v1332 = vadd.f32 %v1312, %v1331
  %1333 = vdwg.mxu0
  %1334 = vmatpush.msra.mxu0 %v540
  %1335 = vmatpush.msra.mxu0 %v536
  %1336 = vmatpush.msra.mxu0 %v532
  %1337 = vmatpush.msra.mxu0 %v528
  %1338 = vmatpush.msra.mxu0 %v524
  %1339 = vmatpush.msra.mxu0 %v520
  %1340 = vmatpush.msra.mxu0 %v516
  %1341 = vmatpush.msra.mxu0 %v512
  %1342 = vmatpush.msra.mxu0 %v508
  %1343 = vmatpush.msra.mxu0 %v504
  %1344 = vmatpush.msra.mxu0 %v500
  %1345 = vmatpush.msra.mxu0 %v496
  %1346 = vmatpush.msra.mxu0 %v492
  %1347 = vmatpush.msra.mxu0 %v488
  %1348 = vmatpush.msra.mxu0 %v484
  %1349 = vmatpush.msra.mxu0 %v480
  %1350 = vmatmul.f32.gmra.mxu0 %v21
  %v1351 = vpop.f32.mrf.mxu0
  %v1352 = vadd.f32 %v1332, %v1351
  %1353 = vdwg.mxu0
  %1354 = vmatpush.msra.mxu0 %v604
  %1355 = vmatpush.msra.mxu0 %v600
  %1356 = vmatpush.msra.mxu0 %v596
  %1357 = vmatpush.msra.mxu0 %v592
  %1358 = vmatpush.msra.mxu0 %v588
  %1359 = vmatpush.msra.mxu0 %v584
  %1360 = vmatpush.msra.mxu0 %v580
  %1361 = vmatpush.msra.mxu0 %v576
  %1362 = vmatpush.msra.mxu0 %v572
  %1363 = vmatpush.msra.mxu0 %v568
  %1364 = vmatpush.msra.mxu0 %v564
  %1365 = vmatpush.msra.mxu0 %v560
  %1366 = vmatpush.msra.mxu0 %v556
  %1367 = vmatpush.msra.mxu0 %v552
  %1368 = vmatpush.msra.mxu0 %v548
  %1369 = vmatpush.msra.mxu0 %v544
  %1370 = vmatmul.f32.gmra.mxu0 %v22
  %v1371 = vpop.f32.mrf.mxu0
  %v1372 = vadd.f32 %v1352, %v1371
  %1373 = vdwg.mxu0
  %1374 = vmatpush.msra.mxu0 %v668
  %1375 = vmatpush.msra.mxu0 %v664
  %1376 = vmatpush.msra.mxu0 %v660
  %1377 = vmatpush.msra.mxu0 %v656
  %1378 = vmatpush.msra.mxu0 %v652
  %1379 = vmatpush.msra.mxu0 %v648
  %1380 = vmatpush.msra.mxu0 %v644
  %1381 = vmatpush.msra.mxu0 %v640
  %1382 = vmatpush.msra.mxu0 %v636
  %1383 = vmatpush.msra.mxu0 %v632
  %1384 = vmatpush.msra.mxu0 %v628
  %1385 = vmatpush.msra.mxu0 %v624
  %1386 = vmatpush.msra.mxu0 %v620
  %1387 = vmatpush.msra.mxu0 %v616
  %1388 = vmatpush.msra.mxu0 %v612
  %1389 = vmatpush.msra.mxu0 %v608
  %1390 = vmatmul.f32.gmra.mxu0 %v23
  %v1391 = vpop.f32.mrf.mxu0
  %v1392 = vadd.f32 %v1372, %v1391
  %1393 = vdwg.mxu0
  %1394 = vmatpush.msra.mxu0 %v732
  %1395 = vmatpush.msra.mxu0 %v728
  %1396 = vmatpush.msra.mxu0 %v724
  %1397 = vmatpush.msra.mxu0 %v720
  %1398 = vmatpush.msra.mxu0 %v716
  %1399 = vmatpush.msra.mxu0 %v712
  %1400 = vmatpush.msra.mxu0 %v708
  %1401 = vmatpush.msra.mxu0 %v704
  %1402 = vmatpush.msra.mxu0 %v700
  %1403 = vmatpush.msra.mxu0 %v696
  %1404 = vmatpush.msra.mxu0 %v692
  %1405 = vmatpush.msra.mxu0 %v688
  %1406 = vmatpush.msra.mxu0 %v684
  %1407 = vmatpush.msra.mxu0 %v680
  %1408 = vmatpush.msra.mxu0 %v676
  %1409 = vmatpush.msra.mxu0 %v672
  %1410 = vmatmul.f32.gmra.mxu0 %v24
  %v1411 = vpop.f32.mrf.mxu0
  %v1412 = vadd.f32 %v1392, %v1411
  %1413 = vdwg.mxu0
  %1414 = vmatpush.msra.mxu0 %v796
  %1415 = vmatpush.msra.mxu0 %v792
  %1416 = vmatpush.msra.mxu0 %v788
  %1417 = vmatpush.msra.mxu0 %v784
  %1418 = vmatpush.msra.mxu0 %v780
  %1419 = vmatpush.msra.mxu0 %v776
  %1420 = vmatpush.msra.mxu0 %v772
  %1421 = vmatpush.msra.mxu0 %v768
  %1422 = vmatpush.msra.mxu0 %v764
  %1423 = vmatpush.msra.mxu0 %v760
  %1424 = vmatpush.msra.mxu0 %v756
  %1425 = vmatpush.msra.mxu0 %v752
  %1426 = vmatpush.msra.mxu0 %v748
  %1427 = vmatpush.msra.mxu0 %v744
  %1428 = vmatpush.msra.mxu0 %v740
  %1429 = vmatpush.msra.mxu0 %v736
  %1430 = vmatmul.f32.gmra.mxu0 %v25
  %v1431 = vpop.f32.mrf.mxu0
  %v1432 = vadd.f32 %v1412, %v1431
  %1433 = vdwg.mxu0
  %1434 = vmatpush.msra.mxu0 %v860
  %1435 = vmatpush.msra.mxu0 %v856
  %1436 = vmatpush.msra.mxu0 %v852
  %1437 = vmatpush.msra.mxu0 %v848
  %1438 = vmatpush.msra.mxu0 %v844
  %1439 = vmatpush.msra.mxu0 %v840
  %1440 = vmatpush.msra.mxu0 %v836
  %1441 = vmatpush.msra.mxu0 %v832
  %1442 = vmatpush.msra.mxu0 %v828
  %1443 = vmatpush.msra.mxu0 %v824
  %1444 = vmatpush.msra.mxu0 %v820
  %1445 = vmatpush.msra.mxu0 %v816
  %1446 = vmatpush.msra.mxu0 %v812
  %1447 = vmatpush.msra.mxu0 %v808
  %1448 = vmatpush.msra.mxu0 %v804
  %1449 = vmatpush.msra.mxu0 %v800
  %1450 = vmatmul.f32.gmra.mxu0 %v26
  %v1451 = vpop.f32.mrf.mxu0
  %v1452 = vadd.f32 %v1432, %v1451
  %1453 = vdwg.mxu0
  %1454 = vmatpush.msra.mxu0 %v924
  %1455 = vmatpush.msra.mxu0 %v920
  %1456 = vmatpush.msra.mxu0 %v916
  %1457 = vmatpush.msra.mxu0 %v912
  %1458 = vmatpush.msra.mxu0 %v908
  %1459 = vmatpush.msra.mxu0 %v904
  %1460 = vmatpush.msra.mxu0 %v900
  %1461 = vmatpush.msra.mxu0 %v896
  %1462 = vmatpush.msra.mxu0 %v892
  %1463 = vmatpush.msra.mxu0 %v888
  %1464 = vmatpush.msra.mxu0 %v884
  %1465 = vmatpush.msra.mxu0 %v880
  %1466 = vmatpush.msra.mxu0 %v876
  %1467 = vmatpush.msra.mxu0 %v872
  %1468 = vmatpush.msra.mxu0 %v868
  %1469 = vmatpush.msra.mxu0 %v864
  %1470 = vmatmul.f32.gmra.mxu0 %v27
  %v1471 = vpop.f32.mrf.mxu0
  %v1472 = vadd.f32 %v1452, %v1471
  %1473 = vdwg.mxu0
  %1474 = vmatpush.msra.mxu0 %v988
  %1475 = vmatpush.msra.mxu0 %v984
  %1476 = vmatpush.msra.mxu0 %v980
  %1477 = vmatpush.msra.mxu0 %v976
  %1478 = vmatpush.msra.mxu0 %v972
  %1479 = vmatpush.msra.mxu0 %v968
  %1480 = vmatpush.msra.mxu0 %v964
  %1481 = vmatpush.msra.mxu0 %v960
  %1482 = vmatpush.msra.mxu0 %v956
  %1483 = vmatpush.msra.mxu0 %v952
  %1484 = vmatpush.msra.mxu0 %v948
  %1485 = vmatpush.msra.mxu0 %v944
  %1486 = vmatpush.msra.mxu0 %v940
  %1487 = vmatpush.msra.mxu0 %v936
  %1488 = vmatpush.msra.mxu0 %v932
  %1489 = vmatpush.msra.mxu0 %v928
  %1490 = vmatmul.f32.gmra.mxu0 %v28
  %v1491 = vpop.f32.mrf.mxu0
  %v1492 = vadd.f32 %v1472, %v1491
  %1493 = vdwg.mxu0
  %1494 = vmatpush.msra.mxu0 %v1052
  %1495 = vmatpush.msra.mxu0 %v1048
  %1496 = vmatpush.msra.mxu0 %v1044
  %1497 = vmatpush.msra.mxu0 %v1040
  %1498 = vmatpush.msra.mxu0 %v1036
  %1499 = vmatpush.msra.mxu0 %v1032
  %1500 = vmatpush.msra.mxu0 %v1028
  %1501 = vmatpush.msra.mxu0 %v1024
  %1502 = vmatpush.msra.mxu0 %v1020
  %1503 = vmatpush.msra.mxu0 %v1016
  %1504 = vmatpush.msra.mxu0 %v1012
  %1505 = vmatpush.msra.mxu0 %v1008
  %1506 = vmatpush.msra.mxu0 %v1004
  %1507 = vmatpush.msra.mxu0 %v1000
  %1508 = vmatpush.msra.mxu0 %v996
  %1509 = vmatpush.msra.mxu0 %v992
  %1510 = vmatmul.f32.gmra.mxu0 %v29
  %v1511 = vpop.f32.mrf.mxu0
  %v1512 = vadd.f32 %v1492, %v1511
  %1513 = vdwg.mxu0
  %1514 = vmatpush.msra.mxu0 %v1116
  %1515 = vmatpush.msra.mxu0 %v1112
  %1516 = vmatpush.msra.mxu0 %v1108
  %1517 = vmatpush.msra.mxu0 %v1104
  %1518 = vmatpush.msra.mxu0 %v1100
  %1519 = vmatpush.msra.mxu0 %v1096
  %1520 = vmatpush.msra.mxu0 %v1092
  %1521 = vmatpush.msra.mxu0 %v1088
  %1522 = vmatpush.msra.mxu0 %v1084
  %1523 = vmatpush.msra.mxu0 %v1080
  %1524 = vmatpush.msra.mxu0 %v1076
  %1525 = vmatpush.msra.mxu0 %v1072
  %1526 = vmatpush.msra.mxu0 %v1068
  %1527 = vmatpush.msra.mxu0 %v1064
  %1528 = vmatpush.msra.mxu0 %v1060
  %1529 = vmatpush.msra.mxu0 %v1056
  %1530 = vmatmul.f32.gmra.mxu0 %v30
  %v1531 = vpop.f32.mrf.mxu0
  %v1532 = vadd.f32 %v1512, %v1531
  %1533 = vdwg.mxu0
  %1534 = vmatpush.msra.mxu0 %v1180
  %1535 = vmatpush.msra.mxu0 %v1176
  %1536 = vmatpush.msra.mxu0 %v1172
  %1537 = vmatpush.msra.mxu0 %v1168
  %1538 = vmatpush.msra.mxu0 %v1164
  %1539 = vmatpush.msra.mxu0 %v1160
  %1540 = vmatpush.msra.mxu0 %v1156
  %1541 = vmatpush.msra.mxu0 %v1152
  %1542 = vmatpush.msra.mxu0 %v1148
  %1543 = vmatpush.msra.mxu0 %v1144
  %1544 = vmatpush.msra.mxu0 %v1140
  %1545 = vmatpush.msra.mxu0 %v1136
  %1546 = vmatpush.msra.mxu0 %v1132
  %1547 = vmatpush.msra.mxu0 %v1128
  %1548 = vmatpush.msra.mxu0 %v1124
  %1549 = vmatpush.msra.mxu0 %v1120
  %1550 = vmatmul.f32.gmra.mxu0 %v31
  %v1551 = vpop.f32.mrf.mxu0
  %v1552 = vadd.f32 %v1532, %v1551
  %1553 = vdwg.mxu0
  %1554 = vmatpush.msra.mxu0 %v93
  %1555 = vmatpush.msra.mxu0 %v89
  %1556 = vmatpush.msra.mxu0 %v85
  %1557 = vmatpush.msra.mxu0 %v81
  %1558 = vmatpush.msra.mxu0 %v77
  %1559 = vmatpush.msra.mxu0 %v73
  %1560 = vmatpush.msra.mxu0 %v69
  %1561 = vmatpush.msra.mxu0 %v65
  %1562 = vmatpush.msra.mxu0 %v61
  %1563 = vmatpush.msra.mxu0 %v57
  %1564 = vmatpush.msra.mxu0 %v53
  %1565 = vmatpush.msra.mxu0 %v49
  %1566 = vmatpush.msra.mxu0 %v45
  %1567 = vmatpush.msra.mxu0 %v41
  %1568 = vmatpush.msra.mxu0 %v37
  %1569 = vmatpush.msra.mxu0 %v33
  %1570 = vmatmul.f32.gmra.mxu0 %v14
  %v1571 = vpop.f32.mrf.mxu0
  %v1572 = vadd.f32 %v1187, %v1571
  %1573 = vdwg.mxu0
  %1574 = vmatpush.msra.mxu0 %v157
  %1575 = vmatpush.msra.mxu0 %v153
  %1576 = vmatpush.msra.mxu0 %v149
  %1577 = vmatpush.msra.mxu0 %v145
  %1578 = vmatpush.msra.mxu0 %v141
  %1579 = vmatpush.msra.mxu0 %v137
  %1580 = vmatpush.msra.mxu0 %v133
  %1581 = vmatpush.msra.mxu0 %v129
  %1582 = vmatpush.msra.mxu0 %v125
  %1583 = vmatpush.msra.mxu0 %v121
  %1584 = vmatpush.msra.mxu0 %v117
  %1585 = vmatpush.msra.mxu0 %v113
  %1586 = vmatpush.msra.mxu0 %v109
  %1587 = vmatpush.msra.mxu0 %v105
  %1588 = vmatpush.msra.mxu0 %v101
  %1589 = vmatpush.msra.mxu0 %v97
  %1590 = vmatmul.f32.gmra.mxu0 %v15
  %v1591 = vpop.f32.mrf.mxu0
  %v1592 = vadd.f32 %v1572, %v1591
  %1593 = vdwg.mxu0
  %1594 = vmatpush.msra.mxu0 %v221
  %1595 = vmatpush.msra.mxu0 %v217
  %1596 = vmatpush.msra.mxu0 %v213
  %1597 = vmatpush.msra.mxu0 %v209
  %1598 = vmatpush.msra.mxu0 %v205
  %1599 = vmatpush.msra.mxu0 %v201
  %1600 = vmatpush.msra.mxu0 %v197
  %1601 = vmatpush.msra.mxu0 %v193
  %1602 = vmatpush.msra.mxu0 %v189
  %1603 = vmatpush.msra.mxu0 %v185
  %1604 = vmatpush.msra.mxu0 %v181
  %1605 = vmatpush.msra.mxu0 %v177
  %1606 = vmatpush.msra.mxu0 %v173
  %1607 = vmatpush.msra.mxu0 %v169
  %1608 = vmatpush.msra.mxu0 %v165
  %1609 = vmatpush.msra.mxu0 %v161
  %1610 = vmatmul.f32.gmra.mxu0 %v16
  %v1611 = vpop.f32.mrf.mxu0
  %v1612 = vadd.f32 %v1592, %v1611
  %1613 = vdwg.mxu0
  %1614 = vmatpush.msra.mxu0 %v285
  %1615 = vmatpush.msra.mxu0 %v281
  %1616 = vmatpush.msra.mxu0 %v277
  %1617 = vmatpush.msra.mxu0 %v273
  %1618 = vmatpush.msra.mxu0 %v269
  %1619 = vmatpush.msra.mxu0 %v265
  %1620 = vmatpush.msra.mxu0 %v261
  %1621 = vmatpush.msra.mxu0 %v257
  %1622 = vmatpush.msra.mxu0 %v253
  %1623 = vmatpush.msra.mxu0 %v249
  %1624 = vmatpush.msra.mxu0 %v245
  %1625 = vmatpush.msra.mxu0 %v241
  %1626 = vmatpush.msra.mxu0 %v237
  %1627 = vmatpush.msra.mxu0 %v233
  %1628 = vmatpush.msra.mxu0 %v229
  %1629 = vmatpush.msra.mxu0 %v225
  %1630 = vmatmul.f32.gmra.mxu0 %v17
  %v1631 = vpop.f32.mrf.mxu0
  %v1632 = vadd.f32 %v1612, %v1631
  %1633 = vdwg.mxu0
  %1634 = vmatpush.msra.mxu0 %v349
  %1635 = vmatpush.msra.mxu0 %v345
  %1636 = vmatpush.msra.mxu0 %v341
  %1637 = vmatpush.msra.mxu0 %v337
  %1638 = vmatpush.msra.mxu0 %v333
  %1639 = vmatpush.msra.mxu0 %v329
  %1640 = vmatpush.msra.mxu0 %v325
  %1641 = vmatpush.msra.mxu0 %v321
  %1642 = vmatpush.msra.mxu0 %v317
  %1643 = vmatpush.msra.mxu0 %v313
  %1644 = vmatpush.msra.mxu0 %v309
  %1645 = vmatpush.msra.mxu0 %v305
  %1646 = vmatpush.msra.mxu0 %v301
  %1647 = vmatpush.msra.mxu0 %v297
  %1648 = vmatpush.msra.mxu0 %v293
  %1649 = vmatpush.msra.mxu0 %v289
  %1650 = vmatmul.f32.gmra.mxu0 %v18
  %v1651 = vpop.f32.mrf.mxu0
  %v1652 = vadd.f32 %v1632, %v1651
  %1653 = vdwg.mxu0
  %1654 = vmatpush.msra.mxu0 %v413
  %1655 = vmatpush.msra.mxu0 %v409
  %1656 = vmatpush.msra.mxu0 %v405
  %1657 = vmatpush.msra.mxu0 %v401
  %1658 = vmatpush.msra.mxu0 %v397
  %1659 = vmatpush.msra.mxu0 %v393
  %1660 = vmatpush.msra.mxu0 %v389
  %1661 = vmatpush.msra.mxu0 %v385
  %1662 = vmatpush.msra.mxu0 %v381
  %1663 = vmatpush.msra.mxu0 %v377
  %1664 = vmatpush.msra.mxu0 %v373
  %1665 = vmatpush.msra.mxu0 %v369
  %1666 = vmatpush.msra.mxu0 %v365
  %1667 = vmatpush.msra.mxu0 %v361
  %1668 = vmatpush.msra.mxu0 %v357
  %1669 = vmatpush.msra.mxu0 %v353
  %1670 = vmatmul.f32.gmra.mxu0 %v19
  %v1671 = vpop.f32.mrf.mxu0
  %v1672 = vadd.f32 %v1652, %v1671
  %1673 = vdwg.mxu0
  %1674 = vmatpush.msra.mxu0 %v477
  %1675 = vmatpush.msra.mxu0 %v473
  %1676 = vmatpush.msra.mxu0 %v469
  %1677 = vmatpush.msra.mxu0 %v465
  %1678 = vmatpush.msra.mxu0 %v461
  %1679 = vmatpush.msra.mxu0 %v457
  %1680 = vmatpush.msra.mxu0 %v453
  %1681 = vmatpush.msra.mxu0 %v449
  %1682 = vmatpush.msra.mxu0 %v445
  %1683 = vmatpush.msra.mxu0 %v441
  %1684 = vmatpush.msra.mxu0 %v437
  %1685 = vmatpush.msra.mxu0 %v433
  %1686 = vmatpush.msra.mxu0 %v429
  %1687 = vmatpush.msra.mxu0 %v425
  %1688 = vmatpush.msra.mxu0 %v421
  %1689 = vmatpush.msra.mxu0 %v417
  %1690 = vmatmul.f32.gmra.mxu0 %v20
  %v1691 = vpop.f32.mrf.mxu0
  %v1692 = vadd.f32 %v1672, %v1691
  %1693 = vdwg.mxu0
  %1694 = vmatpush.msra.mxu0 %v541
  %1695 = vmatpush.msra.mxu0 %v537
  %1696 = vmatpush.msra.mxu0 %v533
  %1697 = vmatpush.msra.mxu0 %v529
  %1698 = vmatpush.msra.mxu0 %v525
  %1699 = vmatpush.msra.mxu0 %v521
  %1700 = vmatpush.msra.mxu0 %v517
  %1701 = vmatpush.msra.mxu0 %v513
  %1702 = vmatpush.msra.mxu0 %v509
  %1703 = vmatpush.msra.mxu0 %v505
  %1704 = vmatpush.msra.mxu0 %v501
  %1705 = vmatpush.msra.mxu0 %v497
  %1706 = vmatpush.msra.mxu0 %v493
  %1707 = vmatpush.msra.mxu0 %v489
  %1708 = vmatpush.msra.mxu0 %v485
  %1709 = vmatpush.msra.mxu0 %v481
  %1710 = vmatmul.f32.gmra.mxu0 %v21
  %v1711 = vpop.f32.mrf.mxu0
  %v1712 = vadd.f32 %v1692, %v1711
  %1713 = vdwg.mxu0
  %1714 = vmatpush.msra.mxu0 %v605
  %1715 = vmatpush.msra.mxu0 %v601
  %1716 = vmatpush.msra.mxu0 %v597
  %1717 = vmatpush.msra.mxu0 %v593
  %1718 = vmatpush.msra.mxu0 %v589
  %1719 = vmatpush.msra.mxu0 %v585
  %1720 = vmatpush.msra.mxu0 %v581
  %1721 = vmatpush.msra.mxu0 %v577
  %1722 = vmatpush.msra.mxu0 %v573
  %1723 = vmatpush.msra.mxu0 %v569
  %1724 = vmatpush.msra.mxu0 %v565
  %1725 = vmatpush.msra.mxu0 %v561
  %1726 = vmatpush.msra.mxu0 %v557
  %1727 = vmatpush.msra.mxu0 %v553
  %1728 = vmatpush.msra.mxu0 %v549
  %1729 = vmatpush.msra.mxu0 %v545
  %1730 = vmatmul.f32.gmra.mxu0 %v22
  %v1731 = vpop.f32.mrf.mxu0
  %v1732 = vadd.f32 %v1712, %v1731
  %1733 = vdwg.mxu0
  %1734 = vmatpush.msra.mxu0 %v669
  %1735 = vmatpush.msra.mxu0 %v665
  %1736 = vmatpush.msra.mxu0 %v661
  %1737 = vmatpush.msra.mxu0 %v657
  %1738 = vmatpush.msra.mxu0 %v653
  %1739 = vmatpush.msra.mxu0 %v649
  %1740 = vmatpush.msra.mxu0 %v645
  %1741 = vmatpush.msra.mxu0 %v641
  %1742 = vmatpush.msra.mxu0 %v637
  %1743 = vmatpush.msra.mxu0 %v633
  %1744 = vmatpush.msra.mxu0 %v629
  %1745 = vmatpush.msra.mxu0 %v625
  %1746 = vmatpush.msra.mxu0 %v621
  %1747 = vmatpush.msra.mxu0 %v617
  %1748 = vmatpush.msra.mxu0 %v613
  %1749 = vmatpush.msra.mxu0 %v609
  %1750 = vmatmul.f32.gmra.mxu0 %v23
  %v1751 = vpop.f32.mrf.mxu0
  %v1752 = vadd.f32 %v1732, %v1751
  %1753 = vdwg.mxu0
  %1754 = vmatpush.msra.mxu0 %v733
  %1755 = vmatpush.msra.mxu0 %v729
  %1756 = vmatpush.msra.mxu0 %v725
  %1757 = vmatpush.msra.mxu0 %v721
  %1758 = vmatpush.msra.mxu0 %v717
  %1759 = vmatpush.msra.mxu0 %v713
  %1760 = vmatpush.msra.mxu0 %v709
  %1761 = vmatpush.msra.mxu0 %v705
  %1762 = vmatpush.msra.mxu0 %v701
  %1763 = vmatpush.msra.mxu0 %v697
  %1764 = vmatpush.msra.mxu0 %v693
  %1765 = vmatpush.msra.mxu0 %v689
  %1766 = vmatpush.msra.mxu0 %v685
  %1767 = vmatpush.msra.mxu0 %v681
  %1768 = vmatpush.msra.mxu0 %v677
  %1769 = vmatpush.msra.mxu0 %v673
  %1770 = vmatmul.f32.gmra.mxu0 %v24
  %v1771 = vpop.f32.mrf.mxu0
  %v1772 = vadd.f32 %v1752, %v1771
  %1773 = vdwg.mxu0
  %1774 = vmatpush.msra.mxu0 %v797
  %1775 = vmatpush.msra.mxu0 %v793
  %1776 = vmatpush.msra.mxu0 %v789
  %1777 = vmatpush.msra.mxu0 %v785
  %1778 = vmatpush.msra.mxu0 %v781
  %1779 = vmatpush.msra.mxu0 %v777
  %1780 = vmatpush.msra.mxu0 %v773
  %1781 = vmatpush.msra.mxu0 %v769
  %1782 = vmatpush.msra.mxu0 %v765
  %1783 = vmatpush.msra.mxu0 %v761
  %1784 = vmatpush.msra.mxu0 %v757
  %1785 = vmatpush.msra.mxu0 %v753
  %1786 = vmatpush.msra.mxu0 %v749
  %1787 = vmatpush.msra.mxu0 %v745
  %1788 = vmatpush.msra.mxu0 %v741
  %1789 = vmatpush.msra.mxu0 %v737
  %1790 = vmatmul.f32.gmra.mxu0 %v25
  %v1791 = vpop.f32.mrf.mxu0
  %v1792 = vadd.f32 %v1772, %v1791
  %1793 = vdwg.mxu0
  %1794 = vmatpush.msra.mxu0 %v861
  %1795 = vmatpush.msra.mxu0 %v857
  %1796 = vmatpush.msra.mxu0 %v853
  %1797 = vmatpush.msra.mxu0 %v849
  %1798 = vmatpush.msra.mxu0 %v845
  %1799 = vmatpush.msra.mxu0 %v841
  %1800 = vmatpush.msra.mxu0 %v837
  %1801 = vmatpush.msra.mxu0 %v833
  %1802 = vmatpush.msra.mxu0 %v829
  %1803 = vmatpush.msra.mxu0 %v825
  %1804 = vmatpush.msra.mxu0 %v821
  %1805 = vmatpush.msra.mxu0 %v817
  %1806 = vmatpush.msra.mxu0 %v813
  %1807 = vmatpush.msra.mxu0 %v809
  %1808 = vmatpush.msra.mxu0 %v805
  %1809 = vmatpush.msra.mxu0 %v801
  %1810 = vmatmul.f32.gmra.mxu0 %v26
  %v1811 = vpop.f32.mrf.mxu0
  %v1812 = vadd.f32 %v1792, %v1811
  %1813 = vdwg.mxu0
  %1814 = vmatpush.msra.mxu0 %v925
  %1815 = vmatpush.msra.mxu0 %v921
  %1816 = vmatpush.msra.mxu0 %v917
  %1817 = vmatpush.msra.mxu0 %v913
  %1818 = vmatpush.msra.mxu0 %v909
  %1819 = vmatpush.msra.mxu0 %v905
  %1820 = vmatpush.msra.mxu0 %v901
  %1821 = vmatpush.msra.mxu0 %v897
  %1822 = vmatpush.msra.mxu0 %v893
  %1823 = vmatpush.msra.mxu0 %v889
  %1824 = vmatpush.msra.mxu0 %v885
  %1825 = vmatpush.msra.mxu0 %v881
  %1826 = vmatpush.msra.mxu0 %v877
  %1827 = vmatpush.msra.mxu0 %v873
  %1828 = vmatpush.msra.mxu0 %v869
  %1829 = vmatpush.msra.mxu0 %v865
  %1830 = vmatmul.f32.gmra.mxu0 %v27
  %v1831 = vpop.f32.mrf.mxu0
  %v1832 = vadd.f32 %v1812, %v1831
  %1833 = vdwg.mxu0
  %1834 = vmatpush.msra.mxu0 %v989
  %1835 = vmatpush.msra.mxu0 %v985
  %1836 = vmatpush.msra.mxu0 %v981
  %1837 = vmatpush.msra.mxu0 %v977
  %1838 = vmatpush.msra.mxu0 %v973
  %1839 = vmatpush.msra.mxu0 %v969
  %1840 = vmatpush.msra.mxu0 %v965
  %1841 = vmatpush.msra.mxu0 %v961
  %1842 = vmatpush.msra.mxu0 %v957
  %1843 = vmatpush.msra.mxu0 %v953
  %1844 = vmatpush.msra.mxu0 %v949
  %1845 = vmatpush.msra.mxu0 %v945
  %1846 = vmatpush.msra.mxu0 %v941
  %1847 = vmatpush.msra.mxu0 %v937
  %1848 = vmatpush.msra.mxu0 %v933
  %1849 = vmatpush.msra.mxu0 %v929
  %1850 = vmatmul.f32.gmra.mxu0 %v28
  %v1851 = vpop.f32.mrf.mxu0
  %v1852 = vadd.f32 %v1832, %v1851
  %1853 = vdwg.mxu0
  %1854 = vmatpush.msra.mxu0 %v1053
  %1855 = vmatpush.msra.mxu0 %v1049
  %1856 = vmatpush.msra.mxu0 %v1045
  %1857 = vmatpush.msra.mxu0 %v1041
  %1858 = vmatpush.msra.mxu0 %v1037
  %1859 = vmatpush.msra.mxu0 %v1033
  %1860 = vmatpush.msra.mxu0 %v1029
  %1861 = vmatpush.msra.mxu0 %v1025
  %1862 = vmatpush.msra.mxu0 %v1021
  %1863 = vmatpush.msra.mxu0 %v1017
  %1864 = vmatpush.msra.mxu0 %v1013
  %1865 = vmatpush.msra.mxu0 %v1009
  %1866 = vmatpush.msra.mxu0 %v1005
  %1867 = vmatpush.msra.mxu0 %v1001
  %1868 = vmatpush.msra.mxu0 %v997
  %1869 = vmatpush.msra.mxu0 %v993
  %1870 = vmatmul.f32.gmra.mxu0 %v29
  %v1871 = vpop.f32.mrf.mxu0
  %v1872 = vadd.f32 %v1852, %v1871
  %1873 = vdwg.mxu0
  %1874 = vmatpush.msra.mxu0 %v1117
  %1875 = vmatpush.msra.mxu0 %v1113
  %1876 = vmatpush.msra.mxu0 %v1109
  %1877 = vmatpush.msra.mxu0 %v1105
  %1878 = vmatpush.msra.mxu0 %v1101
  %1879 = vmatpush.msra.mxu0 %v1097
  %1880 = vmatpush.msra.mxu0 %v1093
  %1881 = vmatpush.msra.mxu0 %v1089
  %1882 = vmatpush.msra.mxu0 %v1085
  %1883 = vmatpush.msra.mxu0 %v1081
  %1884 = vmatpush.msra.mxu0 %v1077
  %1885 = vmatpush.msra.mxu0 %v1073
  %1886 = vmatpush.msra.mxu0 %v1069
  %1887 = vmatpush.msra.mxu0 %v1065
  %1888 = vmatpush.msra.mxu0 %v1061
  %1889 = vmatpush.msra.mxu0 %v1057
  %1890 = vmatmul.f32.gmra.mxu0 %v30
  %v1891 = vpop.f32.mrf.mxu0
  %v1892 = vadd.f32 %v1872, %v1891
  %1893 = vdwg.mxu0
  %1894 = vmatpush.msra.mxu0 %v1181
  %1895 = vmatpush.msra.mxu0 %v1177
  %1896 = vmatpush.msra.mxu0 %v1173
  %1897 = vmatpush.msra.mxu0 %v1169
  %1898 = vmatpush.msra.mxu0 %v1165
  %1899 = vmatpush.msra.mxu0 %v1161
  %1900 = vmatpush.msra.mxu0 %v1157
  %1901 = vmatpush.msra.mxu0 %v1153
  %1902 = vmatpush.msra.mxu0 %v1149
  %1903 = vmatpush.msra.mxu0 %v1145
  %1904 = vmatpush.msra.mxu0 %v1141
  %1905 = vmatpush.msra.mxu0 %v1137
  %1906 = vmatpush.msra.mxu0 %v1133
  %1907 = vmatpush.msra.mxu0 %v1129
  %1908 = vmatpush.msra.mxu0 %v1125
  %1909 = vmatpush.msra.mxu0 %v1121
  %1910 = vmatmul.f32.gmra.mxu0 %v31
  %v1911 = vpop.f32.mrf.mxu0
  %v1912 = vadd.f32 %v1892, %v1911
  %1913 = vdwg.mxu0
  %1914 = vmatpush.msra.mxu0 %v94
  %1915 = vmatpush.msra.mxu0 %v90
  %1916 = vmatpush.msra.mxu0 %v86
  %1917 = vmatpush.msra.mxu0 %v82
  %1918 = vmatpush.msra.mxu0 %v78
  %1919 = vmatpush.msra.mxu0 %v74
  %1920 = vmatpush.msra.mxu0 %v70
  %1921 = vmatpush.msra.mxu0 %v66
  %1922 = vmatpush.msra.mxu0 %v62
  %1923 = vmatpush.msra.mxu0 %v58
  %1924 = vmatpush.msra.mxu0 %v54
  %1925 = vmatpush.msra.mxu0 %v50
  %1926 = vmatpush.msra.mxu0 %v46
  %1927 = vmatpush.msra.mxu0 %v42
  %1928 = vmatpush.msra.mxu0 %v38
  %1929 = vmatpush.msra.mxu0 %v34
  %1930 = vmatmul.f32.gmra.mxu0 %v14
  %v1931 = vpop.f32.mrf.mxu0
  %v1932 = vadd.f32 %v1188, %v1931
  %1933 = vdwg.mxu0
  %1934 = vmatpush.msra.mxu0 %v158
  %1935 = vmatpush.msra.mxu0 %v154
  %1936 = vmatpush.msra.mxu0 %v150
  %1937 = vmatpush.msra.mxu0 %v146
  %1938 = vmatpush.msra.mxu0 %v142
  %1939 = vmatpush.msra.mxu0 %v138
  %1940 = vmatpush.msra.mxu0 %v134
  %1941 = vmatpush.msra.mxu0 %v130
  %1942 = vmatpush.msra.mxu0 %v126
  %1943 = vmatpush.msra.mxu0 %v122
  %1944 = vmatpush.msra.mxu0 %v118
  %1945 = vmatpush.msra.mxu0 %v114
  %1946 = vmatpush.msra.mxu0 %v110
  %1947 = vmatpush.msra.mxu0 %v106
  %1948 = vmatpush.msra.mxu0 %v102
  %1949 = vmatpush.msra.mxu0 %v98
  %1950 = vmatmul.f32.gmra.mxu0 %v15
  %v1951 = vpop.f32.mrf.mxu0
  %v1952 = vadd.f32 %v1932, %v1951
  %1953 = vdwg.mxu0
  %1954 = vmatpush.msra.mxu0 %v222
  %1955 = vmatpush.msra.mxu0 %v218
  %1956 = vmatpush.msra.mxu0 %v214
  %1957 = vmatpush.msra.mxu0 %v210
  %1958 = vmatpush.msra.mxu0 %v206
  %1959 = vmatpush.msra.mxu0 %v202
  %1960 = vmatpush.msra.mxu0 %v198
  %1961 = vmatpush.msra.mxu0 %v194
  %1962 = vmatpush.msra.mxu0 %v190
  %1963 = vmatpush.msra.mxu0 %v186
  %1964 = vmatpush.msra.mxu0 %v182
  %1965 = vmatpush.msra.mxu0 %v178
  %1966 = vmatpush.msra.mxu0 %v174
  %1967 = vmatpush.msra.mxu0 %v170
  %1968 = vmatpush.msra.mxu0 %v166
  %1969 = vmatpush.msra.mxu0 %v162
  %1970 = vmatmul.f32.gmra.mxu0 %v16
  %v1971 = vpop.f32.mrf.mxu0
  %v1972 = vadd.f32 %v1952, %v1971
  %1973 = vdwg.mxu0
  %1974 = vmatpush.msra.mxu0 %v286
  %1975 = vmatpush.msra.mxu0 %v282
  %1976 = vmatpush.msra.mxu0 %v278
  %1977 = vmatpush.msra.mxu0 %v274
  %1978 = vmatpush.msra.mxu0 %v270
  %1979 = vmatpush.msra.mxu0 %v266
  %1980 = vmatpush.msra.mxu0 %v262
  %1981 = vmatpush.msra.mxu0 %v258
  %1982 = vmatpush.msra.mxu0 %v254
  %1983 = vmatpush.msra.mxu0 %v250
  %1984 = vmatpush.msra.mxu0 %v246
  %1985 = vmatpush.msra.mxu0 %v242
  %1986 = vmatpush.msra.mxu0 %v238
  %1987 = vmatpush.msra.mxu0 %v234
  %1988 = vmatpush.msra.mxu0 %v230
  %1989 = vmatpush.msra.mxu0 %v226
  %1990 = vmatmul.f32.gmra.mxu0 %v17
  %v1991 = vpop.f32.mrf.mxu0
  %v1992 = vadd.f32 %v1972, %v1991
  %1993 = vdwg.mxu0
  %1994 = vmatpush.msra.mxu0 %v350
  %1995 = vmatpush.msra.mxu0 %v346
  %1996 = vmatpush.msra.mxu0 %v342
  %1997 = vmatpush.msra.mxu0 %v338
  %1998 = vmatpush.msra.mxu0 %v334
  %1999 = vmatpush.msra.mxu0 %v330
  %2000 = vmatpush.msra.mxu0 %v326
  %2001 = vmatpush.msra.mxu0 %v322
  %2002 = vmatpush.msra.mxu0 %v318
  %2003 = vmatpush.msra.mxu0 %v314
  %2004 = vmatpush.msra.mxu0 %v310
  %2005 = vmatpush.msra.mxu0 %v306
  %2006 = vmatpush.msra.mxu0 %v302
  %2007 = vmatpush.msra.mxu0 %v298
  %2008 = vmatpush.msra.mxu0 %v294
  %2009 = vmatpush.msra.mxu0 %v290
  %2010 = vmatmul.f32.gmra.mxu0 %v18
  %v2011 = vpop.f32.mrf.mxu0
  %v2012 = vadd.f32 %v1992, %v2011
  %2013 = vdwg.mxu0
  %2014 = vmatpush.msra.mxu0 %v414
  %2015 = vmatpush.msra.mxu0 %v410
  %2016 = vmatpush.msra.mxu0 %v406
  %2017 = vmatpush.msra.mxu0 %v402
  %2018 = vmatpush.msra.mxu0 %v398
  %2019 = vmatpush.msra.mxu0 %v394
  %2020 = vmatpush.msra.mxu0 %v390
  %2021 = vmatpush.msra.mxu0 %v386
  %2022 = vmatpush.msra.mxu0 %v382
  %2023 = vmatpush.msra.mxu0 %v378
  %2024 = vmatpush.msra.mxu0 %v374
  %2025 = vmatpush.msra.mxu0 %v370
  %2026 = vmatpush.msra.mxu0 %v366
  %2027 = vmatpush.msra.mxu0 %v362
  %2028 = vmatpush.msra.mxu0 %v358
  %2029 = vmatpush.msra.mxu0 %v354
  %2030 = vmatmul.f32.gmra.mxu0 %v19
  %v2031 = vpop.f32.mrf.mxu0
  %v2032 = vadd.f32 %v2012, %v2031
  %2033 = vdwg.mxu0
  %2034 = vmatpush.msra.mxu0 %v478
  %2035 = vmatpush.msra.mxu0 %v474
  %2036 = vmatpush.msra.mxu0 %v470
  %2037 = vmatpush.msra.mxu0 %v466
  %2038 = vmatpush.msra.mxu0 %v462
  %2039 = vmatpush.msra.mxu0 %v458
  %2040 = vmatpush.msra.mxu0 %v454
  %2041 = vmatpush.msra.mxu0 %v450
  %2042 = vmatpush.msra.mxu0 %v446
  %2043 = vmatpush.msra.mxu0 %v442
  %2044 = vmatpush.msra.mxu0 %v438
  %2045 = vmatpush.msra.mxu0 %v434
  %2046 = vmatpush.msra.mxu0 %v430
  %2047 = vmatpush.msra.mxu0 %v426
  %2048 = vmatpush.msra.mxu0 %v422
  %2049 = vmatpush.msra.mxu0 %v418
  %2050 = vmatmul.f32.gmra.mxu0 %v20
  %v2051 = vpop.f32.mrf.mxu0
  %v2052 = vadd.f32 %v2032, %v2051
  %2053 = vdwg.mxu0
  %2054 = vmatpush.msra.mxu0 %v542
  %2055 = vmatpush.msra.mxu0 %v538
  %2056 = vmatpush.msra.mxu0 %v534
  %2057 = vmatpush.msra.mxu0 %v530
  %2058 = vmatpush.msra.mxu0 %v526
  %2059 = vmatpush.msra.mxu0 %v522
  %2060 = vmatpush.msra.mxu0 %v518
  %2061 = vmatpush.msra.mxu0 %v514
  %2062 = vmatpush.msra.mxu0 %v510
  %2063 = vmatpush.msra.mxu0 %v506
  %2064 = vmatpush.msra.mxu0 %v502
  %2065 = vmatpush.msra.mxu0 %v498
  %2066 = vmatpush.msra.mxu0 %v494
  %2067 = vmatpush.msra.mxu0 %v490
  %2068 = vmatpush.msra.mxu0 %v486
  %2069 = vmatpush.msra.mxu0 %v482
  %2070 = vmatmul.f32.gmra.mxu0 %v21
  %v2071 = vpop.f32.mrf.mxu0
  %v2072 = vadd.f32 %v2052, %v2071
  %2073 = vdwg.mxu0
  %2074 = vmatpush.msra.mxu0 %v606
  %2075 = vmatpush.msra.mxu0 %v602
  %2076 = vmatpush.msra.mxu0 %v598
  %2077 = vmatpush.msra.mxu0 %v594
  %2078 = vmatpush.msra.mxu0 %v590
  %2079 = vmatpush.msra.mxu0 %v586
  %2080 = vmatpush.msra.mxu0 %v582
  %2081 = vmatpush.msra.mxu0 %v578
  %2082 = vmatpush.msra.mxu0 %v574
  %2083 = vmatpush.msra.mxu0 %v570
  %2084 = vmatpush.msra.mxu0 %v566
  %2085 = vmatpush.msra.mxu0 %v562
  %2086 = vmatpush.msra.mxu0 %v558
  %2087 = vmatpush.msra.mxu0 %v554
  %2088 = vmatpush.msra.mxu0 %v550
  %2089 = vmatpush.msra.mxu0 %v546
  %2090 = vmatmul.f32.gmra.mxu0 %v22
  %v2091 = vpop.f32.mrf.mxu0
  %v2092 = vadd.f32 %v2072, %v2091
  %2093 = vdwg.mxu0
  %2094 = vmatpush.msra.mxu0 %v670
  %2095 = vmatpush.msra.mxu0 %v666
  %2096 = vmatpush.msra.mxu0 %v662
  %2097 = vmatpush.msra.mxu0 %v658
  %2098 = vmatpush.msra.mxu0 %v654
  %2099 = vmatpush.msra.mxu0 %v650
  %2100 = vmatpush.msra.mxu0 %v646
  %2101 = vmatpush.msra.mxu0 %v642
  %2102 = vmatpush.msra.mxu0 %v638
  %2103 = vmatpush.msra.mxu0 %v634
  %2104 = vmatpush.msra.mxu0 %v630
  %2105 = vmatpush.msra.mxu0 %v626
  %2106 = vmatpush.msra.mxu0 %v622
  %2107 = vmatpush.msra.mxu0 %v618
  %2108 = vmatpush.msra.mxu0 %v614
  %2109 = vmatpush.msra.mxu0 %v610
  %2110 = vmatmul.f32.gmra.mxu0 %v23
  %v2111 = vpop.f32.mrf.mxu0
  %v2112 = vadd.f32 %v2092, %v2111
  %2113 = vdwg.mxu0
  %2114 = vmatpush.msra.mxu0 %v734
  %2115 = vmatpush.msra.mxu0 %v730
  %2116 = vmatpush.msra.mxu0 %v726
  %2117 = vmatpush.msra.mxu0 %v722
  %2118 = vmatpush.msra.mxu0 %v718
  %2119 = vmatpush.msra.mxu0 %v714
  %2120 = vmatpush.msra.mxu0 %v710
  %2121 = vmatpush.msra.mxu0 %v706
  %2122 = vmatpush.msra.mxu0 %v702
  %2123 = vmatpush.msra.mxu0 %v698
  %2124 = vmatpush.msra.mxu0 %v694
  %2125 = vmatpush.msra.mxu0 %v690
  %2126 = vmatpush.msra.mxu0 %v686
  %2127 = vmatpush.msra.mxu0 %v682
  %2128 = vmatpush.msra.mxu0 %v678
  %2129 = vmatpush.msra.mxu0 %v674
  %2130 = vmatmul.f32.gmra.mxu0 %v24
  %v2131 = vpop.f32.mrf.mxu0
  %v2132 = vadd.f32 %v2112, %v2131
  %2133 = vdwg.mxu0
  %2134 = vmatpush.msra.mxu0 %v798
  %2135 = vmatpush.msra.mxu0 %v794
  %2136 = vmatpush.msra.mxu0 %v790
  %2137 = vmatpush.msra.mxu0 %v786
  %2138 = vmatpush.msra.mxu0 %v782
  %2139 = vmatpush.msra.mxu0 %v778
  %2140 = vmatpush.msra.mxu0 %v774
  %2141 = vmatpush.msra.mxu0 %v770
  %2142 = vmatpush.msra.mxu0 %v766
  %2143 = vmatpush.msra.mxu0 %v762
  %2144 = vmatpush.msra.mxu0 %v758
  %2145 = vmatpush.msra.mxu0 %v754
  %2146 = vmatpush.msra.mxu0 %v750
  %2147 = vmatpush.msra.mxu0 %v746
  %2148 = vmatpush.msra.mxu0 %v742
  %2149 = vmatpush.msra.mxu0 %v738
  %2150 = vmatmul.f32.gmra.mxu0 %v25
  %v2151 = vpop.f32.mrf.mxu0
  %v2152 = vadd.f32 %v2132, %v2151
  %2153 = vdwg.mxu0
  %2154 = vmatpush.msra.mxu0 %v862
  %2155 = vmatpush.msra.mxu0 %v858
  %2156 = vmatpush.msra.mxu0 %v854
  %2157 = vmatpush.msra.mxu0 %v850
  %2158 = vmatpush.msra.mxu0 %v846
  %2159 = vmatpush.msra.mxu0 %v842
  %2160 = vmatpush.msra.mxu0 %v838
  %2161 = vmatpush.msra.mxu0 %v834
  %2162 = vmatpush.msra.mxu0 %v830
  %2163 = vmatpush.msra.mxu0 %v826
  %2164 = vmatpush.msra.mxu0 %v822
  %2165 = vmatpush.msra.mxu0 %v818
  %2166 = vmatpush.msra.mxu0 %v814
  %2167 = vmatpush.msra.mxu0 %v810
  %2168 = vmatpush.msra.mxu0 %v806
  %2169 = vmatpush.msra.mxu0 %v802
  %2170 = vmatmul.f32.gmra.mxu0 %v26
  %v2171 = vpop.f32.mrf.mxu0
  %v2172 = vadd.f32 %v2152, %v2171
  %2173 = vdwg.mxu0
  %2174 = vmatpush.msra.mxu0 %v926
  %2175 = vmatpush.msra.mxu0 %v922
  %2176 = vmatpush.msra.mxu0 %v918
  %2177 = vmatpush.msra.mxu0 %v914
  %2178 = vmatpush.msra.mxu0 %v910
  %2179 = vmatpush.msra.mxu0 %v906
  %2180 = vmatpush.msra.mxu0 %v902
  %2181 = vmatpush.msra.mxu0 %v898
  %2182 = vmatpush.msra.mxu0 %v894
  %2183 = vmatpush.msra.mxu0 %v890
  %2184 = vmatpush.msra.mxu0 %v886
  %2185 = vmatpush.msra.mxu0 %v882
  %2186 = vmatpush.msra.mxu0 %v878
  %2187 = vmatpush.msra.mxu0 %v874
  %2188 = vmatpush.msra.mxu0 %v870
  %2189 = vmatpush.msra.mxu0 %v866
  %2190 = vmatmul.f32.gmra.mxu0 %v27
  %v2191 = vpop.f32.mrf.mxu0
  %v2192 = vadd.f32 %v2172, %v2191
  %2193 = vdwg.mxu0
  %2194 = vmatpush.msra.mxu0 %v990
  %2195 = vmatpush.msra.mxu0 %v986
  %2196 = vmatpush.msra.mxu0 %v982
  %2197 = vmatpush.msra.mxu0 %v978
  %2198 = vmatpush.msra.mxu0 %v974
  %2199 = vmatpush.msra.mxu0 %v970
  %2200 = vmatpush.msra.mxu0 %v966
  %2201 = vmatpush.msra.mxu0 %v962
  %2202 = vmatpush.msra.mxu0 %v958
  %2203 = vmatpush.msra.mxu0 %v954
  %2204 = vmatpush.msra.mxu0 %v950
  %2205 = vmatpush.msra.mxu0 %v946
  %2206 = vmatpush.msra.mxu0 %v942
  %2207 = vmatpush.msra.mxu0 %v938
  %2208 = vmatpush.msra.mxu0 %v934
  %2209 = vmatpush.msra.mxu0 %v930
  %2210 = vmatmul.f32.gmra.mxu0 %v28
  %v2211 = vpop.f32.mrf.mxu0
  %v2212 = vadd.f32 %v2192, %v2211
  %2213 = vdwg.mxu0
  %2214 = vmatpush.msra.mxu0 %v1054
  %2215 = vmatpush.msra.mxu0 %v1050
  %2216 = vmatpush.msra.mxu0 %v1046
  %2217 = vmatpush.msra.mxu0 %v1042
  %2218 = vmatpush.msra.mxu0 %v1038
  %2219 = vmatpush.msra.mxu0 %v1034
  %2220 = vmatpush.msra.mxu0 %v1030
  %2221 = vmatpush.msra.mxu0 %v1026
  %2222 = vmatpush.msra.mxu0 %v1022
  %2223 = vmatpush.msra.mxu0 %v1018
  %2224 = vmatpush.msra.mxu0 %v1014
  %2225 = vmatpush.msra.mxu0 %v1010
  %2226 = vmatpush.msra.mxu0 %v1006
  %2227 = vmatpush.msra.mxu0 %v1002
  %2228 = vmatpush.msra.mxu0 %v998
  %2229 = vmatpush.msra.mxu0 %v994
  %2230 = vmatmul.f32.gmra.mxu0 %v29
  %v2231 = vpop.f32.mrf.mxu0
  %v2232 = vadd.f32 %v2212, %v2231
  %2233 = vdwg.mxu0
  %2234 = vmatpush.msra.mxu0 %v1118
  %2235 = vmatpush.msra.mxu0 %v1114
  %2236 = vmatpush.msra.mxu0 %v1110
  %2237 = vmatpush.msra.mxu0 %v1106
  %2238 = vmatpush.msra.mxu0 %v1102
  %2239 = vmatpush.msra.mxu0 %v1098
  %2240 = vmatpush.msra.mxu0 %v1094
  %2241 = vmatpush.msra.mxu0 %v1090
  %2242 = vmatpush.msra.mxu0 %v1086
  %2243 = vmatpush.msra.mxu0 %v1082
  %2244 = vmatpush.msra.mxu0 %v1078
  %2245 = vmatpush.msra.mxu0 %v1074
  %2246 = vmatpush.msra.mxu0 %v1070
  %2247 = vmatpush.msra.mxu0 %v1066
  %2248 = vmatpush.msra.mxu0 %v1062
  %2249 = vmatpush.msra.mxu0 %v1058
  %2250 = vmatmul.f32.gmra.mxu0 %v30
  %v2251 = vpop.f32.mrf.mxu0
  %v2252 = vadd.f32 %v2232, %v2251
  %2253 = vdwg.mxu0
  %2254 = vmatpush.msra.mxu0 %v1182
  %2255 = vmatpush.msra.mxu0 %v1178
  %2256 = vmatpush.msra.mxu0 %v1174
  %2257 = vmatpush.msra.mxu0 %v1170
  %2258 = vmatpush.msra.mxu0 %v1166
  %2259 = vmatpush.msra.mxu0 %v1162
  %2260 = vmatpush.msra.mxu0 %v1158
  %2261 = vmatpush.msra.mxu0 %v1154
  %2262 = vmatpush.msra.mxu0 %v1150
  %2263 = vmatpush.msra.mxu0 %v1146
  %2264 = vmatpush.msra.mxu0 %v1142
  %2265 = vmatpush.msra.mxu0 %v1138
  %2266 = vmatpush.msra.mxu0 %v1134
  %2267 = vmatpush.msra.mxu0 %v1130
  %2268 = vmatpush.msra.mxu0 %v1126
  %2269 = vmatpush.msra.mxu0 %v1122
  %2270 = vmatmul.f32.gmra.mxu0 %v31
  %v2271 = vpop.f32.mrf.mxu0
  %v2272 = vadd.f32 %v2252, %v2271
  %2273 = vdwg.mxu0
  %2274 = vmatpush.msra.mxu0 %v95
  %2275 = vmatpush.msra.mxu0 %v91
  %2276 = vmatpush.msra.mxu0 %v87
  %2277 = vmatpush.msra.mxu0 %v83
  %2278 = vmatpush.msra.mxu0 %v79
  %2279 = vmatpush.msra.mxu0 %v75
  %2280 = vmatpush.msra.mxu0 %v71
  %2281 = vmatpush.msra.mxu0 %v67
  %2282 = vmatpush.msra.mxu0 %v63
  %2283 = vmatpush.msra.mxu0 %v59
  %2284 = vmatpush.msra.mxu0 %v55
  %2285 = vmatpush.msra.mxu0 %v51
  %2286 = vmatpush.msra.mxu0 %v47
  %2287 = vmatpush.msra.mxu0 %v43
  %2288 = vmatpush.msra.mxu0 %v39
  %2289 = vmatpush.msra.mxu0 %v35
  %2290 = vmatmul.f32.gmra.mxu0 %v14
  %v2291 = vpop.f32.mrf.mxu0
  %v2292 = vadd.f32 %v1189, %v2291
  %2293 = vdwg.mxu0
  %2294 = vmatpush.msra.mxu0 %v159
  %2295 = vmatpush.msra.mxu0 %v155
  %2296 = vmatpush.msra.mxu0 %v151
  %2297 = vmatpush.msra.mxu0 %v147
  %2298 = vmatpush.msra.mxu0 %v143
  %2299 = vmatpush.msra.mxu0 %v139
  %2300 = vmatpush.msra.mxu0 %v135
  %2301 = vmatpush.msra.mxu0 %v131
  %2302 = vmatpush.msra.mxu0 %v127
  %2303 = vmatpush.msra.mxu0 %v123
  %2304 = vmatpush.msra.mxu0 %v119
  %2305 = vmatpush.msra.mxu0 %v115
  %2306 = vmatpush.msra.mxu0 %v111
  %2307 = vmatpush.msra.mxu0 %v107
  %2308 = vmatpush.msra.mxu0 %v103
  %2309 = vmatpush.msra.mxu0 %v99
  %2310 = vmatmul.f32.gmra.mxu0 %v15
  %v2311 = vpop.f32.mrf.mxu0
  %v2312 = vadd.f32 %v2292, %v2311
  %2313 = vdwg.mxu0
  %2314 = vmatpush.msra.mxu0 %v223
  %2315 = vmatpush.msra.mxu0 %v219
  %2316 = vmatpush.msra.mxu0 %v215
  %2317 = vmatpush.msra.mxu0 %v211
  %2318 = vmatpush.msra.mxu0 %v207
  %2319 = vmatpush.msra.mxu0 %v203
  %2320 = vmatpush.msra.mxu0 %v199
  %2321 = vmatpush.msra.mxu0 %v195
  %2322 = vmatpush.msra.mxu0 %v191
  %2323 = vmatpush.msra.mxu0 %v187
  %2324 = vmatpush.msra.mxu0 %v183
  %2325 = vmatpush.msra.mxu0 %v179
  %2326 = vmatpush.msra.mxu0 %v175
  %2327 = vmatpush.msra.mxu0 %v171
  %2328 = vmatpush.msra.mxu0 %v167
  %2329 = vmatpush.msra.mxu0 %v163
  %2330 = vmatmul.f32.gmra.mxu0 %v16
  %v2331 = vpop.f32.mrf.mxu0
  %v2332 = vadd.f32 %v2312, %v2331
  %2333 = vdwg.mxu0
  %2334 = vmatpush.msra.mxu0 %v287
  %2335 = vmatpush.msra.mxu0 %v283
  %2336 = vmatpush.msra.mxu0 %v279
  %2337 = vmatpush.msra.mxu0 %v275
  %2338 = vmatpush.msra.mxu0 %v271
  %2339 = vmatpush.msra.mxu0 %v267
  %2340 = vmatpush.msra.mxu0 %v263
  %2341 = vmatpush.msra.mxu0 %v259
  %2342 = vmatpush.msra.mxu0 %v255
  %2343 = vmatpush.msra.mxu0 %v251
  %2344 = vmatpush.msra.mxu0 %v247
  %2345 = vmatpush.msra.mxu0 %v243
  %2346 = vmatpush.msra.mxu0 %v239
  %2347 = vmatpush.msra.mxu0 %v235
  %2348 = vmatpush.msra.mxu0 %v231
  %2349 = vmatpush.msra.mxu0 %v227
  %2350 = vmatmul.f32.gmra.mxu0 %v17
  %v2351 = vpop.f32.mrf.mxu0
  %v2352 = vadd.f32 %v2332, %v2351
  %2353 = vdwg.mxu0
  %2354 = vmatpush.msra.mxu0 %v351
  %2355 = vmatpush.msra.mxu0 %v347
  %2356 = vmatpush.msra.mxu0 %v343
  %2357 = vmatpush.msra.mxu0 %v339
  %2358 = vmatpush.msra.mxu0 %v335
  %2359 = vmatpush.msra.mxu0 %v331
  %2360 = vmatpush.msra.mxu0 %v327
  %2361 = vmatpush.msra.mxu0 %v323
  %2362 = vmatpush.msra.mxu0 %v319
  %2363 = vmatpush.msra.mxu0 %v315
  %2364 = vmatpush.msra.mxu0 %v311
  %2365 = vmatpush.msra.mxu0 %v307
  %2366 = vmatpush.msra.mxu0 %v303
  %2367 = vmatpush.msra.mxu0 %v299
  %2368 = vmatpush.msra.mxu0 %v295
  %2369 = vmatpush.msra.mxu0 %v291
  %2370 = vmatmul.f32.gmra.mxu0 %v18
  %v2371 = vpop.f32.mrf.mxu0
  %v2372 = vadd.f32 %v2352, %v2371
  %2373 = vdwg.mxu0
  %2374 = vmatpush.msra.mxu0 %v415
  %2375 = vmatpush.msra.mxu0 %v411
  %2376 = vmatpush.msra.mxu0 %v407
  %2377 = vmatpush.msra.mxu0 %v403
  %2378 = vmatpush.msra.mxu0 %v399
  %2379 = vmatpush.msra.mxu0 %v395
  %2380 = vmatpush.msra.mxu0 %v391
  %2381 = vmatpush.msra.mxu0 %v387
  %2382 = vmatpush.msra.mxu0 %v383
  %2383 = vmatpush.msra.mxu0 %v379
  %2384 = vmatpush.msra.mxu0 %v375
  %2385 = vmatpush.msra.mxu0 %v371
  %2386 = vmatpush.msra.mxu0 %v367
  %2387 = vmatpush.msra.mxu0 %v363
  %2388 = vmatpush.msra.mxu0 %v359
  %2389 = vmatpush.msra.mxu0 %v355
  %2390 = vmatmul.f32.gmra.mxu0 %v19
  %v2391 = vpop.f32.mrf.mxu0
  %v2392 = vadd.f32 %v2372, %v2391
  %2393 = vdwg.mxu0
  %2394 = vmatpush.msra.mxu0 %v479
  %2395 = vmatpush.msra.mxu0 %v475
  %2396 = vmatpush.msra.mxu0 %v471
  %2397 = vmatpush.msra.mxu0 %v467
  %2398 = vmatpush.msra.mxu0 %v463
  %2399 = vmatpush.msra.mxu0 %v459
  %2400 = vmatpush.msra.mxu0 %v455
  %2401 = vmatpush.msra.mxu0 %v451
  %2402 = vmatpush.msra.mxu0 %v447
  %2403 = vmatpush.msra.mxu0 %v443
  %2404 = vmatpush.msra.mxu0 %v439
  %2405 = vmatpush.msra.mxu0 %v435
  %2406 = vmatpush.msra.mxu0 %v431
  %2407 = vmatpush.msra.mxu0 %v427
  %2408 = vmatpush.msra.mxu0 %v423
  %2409 = vmatpush.msra.mxu0 %v419
  %2410 = vmatmul.f32.gmra.mxu0 %v20
  %v2411 = vpop.f32.mrf.mxu0
  %v2412 = vadd.f32 %v2392, %v2411
  %2413 = vdwg.mxu0
  %2414 = vmatpush.msra.mxu0 %v543
  %2415 = vmatpush.msra.mxu0 %v539
  %2416 = vmatpush.msra.mxu0 %v535
  %2417 = vmatpush.msra.mxu0 %v531
  %2418 = vmatpush.msra.mxu0 %v527
  %2419 = vmatpush.msra.mxu0 %v523
  %2420 = vmatpush.msra.mxu0 %v519
  %2421 = vmatpush.msra.mxu0 %v515
  %2422 = vmatpush.msra.mxu0 %v511
  %2423 = vmatpush.msra.mxu0 %v507
  %2424 = vmatpush.msra.mxu0 %v503
  %2425 = vmatpush.msra.mxu0 %v499
  %2426 = vmatpush.msra.mxu0 %v495
  %2427 = vmatpush.msra.mxu0 %v491
  %2428 = vmatpush.msra.mxu0 %v487
  %2429 = vmatpush.msra.mxu0 %v483
  %2430 = vmatmul.f32.gmra.mxu0 %v21
  %v2431 = vpop.f32.mrf.mxu0
  %v2432 = vadd.f32 %v2412, %v2431
  %2433 = vdwg.mxu0
  %2434 = vmatpush.msra.mxu0 %v607
  %2435 = vmatpush.msra.mxu0 %v603
  %2436 = vmatpush.msra.mxu0 %v599
  %2437 = vmatpush.msra.mxu0 %v595
  %2438 = vmatpush.msra.mxu0 %v591
  %2439 = vmatpush.msra.mxu0 %v587
  %2440 = vmatpush.msra.mxu0 %v583
  %2441 = vmatpush.msra.mxu0 %v579
  %2442 = vmatpush.msra.mxu0 %v575
  %2443 = vmatpush.msra.mxu0 %v571
  %2444 = vmatpush.msra.mxu0 %v567
  %2445 = vmatpush.msra.mxu0 %v563
  %2446 = vmatpush.msra.mxu0 %v559
  %2447 = vmatpush.msra.mxu0 %v555
  %2448 = vmatpush.msra.mxu0 %v551
  %2449 = vmatpush.msra.mxu0 %v547
  %2450 = vmatmul.f32.gmra.mxu0 %v22
  %v2451 = vpop.f32.mrf.mxu0
  %v2452 = vadd.f32 %v2432, %v2451
  %2453 = vdwg.mxu0
  %2454 = vmatpush.msra.mxu0 %v671
  %2455 = vmatpush.msra.mxu0 %v667
  %2456 = vmatpush.msra.mxu0 %v663
  %2457 = vmatpush.msra.mxu0 %v659
  %2458 = vmatpush.msra.mxu0 %v655
  %2459 = vmatpush.msra.mxu0 %v651
  %2460 = vmatpush.msra.mxu0 %v647
  %2461 = vmatpush.msra.mxu0 %v643
  %2462 = vmatpush.msra.mxu0 %v639
  %2463 = vmatpush.msra.mxu0 %v635
  %2464 = vmatpush.msra.mxu0 %v631
  %2465 = vmatpush.msra.mxu0 %v627
  %2466 = vmatpush.msra.mxu0 %v623
  %2467 = vmatpush.msra.mxu0 %v619
  %2468 = vmatpush.msra.mxu0 %v615
  %2469 = vmatpush.msra.mxu0 %v611
  %2470 = vmatmul.f32.gmra.mxu0 %v23
  %v2471 = vpop.f32.mrf.mxu0
  %v2472 = vadd.f32 %v2452, %v2471
  %2473 = vdwg.mxu0
  %2474 = vmatpush.msra.mxu0 %v735
  %2475 = vmatpush.msra.mxu0 %v731
  %2476 = vmatpush.msra.mxu0 %v727
  %2477 = vmatpush.msra.mxu0 %v723
  %2478 = vmatpush.msra.mxu0 %v719
  %2479 = vmatpush.msra.mxu0 %v715
  %2480 = vmatpush.msra.mxu0 %v711
  %2481 = vmatpush.msra.mxu0 %v707
  %2482 = vmatpush.msra.mxu0 %v703
  %2483 = vmatpush.msra.mxu0 %v699
  %2484 = vmatpush.msra.mxu0 %v695
  %2485 = vmatpush.msra.mxu0 %v691
  %2486 = vmatpush.msra.mxu0 %v687
  %2487 = vmatpush.msra.mxu0 %v683
  %2488 = vmatpush.msra.mxu0 %v679
  %2489 = vmatpush.msra.mxu0 %v675
  %2490 = vmatmul.f32.gmra.mxu0 %v24
  %v2491 = vpop.f32.mrf.mxu0
  %v2492 = vadd.f32 %v2472, %v2491
  %2493 = vdwg.mxu0
  %2494 = vmatpush.msra.mxu0 %v799
  %2495 = vmatpush.msra.mxu0 %v795
  %2496 = vmatpush.msra.mxu0 %v791
  %2497 = vmatpush.msra.mxu0 %v787
  %2498 = vmatpush.msra.mxu0 %v783
  %2499 = vmatpush.msra.mxu0 %v779
  %2500 = vmatpush.msra.mxu0 %v775
  %2501 = vmatpush.msra.mxu0 %v771
  %2502 = vmatpush.msra.mxu0 %v767
  %2503 = vmatpush.msra.mxu0 %v763
  %2504 = vmatpush.msra.mxu0 %v759
  %2505 = vmatpush.msra.mxu0 %v755
  %2506 = vmatpush.msra.mxu0 %v751
  %2507 = vmatpush.msra.mxu0 %v747
  %2508 = vmatpush.msra.mxu0 %v743
  %2509 = vmatpush.msra.mxu0 %v739
  %2510 = vmatmul.f32.gmra.mxu0 %v25
  %v2511 = vpop.f32.mrf.mxu0
  %v2512 = vadd.f32 %v2492, %v2511
  %2513 = vdwg.mxu0
  %2514 = vmatpush.msra.mxu0 %v863
  %2515 = vmatpush.msra.mxu0 %v859
  %2516 = vmatpush.msra.mxu0 %v855
  %2517 = vmatpush.msra.mxu0 %v851
  %2518 = vmatpush.msra.mxu0 %v847
  %2519 = vmatpush.msra.mxu0 %v843
  %2520 = vmatpush.msra.mxu0 %v839
  %2521 = vmatpush.msra.mxu0 %v835
  %2522 = vmatpush.msra.mxu0 %v831
  %2523 = vmatpush.msra.mxu0 %v827
  %2524 = vmatpush.msra.mxu0 %v823
  %2525 = vmatpush.msra.mxu0 %v819
  %2526 = vmatpush.msra.mxu0 %v815
  %2527 = vmatpush.msra.mxu0 %v811
  %2528 = vmatpush.msra.mxu0 %v807
  %2529 = vmatpush.msra.mxu0 %v803
  %2530 = vmatmul.f32.gmra.mxu0 %v26
  %v2531 = vpop.f32.mrf.mxu0
  %v2532 = vadd.f32 %v2512, %v2531
  %2533 = vdwg.mxu0
  %2534 = vmatpush.msra.mxu0 %v927
  %2535 = vmatpush.msra.mxu0 %v923
  %2536 = vmatpush.msra.mxu0 %v919
  %2537 = vmatpush.msra.mxu0 %v915
  %2538 = vmatpush.msra.mxu0 %v911
  %2539 = vmatpush.msra.mxu0 %v907
  %2540 = vmatpush.msra.mxu0 %v903
  %2541 = vmatpush.msra.mxu0 %v899
  %2542 = vmatpush.msra.mxu0 %v895
  %2543 = vmatpush.msra.mxu0 %v891
  %2544 = vmatpush.msra.mxu0 %v887
  %2545 = vmatpush.msra.mxu0 %v883
  %2546 = vmatpush.msra.mxu0 %v879
  %2547 = vmatpush.msra.mxu0 %v875
  %2548 = vmatpush.msra.mxu0 %v871
  %2549 = vmatpush.msra.mxu0 %v867
  %2550 = vmatmul.f32.gmra.mxu0 %v27
  %v2551 = vpop.f32.mrf.mxu0
  %v2552 = vadd.f32 %v2532, %v2551
  %2553 = vdwg.mxu0
  %2554 = vmatpush.msra.mxu0 %v991
  %2555 = vmatpush.msra.mxu0 %v987
  %2556 = vmatpush.msra.mxu0 %v983
  %2557 = vmatpush.msra.mxu0 %v979
  %2558 = vmatpush.msra.mxu0 %v975
  %2559 = vmatpush.msra.mxu0 %v971
  %2560 = vmatpush.msra.mxu0 %v967
  %2561 = vmatpush.msra.mxu0 %v963
  %2562 = vmatpush.msra.mxu0 %v959
  %2563 = vmatpush.msra.mxu0 %v955
  %2564 = vmatpush.msra.mxu0 %v951
  %2565 = vmatpush.msra.mxu0 %v947
  %2566 = vmatpush.msra.mxu0 %v943
  %2567 = vmatpush.msra.mxu0 %v939
  %2568 = vmatpush.msra.mxu0 %v935
  %2569 = vmatpush.msra.mxu0 %v931
  %2570 = vmatmul.f32.gmra.mxu0 %v28
  %v2571 = vpop.f32.mrf.mxu0
  %v2572 = vadd.f32 %v2552, %v2571
  %2573 = vdwg.mxu0
  %2574 = vmatpush.msra.mxu0 %v1055
  %2575 = vmatpush.msra.mxu0 %v1051
  %2576 = vmatpush.msra.mxu0 %v1047
  %2577 = vmatpush.msra.mxu0 %v1043
  %2578 = vmatpush.msra.mxu0 %v1039
  %2579 = vmatpush.msra.mxu0 %v1035
  %2580 = vmatpush.msra.mxu0 %v1031
  %2581 = vmatpush.msra.mxu0 %v1027
  %2582 = vmatpush.msra.mxu0 %v1023
  %2583 = vmatpush.msra.mxu0 %v1019
  %2584 = vmatpush.msra.mxu0 %v1015
  %2585 = vmatpush.msra.mxu0 %v1011
  %2586 = vmatpush.msra.mxu0 %v1007
  %2587 = vmatpush.msra.mxu0 %v1003
  %2588 = vmatpush.msra.mxu0 %v999
  %2589 = vmatpush.msra.mxu0 %v995
  %2590 = vmatmul.f32.gmra.mxu0 %v29
  %v2591 = vpop.f32.mrf.mxu0
  %v2592 = vadd.f32 %v2572, %v2591
  %2593 = vdwg.mxu0
  %2594 = vmatpush.msra.mxu0 %v1119
  %2595 = vmatpush.msra.mxu0 %v1115
  %2596 = vmatpush.msra.mxu0 %v1111
  %2597 = vmatpush.msra.mxu0 %v1107
  %2598 = vmatpush.msra.mxu0 %v1103
  %2599 = vmatpush.msra.mxu0 %v1099
  %2600 = vmatpush.msra.mxu0 %v1095
  %2601 = vmatpush.msra.mxu0 %v1091
  %2602 = vmatpush.msra.mxu0 %v1087
  %2603 = vmatpush.msra.mxu0 %v1083
  %2604 = vmatpush.msra.mxu0 %v1079
  %2605 = vmatpush.msra.mxu0 %v1075
  %2606 = vmatpush.msra.mxu0 %v1071
  %2607 = vmatpush.msra.mxu0 %v1067
  %2608 = vmatpush.msra.mxu0 %v1063
  %2609 = vmatpush.msra.mxu0 %v1059
  %2610 = vmatmul.f32.gmra.mxu0 %v30
  %v2611 = vpop.f32.mrf.mxu0
  %v2612 = vadd.f32 %v2592, %v2611
  %2613 = vdwg.mxu0
  %2614 = vmatpush.msra.mxu0 %v1183
  %2615 = vmatpush.msra.mxu0 %v1179
  %2616 = vmatpush.msra.mxu0 %v1175
  %2617 = vmatpush.msra.mxu0 %v1171
  %2618 = vmatpush.msra.mxu0 %v1167
  %2619 = vmatpush.msra.mxu0 %v1163
  %2620 = vmatpush.msra.mxu0 %v1159
  %2621 = vmatpush.msra.mxu0 %v1155
  %2622 = vmatpush.msra.mxu0 %v1151
  %2623 = vmatpush.msra.mxu0 %v1147
  %2624 = vmatpush.msra.mxu0 %v1143
  %2625 = vmatpush.msra.mxu0 %v1139
  %2626 = vmatpush.msra.mxu0 %v1135
  %2627 = vmatpush.msra.mxu0 %v1131
  %2628 = vmatpush.msra.mxu0 %v1127
  %2629 = vmatpush.msra.mxu0 %v1123
  %2630 = vmatmul.f32.gmra.mxu0 %v31
  %v2631 = vpop.f32.mrf.mxu0
  %v2632 = vadd.f32 %v2612, %v2631
  %2633 = vdwg.mxu0
  %v2634 = vmax.f32 %v1552, 0.0
  %v2635 = vmax.f32 %v1912, 0.0
  %v2636 = vmax.f32 %v2272, 0.0
  %v2637 = vmax.f32 %v2632, 0.0
  %2638 = vst [vmem:[%s3] sm:$0xff] %v2634
  %2639 = vst [vmem:[%s3 + $0x8] sm:$0xff] %v2635
  %2640 = vst [vmem:[%s3 + $0x10] sm:$0xff] %v2636
  %2641 = vst [vmem:[%s3 + $0x18] sm:$0xff] %v2637
  // Predicated region
  $region14: #{_lambda_.25} parent=0 // pred_check
    _
  $region15: #{_lambda_.25} parent=0 // pred_check_branch
    %2643 = sbr.rel (0) target = $region17
  $region16: #{_lambda_.25} parent=0 // pred_region
    _
  $region17: #{_lambda_.25} parent=0 // pred_fallthru
    _
  // Predicated region
  $region18: #{_lambda_.25} parent=0 // pred_check
    _
  $region19: #{_lambda_.25} parent=0 // pred_check_branch
    %2645 = sbr.rel (0) target = $region21
  $region20: #{_lambda_.25} parent=0 // pred_region
    _
  $region21: #{_lambda_.25} parent=0 // pred_fallthru
    _

</llo_original>
